<compile_context>
chip_gen: v5e
topology: v5e:2x2
jax: 0.10.0
libtpu: 0.0.40
codegen_flags: <defaults>
</compile_context>

<pallas_src>
import functools

import jax
import jax.numpy as jnp
import numpy as np
from jax.experimental import pallas as pl
from jax.experimental.pallas import tpu as pltpu


def _xcorr_kernel(z_ref, x_ref, o_ref, *scratch, bn, hz, wz, ho, wo,
                  out_scale, needs_cast):
    # z_ref: (BN, HZ*WZ, C)   x_ref: (BN, H, W, C)   o_ref: (BN, HO, WO)
    # scratch (needs_cast):   xs (H,W,C) f32, zs (HZ*WZ,C) f32, acc (HO,WO,C) f32
    # scratch (f32 inputs):   acc (HO,WO,C) f32
    if needs_cast:
        xs_ref, zs_ref, acc_ref = scratch
    else:
        (acc_ref,) = scratch

    for n in range(bn):
        if needs_cast:
            # Hoisted casts: one pass over x / z per batch element into f32 scratch.
            xs_ref[...] = x_ref[n].astype(jnp.float32)
            zs_ref[...] = z_ref[n].astype(jnp.float32)
            xv, zv = xs_ref, zs_ref
        else:
            # Already f32: slice the VMEM input blocks directly (no copy pass).
            xv, zv = x_ref.at[n], z_ref.at[n]

        # Static unrolled loop over the template window. All operands are small
        # VMEM chunks with C on the lane axis; multiply-add runs on the VPU, the
        # cross-channel reduction happens once after the loop. The first term
        # writes the accumulator directly (saves a zero-fill + add pass).
        for p in range(hz):
            for q in range(wz):
                k = p * wz + q
                win = xv[p:p + ho, q:q + wo, :]                 # (HO, WO, C)
                zrow = zv[k:k + 1, :]                           # (1, C) lane row
                term = win * zrow[None, :, :]
                if k == 0:
                    acc_ref[...] = term
                else:
                    acc_ref[...] += term

        out = jnp.sum(acc_ref[...], axis=-1) * out_scale        # single lane reduce
        o_ref[n] = out.astype(o_ref.dtype)


def _pick_batch_block(nx, block_bytes_per_batch, scratch_bytes,
                      vmem_budget_bytes=24 * 1024 * 1024):
    """Largest BN dividing nx that fits the VMEM budget (double-buffered blocks)
    while keeping >= 2 grid steps so both v7x TensorCores get work."""
    best = 1
    for bn in range(1, nx + 1):
        if nx % bn != 0:
            continue
        if nx >= 2 and nx // bn < 2:
            continue
        if 2 * bn * block_bytes_per_batch + scratch_bytes <= vmem_budget_bytes:
            best = bn
    return best


def siamfc_forward(z, x, out_scale=0.001):
    """Pallas implementation of SiamFC.forward(z, x). Inputs/outputs are NCHW."""
    nz, c, hz, wz = z.shape
    nx, cx, h, w = x.shape
    assert c == cx and nx % nz == 0, "search batch must be a multiple of template batch"
    ho, wo = h - hz + 1, w - wz + 1

    # Channels-last layout so the 128-lane axis carries C; z becomes a matrix of
    # lane-dense (C,) weight rows, one per (p, q) window offset.
    x_nhwc = jnp.transpose(x, (0, 2, 3, 1))                           # (N, H, W, C)
    z_rows = jnp.transpose(z, (0, 2, 3, 1)).reshape(nz, hz * wz, c)   # (NZ, HZ*WZ, C)
    if nz != nx:
        # Grouped-conv pairing: search image b uses template b % nz.
        z_rows = jnp.tile(z_rows, (nx // nz, 1, 1))

    needs_cast = (x.dtype != jnp.float32) or (z.dtype != jnp.float32)

    itemsize = jnp.dtype(x.dtype).itemsize
    block_bytes_per_batch = (h * w * c + hz * wz * c + ho * wo) * itemsize
    scratch_bytes = ho * wo * c * 4
    if needs_cast:
        scratch_bytes += (h * w * c + hz * wz * c) * 4
    bn = _pick_batch_block(nx, block_bytes_per_batch, scratch_bytes)
    grid = (nx // bn,)

    kernel = functools.partial(
        _xcorr_kernel, bn=bn, hz=hz, wz=wz, ho=ho, wo=wo,
        out_scale=float(out_scale), needs_cast=needs_cast)

    scratch_shapes = []
    if needs_cast:
        scratch_shapes += [pltpu.VMEM((h, w, c), jnp.float32),        # cast-hoisted x
                           pltpu.VMEM((hz * wz, c), jnp.float32)]     # cast-hoisted z rows
    scratch_shapes += [pltpu.VMEM((ho, wo, c), jnp.float32)]          # accumulator

    out = pl.pallas_call(
        kernel,
        out_shape=jax.ShapeDtypeStruct((nx, ho, wo), x.dtype),
        grid_spec=pltpu.PrefetchScalarGridSpec(
            num_scalar_prefetch=0,
            grid=grid,
            in_specs=[
                pl.BlockSpec((bn, hz * wz, c), lambda b: (b, 0, 0)),
                pl.BlockSpec((bn, h, w, c), lambda b: (b, 0, 0, 0)),
            ],
            out_specs=pl.BlockSpec((bn, ho, wo), lambda b: (b, 0, 0)),
            scratch_shapes=scratch_shapes),
        compiler_params=pltpu.CompilerParams(
            dimension_semantics=("parallel",),
            vmem_limit_bytes=32 * 1024 * 1024),
    )(z_rows, x_nhwc)

    # Match the PyTorch NCHW output layout (nx, 1, ho, wo).
    return out.reshape(nx, 1, ho, wo)


def siamfc_reference(z, x, out_scale=0.001):
    """Pure-JAX reference mirroring the PyTorch grouped-conv formulation."""
    nz = z.shape[0]
    nx, c, h, w = x.shape
    xr = x.reshape(-1, nz * c, h, w)
    out = jax.lax.conv_general_dilated(
        xr, z, window_strides=(1, 1), padding="VALID",
        dimension_numbers=("NCHW", "OIHW", "NCHW"),
        feature_group_count=nz)
    out = out.reshape(nx, -1, out.shape[-2], out.shape[-1])
    return out * out_scale


if __name__ == "__main__":
    key = jax.random.PRNGKey(0)
    kz, kx = jax.random.split(key)

    # Small shapes consistent with the module: template smaller than search map.
    nz, c = 2, 4
    hz, wz = 6, 6
    h, w = 16, 16

    z = jax.random.normal(kz, (nz, c, hz, wz), dtype=jnp.float32)
    x = jax.random.normal(kx, (nz, c, h, w), dtype=jnp.float32)

    out = siamfc_forward(z, x, out_scale=0.001)
    out = jax.block_until_ready(out)

    ref = jax.block_until_ready(siamfc_reference(z, x, out_scale=0.001))
    assert out.shape == (nz, 1, h - hz + 1, w - wz + 1), out.shape
    np.testing.assert_allclose(np.asarray(out), np.asarray(ref),
                               rtol=1e-5, atol=1e-5)

    print("KERNEL_OK")
</pallas_src>

<mosaic_0001>
module attributes {stable_mosaic.version = 11 : i64} {
  func.func @_xcorr_kernel(%arg0: i32, %arg1: memref<1x36x4xf32, #tpu.memory_space<vmem>>, %arg2: memref<1x16x16x4xf32, #tpu.memory_space<vmem>>, %arg3: memref<1x11x11xf32, #tpu.memory_space<vmem>>, %arg4: memref<11x11x4xf32, #tpu.memory_space<vmem>>) attributes {dimension_semantics = [#tpu.dimension_semantics<parallel>], iteration_bounds = array<i64: 2>, scalar_prefetch = 0 : i64, scratch_operands = 1 : i64, tpu.core_type = #tpu.core_type<tc>, window_params = [{transform_indices = @transform_0, window_bounds = array<i64: 1, 36, 4>}, {transform_indices = @transform_1, window_bounds = array<i64: 1, 16, 16, 4>}, {transform_indices = @transform_2, window_bounds = array<i64: 1, 11, 11>}]} {
    %c0_i32 = arith.constant 0 : i32
    %c0_i32_0 = arith.constant 0 : i32
    %c0_i32_1 = arith.constant 0 : i32
    %c0_i32_2 = arith.constant 0 : i32
    %0 = tpu.memref_slice %arg2[%c0_i32, %c0_i32_0, %c0_i32_1, %c0_i32_2] : memref<1x16x16x4xf32, #tpu.memory_space<vmem>> -> memref<1x16x16x4xf32, #tpu.memory_space<vmem>>
    %1 = tpu.memref_squeeze %0 : memref<1x16x16x4xf32, #tpu.memory_space<vmem>> -> memref<16x16x4xf32, #tpu.memory_space<vmem>>
    %c0 = arith.constant 0 : index
    %c0_3 = arith.constant 0 : index
    %c0_4 = arith.constant 0 : index
    %2 = vector.load %1[%c0, %c0_3, %c0_4] : memref<16x16x4xf32, #tpu.memory_space<vmem>>, vector<11x11x4xf32>
    %c0_i32_5 = arith.constant 0 : i32
    %c0_i32_6 = arith.constant 0 : i32
    %c0_i32_7 = arith.constant 0 : i32
    %3 = tpu.memref_slice %arg1[%c0_i32_5, %c0_i32_6, %c0_i32_7] : memref<1x36x4xf32, #tpu.memory_space<vmem>> -> memref<1x36x4xf32, #tpu.memory_space<vmem>>
    %4 = tpu.memref_squeeze %3 : memref<1x36x4xf32, #tpu.memory_space<vmem>> -> memref<36x4xf32, #tpu.memory_space<vmem>>
    %c0_8 = arith.constant 0 : index
    %c0_9 = arith.constant 0 : index
    %5 = vector.load %4[%c0_8, %c0_9] : memref<36x4xf32, #tpu.memory_space<vmem>>, vector<1x4xf32>
    %6 = vector.shape_cast %5 : vector<1x4xf32> to vector<1x1x4xf32>
    %7 = vector.broadcast %6 : vector<1x1x4xf32> to vector<11x11x4xf32>
    %8 = arith.mulf %2, %7 : vector<11x11x4xf32>
    %c0_10 = arith.constant 0 : index
    %c0_11 = arith.constant 0 : index
    %c0_12 = arith.constant 0 : index
    %9 = vector.load %arg4[%c0_10, %c0_11, %c0_12] : memref<11x11x4xf32, #tpu.memory_space<vmem>>, vector<11x11x4xf32>
    tpu.vector_store %arg4[%c0_10, %c0_11, %c0_12], %8 {strides = array<i32>} : memref<11x11x4xf32, #tpu.memory_space<vmem>>, vector<11x11x4xf32>,
    %c0_i32_13 = arith.constant 0 : i32
    %c0_i32_14 = arith.constant 0 : i32
    %c0_i32_15 = arith.constant 0 : i32
    %c0_i32_16 = arith.constant 0 : i32
    %10 = tpu.memref_slice %arg2[%c0_i32_13, %c0_i32_14, %c0_i32_15, %c0_i32_16] : memref<1x16x16x4xf32, #tpu.memory_space<vmem>> -> memref<1x16x16x4xf32, #tpu.memory_space<vmem>>
    %11 = tpu.memref_squeeze %10 : memref<1x16x16x4xf32, #tpu.memory_space<vmem>> -> memref<16x16x4xf32, #tpu.memory_space<vmem>>
    %c0_17 = arith.constant 0 : index
    %c1 = arith.constant 1 : index
    %c0_18 = arith.constant 0 : index
    %12 = vector.load %11[%c0_17, %c1, %c0_18] : memref<16x16x4xf32, #tpu.memory_space<vmem>>, vector<11x11x4xf32>
    %c0_i32_19 = arith.constant 0 : i32
    %c0_i32_20 = arith.constant 0 : i32
    %c0_i32_21 = arith.constant 0 : i32
    %13 = tpu.memref_slice %arg1[%c0_i32_19, %c0_i32_20, %c0_i32_21] : memref<1x36x4xf32, #tpu.memory_space<vmem>> -> memref<1x36x4xf32, #tpu.memory_space<vmem>>
    %14 = tpu.memref_squeeze %13 : memref<1x36x4xf32, #tpu.memory_space<vmem>> -> memref<36x4xf32, #tpu.memory_space<vmem>>
    %c1_22 = arith.constant 1 : index
    %c0_23 = arith.constant 0 : index
    %15 = vector.load %14[%c1_22, %c0_23] : memref<36x4xf32, #tpu.memory_space<vmem>>, vector<1x4xf32>
    %16 = vector.shape_cast %15 : vector<1x4xf32> to vector<1x1x4xf32>
    %17 = vector.broadcast %16 : vector<1x1x4xf32> to vector<11x11x4xf32>
    %18 = arith.mulf %12, %17 : vector<11x11x4xf32>
    %c0_24 = arith.constant 0 : index
    %c0_25 = arith.constant 0 : index
    %c0_26 = arith.constant 0 : index
    %19 = vector.load %arg4[%c0_24, %c0_25, %c0_26] : memref<11x11x4xf32, #tpu.memory_space<vmem>>, vector<11x11x4xf32>
    %20 = arith.addf %19, %18 : vector<11x11x4xf32>
    %c0_27 = arith.constant 0 : index
    %c0_28 = arith.constant 0 : index
    %c0_29 = arith.constant 0 : index
    %21 = vector.load %arg4[%c0_27, %c0_28, %c0_29] : memref<11x11x4xf32, #tpu.memory_space<vmem>>, vector<11x11x4xf32>
    tpu.vector_store %arg4[%c0_27, %c0_28, %c0_29], %20 {strides = array<i32>} : memref<11x11x4xf32, #tpu.memory_space<vmem>>, vector<11x11x4xf32>,
    %c0_i32_30 = arith.constant 0 : i32
    %c0_i32_31 = arith.constant 0 : i32
    %c0_i32_32 = arith.constant 0 : i32
    %c0_i32_33 = arith.constant 0 : i32
    %22 = tpu.memref_slice %arg2[%c0_i32_30, %c0_i32_31, %c0_i32_32, %c0_i32_33] : memref<1x16x16x4xf32, #tpu.memory_space<vmem>> -> memref<1x16x16x4xf32, #tpu.memory_space<vmem>>
    %23 = tpu.memref_squeeze %22 : memref<1x16x16x4xf32, #tpu.memory_space<vmem>> -> memref<16x16x4xf32, #tpu.memory_space<vmem>>
    %c0_34 = arith.constant 0 : index
    %c2 = arith.constant 2 : index
    %c0_35 = arith.constant 0 : index
    %24 = vector.load %23[%c0_34, %c2, %c0_35] : memref<16x16x4xf32, #tpu.memory_space<vmem>>, vector<11x11x4xf32>
    %c0_i32_36 = arith.constant 0 : i32
    %c0_i32_37 = arith.constant 0 : i32
    %c0_i32_38 = arith.constant 0 : i32
    %25 = tpu.memref_slice %arg1[%c0_i32_36, %c0_i32_37, %c0_i32_38] : memref<1x36x4xf32, #tpu.memory_space<vmem>> -> memref<1x36x4xf32, #tpu.memory_space<vmem>>
    %26 = tpu.memref_squeeze %25 : memref<1x36x4xf32, #tpu.memory_space<vmem>> -> memref<36x4xf32, #tpu.memory_space<vmem>>
    %c2_39 = arith.constant 2 : index
    %c0_40 = arith.constant 0 : index
    %27 = vector.load %26[%c2_39, %c0_40] : memref<36x4xf32, #tpu.memory_space<vmem>>, vector<1x4xf32>
    %28 = vector.shape_cast %27 : vector<1x4xf32> to vector<1x1x4xf32>
    %29 = vector.broadcast %28 : vector<1x1x4xf32> to vector<11x11x4xf32>
    %30 = arith.mulf %24, %29 : vector<11x11x4xf32>
    %c0_41 = arith.constant 0 : index
    %c0_42 = arith.constant 0 : index
    %c0_43 = arith.constant 0 : index
    %31 = vector.load %arg4[%c0_41, %c0_42, %c0_43] : memref<11x11x4xf32, #tpu.memory_space<vmem>>, vector<11x11x4xf32>
    %32 = arith.addf %31, %30 : vector<11x11x4xf32>
    %c0_44 = arith.constant 0 : index
    %c0_45 = arith.constant 0 : index
    %c0_46 = arith.constant 0 : index
    %33 = vector.load %arg4[%c0_44, %c0_45, %c0_46] : memref<11x11x4xf32, #tpu.memory_space<vmem>>, vector<11x11x4xf32>
    tpu.vector_store %arg4[%c0_44, %c0_45, %c0_46], %32 {strides = array<i32>} : memref<11x11x4xf32, #tpu.memory_space<vmem>>, vector<11x11x4xf32>,
    %c0_i32_47 = arith.constant 0 : i32
    %c0_i32_48 = arith.constant 0 : i32
    %c0_i32_49 = arith.constant 0 : i32
    %c0_i32_50 = arith.constant 0 : i32
    %34 = tpu.memref_slice %arg2[%c0_i32_47, %c0_i32_48, %c0_i32_49, %c0_i32_50] : memref<1x16x16x4xf32, #tpu.memory_space<vmem>> -> memref<1x16x16x4xf32, #tpu.memory_space<vmem>>
    %35 = tpu.memref_squeeze %34 : memref<1x16x16x4xf32, #tpu.memory_space<vmem>> -> memref<16x16x4xf32, #tpu.memory_space<vmem>>
    %c0_51 = arith.constant 0 : index
    %c3 = arith.constant 3 : index
    %c0_52 = arith.constant 0 : index
    %36 = vector.load %35[%c0_51, %c3, %c0_52] : memref<16x16x4xf32, #tpu.memory_space<vmem>>, vector<11x11x4xf32>
    %c0_i32_53 = arith.constant 0 : i32
    %c0_i32_54 = arith.constant 0 : i32
    %c0_i32_55 = arith.constant 0 : i32
    %37 = tpu.memref_slice %arg1[%c0_i32_53, %c0_i32_54, %c0_i32_55] : memref<1x36x4xf32, #tpu.memory_space<vmem>> -> memref<1x36x4xf32, #tpu.memory_space<vmem>>
    %38 = tpu.memref_squeeze %37 : memref<1x36x4xf32, #tpu.memory_space<vmem>> -> memref<36x4xf32, #tpu.memory_space<vmem>>
    %c3_56 = arith.constant 3 : index
    %c0_57 = arith.constant 0 : index
    %39 = vector.load %38[%c3_56, %c0_57] : memref<36x4xf32, #tpu.memory_space<vmem>>, vector<1x4xf32>
    %40 = vector.shape_cast %39 : vector<1x4xf32> to vector<1x1x4xf32>
    %41 = vector.broadcast %40 : vector<1x1x4xf32> to vector<11x11x4xf32>
    %42 = arith.mulf %36, %41 : vector<11x11x4xf32>
    %c0_58 = arith.constant 0 : index
    %c0_59 = arith.constant 0 : index
    %c0_60 = arith.constant 0 : index
    %43 = vector.load %arg4[%c0_58, %c0_59, %c0_60] : memref<11x11x4xf32, #tpu.memory_space<vmem>>, vector<11x11x4xf32>
    %44 = arith.addf %43, %42 : vector<11x11x4xf32>
    %c0_61 = arith.constant 0 : index
    %c0_62 = arith.constant 0 : index
    %c0_63 = arith.constant 0 : index
    %45 = vector.load %arg4[%c0_61, %c0_62, %c0_63] : memref<11x11x4xf32, #tpu.memory_space<vmem>>, vector<11x11x4xf32>
    tpu.vector_store %arg4[%c0_61, %c0_62, %c0_63], %44 {strides = array<i32>} : memref<11x11x4xf32, #tpu.memory_space<vmem>>, vector<11x11x4xf32>,
    %c0_i32_64 = arith.constant 0 : i32
    %c0_i32_65 = arith.constant 0 : i32
    %c0_i32_66 = arith.constant 0 : i32
    %c0_i32_67 = arith.constant 0 : i32
    %46 = tpu.memref_slice %arg2[%c0_i32_64, %c0_i32_65, %c0_i32_66, %c0_i32_67] : memref<1x16x16x4xf32, #tpu.memory_space<vmem>> -> memref<1x16x16x4xf32, #tpu.memory_space<vmem>>
    %47 = tpu.memref_squeeze %46 : memref<1x16x16x4xf32, #tpu.memory_space<vmem>> -> memref<16x16x4xf32, #tpu.memory_space<vmem>>
    %c0_68 = arith.constant 0 : index
    %c4 = arith.constant 4 : index
    %c0_69 = arith.constant 0 : index
    %48 = vector.load %47[%c0_68, %c4, %c0_69] : memref<16x16x4xf32, #tpu.memory_space<vmem>>, vector<11x11x4xf32>
    %c0_i32_70 = arith.constant 0 : i32
    %c0_i32_71 = arith.constant 0 : i32
    %c0_i32_72 = arith.constant 0 : i32
    %49 = tpu.memref_slice %arg1[%c0_i32_70, %c0_i32_71, %c0_i32_72] : memref<1x36x4xf32, #tpu.memory_space<vmem>> -> memref<1x36x4xf32, #tpu.memory_space<vmem>>
    %50 = tpu.memref_squeeze %49 : memref<1x36x4xf32, #tpu.memory_space<vmem>> -> memref<36x4xf32, #tpu.memory_space<vmem>>
    %c4_73 = arith.constant 4 : index
    %c0_74 = arith.constant 0 : index
    %51 = vector.load %50[%c4_73, %c0_74] : memref<36x4xf32, #tpu.memory_space<vmem>>, vector<1x4xf32>
    %52 = vector.shape_cast %51 : vector<1x4xf32> to vector<1x1x4xf32>
    %53 = vector.broadcast %52 : vector<1x1x4xf32> to vector<11x11x4xf32>
    %54 = arith.mulf %48, %53 : vector<11x11x4xf32>
    %c0_75 = arith.constant 0 : index
    %c0_76 = arith.constant 0 : index
    %c0_77 = arith.constant 0 : index
    %55 = vector.load %arg4[%c0_75, %c0_76, %c0_77] : memref<11x11x4xf32, #tpu.memory_space<vmem>>, vector<11x11x4xf32>
    %56 = arith.addf %55, %54 : vector<11x11x4xf32>
    %c0_78 = arith.constant 0 : index
    %c0_79 = arith.constant 0 : index
    %c0_80 = arith.constant 0 : index
    %57 = vector.load %arg4[%c0_78, %c0_79, %c0_80] : memref<11x11x4xf32, #tpu.memory_space<vmem>>, vector<11x11x4xf32>
    tpu.vector_store %arg4[%c0_78, %c0_79, %c0_80], %56 {strides = array<i32>} : memref<11x11x4xf32, #tpu.memory_space<vmem>>, vector<11x11x4xf32>,
    %c0_i32_81 = arith.constant 0 : i32
    %c0_i32_82 = arith.constant 0 : i32
    %c0_i32_83 = arith.constant 0 : i32
    %c0_i32_84 = arith.constant 0 : i32
    %58 = tpu.memref_slice %arg2[%c0_i32_81, %c0_i32_82, %c0_i32_83, %c0_i32_84] : memref<1x16x16x4xf32, #tpu.memory_space<vmem>> -> memref<1x16x16x4xf32, #tpu.memory_space<vmem>>
    %59 = tpu.memref_squeeze %58 : memref<1x16x16x4xf32, #tpu.memory_space<vmem>> -> memref<16x16x4xf32, #tpu.memory_space<vmem>>
    %c0_85 = arith.constant 0 : index
    %c5 = arith.constant 5 : index
    %c0_86 = arith.constant 0 : index
    %60 = vector.load %59[%c0_85, %c5, %c0_86] : memref<16x16x4xf32, #tpu.memory_space<vmem>>, vector<11x11x4xf32>
    %c0_i32_87 = arith.constant 0 : i32
    %c0_i32_88 = arith.constant 0 : i32
    %c0_i32_89 = arith.constant 0 : i32
    %61 = tpu.memref_slice %arg1[%c0_i32_87, %c0_i32_88, %c0_i32_89] : memref<1x36x4xf32, #tpu.memory_space<vmem>> -> memref<1x36x4xf32, #tpu.memory_space<vmem>>
    %62 = tpu.memref_squeeze %61 : memref<1x36x4xf32, #tpu.memory_space<vmem>> -> memref<36x4xf32, #tpu.memory_space<vmem>>
    %c5_90 = arith.constant 5 : index
    %c0_91 = arith.constant 0 : index
    %63 = vector.load %62[%c5_90, %c0_91] : memref<36x4xf32, #tpu.memory_space<vmem>>, vector<1x4xf32>
    %64 = vector.shape_cast %63 : vector<1x4xf32> to vector<1x1x4xf32>
    %65 = vector.broadcast %64 : vector<1x1x4xf32> to vector<11x11x4xf32>
    %66 = arith.mulf %60, %65 : vector<11x11x4xf32>
    %c0_92 = arith.constant 0 : index
    %c0_93 = arith.constant 0 : index
    %c0_94 = arith.constant 0 : index
    %67 = vector.load %arg4[%c0_92, %c0_93, %c0_94] : memref<11x11x4xf32, #tpu.memory_space<vmem>>, vector<11x11x4xf32>
    %68 = arith.addf %67, %66 : vector<11x11x4xf32>
    %c0_95 = arith.constant 0 : index
    %c0_96 = arith.constant 0 : index
    %c0_97 = arith.constant 0 : index
    %69 = vector.load %arg4[%c0_95, %c0_96, %c0_97] : memref<11x11x4xf32, #tpu.memory_space<vmem>>, vector<11x11x4xf32>
    tpu.vector_store %arg4[%c0_95, %c0_96, %c0_97], %68 {strides = array<i32>} : memref<11x11x4xf32, #tpu.memory_space<vmem>>, vector<11x11x4xf32>,
    %c0_i32_98 = arith.constant 0 : i32
    %c0_i32_99 = arith.constant 0 : i32
    %c0_i32_100 = arith.constant 0 : i32
    %c0_i32_101 = arith.constant 0 : i32
    %70 = tpu.memref_slice %arg2[%c0_i32_98, %c0_i32_99, %c0_i32_100, %c0_i32_101] : memref<1x16x16x4xf32, #tpu.memory_space<vmem>> -> memref<1x16x16x4xf32, #tpu.memory_space<vmem>>
    %71 = tpu.memref_squeeze %70 : memref<1x16x16x4xf32, #tpu.memory_space<vmem>> -> memref<16x16x4xf32, #tpu.memory_space<vmem>>
    %c1_102 = arith.constant 1 : index
    %c0_103 = arith.constant 0 : index
    %c0_104 = arith.constant 0 : index
    %72 = vector.load %71[%c1_102, %c0_103, %c0_104] : memref<16x16x4xf32, #tpu.memory_space<vmem>>, vector<11x11x4xf32>
    %c0_i32_105 = arith.constant 0 : i32
    %c0_i32_106 = arith.constant 0 : i32
    %c0_i32_107 = arith.constant 0 : i32
    %73 = tpu.memref_slice %arg1[%c0_i32_105, %c0_i32_106, %c0_i32_107] : memref<1x36x4xf32, #tpu.memory_space<vmem>> -> memref<1x36x4xf32, #tpu.memory_space<vmem>>
    %74 = tpu.memref_squeeze %73 : memref<1x36x4xf32, #tpu.memory_space<vmem>> -> memref<36x4xf32, #tpu.memory_space<vmem>>
    %c6 = arith.constant 6 : index
    %c0_108 = arith.constant 0 : index
    %75 = vector.load %74[%c6, %c0_108] : memref<36x4xf32, #tpu.memory_space<vmem>>, vector<1x4xf32>
    %76 = vector.shape_cast %75 : vector<1x4xf32> to vector<1x1x4xf32>
    %77 = vector.broadcast %76 : vector<1x1x4xf32> to vector<11x11x4xf32>
    %78 = arith.mulf %72, %77 : vector<11x11x4xf32>
    %c0_109 = arith.constant 0 : index
    %c0_110 = arith.constant 0 : index
    %c0_111 = arith.constant 0 : index
    %79 = vector.load %arg4[%c0_109, %c0_110, %c0_111] : memref<11x11x4xf32, #tpu.memory_space<vmem>>, vector<11x11x4xf32>
    %80 = arith.addf %79, %78 : vector<11x11x4xf32>
    %c0_112 = arith.constant 0 : index
    %c0_113 = arith.constant 0 : index
    %c0_114 = arith.constant 0 : index
    %81 = vector.load %arg4[%c0_112, %c0_113, %c0_114] : memref<11x11x4xf32, #tpu.memory_space<vmem>>, vector<11x11x4xf32>
    tpu.vector_store %arg4[%c0_112, %c0_113, %c0_114], %80 {strides = array<i32>} : memref<11x11x4xf32, #tpu.memory_space<vmem>>, vector<11x11x4xf32>,
    %c0_i32_115 = arith.constant 0 : i32
    %c0_i32_116 = arith.constant 0 : i32
    %c0_i32_117 = arith.constant 0 : i32
    %c0_i32_118 = arith.constant 0 : i32
    %82 = tpu.memref_slice %arg2[%c0_i32_115, %c0_i32_116, %c0_i32_117, %c0_i32_118] : memref<1x16x16x4xf32, #tpu.memory_space<vmem>> -> memref<1x16x16x4xf32, #tpu.memory_space<vmem>>
    %83 = tpu.memref_squeeze %82 : memref<1x16x16x4xf32, #tpu.memory_space<vmem>> -> memref<16x16x4xf32, #tpu.memory_space<vmem>>
    %c1_119 = arith.constant 1 : index
    %c1_120 = arith.constant 1 : index
    %c0_121 = arith.constant 0 : index
    %84 = vector.load %83[%c1_119, %c1_120, %c0_121] : memref<16x16x4xf32, #tpu.memory_space<vmem>>, vector<11x11x4xf32>
    %c0_i32_122 = arith.constant 0 : i32
    %c0_i32_123 = arith.constant 0 : i32
    %c0_i32_124 = arith.constant 0 : i32
    %85 = tpu.memref_slice %arg1[%c0_i32_122, %c0_i32_123, %c0_i32_124] : memref<1x36x4xf32, #tpu.memory_space<vmem>> -> memref<1x36x4xf32, #tpu.memory_space<vmem>>
    %86 = tpu.memref_squeeze %85 : memref<1x36x4xf32, #tpu.memory_space<vmem>> -> memref<36x4xf32, #tpu.memory_space<vmem>>
    %c7 = arith.constant 7 : index
    %c0_125 = arith.constant 0 : index
    %87 = vector.load %86[%c7, %c0_125] : memref<36x4xf32, #tpu.memory_space<vmem>>, vector<1x4xf32>
    %88 = vector.shape_cast %87 : vector<1x4xf32> to vector<1x1x4xf32>
    %89 = vector.broadcast %88 : vector<1x1x4xf32> to vector<11x11x4xf32>
    %90 = arith.mulf %84, %89 : vector<11x11x4xf32>
    %c0_126 = arith.constant 0 : index
    %c0_127 = arith.constant 0 : index
    %c0_128 = arith.constant 0 : index
    %91 = vector.load %arg4[%c0_126, %c0_127, %c0_128] : memref<11x11x4xf32, #tpu.memory_space<vmem>>, vector<11x11x4xf32>
    %92 = arith.addf %91, %90 : vector<11x11x4xf32>
    %c0_129 = arith.constant 0 : index
    %c0_130 = arith.constant 0 : index
    %c0_131 = arith.constant 0 : index
    %93 = vector.load %arg4[%c0_129, %c0_130, %c0_131] : memref<11x11x4xf32, #tpu.memory_space<vmem>>, vector<11x11x4xf32>
    tpu.vector_store %arg4[%c0_129, %c0_130, %c0_131], %92 {strides = array<i32>} : memref<11x11x4xf32, #tpu.memory_space<vmem>>, vector<11x11x4xf32>,
    %c0_i32_132 = arith.constant 0 : i32
    %c0_i32_133 = arith.constant 0 : i32
    %c0_i32_134 = arith.constant 0 : i32
    %c0_i32_135 = arith.constant 0 : i32
    %94 = tpu.memref_slice %arg2[%c0_i32_132, %c0_i32_133, %c0_i32_134, %c0_i32_135] : memref<1x16x16x4xf32, #tpu.memory_space<vmem>> -> memref<1x16x16x4xf32, #tpu.memory_space<vmem>>
    %95 = tpu.memref_squeeze %94 : memref<1x16x16x4xf32, #tpu.memory_space<vmem>> -> memref<16x16x4xf32, #tpu.memory_space<vmem>>
    %c1_136 = arith.constant 1 : index
    %c2_137 = arith.constant 2 : index
    %c0_138 = arith.constant 0 : index
    %96 = vector.load %95[%c1_136, %c2_137, %c0_138] : memref<16x16x4xf32, #tpu.memory_space<vmem>>, vector<11x11x4xf32>
    %c0_i32_139 = arith.constant 0 : i32
    %c0_i32_140 = arith.constant 0 : i32
    %c0_i32_141 = arith.constant 0 : i32
    %97 = tpu.memref_slice %arg1[%c0_i32_139, %c0_i32_140, %c0_i32_141] : memref<1x36x4xf32, #tpu.memory_space<vmem>> -> memref<1x36x4xf32, #tpu.memory_space<vmem>>
    %98 = tpu.memref_squeeze %97 : memref<1x36x4xf32, #tpu.memory_space<vmem>> -> memref<36x4xf32, #tpu.memory_space<vmem>>
    %c8 = arith.constant 8 : index
    %c0_142 = arith.constant 0 : index
    %99 = vector.load %98[%c8, %c0_142] : memref<36x4xf32, #tpu.memory_space<vmem>>, vector<1x4xf32>
    %100 = vector.shape_cast %99 : vector<1x4xf32> to vector<1x1x4xf32>
    %101 = vector.broadcast %100 : vector<1x1x4xf32> to vector<11x11x4xf32>
    %102 = arith.mulf %96, %101 : vector<11x11x4xf32>
    %c0_143 = arith.constant 0 : index
    %c0_144 = arith.constant 0 : index
    %c0_145 = arith.constant 0 : index
    %103 = vector.load %arg4[%c0_143, %c0_144, %c0_145] : memref<11x11x4xf32, #tpu.memory_space<vmem>>, vector<11x11x4xf32>
    %104 = arith.addf %103, %102 : vector<11x11x4xf32>
    %c0_146 = arith.constant 0 : index
    %c0_147 = arith.constant 0 : index
    %c0_148 = arith.constant 0 : index
    %105 = vector.load %arg4[%c0_146, %c0_147, %c0_148] : memref<11x11x4xf32, #tpu.memory_space<vmem>>, vector<11x11x4xf32>
    tpu.vector_store %arg4[%c0_146, %c0_147, %c0_148], %104 {strides = array<i32>} : memref<11x11x4xf32, #tpu.memory_space<vmem>>, vector<11x11x4xf32>,
    %c0_i32_149 = arith.constant 0 : i32
    %c0_i32_150 = arith.constant 0 : i32
    %c0_i32_151 = arith.constant 0 : i32
    %c0_i32_152 = arith.constant 0 : i32
    %106 = tpu.memref_slice %arg2[%c0_i32_149, %c0_i32_150, %c0_i32_151, %c0_i32_152] : memref<1x16x16x4xf32, #tpu.memory_space<vmem>> -> memref<1x16x16x4xf32, #tpu.memory_space<vmem>>
    %107 = tpu.memref_squeeze %106 : memref<1x16x16x4xf32, #tpu.memory_space<vmem>> -> memref<16x16x4xf32, #tpu.memory_space<vmem>>
    %c1_153 = arith.constant 1 : index
    %c3_154 = arith.constant 3 : index
    %c0_155 = arith.constant 0 : index
    %108 = vector.load %107[%c1_153, %c3_154, %c0_155] : memref<16x16x4xf32, #tpu.memory_space<vmem>>, vector<11x11x4xf32>
    %c0_i32_156 = arith.constant 0 : i32
    %c0_i32_157 = arith.constant 0 : i32
    %c0_i32_158 = arith.constant 0 : i32
    %109 = tpu.memref_slice %arg1[%c0_i32_156, %c0_i32_157, %c0_i32_158] : memref<1x36x4xf32, #tpu.memory_space<vmem>> -> memref<1x36x4xf32, #tpu.memory_space<vmem>>
    %110 = tpu.memref_squeeze %109 : memref<1x36x4xf32, #tpu.memory_space<vmem>> -> memref<36x4xf32, #tpu.memory_space<vmem>>
    %c9 = arith.constant 9 : index
    %c0_159 = arith.constant 0 : index
    %111 = vector.load %110[%c9, %c0_159] : memref<36x4xf32, #tpu.memory_space<vmem>>, vector<1x4xf32>
    %112 = vector.shape_cast %111 : vector<1x4xf32> to vector<1x1x4xf32>
    %113 = vector.broadcast %112 : vector<1x1x4xf32> to vector<11x11x4xf32>
    %114 = arith.mulf %108, %113 : vector<11x11x4xf32>
    %c0_160 = arith.constant 0 : index
    %c0_161 = arith.constant 0 : index
    %c0_162 = arith.constant 0 : index
    %115 = vector.load %arg4[%c0_160, %c0_161, %c0_162] : memref<11x11x4xf32, #tpu.memory_space<vmem>>, vector<11x11x4xf32>
    %116 = arith.addf %115, %114 : vector<11x11x4xf32>
    %c0_163 = arith.constant 0 : index
    %c0_164 = arith.constant 0 : index
    %c0_165 = arith.constant 0 : index
    %117 = vector.load %arg4[%c0_163, %c0_164, %c0_165] : memref<11x11x4xf32, #tpu.memory_space<vmem>>, vector<11x11x4xf32>
    tpu.vector_store %arg4[%c0_163, %c0_164, %c0_165], %116 {strides = array<i32>} : memref<11x11x4xf32, #tpu.memory_space<vmem>>, vector<11x11x4xf32>,
    %c0_i32_166 = arith.constant 0 : i32
    %c0_i32_167 = arith.constant 0 : i32
    %c0_i32_168 = arith.constant 0 : i32
    %c0_i32_169 = arith.constant 0 : i32
    %118 = tpu.memref_slice %arg2[%c0_i32_166, %c0_i32_167, %c0_i32_168, %c0_i32_169] : memref<1x16x16x4xf32, #tpu.memory_space<vmem>> -> memref<1x16x16x4xf32, #tpu.memory_space<vmem>>
    %119 = tpu.memref_squeeze %118 : memref<1x16x16x4xf32, #tpu.memory_space<vmem>> -> memref<16x16x4xf32, #tpu.memory_space<vmem>>
    %c1_170 = arith.constant 1 : index
    %c4_171 = arith.constant 4 : index
    %c0_172 = arith.constant 0 : index
    %120 = vector.load %119[%c1_170, %c4_171, %c0_172] : memref<16x16x4xf32, #tpu.memory_space<vmem>>, vector<11x11x4xf32>
    %c0_i32_173 = arith.constant 0 : i32
    %c0_i32_174 = arith.constant 0 : i32
    %c0_i32_175 = arith.constant 0 : i32
    %121 = tpu.memref_slice %arg1[%c0_i32_173, %c0_i32_174, %c0_i32_175] : memref<1x36x4xf32, #tpu.memory_space<vmem>> -> memref<1x36x4xf32, #tpu.memory_space<vmem>>
    %122 = tpu.memref_squeeze %121 : memref<1x36x4xf32, #tpu.memory_space<vmem>> -> memref<36x4xf32, #tpu.memory_space<vmem>>
    %c10 = arith.constant 10 : index
    %c0_176 = arith.constant 0 : index
    %123 = vector.load %122[%c10, %c0_176] : memref<36x4xf32, #tpu.memory_space<vmem>>, vector<1x4xf32>
    %124 = vector.shape_cast %123 : vector<1x4xf32> to vector<1x1x4xf32>
    %125 = vector.broadcast %124 : vector<1x1x4xf32> to vector<11x11x4xf32>
    %126 = arith.mulf %120, %125 : vector<11x11x4xf32>
    %c0_177 = arith.constant 0 : index
    %c0_178 = arith.constant 0 : index
    %c0_179 = arith.constant 0 : index
    %127 = vector.load %arg4[%c0_177, %c0_178, %c0_179] : memref<11x11x4xf32, #tpu.memory_space<vmem>>, vector<11x11x4xf32>
    %128 = arith.addf %127, %126 : vector<11x11x4xf32>
    %c0_180 = arith.constant 0 : index
    %c0_181 = arith.constant 0 : index
    %c0_182 = arith.constant 0 : index
    %129 = vector.load %arg4[%c0_180, %c0_181, %c0_182] : memref<11x11x4xf32, #tpu.memory_space<vmem>>, vector<11x11x4xf32>
    tpu.vector_store %arg4[%c0_180, %c0_181, %c0_182], %128 {strides = array<i32>} : memref<11x11x4xf32, #tpu.memory_space<vmem>>, vector<11x11x4xf32>,
    %c0_i32_183 = arith.constant 0 : i32
    %c0_i32_184 = arith.constant 0 : i32
    %c0_i32_185 = arith.constant 0 : i32
    %c0_i32_186 = arith.constant 0 : i32
    %130 = tpu.memref_slice %arg2[%c0_i32_183, %c0_i32_184, %c0_i32_185, %c0_i32_186] : memref<1x16x16x4xf32, #tpu.memory_space<vmem>> -> memref<1x16x16x4xf32, #tpu.memory_space<vmem>>
    %131 = tpu.memref_squeeze %130 : memref<1x16x16x4xf32, #tpu.memory_space<vmem>> -> memref<16x16x4xf32, #tpu.memory_space<vmem>>
    %c1_187 = arith.constant 1 : index
    %c5_188 = arith.constant 5 : index
    %c0_189 = arith.constant 0 : index
    %132 = vector.load %131[%c1_187, %c5_188, %c0_189] : memref<16x16x4xf32, #tpu.memory_space<vmem>>, vector<11x11x4xf32>
    %c0_i32_190 = arith.constant 0 : i32
    %c0_i32_191 = arith.constant 0 : i32
    %c0_i32_192 = arith.constant 0 : i32
    %133 = tpu.memref_slice %arg1[%c0_i32_190, %c0_i32_191, %c0_i32_192] : memref<1x36x4xf32, #tpu.memory_space<vmem>> -> memref<1x36x4xf32, #tpu.memory_space<vmem>>
    %134 = tpu.memref_squeeze %133 : memref<1x36x4xf32, #tpu.memory_space<vmem>> -> memref<36x4xf32, #tpu.memory_space<vmem>>
    %c11 = arith.constant 11 : index
    %c0_193 = arith.constant 0 : index
    %135 = vector.load %134[%c11, %c0_193] : memref<36x4xf32, #tpu.memory_space<vmem>>, vector<1x4xf32>
    %136 = vector.shape_cast %135 : vector<1x4xf32> to vector<1x1x4xf32>
    %137 = vector.broadcast %136 : vector<1x1x4xf32> to vector<11x11x4xf32>
    %138 = arith.mulf %132, %137 : vector<11x11x4xf32>
    %c0_194 = arith.constant 0 : index
    %c0_195 = arith.constant 0 : index
    %c0_196 = arith.constant 0 : index
    %139 = vector.load %arg4[%c0_194, %c0_195, %c0_196] : memref<11x11x4xf32, #tpu.memory_space<vmem>>, vector<11x11x4xf32>
    %140 = arith.addf %139, %138 : vector<11x11x4xf32>
    %c0_197 = arith.constant 0 : index
    %c0_198 = arith.constant 0 : index
    %c0_199 = arith.constant 0 : index
    %141 = vector.load %arg4[%c0_197, %c0_198, %c0_199] : memref<11x11x4xf32, #tpu.memory_space<vmem>>, vector<11x11x4xf32>
    tpu.vector_store %arg4[%c0_197, %c0_198, %c0_199], %140 {strides = array<i32>} : memref<11x11x4xf32, #tpu.memory_space<vmem>>, vector<11x11x4xf32>,
    %c0_i32_200 = arith.constant 0 : i32
    %c0_i32_201 = arith.constant 0 : i32
    %c0_i32_202 = arith.constant 0 : i32
    %c0_i32_203 = arith.constant 0 : i32
    %142 = tpu.memref_slice %arg2[%c0_i32_200, %c0_i32_201, %c0_i32_202, %c0_i32_203] : memref<1x16x16x4xf32, #tpu.memory_space<vmem>> -> memref<1x16x16x4xf32, #tpu.memory_space<vmem>>
    %143 = tpu.memref_squeeze %142 : memref<1x16x16x4xf32, #tpu.memory_space<vmem>> -> memref<16x16x4xf32, #tpu.memory_space<vmem>>
    %c2_204 = arith.constant 2 : index
    %c0_205 = arith.constant 0 : index
    %c0_206 = arith.constant 0 : index
    %144 = vector.load %143[%c2_204, %c0_205, %c0_206] : memref<16x16x4xf32, #tpu.memory_space<vmem>>, vector<11x11x4xf32>
    %c0_i32_207 = arith.constant 0 : i32
    %c0_i32_208 = arith.constant 0 : i32
    %c0_i32_209 = arith.constant 0 : i32
    %145 = tpu.memref_slice %arg1[%c0_i32_207, %c0_i32_208, %c0_i32_209] : memref<1x36x4xf32, #tpu.memory_space<vmem>> -> memref<1x36x4xf32, #tpu.memory_space<vmem>>
    %146 = tpu.memref_squeeze %145 : memref<1x36x4xf32, #tpu.memory_space<vmem>> -> memref<36x4xf32, #tpu.memory_space<vmem>>
    %c12 = arith.constant 12 : index
    %c0_210 = arith.constant 0 : index
    %147 = vector.load %146[%c12, %c0_210] : memref<36x4xf32, #tpu.memory_space<vmem>>, vector<1x4xf32>
    %148 = vector.shape_cast %147 : vector<1x4xf32> to vector<1x1x4xf32>
    %149 = vector.broadcast %148 : vector<1x1x4xf32> to vector<11x11x4xf32>
    %150 = arith.mulf %144, %149 : vector<11x11x4xf32>
    %c0_211 = arith.constant 0 : index
    %c0_212 = arith.constant 0 : index
    %c0_213 = arith.constant 0 : index
    %151 = vector.load %arg4[%c0_211, %c0_212, %c0_213] : memref<11x11x4xf32, #tpu.memory_space<vmem>>, vector<11x11x4xf32>
    %152 = arith.addf %151, %150 : vector<11x11x4xf32>
    %c0_214 = arith.constant 0 : index
    %c0_215 = arith.constant 0 : index
    %c0_216 = arith.constant 0 : index
    %153 = vector.load %arg4[%c0_214, %c0_215, %c0_216] : memref<11x11x4xf32, #tpu.memory_space<vmem>>, vector<11x11x4xf32>
    tpu.vector_store %arg4[%c0_214, %c0_215, %c0_216], %152 {strides = array<i32>} : memref<11x11x4xf32, #tpu.memory_space<vmem>>, vector<11x11x4xf32>,
    %c0_i32_217 = arith.constant 0 : i32
    %c0_i32_218 = arith.constant 0 : i32
    %c0_i32_219 = arith.constant 0 : i32
    %c0_i32_220 = arith.constant 0 : i32
    %154 = tpu.memref_slice %arg2[%c0_i32_217, %c0_i32_218, %c0_i32_219, %c0_i32_220] : memref<1x16x16x4xf32, #tpu.memory_space<vmem>> -> memref<1x16x16x4xf32, #tpu.memory_space<vmem>>
    %155 = tpu.memref_squeeze %154 : memref<1x16x16x4xf32, #tpu.memory_space<vmem>> -> memref<16x16x4xf32, #tpu.memory_space<vmem>>
    %c2_221 = arith.constant 2 : index
    %c1_222 = arith.constant 1 : index
    %c0_223 = arith.constant 0 : index
    %156 = vector.load %155[%c2_221, %c1_222, %c0_223] : memref<16x16x4xf32, #tpu.memory_space<vmem>>, vector<11x11x4xf32>
    %c0_i32_224 = arith.constant 0 : i32
    %c0_i32_225 = arith.constant 0 : i32
    %c0_i32_226 = arith.constant 0 : i32
    %157 = tpu.memref_slice %arg1[%c0_i32_224, %c0_i32_225, %c0_i32_226] : memref<1x36x4xf32, #tpu.memory_space<vmem>> -> memref<1x36x4xf32, #tpu.memory_space<vmem>>
    %158 = tpu.memref_squeeze %157 : memref<1x36x4xf32, #tpu.memory_space<vmem>> -> memref<36x4xf32, #tpu.memory_space<vmem>>
    %c13 = arith.constant 13 : index
    %c0_227 = arith.constant 0 : index
    %159 = vector.load %158[%c13, %c0_227] : memref<36x4xf32, #tpu.memory_space<vmem>>, vector<1x4xf32>
    %160 = vector.shape_cast %159 : vector<1x4xf32> to vector<1x1x4xf32>
    %161 = vector.broadcast %160 : vector<1x1x4xf32> to vector<11x11x4xf32>
    %162 = arith.mulf %156, %161 : vector<11x11x4xf32>
    %c0_228 = arith.constant 0 : index
    %c0_229 = arith.constant 0 : index
    %c0_230 = arith.constant 0 : index
    %163 = vector.load %arg4[%c0_228, %c0_229, %c0_230] : memref<11x11x4xf32, #tpu.memory_space<vmem>>, vector<11x11x4xf32>
    %164 = arith.addf %163, %162 : vector<11x11x4xf32>
    %c0_231 = arith.constant 0 : index
    %c0_232 = arith.constant 0 : index
    %c0_233 = arith.constant 0 : index
    %165 = vector.load %arg4[%c0_231, %c0_232, %c0_233] : memref<11x11x4xf32, #tpu.memory_space<vmem>>, vector<11x11x4xf32>
    tpu.vector_store %arg4[%c0_231, %c0_232, %c0_233], %164 {strides = array<i32>} : memref<11x11x4xf32, #tpu.memory_space<vmem>>, vector<11x11x4xf32>,
    %c0_i32_234 = arith.constant 0 : i32
    %c0_i32_235 = arith.constant 0 : i32
    %c0_i32_236 = arith.constant 0 : i32
    %c0_i32_237 = arith.constant 0 : i32
    %166 = tpu.memref_slice %arg2[%c0_i32_234, %c0_i32_235, %c0_i32_236, %c0_i32_237] : memref<1x16x16x4xf32, #tpu.memory_space<vmem>> -> memref<1x16x16x4xf32, #tpu.memory_space<vmem>>
    %167 = tpu.memref_squeeze %166 : memref<1x16x16x4xf32, #tpu.memory_space<vmem>> -> memref<16x16x4xf32, #tpu.memory_space<vmem>>
    %c2_238 = arith.constant 2 : index
    %c2_239 = arith.constant 2 : index
    %c0_240 = arith.constant 0 : index
    %168 = vector.load %167[%c2_238, %c2_239, %c0_240] : memref<16x16x4xf32, #tpu.memory_space<vmem>>, vector<11x11x4xf32>
    %c0_i32_241 = arith.constant 0 : i32
    %c0_i32_242 = arith.constant 0 : i32
    %c0_i32_243 = arith.constant 0 : i32
    %169 = tpu.memref_slice %arg1[%c0_i32_241, %c0_i32_242, %c0_i32_243] : memref<1x36x4xf32, #tpu.memory_space<vmem>> -> memref<1x36x4xf32, #tpu.memory_space<vmem>>
    %170 = tpu.memref_squeeze %169 : memref<1x36x4xf32, #tpu.memory_space<vmem>> -> memref<36x4xf32, #tpu.memory_space<vmem>>
    %c14 = arith.constant 14 : index
    %c0_244 = arith.constant 0 : index
    %171 = vector.load %170[%c14, %c0_244] : memref<36x4xf32, #tpu.memory_space<vmem>>, vector<1x4xf32>
    %172 = vector.shape_cast %171 : vector<1x4xf32> to vector<1x1x4xf32>
    %173 = vector.broadcast %172 : vector<1x1x4xf32> to vector<11x11x4xf32>
    %174 = arith.mulf %168, %173 : vector<11x11x4xf32>
    %c0_245 = arith.constant 0 : index
    %c0_246 = arith.constant 0 : index
    %c0_247 = arith.constant 0 : index
    %175 = vector.load %arg4[%c0_245, %c0_246, %c0_247] : memref<11x11x4xf32, #tpu.memory_space<vmem>>, vector<11x11x4xf32>
    %176 = arith.addf %175, %174 : vector<11x11x4xf32>
    %c0_248 = arith.constant 0 : index
    %c0_249 = arith.constant 0 : index
    %c0_250 = arith.constant 0 : index
    %177 = vector.load %arg4[%c0_248, %c0_249, %c0_250] : memref<11x11x4xf32, #tpu.memory_space<vmem>>, vector<11x11x4xf32>
    tpu.vector_store %arg4[%c0_248, %c0_249, %c0_250], %176 {strides = array<i32>} : memref<11x11x4xf32, #tpu.memory_space<vmem>>, vector<11x11x4xf32>,
    %c0_i32_251 = arith.constant 0 : i32
    %c0_i32_252 = arith.constant 0 : i32
    %c0_i32_253 = arith.constant 0 : i32
    %c0_i32_254 = arith.constant 0 : i32
    %178 = tpu.memref_slice %arg2[%c0_i32_251, %c0_i32_252, %c0_i32_253, %c0_i32_254] : memref<1x16x16x4xf32, #tpu.memory_space<vmem>> -> memref<1x16x16x4xf32, #tpu.memory_space<vmem>>
    %179 = tpu.memref_squeeze %178 : memref<1x16x16x4xf32, #tpu.memory_space<vmem>> -> memref<16x16x4xf32, #tpu.memory_space<vmem>>
    %c2_255 = arith.constant 2 : index
    %c3_256 = arith.constant 3 : index
    %c0_257 = arith.constant 0 : index
    %180 = vector.load %179[%c2_255, %c3_256, %c0_257] : memref<16x16x4xf32, #tpu.memory_space<vmem>>, vector<11x11x4xf32>
    %c0_i32_258 = arith.constant 0 : i32
    %c0_i32_259 = arith.constant 0 : i32
    %c0_i32_260 = arith.constant 0 : i32
    %181 = tpu.memref_slice %arg1[%c0_i32_258, %c0_i32_259, %c0_i32_260] : memref<1x36x4xf32, #tpu.memory_space<vmem>> -> memref<1x36x4xf32, #tpu.memory_space<vmem>>
    %182 = tpu.memref_squeeze %181 : memref<1x36x4xf32, #tpu.memory_space<vmem>> -> memref<36x4xf32, #tpu.memory_space<vmem>>
    %c15 = arith.constant 15 : index
    %c0_261 = arith.constant 0 : index
    %183 = vector.load %182[%c15, %c0_261] : memref<36x4xf32, #tpu.memory_space<vmem>>, vector<1x4xf32>
    %184 = vector.shape_cast %183 : vector<1x4xf32> to vector<1x1x4xf32>
    %185 = vector.broadcast %184 : vector<1x1x4xf32> to vector<11x11x4xf32>
    %186 = arith.mulf %180, %185 : vector<11x11x4xf32>
    %c0_262 = arith.constant 0 : index
    %c0_263 = arith.constant 0 : index
    %c0_264 = arith.constant 0 : index
    %187 = vector.load %arg4[%c0_262, %c0_263, %c0_264] : memref<11x11x4xf32, #tpu.memory_space<vmem>>, vector<11x11x4xf32>
    %188 = arith.addf %187, %186 : vector<11x11x4xf32>
    %c0_265 = arith.constant 0 : index
    %c0_266 = arith.constant 0 : index
    %c0_267 = arith.constant 0 : index
    %189 = vector.load %arg4[%c0_265, %c0_266, %c0_267] : memref<11x11x4xf32, #tpu.memory_space<vmem>>, vector<11x11x4xf32>
    tpu.vector_store %arg4[%c0_265, %c0_266, %c0_267], %188 {strides = array<i32>} : memref<11x11x4xf32, #tpu.memory_space<vmem>>, vector<11x11x4xf32>,
    %c0_i32_268 = arith.constant 0 : i32
    %c0_i32_269 = arith.constant 0 : i32
    %c0_i32_270 = arith.constant 0 : i32
    %c0_i32_271 = arith.constant 0 : i32
    %190 = tpu.memref_slice %arg2[%c0_i32_268, %c0_i32_269, %c0_i32_270, %c0_i32_271] : memref<1x16x16x4xf32, #tpu.memory_space<vmem>> -> memref<1x16x16x4xf32, #tpu.memory_space<vmem>>
    %191 = tpu.memref_squeeze %190 : memref<1x16x16x4xf32, #tpu.memory_space<vmem>> -> memref<16x16x4xf32, #tpu.memory_space<vmem>>
    %c2_272 = arith.constant 2 : index
    %c4_273 = arith.constant 4 : index
    %c0_274 = arith.constant 0 : index
    %192 = vector.load %191[%c2_272, %c4_273, %c0_274] : memref<16x16x4xf32, #tpu.memory_space<vmem>>, vector<11x11x4xf32>
    %c0_i32_275 = arith.constant 0 : i32
    %c0_i32_276 = arith.constant 0 : i32
    %c0_i32_277 = arith.constant 0 : i32
    %193 = tpu.memref_slice %arg1[%c0_i32_275, %c0_i32_276, %c0_i32_277] : memref<1x36x4xf32, #tpu.memory_space<vmem>> -> memref<1x36x4xf32, #tpu.memory_space<vmem>>
    %194 = tpu.memref_squeeze %193 : memref<1x36x4xf32, #tpu.memory_space<vmem>> -> memref<36x4xf32, #tpu.memory_space<vmem>>
    %c16 = arith.constant 16 : index
    %c0_278 = arith.constant 0 : index
    %195 = vector.load %194[%c16, %c0_278] : memref<36x4xf32, #tpu.memory_space<vmem>>, vector<1x4xf32>
    %196 = vector.shape_cast %195 : vector<1x4xf32> to vector<1x1x4xf32>
    %197 = vector.broadcast %196 : vector<1x1x4xf32> to vector<11x11x4xf32>
    %198 = arith.mulf %192, %197 : vector<11x11x4xf32>
    %c0_279 = arith.constant 0 : index
    %c0_280 = arith.constant 0 : index
    %c0_281 = arith.constant 0 : index
    %199 = vector.load %arg4[%c0_279, %c0_280, %c0_281] : memref<11x11x4xf32, #tpu.memory_space<vmem>>, vector<11x11x4xf32>
    %200 = arith.addf %199, %198 : vector<11x11x4xf32>
    %c0_282 = arith.constant 0 : index
    %c0_283 = arith.constant 0 : index
    %c0_284 = arith.constant 0 : index
    %201 = vector.load %arg4[%c0_282, %c0_283, %c0_284] : memref<11x11x4xf32, #tpu.memory_space<vmem>>, vector<11x11x4xf32>
    tpu.vector_store %arg4[%c0_282, %c0_283, %c0_284], %200 {strides = array<i32>} : memref<11x11x4xf32, #tpu.memory_space<vmem>>, vector<11x11x4xf32>,
    %c0_i32_285 = arith.constant 0 : i32
    %c0_i32_286 = arith.constant 0 : i32
    %c0_i32_287 = arith.constant 0 : i32
    %c0_i32_288 = arith.constant 0 : i32
    %202 = tpu.memref_slice %arg2[%c0_i32_285, %c0_i32_286, %c0_i32_287, %c0_i32_288] : memref<1x16x16x4xf32, #tpu.memory_space<vmem>> -> memref<1x16x16x4xf32, #tpu.memory_space<vmem>>
    %203 = tpu.memref_squeeze %202 : memref<1x16x16x4xf32, #tpu.memory_space<vmem>> -> memref<16x16x4xf32, #tpu.memory_space<vmem>>
    %c2_289 = arith.constant 2 : index
    %c5_290 = arith.constant 5 : index
    %c0_291 = arith.constant 0 : index
    %204 = vector.load %203[%c2_289, %c5_290, %c0_291] : memref<16x16x4xf32, #tpu.memory_space<vmem>>, vector<11x11x4xf32>
    %c0_i32_292 = arith.constant 0 : i32
    %c0_i32_293 = arith.constant 0 : i32
    %c0_i32_294 = arith.constant 0 : i32
    %205 = tpu.memref_slice %arg1[%c0_i32_292, %c0_i32_293, %c0_i32_294] : memref<1x36x4xf32, #tpu.memory_space<vmem>> -> memref<1x36x4xf32, #tpu.memory_space<vmem>>
    %206 = tpu.memref_squeeze %205 : memref<1x36x4xf32, #tpu.memory_space<vmem>> -> memref<36x4xf32, #tpu.memory_space<vmem>>
    %c17 = arith.constant 17 : index
    %c0_295 = arith.constant 0 : index
    %207 = vector.load %206[%c17, %c0_295] : memref<36x4xf32, #tpu.memory_space<vmem>>, vector<1x4xf32>
    %208 = vector.shape_cast %207 : vector<1x4xf32> to vector<1x1x4xf32>
    %209 = vector.broadcast %208 : vector<1x1x4xf32> to vector<11x11x4xf32>
    %210 = arith.mulf %204, %209 : vector<11x11x4xf32>
    %c0_296 = arith.constant 0 : index
    %c0_297 = arith.constant 0 : index
    %c0_298 = arith.constant 0 : index
    %211 = vector.load %arg4[%c0_296, %c0_297, %c0_298] : memref<11x11x4xf32, #tpu.memory_space<vmem>>, vector<11x11x4xf32>
    %212 = arith.addf %211, %210 : vector<11x11x4xf32>
    %c0_299 = arith.constant 0 : index
    %c0_300 = arith.constant 0 : index
    %c0_301 = arith.constant 0 : index
    %213 = vector.load %arg4[%c0_299, %c0_300, %c0_301] : memref<11x11x4xf32, #tpu.memory_space<vmem>>, vector<11x11x4xf32>
    tpu.vector_store %arg4[%c0_299, %c0_300, %c0_301], %212 {strides = array<i32>} : memref<11x11x4xf32, #tpu.memory_space<vmem>>, vector<11x11x4xf32>,
    %c0_i32_302 = arith.constant 0 : i32
    %c0_i32_303 = arith.constant 0 : i32
    %c0_i32_304 = arith.constant 0 : i32
    %c0_i32_305 = arith.constant 0 : i32
    %214 = tpu.memref_slice %arg2[%c0_i32_302, %c0_i32_303, %c0_i32_304, %c0_i32_305] : memref<1x16x16x4xf32, #tpu.memory_space<vmem>> -> memref<1x16x16x4xf32, #tpu.memory_space<vmem>>
    %215 = tpu.memref_squeeze %214 : memref<1x16x16x4xf32, #tpu.memory_space<vmem>> -> memref<16x16x4xf32, #tpu.memory_space<vmem>>
    %c3_306 = arith.constant 3 : index
    %c0_307 = arith.constant 0 : index
    %c0_308 = arith.constant 0 : index
    %216 = vector.load %215[%c3_306, %c0_307, %c0_308] : memref<16x16x4xf32, #tpu.memory_space<vmem>>, vector<11x11x4xf32>
    %c0_i32_309 = arith.constant 0 : i32
    %c0_i32_310 = arith.constant 0 : i32
    %c0_i32_311 = arith.constant 0 : i32
    %217 = tpu.memref_slice %arg1[%c0_i32_309, %c0_i32_310, %c0_i32_311] : memref<1x36x4xf32, #tpu.memory_space<vmem>> -> memref<1x36x4xf32, #tpu.memory_space<vmem>>
    %218 = tpu.memref_squeeze %217 : memref<1x36x4xf32, #tpu.memory_space<vmem>> -> memref<36x4xf32, #tpu.memory_space<vmem>>
    %c18 = arith.constant 18 : index
    %c0_312 = arith.constant 0 : index
    %219 = vector.load %218[%c18, %c0_312] : memref<36x4xf32, #tpu.memory_space<vmem>>, vector<1x4xf32>
    %220 = vector.shape_cast %219 : vector<1x4xf32> to vector<1x1x4xf32>
    %221 = vector.broadcast %220 : vector<1x1x4xf32> to vector<11x11x4xf32>
    %222 = arith.mulf %216, %221 : vector<11x11x4xf32>
    %c0_313 = arith.constant 0 : index
    %c0_314 = arith.constant 0 : index
    %c0_315 = arith.constant 0 : index
    %223 = vector.load %arg4[%c0_313, %c0_314, %c0_315] : memref<11x11x4xf32, #tpu.memory_space<vmem>>, vector<11x11x4xf32>
    %224 = arith.addf %223, %222 : vector<11x11x4xf32>
    %c0_316 = arith.constant 0 : index
    %c0_317 = arith.constant 0 : index
    %c0_318 = arith.constant 0 : index
    %225 = vector.load %arg4[%c0_316, %c0_317, %c0_318] : memref<11x11x4xf32, #tpu.memory_space<vmem>>, vector<11x11x4xf32>
    tpu.vector_store %arg4[%c0_316, %c0_317, %c0_318], %224 {strides = array<i32>} : memref<11x11x4xf32, #tpu.memory_space<vmem>>, vector<11x11x4xf32>,
    %c0_i32_319 = arith.constant 0 : i32
    %c0_i32_320 = arith.constant 0 : i32
    %c0_i32_321 = arith.constant 0 : i32
    %c0_i32_322 = arith.constant 0 : i32
    %226 = tpu.memref_slice %arg2[%c0_i32_319, %c0_i32_320, %c0_i32_321, %c0_i32_322] : memref<1x16x16x4xf32, #tpu.memory_space<vmem>> -> memref<1x16x16x4xf32, #tpu.memory_space<vmem>>
    %227 = tpu.memref_squeeze %226 : memref<1x16x16x4xf32, #tpu.memory_space<vmem>> -> memref<16x16x4xf32, #tpu.memory_space<vmem>>
    %c3_323 = arith.constant 3 : index
    %c1_324 = arith.constant 1 : index
    %c0_325 = arith.constant 0 : index
    %228 = vector.load %227[%c3_323, %c1_324, %c0_325] : memref<16x16x4xf32, #tpu.memory_space<vmem>>, vector<11x11x4xf32>
    %c0_i32_326 = arith.constant 0 : i32
    %c0_i32_327 = arith.constant 0 : i32
    %c0_i32_328 = arith.constant 0 : i32
    %229 = tpu.memref_slice %arg1[%c0_i32_326, %c0_i32_327, %c0_i32_328] : memref<1x36x4xf32, #tpu.memory_space<vmem>> -> memref<1x36x4xf32, #tpu.memory_space<vmem>>
    %230 = tpu.memref_squeeze %229 : memref<1x36x4xf32, #tpu.memory_space<vmem>> -> memref<36x4xf32, #tpu.memory_space<vmem>>
    %c19 = arith.constant 19 : index
    %c0_329 = arith.constant 0 : index
    %231 = vector.load %230[%c19, %c0_329] : memref<36x4xf32, #tpu.memory_space<vmem>>, vector<1x4xf32>
    %232 = vector.shape_cast %231 : vector<1x4xf32> to vector<1x1x4xf32>
    %233 = vector.broadcast %232 : vector<1x1x4xf32> to vector<11x11x4xf32>
    %234 = arith.mulf %228, %233 : vector<11x11x4xf32>
    %c0_330 = arith.constant 0 : index
    %c0_331 = arith.constant 0 : index
    %c0_332 = arith.constant 0 : index
    %235 = vector.load %arg4[%c0_330, %c0_331, %c0_332] : memref<11x11x4xf32, #tpu.memory_space<vmem>>, vector<11x11x4xf32>
    %236 = arith.addf %235, %234 : vector<11x11x4xf32>
    %c0_333 = arith.constant 0 : index
    %c0_334 = arith.constant 0 : index
    %c0_335 = arith.constant 0 : index
    %237 = vector.load %arg4[%c0_333, %c0_334, %c0_335] : memref<11x11x4xf32, #tpu.memory_space<vmem>>, vector<11x11x4xf32>
    tpu.vector_store %arg4[%c0_333, %c0_334, %c0_335], %236 {strides = array<i32>} : memref<11x11x4xf32, #tpu.memory_space<vmem>>, vector<11x11x4xf32>,
    %c0_i32_336 = arith.constant 0 : i32
    %c0_i32_337 = arith.constant 0 : i32
    %c0_i32_338 = arith.constant 0 : i32
    %c0_i32_339 = arith.constant 0 : i32
    %238 = tpu.memref_slice %arg2[%c0_i32_336, %c0_i32_337, %c0_i32_338, %c0_i32_339] : memref<1x16x16x4xf32, #tpu.memory_space<vmem>> -> memref<1x16x16x4xf32, #tpu.memory_space<vmem>>
    %239 = tpu.memref_squeeze %238 : memref<1x16x16x4xf32, #tpu.memory_space<vmem>> -> memref<16x16x4xf32, #tpu.memory_space<vmem>>
    %c3_340 = arith.constant 3 : index
    %c2_341 = arith.constant 2 : index
    %c0_342 = arith.constant 0 : index
    %240 = vector.load %239[%c3_340, %c2_341, %c0_342] : memref<16x16x4xf32, #tpu.memory_space<vmem>>, vector<11x11x4xf32>
    %c0_i32_343 = arith.constant 0 : i32
    %c0_i32_344 = arith.constant 0 : i32
    %c0_i32_345 = arith.constant 0 : i32
    %241 = tpu.memref_slice %arg1[%c0_i32_343, %c0_i32_344, %c0_i32_345] : memref<1x36x4xf32, #tpu.memory_space<vmem>> -> memref<1x36x4xf32, #tpu.memory_space<vmem>>
    %242 = tpu.memref_squeeze %241 : memref<1x36x4xf32, #tpu.memory_space<vmem>> -> memref<36x4xf32, #tpu.memory_space<vmem>>
    %c20 = arith.constant 20 : index
    %c0_346 = arith.constant 0 : index
    %243 = vector.load %242[%c20, %c0_346] : memref<36x4xf32, #tpu.memory_space<vmem>>, vector<1x4xf32>
    %244 = vector.shape_cast %243 : vector<1x4xf32> to vector<1x1x4xf32>
    %245 = vector.broadcast %244 : vector<1x1x4xf32> to vector<11x11x4xf32>
    %246 = arith.mulf %240, %245 : vector<11x11x4xf32>
    %c0_347 = arith.constant 0 : index
    %c0_348 = arith.constant 0 : index
    %c0_349 = arith.constant 0 : index
    %247 = vector.load %arg4[%c0_347, %c0_348, %c0_349] : memref<11x11x4xf32, #tpu.memory_space<vmem>>, vector<11x11x4xf32>
    %248 = arith.addf %247, %246 : vector<11x11x4xf32>
    %c0_350 = arith.constant 0 : index
    %c0_351 = arith.constant 0 : index
    %c0_352 = arith.constant 0 : index
    %249 = vector.load %arg4[%c0_350, %c0_351, %c0_352] : memref<11x11x4xf32, #tpu.memory_space<vmem>>, vector<11x11x4xf32>
    tpu.vector_store %arg4[%c0_350, %c0_351, %c0_352], %248 {strides = array<i32>} : memref<11x11x4xf32, #tpu.memory_space<vmem>>, vector<11x11x4xf32>,
    %c0_i32_353 = arith.constant 0 : i32
    %c0_i32_354 = arith.constant 0 : i32
    %c0_i32_355 = arith.constant 0 : i32
    %c0_i32_356 = arith.constant 0 : i32
    %250 = tpu.memref_slice %arg2[%c0_i32_353, %c0_i32_354, %c0_i32_355, %c0_i32_356] : memref<1x16x16x4xf32, #tpu.memory_space<vmem>> -> memref<1x16x16x4xf32, #tpu.memory_space<vmem>>
    %251 = tpu.memref_squeeze %250 : memref<1x16x16x4xf32, #tpu.memory_space<vmem>> -> memref<16x16x4xf32, #tpu.memory_space<vmem>>
    %c3_357 = arith.constant 3 : index
    %c3_358 = arith.constant 3 : index
    %c0_359 = arith.constant 0 : index
    %252 = vector.load %251[%c3_357, %c3_358, %c0_359] : memref<16x16x4xf32, #tpu.memory_space<vmem>>, vector<11x11x4xf32>
    %c0_i32_360 = arith.constant 0 : i32
    %c0_i32_361 = arith.constant 0 : i32
    %c0_i32_362 = arith.constant 0 : i32
    %253 = tpu.memref_slice %arg1[%c0_i32_360, %c0_i32_361, %c0_i32_362] : memref<1x36x4xf32, #tpu.memory_space<vmem>> -> memref<1x36x4xf32, #tpu.memory_space<vmem>>
    %254 = tpu.memref_squeeze %253 : memref<1x36x4xf32, #tpu.memory_space<vmem>> -> memref<36x4xf32, #tpu.memory_space<vmem>>
    %c21 = arith.constant 21 : index
    %c0_363 = arith.constant 0 : index
    %255 = vector.load %254[%c21, %c0_363] : memref<36x4xf32, #tpu.memory_space<vmem>>, vector<1x4xf32>
    %256 = vector.shape_cast %255 : vector<1x4xf32> to vector<1x1x4xf32>
    %257 = vector.broadcast %256 : vector<1x1x4xf32> to vector<11x11x4xf32>
    %258 = arith.mulf %252, %257 : vector<11x11x4xf32>
    %c0_364 = arith.constant 0 : index
    %c0_365 = arith.constant 0 : index
    %c0_366 = arith.constant 0 : index
    %259 = vector.load %arg4[%c0_364, %c0_365, %c0_366] : memref<11x11x4xf32, #tpu.memory_space<vmem>>, vector<11x11x4xf32>
    %260 = arith.addf %259, %258 : vector<11x11x4xf32>
    %c0_367 = arith.constant 0 : index
    %c0_368 = arith.constant 0 : index
    %c0_369 = arith.constant 0 : index
    %261 = vector.load %arg4[%c0_367, %c0_368, %c0_369] : memref<11x11x4xf32, #tpu.memory_space<vmem>>, vector<11x11x4xf32>
    tpu.vector_store %arg4[%c0_367, %c0_368, %c0_369], %260 {strides = array<i32>} : memref<11x11x4xf32, #tpu.memory_space<vmem>>, vector<11x11x4xf32>,
    %c0_i32_370 = arith.constant 0 : i32
    %c0_i32_371 = arith.constant 0 : i32
    %c0_i32_372 = arith.constant 0 : i32
    %c0_i32_373 = arith.constant 0 : i32
    %262 = tpu.memref_slice %arg2[%c0_i32_370, %c0_i32_371, %c0_i32_372, %c0_i32_373] : memref<1x16x16x4xf32, #tpu.memory_space<vmem>> -> memref<1x16x16x4xf32, #tpu.memory_space<vmem>>
    %263 = tpu.memref_squeeze %262 : memref<1x16x16x4xf32, #tpu.memory_space<vmem>> -> memref<16x16x4xf32, #tpu.memory_space<vmem>>
    %c3_374 = arith.constant 3 : index
    %c4_375 = arith.constant 4 : index
    %c0_376 = arith.constant 0 : index
    %264 = vector.load %263[%c3_374, %c4_375, %c0_376] : memref<16x16x4xf32, #tpu.memory_space<vmem>>, vector<11x11x4xf32>
    %c0_i32_377 = arith.constant 0 : i32
    %c0_i32_378 = arith.constant 0 : i32
    %c0_i32_379 = arith.constant 0 : i32
    %265 = tpu.memref_slice %arg1[%c0_i32_377, %c0_i32_378, %c0_i32_379] : memref<1x36x4xf32, #tpu.memory_space<vmem>> -> memref<1x36x4xf32, #tpu.memory_space<vmem>>
    %266 = tpu.memref_squeeze %265 : memref<1x36x4xf32, #tpu.memory_space<vmem>> -> memref<36x4xf32, #tpu.memory_space<vmem>>
    %c22 = arith.constant 22 : index
    %c0_380 = arith.constant 0 : index
    %267 = vector.load %266[%c22, %c0_380] : memref<36x4xf32, #tpu.memory_space<vmem>>, vector<1x4xf32>
    %268 = vector.shape_cast %267 : vector<1x4xf32> to vector<1x1x4xf32>
    %269 = vector.broadcast %268 : vector<1x1x4xf32> to vector<11x11x4xf32>
    %270 = arith.mulf %264, %269 : vector<11x11x4xf32>
    %c0_381 = arith.constant 0 : index
    %c0_382 = arith.constant 0 : index
    %c0_383 = arith.constant 0 : index
    %271 = vector.load %arg4[%c0_381, %c0_382, %c0_383] : memref<11x11x4xf32, #tpu.memory_space<vmem>>, vector<11x11x4xf32>
    %272 = arith.addf %271, %270 : vector<11x11x4xf32>
    %c0_384 = arith.constant 0 : index
    %c0_385 = arith.constant 0 : index
    %c0_386 = arith.constant 0 : index
    %273 = vector.load %arg4[%c0_384, %c0_385, %c0_386] : memref<11x11x4xf32, #tpu.memory_space<vmem>>, vector<11x11x4xf32>
    tpu.vector_store %arg4[%c0_384, %c0_385, %c0_386], %272 {strides = array<i32>} : memref<11x11x4xf32, #tpu.memory_space<vmem>>, vector<11x11x4xf32>,
    %c0_i32_387 = arith.constant 0 : i32
    %c0_i32_388 = arith.constant 0 : i32
    %c0_i32_389 = arith.constant 0 : i32
    %c0_i32_390 = arith.constant 0 : i32
    %274 = tpu.memref_slice %arg2[%c0_i32_387, %c0_i32_388, %c0_i32_389, %c0_i32_390] : memref<1x16x16x4xf32, #tpu.memory_space<vmem>> -> memref<1x16x16x4xf32, #tpu.memory_space<vmem>>
    %275 = tpu.memref_squeeze %274 : memref<1x16x16x4xf32, #tpu.memory_space<vmem>> -> memref<16x16x4xf32, #tpu.memory_space<vmem>>
    %c3_391 = arith.constant 3 : index
    %c5_392 = arith.constant 5 : index
    %c0_393 = arith.constant 0 : index
    %276 = vector.load %275[%c3_391, %c5_392, %c0_393] : memref<16x16x4xf32, #tpu.memory_space<vmem>>, vector<11x11x4xf32>
    %c0_i32_394 = arith.constant 0 : i32
    %c0_i32_395 = arith.constant 0 : i32
    %c0_i32_396 = arith.constant 0 : i32
    %277 = tpu.memref_slice %arg1[%c0_i32_394, %c0_i32_395, %c0_i32_396] : memref<1x36x4xf32, #tpu.memory_space<vmem>> -> memref<1x36x4xf32, #tpu.memory_space<vmem>>
    %278 = tpu.memref_squeeze %277 : memref<1x36x4xf32, #tpu.memory_space<vmem>> -> memref<36x4xf32, #tpu.memory_space<vmem>>
    %c23 = arith.constant 23 : index
    %c0_397 = arith.constant 0 : index
    %279 = vector.load %278[%c23, %c0_397] : memref<36x4xf32, #tpu.memory_space<vmem>>, vector<1x4xf32>
    %280 = vector.shape_cast %279 : vector<1x4xf32> to vector<1x1x4xf32>
    %281 = vector.broadcast %280 : vector<1x1x4xf32> to vector<11x11x4xf32>
    %282 = arith.mulf %276, %281 : vector<11x11x4xf32>
    %c0_398 = arith.constant 0 : index
    %c0_399 = arith.constant 0 : index
    %c0_400 = arith.constant 0 : index
    %283 = vector.load %arg4[%c0_398, %c0_399, %c0_400] : memref<11x11x4xf32, #tpu.memory_space<vmem>>, vector<11x11x4xf32>
    %284 = arith.addf %283, %282 : vector<11x11x4xf32>
    %c0_401 = arith.constant 0 : index
    %c0_402 = arith.constant 0 : index
    %c0_403 = arith.constant 0 : index
    %285 = vector.load %arg4[%c0_401, %c0_402, %c0_403] : memref<11x11x4xf32, #tpu.memory_space<vmem>>, vector<11x11x4xf32>
    tpu.vector_store %arg4[%c0_401, %c0_402, %c0_403], %284 {strides = array<i32>} : memref<11x11x4xf32, #tpu.memory_space<vmem>>, vector<11x11x4xf32>,
    %c0_i32_404 = arith.constant 0 : i32
    %c0_i32_405 = arith.constant 0 : i32
    %c0_i32_406 = arith.constant 0 : i32
    %c0_i32_407 = arith.constant 0 : i32
    %286 = tpu.memref_slice %arg2[%c0_i32_404, %c0_i32_405, %c0_i32_406, %c0_i32_407] : memref<1x16x16x4xf32, #tpu.memory_space<vmem>> -> memref<1x16x16x4xf32, #tpu.memory_space<vmem>>
    %287 = tpu.memref_squeeze %286 : memref<1x16x16x4xf32, #tpu.memory_space<vmem>> -> memref<16x16x4xf32, #tpu.memory_space<vmem>>
    %c4_408 = arith.constant 4 : index
    %c0_409 = arith.constant 0 : index
    %c0_410 = arith.constant 0 : index
    %288 = vector.load %287[%c4_408, %c0_409, %c0_410] : memref<16x16x4xf32, #tpu.memory_space<vmem>>, vector<11x11x4xf32>
    %c0_i32_411 = arith.constant 0 : i32
    %c0_i32_412 = arith.constant 0 : i32
    %c0_i32_413 = arith.constant 0 : i32
    %289 = tpu.memref_slice %arg1[%c0_i32_411, %c0_i32_412, %c0_i32_413] : memref<1x36x4xf32, #tpu.memory_space<vmem>> -> memref<1x36x4xf32, #tpu.memory_space<vmem>>
    %290 = tpu.memref_squeeze %289 : memref<1x36x4xf32, #tpu.memory_space<vmem>> -> memref<36x4xf32, #tpu.memory_space<vmem>>
    %c24 = arith.constant 24 : index
    %c0_414 = arith.constant 0 : index
    %291 = vector.load %290[%c24, %c0_414] : memref<36x4xf32, #tpu.memory_space<vmem>>, vector<1x4xf32>
    %292 = vector.shape_cast %291 : vector<1x4xf32> to vector<1x1x4xf32>
    %293 = vector.broadcast %292 : vector<1x1x4xf32> to vector<11x11x4xf32>
    %294 = arith.mulf %288, %293 : vector<11x11x4xf32>
    %c0_415 = arith.constant 0 : index
    %c0_416 = arith.constant 0 : index
    %c0_417 = arith.constant 0 : index
    %295 = vector.load %arg4[%c0_415, %c0_416, %c0_417] : memref<11x11x4xf32, #tpu.memory_space<vmem>>, vector<11x11x4xf32>
    %296 = arith.addf %295, %294 : vector<11x11x4xf32>
    %c0_418 = arith.constant 0 : index
    %c0_419 = arith.constant 0 : index
    %c0_420 = arith.constant 0 : index
    %297 = vector.load %arg4[%c0_418, %c0_419, %c0_420] : memref<11x11x4xf32, #tpu.memory_space<vmem>>, vector<11x11x4xf32>
    tpu.vector_store %arg4[%c0_418, %c0_419, %c0_420], %296 {strides = array<i32>} : memref<11x11x4xf32, #tpu.memory_space<vmem>>, vector<11x11x4xf32>,
    %c0_i32_421 = arith.constant 0 : i32
    %c0_i32_422 = arith.constant 0 : i32
    %c0_i32_423 = arith.constant 0 : i32
    %c0_i32_424 = arith.constant 0 : i32
    %298 = tpu.memref_slice %arg2[%c0_i32_421, %c0_i32_422, %c0_i32_423, %c0_i32_424] : memref<1x16x16x4xf32, #tpu.memory_space<vmem>> -> memref<1x16x16x4xf32, #tpu.memory_space<vmem>>
    %299 = tpu.memref_squeeze %298 : memref<1x16x16x4xf32, #tpu.memory_space<vmem>> -> memref<16x16x4xf32, #tpu.memory_space<vmem>>
    %c4_425 = arith.constant 4 : index
    %c1_426 = arith.constant 1 : index
    %c0_427 = arith.constant 0 : index
    %300 = vector.load %299[%c4_425, %c1_426, %c0_427] : memref<16x16x4xf32, #tpu.memory_space<vmem>>, vector<11x11x4xf32>
    %c0_i32_428 = arith.constant 0 : i32
    %c0_i32_429 = arith.constant 0 : i32
    %c0_i32_430 = arith.constant 0 : i32
    %301 = tpu.memref_slice %arg1[%c0_i32_428, %c0_i32_429, %c0_i32_430] : memref<1x36x4xf32, #tpu.memory_space<vmem>> -> memref<1x36x4xf32, #tpu.memory_space<vmem>>
    %302 = tpu.memref_squeeze %301 : memref<1x36x4xf32, #tpu.memory_space<vmem>> -> memref<36x4xf32, #tpu.memory_space<vmem>>
    %c25 = arith.constant 25 : index
    %c0_431 = arith.constant 0 : index
    %303 = vector.load %302[%c25, %c0_431] : memref<36x4xf32, #tpu.memory_space<vmem>>, vector<1x4xf32>
    %304 = vector.shape_cast %303 : vector<1x4xf32> to vector<1x1x4xf32>
    %305 = vector.broadcast %304 : vector<1x1x4xf32> to vector<11x11x4xf32>
    %306 = arith.mulf %300, %305 : vector<11x11x4xf32>
    %c0_432 = arith.constant 0 : index
    %c0_433 = arith.constant 0 : index
    %c0_434 = arith.constant 0 : index
    %307 = vector.load %arg4[%c0_432, %c0_433, %c0_434] : memref<11x11x4xf32, #tpu.memory_space<vmem>>, vector<11x11x4xf32>
    %308 = arith.addf %307, %306 : vector<11x11x4xf32>
    %c0_435 = arith.constant 0 : index
    %c0_436 = arith.constant 0 : index
    %c0_437 = arith.constant 0 : index
    %309 = vector.load %arg4[%c0_435, %c0_436, %c0_437] : memref<11x11x4xf32, #tpu.memory_space<vmem>>, vector<11x11x4xf32>
    tpu.vector_store %arg4[%c0_435, %c0_436, %c0_437], %308 {strides = array<i32>} : memref<11x11x4xf32, #tpu.memory_space<vmem>>, vector<11x11x4xf32>,
    %c0_i32_438 = arith.constant 0 : i32
    %c0_i32_439 = arith.constant 0 : i32
    %c0_i32_440 = arith.constant 0 : i32
    %c0_i32_441 = arith.constant 0 : i32
    %310 = tpu.memref_slice %arg2[%c0_i32_438, %c0_i32_439, %c0_i32_440, %c0_i32_441] : memref<1x16x16x4xf32, #tpu.memory_space<vmem>> -> memref<1x16x16x4xf32, #tpu.memory_space<vmem>>
    %311 = tpu.memref_squeeze %310 : memref<1x16x16x4xf32, #tpu.memory_space<vmem>> -> memref<16x16x4xf32, #tpu.memory_space<vmem>>
    %c4_442 = arith.constant 4 : index
    %c2_443 = arith.constant 2 : index
    %c0_444 = arith.constant 0 : index
    %312 = vector.load %311[%c4_442, %c2_443, %c0_444] : memref<16x16x4xf32, #tpu.memory_space<vmem>>, vector<11x11x4xf32>
    %c0_i32_445 = arith.constant 0 : i32
    %c0_i32_446 = arith.constant 0 : i32
    %c0_i32_447 = arith.constant 0 : i32
    %313 = tpu.memref_slice %arg1[%c0_i32_445, %c0_i32_446, %c0_i32_447] : memref<1x36x4xf32, #tpu.memory_space<vmem>> -> memref<1x36x4xf32, #tpu.memory_space<vmem>>
    %314 = tpu.memref_squeeze %313 : memref<1x36x4xf32, #tpu.memory_space<vmem>> -> memref<36x4xf32, #tpu.memory_space<vmem>>
    %c26 = arith.constant 26 : index
    %c0_448 = arith.constant 0 : index
    %315 = vector.load %314[%c26, %c0_448] : memref<36x4xf32, #tpu.memory_space<vmem>>, vector<1x4xf32>
    %316 = vector.shape_cast %315 : vector<1x4xf32> to vector<1x1x4xf32>
    %317 = vector.broadcast %316 : vector<1x1x4xf32> to vector<11x11x4xf32>
    %318 = arith.mulf %312, %317 : vector<11x11x4xf32>
    %c0_449 = arith.constant 0 : index
    %c0_450 = arith.constant 0 : index
    %c0_451 = arith.constant 0 : index
    %319 = vector.load %arg4[%c0_449, %c0_450, %c0_451] : memref<11x11x4xf32, #tpu.memory_space<vmem>>, vector<11x11x4xf32>
    %320 = arith.addf %319, %318 : vector<11x11x4xf32>
    %c0_452 = arith.constant 0 : index
    %c0_453 = arith.constant 0 : index
    %c0_454 = arith.constant 0 : index
    %321 = vector.load %arg4[%c0_452, %c0_453, %c0_454] : memref<11x11x4xf32, #tpu.memory_space<vmem>>, vector<11x11x4xf32>
    tpu.vector_store %arg4[%c0_452, %c0_453, %c0_454], %320 {strides = array<i32>} : memref<11x11x4xf32, #tpu.memory_space<vmem>>, vector<11x11x4xf32>,
    %c0_i32_455 = arith.constant 0 : i32
    %c0_i32_456 = arith.constant 0 : i32
    %c0_i32_457 = arith.constant 0 : i32
    %c0_i32_458 = arith.constant 0 : i32
    %322 = tpu.memref_slice %arg2[%c0_i32_455, %c0_i32_456, %c0_i32_457, %c0_i32_458] : memref<1x16x16x4xf32, #tpu.memory_space<vmem>> -> memref<1x16x16x4xf32, #tpu.memory_space<vmem>>
    %323 = tpu.memref_squeeze %322 : memref<1x16x16x4xf32, #tpu.memory_space<vmem>> -> memref<16x16x4xf32, #tpu.memory_space<vmem>>
    %c4_459 = arith.constant 4 : index
    %c3_460 = arith.constant 3 : index
    %c0_461 = arith.constant 0 : index
    %324 = vector.load %323[%c4_459, %c3_460, %c0_461] : memref<16x16x4xf32, #tpu.memory_space<vmem>>, vector<11x11x4xf32>
    %c0_i32_462 = arith.constant 0 : i32
    %c0_i32_463 = arith.constant 0 : i32
    %c0_i32_464 = arith.constant 0 : i32
    %325 = tpu.memref_slice %arg1[%c0_i32_462, %c0_i32_463, %c0_i32_464] : memref<1x36x4xf32, #tpu.memory_space<vmem>> -> memref<1x36x4xf32, #tpu.memory_space<vmem>>
    %326 = tpu.memref_squeeze %325 : memref<1x36x4xf32, #tpu.memory_space<vmem>> -> memref<36x4xf32, #tpu.memory_space<vmem>>
    %c27 = arith.constant 27 : index
    %c0_465 = arith.constant 0 : index
    %327 = vector.load %326[%c27, %c0_465] : memref<36x4xf32, #tpu.memory_space<vmem>>, vector<1x4xf32>
    %328 = vector.shape_cast %327 : vector<1x4xf32> to vector<1x1x4xf32>
    %329 = vector.broadcast %328 : vector<1x1x4xf32> to vector<11x11x4xf32>
    %330 = arith.mulf %324, %329 : vector<11x11x4xf32>
    %c0_466 = arith.constant 0 : index
    %c0_467 = arith.constant 0 : index
    %c0_468 = arith.constant 0 : index
    %331 = vector.load %arg4[%c0_466, %c0_467, %c0_468] : memref<11x11x4xf32, #tpu.memory_space<vmem>>, vector<11x11x4xf32>
    %332 = arith.addf %331, %330 : vector<11x11x4xf32>
    %c0_469 = arith.constant 0 : index
    %c0_470 = arith.constant 0 : index
    %c0_471 = arith.constant 0 : index
    %333 = vector.load %arg4[%c0_469, %c0_470, %c0_471] : memref<11x11x4xf32, #tpu.memory_space<vmem>>, vector<11x11x4xf32>
    tpu.vector_store %arg4[%c0_469, %c0_470, %c0_471], %332 {strides = array<i32>} : memref<11x11x4xf32, #tpu.memory_space<vmem>>, vector<11x11x4xf32>,
    %c0_i32_472 = arith.constant 0 : i32
    %c0_i32_473 = arith.constant 0 : i32
    %c0_i32_474 = arith.constant 0 : i32
    %c0_i32_475 = arith.constant 0 : i32
    %334 = tpu.memref_slice %arg2[%c0_i32_472, %c0_i32_473, %c0_i32_474, %c0_i32_475] : memref<1x16x16x4xf32, #tpu.memory_space<vmem>> -> memref<1x16x16x4xf32, #tpu.memory_space<vmem>>
    %335 = tpu.memref_squeeze %334 : memref<1x16x16x4xf32, #tpu.memory_space<vmem>> -> memref<16x16x4xf32, #tpu.memory_space<vmem>>
    %c4_476 = arith.constant 4 : index
    %c4_477 = arith.constant 4 : index
    %c0_478 = arith.constant 0 : index
    %336 = vector.load %335[%c4_476, %c4_477, %c0_478] : memref<16x16x4xf32, #tpu.memory_space<vmem>>, vector<11x11x4xf32>
    %c0_i32_479 = arith.constant 0 : i32
    %c0_i32_480 = arith.constant 0 : i32
    %c0_i32_481 = arith.constant 0 : i32
    %337 = tpu.memref_slice %arg1[%c0_i32_479, %c0_i32_480, %c0_i32_481] : memref<1x36x4xf32, #tpu.memory_space<vmem>> -> memref<1x36x4xf32, #tpu.memory_space<vmem>>
    %338 = tpu.memref_squeeze %337 : memref<1x36x4xf32, #tpu.memory_space<vmem>> -> memref<36x4xf32, #tpu.memory_space<vmem>>
    %c28 = arith.constant 28 : index
    %c0_482 = arith.constant 0 : index
    %339 = vector.load %338[%c28, %c0_482] : memref<36x4xf32, #tpu.memory_space<vmem>>, vector<1x4xf32>
    %340 = vector.shape_cast %339 : vector<1x4xf32> to vector<1x1x4xf32>
    %341 = vector.broadcast %340 : vector<1x1x4xf32> to vector<11x11x4xf32>
    %342 = arith.mulf %336, %341 : vector<11x11x4xf32>
    %c0_483 = arith.constant 0 : index
    %c0_484 = arith.constant 0 : index
    %c0_485 = arith.constant 0 : index
    %343 = vector.load %arg4[%c0_483, %c0_484, %c0_485] : memref<11x11x4xf32, #tpu.memory_space<vmem>>, vector<11x11x4xf32>
    %344 = arith.addf %343, %342 : vector<11x11x4xf32>
    %c0_486 = arith.constant 0 : index
    %c0_487 = arith.constant 0 : index
    %c0_488 = arith.constant 0 : index
    %345 = vector.load %arg4[%c0_486, %c0_487, %c0_488] : memref<11x11x4xf32, #tpu.memory_space<vmem>>, vector<11x11x4xf32>
    tpu.vector_store %arg4[%c0_486, %c0_487, %c0_488], %344 {strides = array<i32>} : memref<11x11x4xf32, #tpu.memory_space<vmem>>, vector<11x11x4xf32>,
    %c0_i32_489 = arith.constant 0 : i32
    %c0_i32_490 = arith.constant 0 : i32
    %c0_i32_491 = arith.constant 0 : i32
    %c0_i32_492 = arith.constant 0 : i32
    %346 = tpu.memref_slice %arg2[%c0_i32_489, %c0_i32_490, %c0_i32_491, %c0_i32_492] : memref<1x16x16x4xf32, #tpu.memory_space<vmem>> -> memref<1x16x16x4xf32, #tpu.memory_space<vmem>>
    %347 = tpu.memref_squeeze %346 : memref<1x16x16x4xf32, #tpu.memory_space<vmem>> -> memref<16x16x4xf32, #tpu.memory_space<vmem>>
    %c4_493 = arith.constant 4 : index
    %c5_494 = arith.constant 5 : index
    %c0_495 = arith.constant 0 : index
    %348 = vector.load %347[%c4_493, %c5_494, %c0_495] : memref<16x16x4xf32, #tpu.memory_space<vmem>>, vector<11x11x4xf32>
    %c0_i32_496 = arith.constant 0 : i32
    %c0_i32_497 = arith.constant 0 : i32
    %c0_i32_498 = arith.constant 0 : i32
    %349 = tpu.memref_slice %arg1[%c0_i32_496, %c0_i32_497, %c0_i32_498] : memref<1x36x4xf32, #tpu.memory_space<vmem>> -> memref<1x36x4xf32, #tpu.memory_space<vmem>>
    %350 = tpu.memref_squeeze %349 : memref<1x36x4xf32, #tpu.memory_space<vmem>> -> memref<36x4xf32, #tpu.memory_space<vmem>>
    %c29 = arith.constant 29 : index
    %c0_499 = arith.constant 0 : index
    %351 = vector.load %350[%c29, %c0_499] : memref<36x4xf32, #tpu.memory_space<vmem>>, vector<1x4xf32>
    %352 = vector.shape_cast %351 : vector<1x4xf32> to vector<1x1x4xf32>
    %353 = vector.broadcast %352 : vector<1x1x4xf32> to vector<11x11x4xf32>
    %354 = arith.mulf %348, %353 : vector<11x11x4xf32>
    %c0_500 = arith.constant 0 : index
    %c0_501 = arith.constant 0 : index
    %c0_502 = arith.constant 0 : index
    %355 = vector.load %arg4[%c0_500, %c0_501, %c0_502] : memref<11x11x4xf32, #tpu.memory_space<vmem>>, vector<11x11x4xf32>
    %356 = arith.addf %355, %354 : vector<11x11x4xf32>
    %c0_503 = arith.constant 0 : index
    %c0_504 = arith.constant 0 : index
    %c0_505 = arith.constant 0 : index
    %357 = vector.load %arg4[%c0_503, %c0_504, %c0_505] : memref<11x11x4xf32, #tpu.memory_space<vmem>>, vector<11x11x4xf32>
    tpu.vector_store %arg4[%c0_503, %c0_504, %c0_505], %356 {strides = array<i32>} : memref<11x11x4xf32, #tpu.memory_space<vmem>>, vector<11x11x4xf32>,
    %c0_i32_506 = arith.constant 0 : i32
    %c0_i32_507 = arith.constant 0 : i32
    %c0_i32_508 = arith.constant 0 : i32
    %c0_i32_509 = arith.constant 0 : i32
    %358 = tpu.memref_slice %arg2[%c0_i32_506, %c0_i32_507, %c0_i32_508, %c0_i32_509] : memref<1x16x16x4xf32, #tpu.memory_space<vmem>> -> memref<1x16x16x4xf32, #tpu.memory_space<vmem>>
    %359 = tpu.memref_squeeze %358 : memref<1x16x16x4xf32, #tpu.memory_space<vmem>> -> memref<16x16x4xf32, #tpu.memory_space<vmem>>
    %c5_510 = arith.constant 5 : index
    %c0_511 = arith.constant 0 : index
    %c0_512 = arith.constant 0 : index
    %360 = vector.load %359[%c5_510, %c0_511, %c0_512] : memref<16x16x4xf32, #tpu.memory_space<vmem>>, vector<11x11x4xf32>
    %c0_i32_513 = arith.constant 0 : i32
    %c0_i32_514 = arith.constant 0 : i32
    %c0_i32_515 = arith.constant 0 : i32
    %361 = tpu.memref_slice %arg1[%c0_i32_513, %c0_i32_514, %c0_i32_515] : memref<1x36x4xf32, #tpu.memory_space<vmem>> -> memref<1x36x4xf32, #tpu.memory_space<vmem>>
    %362 = tpu.memref_squeeze %361 : memref<1x36x4xf32, #tpu.memory_space<vmem>> -> memref<36x4xf32, #tpu.memory_space<vmem>>
    %c30 = arith.constant 30 : index
    %c0_516 = arith.constant 0 : index
    %363 = vector.load %362[%c30, %c0_516] : memref<36x4xf32, #tpu.memory_space<vmem>>, vector<1x4xf32>
    %364 = vector.shape_cast %363 : vector<1x4xf32> to vector<1x1x4xf32>
    %365 = vector.broadcast %364 : vector<1x1x4xf32> to vector<11x11x4xf32>
    %366 = arith.mulf %360, %365 : vector<11x11x4xf32>
    %c0_517 = arith.constant 0 : index
    %c0_518 = arith.constant 0 : index
    %c0_519 = arith.constant 0 : index
    %367 = vector.load %arg4[%c0_517, %c0_518, %c0_519] : memref<11x11x4xf32, #tpu.memory_space<vmem>>, vector<11x11x4xf32>
    %368 = arith.addf %367, %366 : vector<11x11x4xf32>
    %c0_520 = arith.constant 0 : index
    %c0_521 = arith.constant 0 : index
    %c0_522 = arith.constant 0 : index
    %369 = vector.load %arg4[%c0_520, %c0_521, %c0_522] : memref<11x11x4xf32, #tpu.memory_space<vmem>>, vector<11x11x4xf32>
    tpu.vector_store %arg4[%c0_520, %c0_521, %c0_522], %368 {strides = array<i32>} : memref<11x11x4xf32, #tpu.memory_space<vmem>>, vector<11x11x4xf32>,
    %c0_i32_523 = arith.constant 0 : i32
    %c0_i32_524 = arith.constant 0 : i32
    %c0_i32_525 = arith.constant 0 : i32
    %c0_i32_526 = arith.constant 0 : i32
    %370 = tpu.memref_slice %arg2[%c0_i32_523, %c0_i32_524, %c0_i32_525, %c0_i32_526] : memref<1x16x16x4xf32, #tpu.memory_space<vmem>> -> memref<1x16x16x4xf32, #tpu.memory_space<vmem>>
    %371 = tpu.memref_squeeze %370 : memref<1x16x16x4xf32, #tpu.memory_space<vmem>> -> memref<16x16x4xf32, #tpu.memory_space<vmem>>
    %c5_527 = arith.constant 5 : index
    %c1_528 = arith.constant 1 : index
    %c0_529 = arith.constant 0 : index
    %372 = vector.load %371[%c5_527, %c1_528, %c0_529] : memref<16x16x4xf32, #tpu.memory_space<vmem>>, vector<11x11x4xf32>
    %c0_i32_530 = arith.constant 0 : i32
    %c0_i32_531 = arith.constant 0 : i32
    %c0_i32_532 = arith.constant 0 : i32
    %373 = tpu.memref_slice %arg1[%c0_i32_530, %c0_i32_531, %c0_i32_532] : memref<1x36x4xf32, #tpu.memory_space<vmem>> -> memref<1x36x4xf32, #tpu.memory_space<vmem>>
    %374 = tpu.memref_squeeze %373 : memref<1x36x4xf32, #tpu.memory_space<vmem>> -> memref<36x4xf32, #tpu.memory_space<vmem>>
    %c31 = arith.constant 31 : index
    %c0_533 = arith.constant 0 : index
    %375 = vector.load %374[%c31, %c0_533] : memref<36x4xf32, #tpu.memory_space<vmem>>, vector<1x4xf32>
    %376 = vector.shape_cast %375 : vector<1x4xf32> to vector<1x1x4xf32>
    %377 = vector.broadcast %376 : vector<1x1x4xf32> to vector<11x11x4xf32>
    %378 = arith.mulf %372, %377 : vector<11x11x4xf32>
    %c0_534 = arith.constant 0 : index
    %c0_535 = arith.constant 0 : index
    %c0_536 = arith.constant 0 : index
    %379 = vector.load %arg4[%c0_534, %c0_535, %c0_536] : memref<11x11x4xf32, #tpu.memory_space<vmem>>, vector<11x11x4xf32>
    %380 = arith.addf %379, %378 : vector<11x11x4xf32>
    %c0_537 = arith.constant 0 : index
    %c0_538 = arith.constant 0 : index
    %c0_539 = arith.constant 0 : index
    %381 = vector.load %arg4[%c0_537, %c0_538, %c0_539] : memref<11x11x4xf32, #tpu.memory_space<vmem>>, vector<11x11x4xf32>
    tpu.vector_store %arg4[%c0_537, %c0_538, %c0_539], %380 {strides = array<i32>} : memref<11x11x4xf32, #tpu.memory_space<vmem>>, vector<11x11x4xf32>,
    %c0_i32_540 = arith.constant 0 : i32
    %c0_i32_541 = arith.constant 0 : i32
    %c0_i32_542 = arith.constant 0 : i32
    %c0_i32_543 = arith.constant 0 : i32
    %382 = tpu.memref_slice %arg2[%c0_i32_540, %c0_i32_541, %c0_i32_542, %c0_i32_543] : memref<1x16x16x4xf32, #tpu.memory_space<vmem>> -> memref<1x16x16x4xf32, #tpu.memory_space<vmem>>
    %383 = tpu.memref_squeeze %382 : memref<1x16x16x4xf32, #tpu.memory_space<vmem>> -> memref<16x16x4xf32, #tpu.memory_space<vmem>>
    %c5_544 = arith.constant 5 : index
    %c2_545 = arith.constant 2 : index
    %c0_546 = arith.constant 0 : index
    %384 = vector.load %383[%c5_544, %c2_545, %c0_546] : memref<16x16x4xf32, #tpu.memory_space<vmem>>, vector<11x11x4xf32>
    %c0_i32_547 = arith.constant 0 : i32
    %c0_i32_548 = arith.constant 0 : i32
    %c0_i32_549 = arith.constant 0 : i32
    %385 = tpu.memref_slice %arg1[%c0_i32_547, %c0_i32_548, %c0_i32_549] : memref<1x36x4xf32, #tpu.memory_space<vmem>> -> memref<1x36x4xf32, #tpu.memory_space<vmem>>
    %386 = tpu.memref_squeeze %385 : memref<1x36x4xf32, #tpu.memory_space<vmem>> -> memref<36x4xf32, #tpu.memory_space<vmem>>
    %c32 = arith.constant 32 : index
    %c0_550 = arith.constant 0 : index
    %387 = vector.load %386[%c32, %c0_550] : memref<36x4xf32, #tpu.memory_space<vmem>>, vector<1x4xf32>
    %388 = vector.shape_cast %387 : vector<1x4xf32> to vector<1x1x4xf32>
    %389 = vector.broadcast %388 : vector<1x1x4xf32> to vector<11x11x4xf32>
    %390 = arith.mulf %384, %389 : vector<11x11x4xf32>
    %c0_551 = arith.constant 0 : index
    %c0_552 = arith.constant 0 : index
    %c0_553 = arith.constant 0 : index
    %391 = vector.load %arg4[%c0_551, %c0_552, %c0_553] : memref<11x11x4xf32, #tpu.memory_space<vmem>>, vector<11x11x4xf32>
    %392 = arith.addf %391, %390 : vector<11x11x4xf32>
    %c0_554 = arith.constant 0 : index
    %c0_555 = arith.constant 0 : index
    %c0_556 = arith.constant 0 : index
    %393 = vector.load %arg4[%c0_554, %c0_555, %c0_556] : memref<11x11x4xf32, #tpu.memory_space<vmem>>, vector<11x11x4xf32>
    tpu.vector_store %arg4[%c0_554, %c0_555, %c0_556], %392 {strides = array<i32>} : memref<11x11x4xf32, #tpu.memory_space<vmem>>, vector<11x11x4xf32>,
    %c0_i32_557 = arith.constant 0 : i32
    %c0_i32_558 = arith.constant 0 : i32
    %c0_i32_559 = arith.constant 0 : i32
    %c0_i32_560 = arith.constant 0 : i32
    %394 = tpu.memref_slice %arg2[%c0_i32_557, %c0_i32_558, %c0_i32_559, %c0_i32_560] : memref<1x16x16x4xf32, #tpu.memory_space<vmem>> -> memref<1x16x16x4xf32, #tpu.memory_space<vmem>>
    %395 = tpu.memref_squeeze %394 : memref<1x16x16x4xf32, #tpu.memory_space<vmem>> -> memref<16x16x4xf32, #tpu.memory_space<vmem>>
    %c5_561 = arith.constant 5 : index
    %c3_562 = arith.constant 3 : index
    %c0_563 = arith.constant 0 : index
    %396 = vector.load %395[%c5_561, %c3_562, %c0_563] : memref<16x16x4xf32, #tpu.memory_space<vmem>>, vector<11x11x4xf32>
    %c0_i32_564 = arith.constant 0 : i32
    %c0_i32_565 = arith.constant 0 : i32
    %c0_i32_566 = arith.constant 0 : i32
    %397 = tpu.memref_slice %arg1[%c0_i32_564, %c0_i32_565, %c0_i32_566] : memref<1x36x4xf32, #tpu.memory_space<vmem>> -> memref<1x36x4xf32, #tpu.memory_space<vmem>>
    %398 = tpu.memref_squeeze %397 : memref<1x36x4xf32, #tpu.memory_space<vmem>> -> memref<36x4xf32, #tpu.memory_space<vmem>>
    %c33 = arith.constant 33 : index
    %c0_567 = arith.constant 0 : index
    %399 = vector.load %398[%c33, %c0_567] : memref<36x4xf32, #tpu.memory_space<vmem>>, vector<1x4xf32>
    %400 = vector.shape_cast %399 : vector<1x4xf32> to vector<1x1x4xf32>
    %401 = vector.broadcast %400 : vector<1x1x4xf32> to vector<11x11x4xf32>
    %402 = arith.mulf %396, %401 : vector<11x11x4xf32>
    %c0_568 = arith.constant 0 : index
    %c0_569 = arith.constant 0 : index
    %c0_570 = arith.constant 0 : index
    %403 = vector.load %arg4[%c0_568, %c0_569, %c0_570] : memref<11x11x4xf32, #tpu.memory_space<vmem>>, vector<11x11x4xf32>
    %404 = arith.addf %403, %402 : vector<11x11x4xf32>
    %c0_571 = arith.constant 0 : index
    %c0_572 = arith.constant 0 : index
    %c0_573 = arith.constant 0 : index
    %405 = vector.load %arg4[%c0_571, %c0_572, %c0_573] : memref<11x11x4xf32, #tpu.memory_space<vmem>>, vector<11x11x4xf32>
    tpu.vector_store %arg4[%c0_571, %c0_572, %c0_573], %404 {strides = array<i32>} : memref<11x11x4xf32, #tpu.memory_space<vmem>>, vector<11x11x4xf32>,
    %c0_i32_574 = arith.constant 0 : i32
    %c0_i32_575 = arith.constant 0 : i32
    %c0_i32_576 = arith.constant 0 : i32
    %c0_i32_577 = arith.constant 0 : i32
    %406 = tpu.memref_slice %arg2[%c0_i32_574, %c0_i32_575, %c0_i32_576, %c0_i32_577] : memref<1x16x16x4xf32, #tpu.memory_space<vmem>> -> memref<1x16x16x4xf32, #tpu.memory_space<vmem>>
    %407 = tpu.memref_squeeze %406 : memref<1x16x16x4xf32, #tpu.memory_space<vmem>> -> memref<16x16x4xf32, #tpu.memory_space<vmem>>
    %c5_578 = arith.constant 5 : index
    %c4_579 = arith.constant 4 : index
    %c0_580 = arith.constant 0 : index
    %408 = vector.load %407[%c5_578, %c4_579, %c0_580] : memref<16x16x4xf32, #tpu.memory_space<vmem>>, vector<11x11x4xf32>
    %c0_i32_581 = arith.constant 0 : i32
    %c0_i32_582 = arith.constant 0 : i32
    %c0_i32_583 = arith.constant 0 : i32
    %409 = tpu.memref_slice %arg1[%c0_i32_581, %c0_i32_582, %c0_i32_583] : memref<1x36x4xf32, #tpu.memory_space<vmem>> -> memref<1x36x4xf32, #tpu.memory_space<vmem>>
    %410 = tpu.memref_squeeze %409 : memref<1x36x4xf32, #tpu.memory_space<vmem>> -> memref<36x4xf32, #tpu.memory_space<vmem>>
    %c34 = arith.constant 34 : index
    %c0_584 = arith.constant 0 : index
    %411 = vector.load %410[%c34, %c0_584] : memref<36x4xf32, #tpu.memory_space<vmem>>, vector<1x4xf32>
    %412 = vector.shape_cast %411 : vector<1x4xf32> to vector<1x1x4xf32>
    %413 = vector.broadcast %412 : vector<1x1x4xf32> to vector<11x11x4xf32>
    %414 = arith.mulf %408, %413 : vector<11x11x4xf32>
    %c0_585 = arith.constant 0 : index
    %c0_586 = arith.constant 0 : index
    %c0_587 = arith.constant 0 : index
    %415 = vector.load %arg4[%c0_585, %c0_586, %c0_587] : memref<11x11x4xf32, #tpu.memory_space<vmem>>, vector<11x11x4xf32>
    %416 = arith.addf %415, %414 : vector<11x11x4xf32>
    %c0_588 = arith.constant 0 : index
    %c0_589 = arith.constant 0 : index
    %c0_590 = arith.constant 0 : index
    %417 = vector.load %arg4[%c0_588, %c0_589, %c0_590] : memref<11x11x4xf32, #tpu.memory_space<vmem>>, vector<11x11x4xf32>
    tpu.vector_store %arg4[%c0_588, %c0_589, %c0_590], %416 {strides = array<i32>} : memref<11x11x4xf32, #tpu.memory_space<vmem>>, vector<11x11x4xf32>,
    %c0_i32_591 = arith.constant 0 : i32
    %c0_i32_592 = arith.constant 0 : i32
    %c0_i32_593 = arith.constant 0 : i32
    %c0_i32_594 = arith.constant 0 : i32
    %418 = tpu.memref_slice %arg2[%c0_i32_591, %c0_i32_592, %c0_i32_593, %c0_i32_594] : memref<1x16x16x4xf32, #tpu.memory_space<vmem>> -> memref<1x16x16x4xf32, #tpu.memory_space<vmem>>
    %419 = tpu.memref_squeeze %418 : memref<1x16x16x4xf32, #tpu.memory_space<vmem>> -> memref<16x16x4xf32, #tpu.memory_space<vmem>>
    %c5_595 = arith.constant 5 : index
    %c5_596 = arith.constant 5 : index
    %c0_597 = arith.constant 0 : index
    %420 = vector.load %419[%c5_595, %c5_596, %c0_597] : memref<16x16x4xf32, #tpu.memory_space<vmem>>, vector<11x11x4xf32>
    %c0_i32_598 = arith.constant 0 : i32
    %c0_i32_599 = arith.constant 0 : i32
    %c0_i32_600 = arith.constant 0 : i32
    %421 = tpu.memref_slice %arg1[%c0_i32_598, %c0_i32_599, %c0_i32_600] : memref<1x36x4xf32, #tpu.memory_space<vmem>> -> memref<1x36x4xf32, #tpu.memory_space<vmem>>
    %422 = tpu.memref_squeeze %421 : memref<1x36x4xf32, #tpu.memory_space<vmem>> -> memref<36x4xf32, #tpu.memory_space<vmem>>
    %c35 = arith.constant 35 : index
    %c0_601 = arith.constant 0 : index
    %423 = vector.load %422[%c35, %c0_601] : memref<36x4xf32, #tpu.memory_space<vmem>>, vector<1x4xf32>
    %424 = vector.shape_cast %423 : vector<1x4xf32> to vector<1x1x4xf32>
    %425 = vector.broadcast %424 : vector<1x1x4xf32> to vector<11x11x4xf32>
    %426 = arith.mulf %420, %425 : vector<11x11x4xf32>
    %c0_602 = arith.constant 0 : index
    %c0_603 = arith.constant 0 : index
    %c0_604 = arith.constant 0 : index
    %427 = vector.load %arg4[%c0_602, %c0_603, %c0_604] : memref<11x11x4xf32, #tpu.memory_space<vmem>>, vector<11x11x4xf32>
    %428 = arith.addf %427, %426 : vector<11x11x4xf32>
    %c0_605 = arith.constant 0 : index
    %c0_606 = arith.constant 0 : index
    %c0_607 = arith.constant 0 : index
    %429 = vector.load %arg4[%c0_605, %c0_606, %c0_607] : memref<11x11x4xf32, #tpu.memory_space<vmem>>, vector<11x11x4xf32>
    tpu.vector_store %arg4[%c0_605, %c0_606, %c0_607], %428 {strides = array<i32>} : memref<11x11x4xf32, #tpu.memory_space<vmem>>, vector<11x11x4xf32>,
    %c0_608 = arith.constant 0 : index
    %c0_609 = arith.constant 0 : index
    %c0_610 = arith.constant 0 : index
    %430 = vector.load %arg4[%c0_608, %c0_609, %c0_610] : memref<11x11x4xf32, #tpu.memory_space<vmem>>, vector<11x11x4xf32>
    %cst = arith.constant dense<0.000000e+00> : vector<11x11xf32>
    %431 = vector.multi_reduction <add>, %430, %cst [2] : vector<11x11x4xf32> to vector<11x11xf32>
    %cst_611 = arith.constant 1.000000e-03 : f32
    %432 = vector.broadcast %cst_611 : f32 to vector<11x11xf32>
    %433 = arith.mulf %431, %432 : vector<11x11xf32>
    %c0_612 = arith.constant 0 : index
    %c0_613 = arith.constant 0 : index
    %c0_614 = arith.constant 0 : index
    %434 = vector.load %arg3[%c0_612, %c0_613, %c0_614] : memref<1x11x11xf32, #tpu.memory_space<vmem>>, vector<1x11x11xf32>
    %435 = vector.shape_cast %434 : vector<1x11x11xf32> to vector<11x11xf32>
    %436 = vector.shape_cast %433 : vector<11x11xf32> to vector<1x11x11xf32>
    tpu.vector_store %arg3[%c0_612, %c0_613, %c0_614], %436 {strides = array<i32>} : memref<1x11x11xf32, #tpu.memory_space<vmem>>, vector<1x11x11xf32>,
    return
  }
  func.func @transform_0(%arg0: i32) -> (i32, i32, i32) {
    %c0_i32 = arith.constant 0 : i32
    %c0_i32_0 = arith.constant 0 : i32
    %c0_i32_1 = arith.constant 0 : i32
    return %arg0, %c0_i32, %c0_i32_0 : i32, i32, i32
  }
  func.func @transform_1(%arg0: i32) -> (i32, i32, i32, i32) {
    %c0_i32 = arith.constant 0 : i32
    %c0_i32_0 = arith.constant 0 : i32
    %c0_i32_1 = arith.constant 0 : i32
    %c0_i32_2 = arith.constant 0 : i32
    return %arg0, %c0_i32, %c0_i32_0, %c0_i32_1 : i32, i32, i32, i32
  }
  func.func @transform_2(%arg0: i32) -> (i32, i32, i32) {
    %c0_i32 = arith.constant 0 : i32
    %c0_i32_0 = arith.constant 0 : i32
    %c0_i32_1 = arith.constant 0 : i32
    return %arg0, %c0_i32, %c0_i32_0 : i32, i32, i32
  }
}

</mosaic_0001>

<llo_original>
// kernel: tpu_custom_call.1
$region0: #{tpu_custom_call.1}
  #allocation0 [shape = 'u32[]', space=smem, size = 0x4, offset = 0x4, fixed_abs, tag = 'smem constant byte address 0x4 - core index']
  #allocation1 [shape = 'u32[72,128]{1,0:T(1,128)}', space=vmem, size = 0x9000, scoped, tag = 'internal scratch']
  #allocation2 [shape = 'f32[11,11,4]{2,1,0:T(8,128)}', space=vmem, size = 0x16000, scoped, tag = 'scratch operand']
  %s0 = inlined_call_operand.vmem [shape: f32[2,36,4], index: 0, kind: input, shape index: {}]
  %s1 = inlined_call_operand.vmem [shape: f32[2,16,16,4], index: 1, kind: input, shape index: {}]
  %s2 = inlined_call_operand.vmem [shape: f32[2,11,11], index: 2, kind: output, shape index: {}]
  %s3 = sld [smem:[#allocation0]]
  $region41: #{tpu_custom_call.1} parent=0
    _
  %s5 = ssub.s32 1, %s3
  %s6 = scalar_select 0, %s5, %s3
  loop: start=0, step=1, limit=4
  $region2: #{tpu_custom_call.1} parent=0 // loop_pre_header
    _
  $region3: #{tpu_custom_call.1} parent=0 // loop_header
    %s8 = sphi 0, %s12
    %p9 = scmp.ge.s32.totalorder %s8, 4
    %s18 = sphi 0, %s20
    %s21 = sphi 0, %s18
    %s22 = sphi 0, %s21
    %s38 = sphi 0, %s22
    %s44 = sphi 0, %s46
    %s47 = sphi 0, %s44
    %s48 = sphi 0, %s47
    %s64 = sphi 0, %s48
    %s70 = sphi 0, %s72
    %s73 = sphi 0, %s70
    %s74 = sphi 0, %s73
    %s90 = sphi 0, %s74
  $region4: #{tpu_custom_call.1} parent=0 // loop_header_branch
    %11 = sbr.rel (%p9) target = $region8
  $region5: #{tpu_custom_call.1} parent=0 // loop_body
    %s13 = ssub.s32 %s8, 1
    %s14 = ssub.s32 %s8, 2
    %s15 = sadd.s32 %s8, 1
    %s16 = ssub.s32 %s8, %s15
    %p17 = scmp.eq.s32.totalorder %s16, 0
    %s19 = sadd.s32 %s18, 1
    %s20 = scalar_select %p17, %s18, %s19
    %p23 = pneg %p17
    %p24 = scmp.eq.s32.totalorder %s8, 1
    %p25 = por %p23, %p24
    %p26 = scmp.ne.s32.totalorder %s18, %s21
    %p27 = scmp.eq.s32.totalorder %s8, 0
    %p28 = por %p26, %p27
    %p29 = scmp.ne.s32.totalorder %s18, %s21
    %p30 = scmp.eq.s32.totalorder %s13, 1
    %p31 = por %p29, %p30
    %p32 = scmp.ne.s32.totalorder %s21, %s22
    %p33 = scmp.eq.s32.totalorder %s13, 0
    %p34 = por %p32, %p33
    %p35 = scmp.ne.s32.totalorder %s21, %s22
    %p36 = scmp.eq.s32.totalorder %s14, 1
    %p37 = por %p35, %p36
    %p39 = scmp.ne.s32.totalorder %s22, %s38
    %p40 = scmp.eq.s32.totalorder %s14, 0
    %p41 = por %p39, %p40
    %s42 = ssub.s32 %s8, %s15
    %p43 = scmp.eq.s32.totalorder %s42, 0
    %s45 = sadd.s32 %s44, 1
    %s46 = scalar_select %p43, %s44, %s45
    %p49 = pneg %p43
    %p50 = scmp.eq.s32.totalorder %s8, 1
    %p51 = por %p49, %p50
    %p52 = scmp.ne.s32.totalorder %s44, %s47
    %p53 = scmp.eq.s32.totalorder %s8, 0
    %p54 = por %p52, %p53
    %p55 = scmp.ne.s32.totalorder %s44, %s47
    %p56 = scmp.eq.s32.totalorder %s13, 1
    %p57 = por %p55, %p56
    %p58 = scmp.ne.s32.totalorder %s47, %s48
    %p59 = scmp.eq.s32.totalorder %s13, 0
    %p60 = por %p58, %p59
    %p61 = scmp.ne.s32.totalorder %s47, %s48
    %p62 = scmp.eq.s32.totalorder %s14, 1
    %p63 = por %p61, %p62
    %p65 = scmp.ne.s32.totalorder %s48, %s64
    %p66 = scmp.eq.s32.totalorder %s14, 0
    %p67 = por %p65, %p66
    %s68 = ssub.s32 %s8, %s15
    %p69 = scmp.eq.s32.totalorder %s68, 0
    %s71 = sadd.s32 %s70, 1
    %s72 = scalar_select %p69, %s70, %s71
    %p75 = pneg %p69
    %p76 = scmp.eq.s32.totalorder %s8, 1
    %p77 = por %p75, %p76
    %p78 = scmp.ne.s32.totalorder %s70, %s73
    %p79 = scmp.eq.s32.totalorder %s8, 0
    %p80 = por %p78, %p79
    %p81 = scmp.ne.s32.totalorder %s70, %s73
    %p82 = scmp.eq.s32.totalorder %s13, 1
    %p83 = por %p81, %p82
    %p84 = scmp.ne.s32.totalorder %s73, %s74
    %p85 = scmp.eq.s32.totalorder %s13, 0
    %p86 = por %p84, %p85
    %p87 = scmp.ne.s32.totalorder %s73, %s74
    %p88 = scmp.eq.s32.totalorder %s14, 1
    %p89 = por %p87, %p88
    %p91 = scmp.ne.s32.totalorder %s74, %s90
    %p92 = scmp.eq.s32.totalorder %s14, 0
    %p93 = por %p91, %p92
    %p94 = scmp.le.s32.totalorder 1, %s8
    %p95 = scmp.lt.s32.totalorder %s8, 3
    %p96 = pnand %p94, %p95
    %p97 = pneg %p96
    // Predicated region
    $region9: #{tpu_custom_call.1} parent=5 // pred_check
      _
    $region10: #{tpu_custom_call.1} parent=5 // pred_check_branch
      %99 = sbr.rel (%p96) target = $region12
    $region11: #{tpu_custom_call.1} parent=5 // pred_region
      %s100 = ssub.s32 %s8, 1
    $region12: #{tpu_custom_call.1} parent=5 // pred_fallthru
      _
    %p101 = scmp.lt.s32.totalorder %s8, 2
    // Predicated region
    $region13: #{tpu_custom_call.1} parent=5 // pred_check
      %p102 = pneg %p101
    $region14: #{tpu_custom_call.1} parent=5 // pred_check_branch
      %104 = sbr.rel (%p102) target = $region16
    $region15: #{tpu_custom_call.1} parent=5 // pred_region
      // Predicated region
      $region17: #{tpu_custom_call.1} parent=15 // pred_check
        %p105 = pneg %p28
      $region18: #{tpu_custom_call.1} parent=15 // pred_check_branch
        %107 = sbr.rel (%p105) target = $region20
      $region19: #{tpu_custom_call.1} parent=15 // pred_region
        %p108 = scmp.lt.s32.totalorder %s8, 1
        %s109 = scalar_select %p108, %s8, 1
        %s110 = smul.addr %s109, 5
        %s111 = smul.addr %s110, 8
        %s112 = scalar_lea.vmem %s0, %s111
      $region20: #{tpu_custom_call.1} parent=15 // pred_fallthru
        _
      // Predicated region
      $region21: #{tpu_custom_call.1} parent=15 // pred_check
        %p113 = pneg %p54
      $region22: #{tpu_custom_call.1} parent=15 // pred_check_branch
        %115 = sbr.rel (%p113) target = $region24
      $region23: #{tpu_custom_call.1} parent=15 // pred_region
        %p116 = scmp.lt.s32.totalorder %s8, 1
        %s117 = scalar_select %p116, %s8, 1
        %s118 = smul.addr %s117, 32
        %s119 = smul.addr %s118, 8
        %s120 = scalar_lea.vmem %s1, %s119
      $region24: #{tpu_custom_call.1} parent=15 // pred_fallthru
        _
    $region16: #{tpu_custom_call.1} parent=5 // pred_fallthru
      _
    %p121 = scmp.le.s32.totalorder 1, %s8
    %p122 = scmp.lt.s32.totalorder %s8, 3
    %p123 = pnand %p121, %p122
    %p124 = pneg %p123
    // Predicated region
    $region25: #{tpu_custom_call.1} parent=5 // pred_check
      _
    $region26: #{tpu_custom_call.1} parent=5 // pred_check_branch
      %126 = sbr.rel (%p123) target = $region28
    $region27: #{tpu_custom_call.1} parent=5 // pred_region
      %s127 = ssub.s32 %s8, 1
      %p128 = scmp.lt.s32.totalorder %s13, 1
      %s129 = scalar_select %p128, %s13, 1
      %s130 = smul.addr %s129, 5
      %s131 = smul.addr %s130, 8
      %s132 = scalar_lea.vmem %s0, %s131
      %p133 = pneg %p34
      %p134 = pneg %p31
      %p135 = scmp.lt.s32.totalorder %s13, 1
      %s136 = scalar_select %p135, %s13, 1
      %s137 = smul.addr %s136, 32
      %s138 = smul.addr %s137, 8
      %s139 = scalar_lea.vmem %s1, %s138
      %p140 = pneg %p60
      %p141 = pneg %p57
      %p142 = pneg %p86
      %p143 = pneg %p83
      %p144 = scmp.lt.s32.totalorder %s13, 1
      %s145 = scalar_select %p144, %s13, 1
      %s146 = smul.addr %s145, 2
      %s147 = smul.addr %s146, 8
      %s148 = scalar_lea.vmem %s2, %s147
      %p149 = scmp.lt.s32.totalorder %s13, 1
      %s150 = scalar_select %p149, %s13, 1
      %s151 = smul.addr %s150, 5
      %s152 = smul.addr %s151, 8
      %s153 = scalar_lea.vmem %s0, %s152
      %p154 = scmp.lt.s32.totalorder %s13, 1
      %s155 = scalar_select %p154, %s13, 1
      %s156 = smul.addr %s155, 32
      %s157 = smul.addr %s156, 8
      %s158 = scalar_lea.vmem %s1, %s157
      %p159 = scmp.lt.s32.totalorder %s13, 1
      %s160 = scalar_select %p159, %s13, 1
      %s161 = smul.addr %s160, 2
      %s162 = smul.addr %s161, 8
      %s163 = scalar_lea.vmem %s2, %s162
      %v164 = vld [vmem:[%s158] sm:$0xff]
      %v165 = vld [vmem:[%s158 + $0x8] sm:$0x7]
      %v166 = vld [vmem:[%s158 + $0x10] sm:$0xff]
      %v167 = vld [vmem:[%s158 + $0x18] sm:$0x7]
      %v168 = vld [vmem:[%s158 + $0x20] sm:$0xff]
      %v169 = vld [vmem:[%s158 + $0x28] sm:$0x7]
      %v170 = vld [vmem:[%s158 + $0x30] sm:$0xff]
      %v171 = vld [vmem:[%s158 + $0x38] sm:$0x7]
      %v172 = vld [vmem:[%s158 + $0x40] sm:$0xff]
      %v173 = vld [vmem:[%s158 + $0x48] sm:$0x7]
      %v174 = vld [vmem:[%s158 + $0x50] sm:$0xff]
      %v175 = vld [vmem:[%s158 + $0x58] sm:$0x7]
      %v176 = vld [vmem:[%s158 + $0x60] sm:$0xff]
      %v177 = vld [vmem:[%s158 + $0x68] sm:$0x7]
      %v178 = vld [vmem:[%s158 + $0x70] sm:$0xff]
      %v179 = vld [vmem:[%s158 + $0x78] sm:$0x7]
      %v180 = vld [vmem:[%s158 + $0x80] sm:$0xff]
      %v181 = vld [vmem:[%s158 + $0x88] sm:$0x7]
      %v182 = vld [vmem:[%s158 + $0x90] sm:$0xff]
      %v183 = vld [vmem:[%s158 + $0x98] sm:$0x7]
      %v184 = vld [vmem:[%s158 + $0xa0] sm:$0xff]
      %v185 = vld [vmem:[%s158 + $0xa8] sm:$0x7]
      %v186 = vld [vmem:[%s153] sm:$0x1]
      %v187 = vperm.slane %v186, 0
      %v188 = vmul.f32 %v164, %v187
      %v189 = vmul.f32 %v165, %v187
      %v190 = vmul.f32 %v166, %v187
      %v191 = vmul.f32 %v167, %v187
      %v192 = vmul.f32 %v168, %v187
      %v193 = vmul.f32 %v169, %v187
      %v194 = vmul.f32 %v170, %v187
      %v195 = vmul.f32 %v171, %v187
      %v196 = vmul.f32 %v172, %v187
      %v197 = vmul.f32 %v173, %v187
      %v198 = vmul.f32 %v174, %v187
      %v199 = vmul.f32 %v175, %v187
      %v200 = vmul.f32 %v176, %v187
      %v201 = vmul.f32 %v177, %v187
      %v202 = vmul.f32 %v178, %v187
      %v203 = vmul.f32 %v179, %v187
      %v204 = vmul.f32 %v180, %v187
      %v205 = vmul.f32 %v181, %v187
      %v206 = vmul.f32 %v182, %v187
      %v207 = vmul.f32 %v183, %v187
      %v208 = vmul.f32 %v184, %v187
      %v209 = vmul.f32 %v185, %v187
      %vm210 = vcmask 31744
      %211 = vst.msk [vmem:[#allocation2] sm:$0xff] %vm210, %v188
      %vm212 = vcmask 26624
      %213 = vst.msk [vmem:[#allocation2 + $0x8] sm:$0x7] %vm212, %v189
      %214 = vst.msk [vmem:[#allocation2 + $0x10] sm:$0xff] %vm210, %v190
      %215 = vst.msk [vmem:[#allocation2 + $0x18] sm:$0x7] %vm212, %v191
      %216 = vst.msk [vmem:[#allocation2 + $0x20] sm:$0xff] %vm210, %v192
      %217 = vst.msk [vmem:[#allocation2 + $0x28] sm:$0x7] %vm212, %v193
      %218 = vst.msk [vmem:[#allocation2 + $0x30] sm:$0xff] %vm210, %v194
      %219 = vst.msk [vmem:[#allocation2 + $0x38] sm:$0x7] %vm212, %v195
      %220 = vst.msk [vmem:[#allocation2 + $0x40] sm:$0xff] %vm210, %v196
      %221 = vst.msk [vmem:[#allocation2 + $0x48] sm:$0x7] %vm212, %v197
      %222 = vst.msk [vmem:[#allocation2 + $0x50] sm:$0xff] %vm210, %v198
      %223 = vst.msk [vmem:[#allocation2 + $0x58] sm:$0x7] %vm212, %v199
      %224 = vst.msk [vmem:[#allocation2 + $0x60] sm:$0xff] %vm210, %v200
      %225 = vst.msk [vmem:[#allocation2 + $0x68] sm:$0x7] %vm212, %v201
      %226 = vst.msk [vmem:[#allocation2 + $0x70] sm:$0xff] %vm210, %v202
      %227 = vst.msk [vmem:[#allocation2 + $0x78] sm:$0x7] %vm212, %v203
      %228 = vst.msk [vmem:[#allocation2 + $0x80] sm:$0xff] %vm210, %v204
      %229 = vst.msk [vmem:[#allocation2 + $0x88] sm:$0x7] %vm212, %v205
      %230 = vst.msk [vmem:[#allocation2 + $0x90] sm:$0xff] %vm210, %v206
      %231 = vst.msk [vmem:[#allocation2 + $0x98] sm:$0x7] %vm212, %v207
      %232 = vst.msk [vmem:[#allocation2 + $0xa0] sm:$0xff] %vm210, %v208
      %233 = vst.msk [vmem:[#allocation2 + $0xa8] sm:$0x7] %vm212, %v209
      %v234 = vld [vmem:[%s158 + $0x1] sm:$0xff]
      %v235 = vld [vmem:[%s158 + $0x9] sm:$0x7]
      %v236 = vld [vmem:[%s158 + $0x11] sm:$0xff]
      %v237 = vld [vmem:[%s158 + $0x19] sm:$0x7]
      %v238 = vld [vmem:[%s158 + $0x21] sm:$0xff]
      %v239 = vld [vmem:[%s158 + $0x29] sm:$0x7]
      %v240 = vld [vmem:[%s158 + $0x31] sm:$0xff]
      %v241 = vld [vmem:[%s158 + $0x39] sm:$0x7]
      %v242 = vld [vmem:[%s158 + $0x41] sm:$0xff]
      %v243 = vld [vmem:[%s158 + $0x49] sm:$0x7]
      %v244 = vld [vmem:[%s158 + $0x51] sm:$0xff]
      %v245 = vld [vmem:[%s158 + $0x59] sm:$0x7]
      %v246 = vld [vmem:[%s158 + $0x61] sm:$0xff]
      %v247 = vld [vmem:[%s158 + $0x69] sm:$0x7]
      %v248 = vld [vmem:[%s158 + $0x71] sm:$0xff]
      %v249 = vld [vmem:[%s158 + $0x79] sm:$0x7]
      %v250 = vld [vmem:[%s158 + $0x81] sm:$0xff]
      %v251 = vld [vmem:[%s158 + $0x89] sm:$0x7]
      %v252 = vld [vmem:[%s158 + $0x91] sm:$0xff]
      %v253 = vld [vmem:[%s158 + $0x99] sm:$0x7]
      %v254 = vld [vmem:[%s158 + $0xa1] sm:$0xff]
      %v255 = vld [vmem:[%s158 + $0xa9] sm:$0x7]
      %v256 = vld [vmem:[%s153 + $0x1] sm:$0x1]
      %v257 = vperm.slane %v256, 0
      %v258 = vmul.f32 %v234, %v257
      %v259 = vmul.f32 %v235, %v257
      %v260 = vmul.f32 %v236, %v257
      %v261 = vmul.f32 %v237, %v257
      %v262 = vmul.f32 %v238, %v257
      %v263 = vmul.f32 %v239, %v257
      %v264 = vmul.f32 %v240, %v257
      %v265 = vmul.f32 %v241, %v257
      %v266 = vmul.f32 %v242, %v257
      %v267 = vmul.f32 %v243, %v257
      %v268 = vmul.f32 %v244, %v257
      %v269 = vmul.f32 %v245, %v257
      %v270 = vmul.f32 %v246, %v257
      %v271 = vmul.f32 %v247, %v257
      %v272 = vmul.f32 %v248, %v257
      %v273 = vmul.f32 %v249, %v257
      %v274 = vmul.f32 %v250, %v257
      %v275 = vmul.f32 %v251, %v257
      %v276 = vmul.f32 %v252, %v257
      %v277 = vmul.f32 %v253, %v257
      %v278 = vmul.f32 %v254, %v257
      %v279 = vmul.f32 %v255, %v257
      %v280 = vld [vmem:[#allocation2] sm:$0xff]
      %v281 = vld [vmem:[#allocation2 + $0x8] sm:$0x7]
      %v282 = vld [vmem:[#allocation2 + $0x10] sm:$0xff]
      %v283 = vld [vmem:[#allocation2 + $0x18] sm:$0x7]
      %v284 = vld [vmem:[#allocation2 + $0x20] sm:$0xff]
      %v285 = vld [vmem:[#allocation2 + $0x28] sm:$0x7]
      %v286 = vld [vmem:[#allocation2 + $0x30] sm:$0xff]
      %v287 = vld [vmem:[#allocation2 + $0x38] sm:$0x7]
      %v288 = vld [vmem:[#allocation2 + $0x40] sm:$0xff]
      %v289 = vld [vmem:[#allocation2 + $0x48] sm:$0x7]
      %v290 = vld [vmem:[#allocation2 + $0x50] sm:$0xff]
      %v291 = vld [vmem:[#allocation2 + $0x58] sm:$0x7]
      %v292 = vld [vmem:[#allocation2 + $0x60] sm:$0xff]
      %v293 = vld [vmem:[#allocation2 + $0x68] sm:$0x7]
      %v294 = vld [vmem:[#allocation2 + $0x70] sm:$0xff]
      %v295 = vld [vmem:[#allocation2 + $0x78] sm:$0x7]
      %v296 = vld [vmem:[#allocation2 + $0x80] sm:$0xff]
      %v297 = vld [vmem:[#allocation2 + $0x88] sm:$0x7]
      %v298 = vld [vmem:[#allocation2 + $0x90] sm:$0xff]
      %v299 = vld [vmem:[#allocation2 + $0x98] sm:$0x7]
      %v300 = vld [vmem:[#allocation2 + $0xa0] sm:$0xff]
      %v301 = vld [vmem:[#allocation2 + $0xa8] sm:$0x7]
      %v302 = vadd.f32 %v280, %v258
      %v303 = vadd.f32 %v281, %v259
      %v304 = vadd.f32 %v282, %v260
      %v305 = vadd.f32 %v283, %v261
      %v306 = vadd.f32 %v284, %v262
      %v307 = vadd.f32 %v285, %v263
      %v308 = vadd.f32 %v286, %v264
      %v309 = vadd.f32 %v287, %v265
      %v310 = vadd.f32 %v288, %v266
      %v311 = vadd.f32 %v289, %v267
      %v312 = vadd.f32 %v290, %v268
      %v313 = vadd.f32 %v291, %v269
      %v314 = vadd.f32 %v292, %v270
      %v315 = vadd.f32 %v293, %v271
      %v316 = vadd.f32 %v294, %v272
      %v317 = vadd.f32 %v295, %v273
      %v318 = vadd.f32 %v296, %v274
      %v319 = vadd.f32 %v297, %v275
      %v320 = vadd.f32 %v298, %v276
      %v321 = vadd.f32 %v299, %v277
      %v322 = vadd.f32 %v300, %v278
      %v323 = vadd.f32 %v301, %v279
      %324 = vst.msk [vmem:[#allocation2] sm:$0xff] %vm210, %v302
      %325 = vst.msk [vmem:[#allocation2 + $0x8] sm:$0x7] %vm212, %v303
      %326 = vst.msk [vmem:[#allocation2 + $0x10] sm:$0xff] %vm210, %v304
      %327 = vst.msk [vmem:[#allocation2 + $0x18] sm:$0x7] %vm212, %v305
      %328 = vst.msk [vmem:[#allocation2 + $0x20] sm:$0xff] %vm210, %v306
      %329 = vst.msk [vmem:[#allocation2 + $0x28] sm:$0x7] %vm212, %v307
      %330 = vst.msk [vmem:[#allocation2 + $0x30] sm:$0xff] %vm210, %v308
      %331 = vst.msk [vmem:[#allocation2 + $0x38] sm:$0x7] %vm212, %v309
      %332 = vst.msk [vmem:[#allocation2 + $0x40] sm:$0xff] %vm210, %v310
      %333 = vst.msk [vmem:[#allocation2 + $0x48] sm:$0x7] %vm212, %v311
      %334 = vst.msk [vmem:[#allocation2 + $0x50] sm:$0xff] %vm210, %v312
      %335 = vst.msk [vmem:[#allocation2 + $0x58] sm:$0x7] %vm212, %v313
      %336 = vst.msk [vmem:[#allocation2 + $0x60] sm:$0xff] %vm210, %v314
      %337 = vst.msk [vmem:[#allocation2 + $0x68] sm:$0x7] %vm212, %v315
      %338 = vst.msk [vmem:[#allocation2 + $0x70] sm:$0xff] %vm210, %v316
      %339 = vst.msk [vmem:[#allocation2 + $0x78] sm:$0x7] %vm212, %v317
      %340 = vst.msk [vmem:[#allocation2 + $0x80] sm:$0xff] %vm210, %v318
      %341 = vst.msk [vmem:[#allocation2 + $0x88] sm:$0x7] %vm212, %v319
      %342 = vst.msk [vmem:[#allocation2 + $0x90] sm:$0xff] %vm210, %v320
      %343 = vst.msk [vmem:[#allocation2 + $0x98] sm:$0x7] %vm212, %v321
      %344 = vst.msk [vmem:[#allocation2 + $0xa0] sm:$0xff] %vm210, %v322
      %345 = vst.msk [vmem:[#allocation2 + $0xa8] sm:$0x7] %vm212, %v323
      %v346 = vld [vmem:[%s158 + $0x2] sm:$0xff]
      %v347 = vld [vmem:[%s158 + $0xa] sm:$0x7]
      %v348 = vld [vmem:[%s158 + $0x12] sm:$0xff]
      %v349 = vld [vmem:[%s158 + $0x1a] sm:$0x7]
      %v350 = vld [vmem:[%s158 + $0x22] sm:$0xff]
      %v351 = vld [vmem:[%s158 + $0x2a] sm:$0x7]
      %v352 = vld [vmem:[%s158 + $0x32] sm:$0xff]
      %v353 = vld [vmem:[%s158 + $0x3a] sm:$0x7]
      %v354 = vld [vmem:[%s158 + $0x42] sm:$0xff]
      %v355 = vld [vmem:[%s158 + $0x4a] sm:$0x7]
      %v356 = vld [vmem:[%s158 + $0x52] sm:$0xff]
      %v357 = vld [vmem:[%s158 + $0x5a] sm:$0x7]
      %v358 = vld [vmem:[%s158 + $0x62] sm:$0xff]
      %v359 = vld [vmem:[%s158 + $0x6a] sm:$0x7]
      %v360 = vld [vmem:[%s158 + $0x72] sm:$0xff]
      %v361 = vld [vmem:[%s158 + $0x7a] sm:$0x7]
      %v362 = vld [vmem:[%s158 + $0x82] sm:$0xff]
      %v363 = vld [vmem:[%s158 + $0x8a] sm:$0x7]
      %v364 = vld [vmem:[%s158 + $0x92] sm:$0xff]
      %v365 = vld [vmem:[%s158 + $0x9a] sm:$0x7]
      %v366 = vld [vmem:[%s158 + $0xa2] sm:$0xff]
      %v367 = vld [vmem:[%s158 + $0xaa] sm:$0x7]
      %v368 = vld [vmem:[%s153 + $0x2] sm:$0x1]
      %v369 = vperm.slane %v368, 0
      %v370 = vmul.f32 %v346, %v369
      %v371 = vmul.f32 %v347, %v369
      %v372 = vmul.f32 %v348, %v369
      %v373 = vmul.f32 %v349, %v369
      %v374 = vmul.f32 %v350, %v369
      %v375 = vmul.f32 %v351, %v369
      %v376 = vmul.f32 %v352, %v369
      %v377 = vmul.f32 %v353, %v369
      %v378 = vmul.f32 %v354, %v369
      %v379 = vmul.f32 %v355, %v369
      %v380 = vmul.f32 %v356, %v369
      %v381 = vmul.f32 %v357, %v369
      %v382 = vmul.f32 %v358, %v369
      %v383 = vmul.f32 %v359, %v369
      %v384 = vmul.f32 %v360, %v369
      %v385 = vmul.f32 %v361, %v369
      %v386 = vmul.f32 %v362, %v369
      %v387 = vmul.f32 %v363, %v369
      %v388 = vmul.f32 %v364, %v369
      %v389 = vmul.f32 %v365, %v369
      %v390 = vmul.f32 %v366, %v369
      %v391 = vmul.f32 %v367, %v369
      %v392 = vld [vmem:[#allocation2] sm:$0xff]
      %v393 = vld [vmem:[#allocation2 + $0x8] sm:$0x7]
      %v394 = vld [vmem:[#allocation2 + $0x10] sm:$0xff]
      %v395 = vld [vmem:[#allocation2 + $0x18] sm:$0x7]
      %v396 = vld [vmem:[#allocation2 + $0x20] sm:$0xff]
      %v397 = vld [vmem:[#allocation2 + $0x28] sm:$0x7]
      %v398 = vld [vmem:[#allocation2 + $0x30] sm:$0xff]
      %v399 = vld [vmem:[#allocation2 + $0x38] sm:$0x7]
      %v400 = vld [vmem:[#allocation2 + $0x40] sm:$0xff]
      %v401 = vld [vmem:[#allocation2 + $0x48] sm:$0x7]
      %v402 = vld [vmem:[#allocation2 + $0x50] sm:$0xff]
      %v403 = vld [vmem:[#allocation2 + $0x58] sm:$0x7]
      %v404 = vld [vmem:[#allocation2 + $0x60] sm:$0xff]
      %v405 = vld [vmem:[#allocation2 + $0x68] sm:$0x7]
      %v406 = vld [vmem:[#allocation2 + $0x70] sm:$0xff]
      %v407 = vld [vmem:[#allocation2 + $0x78] sm:$0x7]
      %v408 = vld [vmem:[#allocation2 + $0x80] sm:$0xff]
      %v409 = vld [vmem:[#allocation2 + $0x88] sm:$0x7]
      %v410 = vld [vmem:[#allocation2 + $0x90] sm:$0xff]
      %v411 = vld [vmem:[#allocation2 + $0x98] sm:$0x7]
      %v412 = vld [vmem:[#allocation2 + $0xa0] sm:$0xff]
      %v413 = vld [vmem:[#allocation2 + $0xa8] sm:$0x7]
      %v414 = vadd.f32 %v392, %v370
      %v415 = vadd.f32 %v393, %v371
      %v416 = vadd.f32 %v394, %v372
      %v417 = vadd.f32 %v395, %v373
      %v418 = vadd.f32 %v396, %v374
      %v419 = vadd.f32 %v397, %v375
      %v420 = vadd.f32 %v398, %v376
      %v421 = vadd.f32 %v399, %v377
      %v422 = vadd.f32 %v400, %v378
      %v423 = vadd.f32 %v401, %v379
      %v424 = vadd.f32 %v402, %v380
      %v425 = vadd.f32 %v403, %v381
      %v426 = vadd.f32 %v404, %v382
      %v427 = vadd.f32 %v405, %v383
      %v428 = vadd.f32 %v406, %v384
      %v429 = vadd.f32 %v407, %v385
      %v430 = vadd.f32 %v408, %v386
      %v431 = vadd.f32 %v409, %v387
      %v432 = vadd.f32 %v410, %v388
      %v433 = vadd.f32 %v411, %v389
      %v434 = vadd.f32 %v412, %v390
      %v435 = vadd.f32 %v413, %v391
      %436 = vst.msk [vmem:[#allocation2] sm:$0xff] %vm210, %v414
      %437 = vst.msk [vmem:[#allocation2 + $0x8] sm:$0x7] %vm212, %v415
      %438 = vst.msk [vmem:[#allocation2 + $0x10] sm:$0xff] %vm210, %v416
      %439 = vst.msk [vmem:[#allocation2 + $0x18] sm:$0x7] %vm212, %v417
      %440 = vst.msk [vmem:[#allocation2 + $0x20] sm:$0xff] %vm210, %v418
      %441 = vst.msk [vmem:[#allocation2 + $0x28] sm:$0x7] %vm212, %v419
      %442 = vst.msk [vmem:[#allocation2 + $0x30] sm:$0xff] %vm210, %v420
      %443 = vst.msk [vmem:[#allocation2 + $0x38] sm:$0x7] %vm212, %v421
      %444 = vst.msk [vmem:[#allocation2 + $0x40] sm:$0xff] %vm210, %v422
      %445 = vst.msk [vmem:[#allocation2 + $0x48] sm:$0x7] %vm212, %v423
      %446 = vst.msk [vmem:[#allocation2 + $0x50] sm:$0xff] %vm210, %v424
      %447 = vst.msk [vmem:[#allocation2 + $0x58] sm:$0x7] %vm212, %v425
      %448 = vst.msk [vmem:[#allocation2 + $0x60] sm:$0xff] %vm210, %v426
      %449 = vst.msk [vmem:[#allocation2 + $0x68] sm:$0x7] %vm212, %v427
      %450 = vst.msk [vmem:[#allocation2 + $0x70] sm:$0xff] %vm210, %v428
      %451 = vst.msk [vmem:[#allocation2 + $0x78] sm:$0x7] %vm212, %v429
      %452 = vst.msk [vmem:[#allocation2 + $0x80] sm:$0xff] %vm210, %v430
      %453 = vst.msk [vmem:[#allocation2 + $0x88] sm:$0x7] %vm212, %v431
      %454 = vst.msk [vmem:[#allocation2 + $0x90] sm:$0xff] %vm210, %v432
      %455 = vst.msk [vmem:[#allocation2 + $0x98] sm:$0x7] %vm212, %v433
      %456 = vst.msk [vmem:[#allocation2 + $0xa0] sm:$0xff] %vm210, %v434
      %457 = vst.msk [vmem:[#allocation2 + $0xa8] sm:$0x7] %vm212, %v435
      %v458 = vld [vmem:[%s158 + $0x3] sm:$0xff]
      %v459 = vld [vmem:[%s158 + $0xb] sm:$0x7]
      %v460 = vld [vmem:[%s158 + $0x13] sm:$0xff]
      %v461 = vld [vmem:[%s158 + $0x1b] sm:$0x7]
      %v462 = vld [vmem:[%s158 + $0x23] sm:$0xff]
      %v463 = vld [vmem:[%s158 + $0x2b] sm:$0x7]
      %v464 = vld [vmem:[%s158 + $0x33] sm:$0xff]
      %v465 = vld [vmem:[%s158 + $0x3b] sm:$0x7]
      %v466 = vld [vmem:[%s158 + $0x43] sm:$0xff]
      %v467 = vld [vmem:[%s158 + $0x4b] sm:$0x7]
      %v468 = vld [vmem:[%s158 + $0x53] sm:$0xff]
      %v469 = vld [vmem:[%s158 + $0x5b] sm:$0x7]
      %v470 = vld [vmem:[%s158 + $0x63] sm:$0xff]
      %v471 = vld [vmem:[%s158 + $0x6b] sm:$0x7]
      %v472 = vld [vmem:[%s158 + $0x73] sm:$0xff]
      %v473 = vld [vmem:[%s158 + $0x7b] sm:$0x7]
      %v474 = vld [vmem:[%s158 + $0x83] sm:$0xff]
      %v475 = vld [vmem:[%s158 + $0x8b] sm:$0x7]
      %v476 = vld [vmem:[%s158 + $0x93] sm:$0xff]
      %v477 = vld [vmem:[%s158 + $0x9b] sm:$0x7]
      %v478 = vld [vmem:[%s158 + $0xa3] sm:$0xff]
      %v479 = vld [vmem:[%s158 + $0xab] sm:$0x7]
      %v480 = vld [vmem:[%s153 + $0x3] sm:$0x1]
      %v481 = vperm.slane %v480, 0
      %v482 = vmul.f32 %v458, %v481
      %v483 = vmul.f32 %v459, %v481
      %v484 = vmul.f32 %v460, %v481
      %v485 = vmul.f32 %v461, %v481
      %v486 = vmul.f32 %v462, %v481
      %v487 = vmul.f32 %v463, %v481
      %v488 = vmul.f32 %v464, %v481
      %v489 = vmul.f32 %v465, %v481
      %v490 = vmul.f32 %v466, %v481
      %v491 = vmul.f32 %v467, %v481
      %v492 = vmul.f32 %v468, %v481
      %v493 = vmul.f32 %v469, %v481
      %v494 = vmul.f32 %v470, %v481
      %v495 = vmul.f32 %v471, %v481
      %v496 = vmul.f32 %v472, %v481
      %v497 = vmul.f32 %v473, %v481
      %v498 = vmul.f32 %v474, %v481
      %v499 = vmul.f32 %v475, %v481
      %v500 = vmul.f32 %v476, %v481
      %v501 = vmul.f32 %v477, %v481
      %v502 = vmul.f32 %v478, %v481
      %v503 = vmul.f32 %v479, %v481
      %v504 = vld [vmem:[#allocation2] sm:$0xff]
      %v505 = vld [vmem:[#allocation2 + $0x8] sm:$0x7]
      %v506 = vld [vmem:[#allocation2 + $0x10] sm:$0xff]
      %v507 = vld [vmem:[#allocation2 + $0x18] sm:$0x7]
      %v508 = vld [vmem:[#allocation2 + $0x20] sm:$0xff]
      %v509 = vld [vmem:[#allocation2 + $0x28] sm:$0x7]
      %v510 = vld [vmem:[#allocation2 + $0x30] sm:$0xff]
      %v511 = vld [vmem:[#allocation2 + $0x38] sm:$0x7]
      %v512 = vld [vmem:[#allocation2 + $0x40] sm:$0xff]
      %v513 = vld [vmem:[#allocation2 + $0x48] sm:$0x7]
      %v514 = vld [vmem:[#allocation2 + $0x50] sm:$0xff]
      %v515 = vld [vmem:[#allocation2 + $0x58] sm:$0x7]
      %v516 = vld [vmem:[#allocation2 + $0x60] sm:$0xff]
      %v517 = vld [vmem:[#allocation2 + $0x68] sm:$0x7]
      %v518 = vld [vmem:[#allocation2 + $0x70] sm:$0xff]
      %v519 = vld [vmem:[#allocation2 + $0x78] sm:$0x7]
      %v520 = vld [vmem:[#allocation2 + $0x80] sm:$0xff]
      %v521 = vld [vmem:[#allocation2 + $0x88] sm:$0x7]
      %v522 = vld [vmem:[#allocation2 + $0x90] sm:$0xff]
      %v523 = vld [vmem:[#allocation2 + $0x98] sm:$0x7]
      %v524 = vld [vmem:[#allocation2 + $0xa0] sm:$0xff]
      %v525 = vld [vmem:[#allocation2 + $0xa8] sm:$0x7]
      %v526 = vadd.f32 %v504, %v482
      %v527 = vadd.f32 %v505, %v483
      %v528 = vadd.f32 %v506, %v484
      %v529 = vadd.f32 %v507, %v485
      %v530 = vadd.f32 %v508, %v486
      %v531 = vadd.f32 %v509, %v487
      %v532 = vadd.f32 %v510, %v488
      %v533 = vadd.f32 %v511, %v489
      %v534 = vadd.f32 %v512, %v490
      %v535 = vadd.f32 %v513, %v491
      %v536 = vadd.f32 %v514, %v492
      %v537 = vadd.f32 %v515, %v493
      %v538 = vadd.f32 %v516, %v494
      %v539 = vadd.f32 %v517, %v495
      %v540 = vadd.f32 %v518, %v496
      %v541 = vadd.f32 %v519, %v497
      %v542 = vadd.f32 %v520, %v498
      %v543 = vadd.f32 %v521, %v499
      %v544 = vadd.f32 %v522, %v500
      %v545 = vadd.f32 %v523, %v501
      %v546 = vadd.f32 %v524, %v502
      %v547 = vadd.f32 %v525, %v503
      %548 = vst.msk [vmem:[#allocation2] sm:$0xff] %vm210, %v526
      %549 = vst.msk [vmem:[#allocation2 + $0x8] sm:$0x7] %vm212, %v527
      %550 = vst.msk [vmem:[#allocation2 + $0x10] sm:$0xff] %vm210, %v528
      %551 = vst.msk [vmem:[#allocation2 + $0x18] sm:$0x7] %vm212, %v529
      %552 = vst.msk [vmem:[#allocation2 + $0x20] sm:$0xff] %vm210, %v530
      %553 = vst.msk [vmem:[#allocation2 + $0x28] sm:$0x7] %vm212, %v531
      %554 = vst.msk [vmem:[#allocation2 + $0x30] sm:$0xff] %vm210, %v532
      %555 = vst.msk [vmem:[#allocation2 + $0x38] sm:$0x7] %vm212, %v533
      %556 = vst.msk [vmem:[#allocation2 + $0x40] sm:$0xff] %vm210, %v534
      %557 = vst.msk [vmem:[#allocation2 + $0x48] sm:$0x7] %vm212, %v535
      %558 = vst.msk [vmem:[#allocation2 + $0x50] sm:$0xff] %vm210, %v536
      %559 = vst.msk [vmem:[#allocation2 + $0x58] sm:$0x7] %vm212, %v537
      %560 = vst.msk [vmem:[#allocation2 + $0x60] sm:$0xff] %vm210, %v538
      %561 = vst.msk [vmem:[#allocation2 + $0x68] sm:$0x7] %vm212, %v539
      %562 = vst.msk [vmem:[#allocation2 + $0x70] sm:$0xff] %vm210, %v540
      %563 = vst.msk [vmem:[#allocation2 + $0x78] sm:$0x7] %vm212, %v541
      %564 = vst.msk [vmem:[#allocation2 + $0x80] sm:$0xff] %vm210, %v542
      %565 = vst.msk [vmem:[#allocation2 + $0x88] sm:$0x7] %vm212, %v543
      %566 = vst.msk [vmem:[#allocation2 + $0x90] sm:$0xff] %vm210, %v544
      %567 = vst.msk [vmem:[#allocation2 + $0x98] sm:$0x7] %vm212, %v545
      %568 = vst.msk [vmem:[#allocation2 + $0xa0] sm:$0xff] %vm210, %v546
      %569 = vst.msk [vmem:[#allocation2 + $0xa8] sm:$0x7] %vm212, %v547
      %v570 = vld [vmem:[%s158 + $0x4] sm:$0xff]
      %v571 = vld [vmem:[%s158 + $0xc] sm:$0x7]
      %v572 = vld [vmem:[%s158 + $0x14] sm:$0xff]
      %v573 = vld [vmem:[%s158 + $0x1c] sm:$0x7]
      %v574 = vld [vmem:[%s158 + $0x24] sm:$0xff]
      %v575 = vld [vmem:[%s158 + $0x2c] sm:$0x7]
      %v576 = vld [vmem:[%s158 + $0x34] sm:$0xff]
      %v577 = vld [vmem:[%s158 + $0x3c] sm:$0x7]
      %v578 = vld [vmem:[%s158 + $0x44] sm:$0xff]
      %v579 = vld [vmem:[%s158 + $0x4c] sm:$0x7]
      %v580 = vld [vmem:[%s158 + $0x54] sm:$0xff]
      %v581 = vld [vmem:[%s158 + $0x5c] sm:$0x7]
      %v582 = vld [vmem:[%s158 + $0x64] sm:$0xff]
      %v583 = vld [vmem:[%s158 + $0x6c] sm:$0x7]
      %v584 = vld [vmem:[%s158 + $0x74] sm:$0xff]
      %v585 = vld [vmem:[%s158 + $0x7c] sm:$0x7]
      %v586 = vld [vmem:[%s158 + $0x84] sm:$0xff]
      %v587 = vld [vmem:[%s158 + $0x8c] sm:$0x7]
      %v588 = vld [vmem:[%s158 + $0x94] sm:$0xff]
      %v589 = vld [vmem:[%s158 + $0x9c] sm:$0x7]
      %v590 = vld [vmem:[%s158 + $0xa4] sm:$0xff]
      %v591 = vld [vmem:[%s158 + $0xac] sm:$0x7]
      %v592 = vld [vmem:[%s153 + $0x4] sm:$0x1]
      %v593 = vperm.slane %v592, 0
      %v594 = vmul.f32 %v570, %v593
      %v595 = vmul.f32 %v571, %v593
      %v596 = vmul.f32 %v572, %v593
      %v597 = vmul.f32 %v573, %v593
      %v598 = vmul.f32 %v574, %v593
      %v599 = vmul.f32 %v575, %v593
      %v600 = vmul.f32 %v576, %v593
      %v601 = vmul.f32 %v577, %v593
      %v602 = vmul.f32 %v578, %v593
      %v603 = vmul.f32 %v579, %v593
      %v604 = vmul.f32 %v580, %v593
      %v605 = vmul.f32 %v581, %v593
      %v606 = vmul.f32 %v582, %v593
      %v607 = vmul.f32 %v583, %v593
      %v608 = vmul.f32 %v584, %v593
      %v609 = vmul.f32 %v585, %v593
      %v610 = vmul.f32 %v586, %v593
      %v611 = vmul.f32 %v587, %v593
      %v612 = vmul.f32 %v588, %v593
      %v613 = vmul.f32 %v589, %v593
      %v614 = vmul.f32 %v590, %v593
      %v615 = vmul.f32 %v591, %v593
      %v616 = vld [vmem:[#allocation2] sm:$0xff]
      %v617 = vld [vmem:[#allocation2 + $0x8] sm:$0x7]
      %v618 = vld [vmem:[#allocation2 + $0x10] sm:$0xff]
      %v619 = vld [vmem:[#allocation2 + $0x18] sm:$0x7]
      %v620 = vld [vmem:[#allocation2 + $0x20] sm:$0xff]
      %v621 = vld [vmem:[#allocation2 + $0x28] sm:$0x7]
      %v622 = vld [vmem:[#allocation2 + $0x30] sm:$0xff]
      %v623 = vld [vmem:[#allocation2 + $0x38] sm:$0x7]
      %v624 = vld [vmem:[#allocation2 + $0x40] sm:$0xff]
      %v625 = vld [vmem:[#allocation2 + $0x48] sm:$0x7]
      %v626 = vld [vmem:[#allocation2 + $0x50] sm:$0xff]
      %v627 = vld [vmem:[#allocation2 + $0x58] sm:$0x7]
      %v628 = vld [vmem:[#allocation2 + $0x60] sm:$0xff]
      %v629 = vld [vmem:[#allocation2 + $0x68] sm:$0x7]
      %v630 = vld [vmem:[#allocation2 + $0x70] sm:$0xff]
      %v631 = vld [vmem:[#allocation2 + $0x78] sm:$0x7]
      %v632 = vld [vmem:[#allocation2 + $0x80] sm:$0xff]
      %v633 = vld [vmem:[#allocation2 + $0x88] sm:$0x7]
      %v634 = vld [vmem:[#allocation2 + $0x90] sm:$0xff]
      %v635 = vld [vmem:[#allocation2 + $0x98] sm:$0x7]
      %v636 = vld [vmem:[#allocation2 + $0xa0] sm:$0xff]
      %v637 = vld [vmem:[#allocation2 + $0xa8] sm:$0x7]
      %v638 = vadd.f32 %v616, %v594
      %v639 = vadd.f32 %v617, %v595
      %v640 = vadd.f32 %v618, %v596
      %v641 = vadd.f32 %v619, %v597
      %v642 = vadd.f32 %v620, %v598
      %v643 = vadd.f32 %v621, %v599
      %v644 = vadd.f32 %v622, %v600
      %v645 = vadd.f32 %v623, %v601
      %v646 = vadd.f32 %v624, %v602
      %v647 = vadd.f32 %v625, %v603
      %v648 = vadd.f32 %v626, %v604
      %v649 = vadd.f32 %v627, %v605
      %v650 = vadd.f32 %v628, %v606
      %v651 = vadd.f32 %v629, %v607
      %v652 = vadd.f32 %v630, %v608
      %v653 = vadd.f32 %v631, %v609
      %v654 = vadd.f32 %v632, %v610
      %v655 = vadd.f32 %v633, %v611
      %v656 = vadd.f32 %v634, %v612
      %v657 = vadd.f32 %v635, %v613
      %v658 = vadd.f32 %v636, %v614
      %v659 = vadd.f32 %v637, %v615
      %660 = vst.msk [vmem:[#allocation2] sm:$0xff] %vm210, %v638
      %661 = vst.msk [vmem:[#allocation2 + $0x8] sm:$0x7] %vm212, %v639
      %662 = vst.msk [vmem:[#allocation2 + $0x10] sm:$0xff] %vm210, %v640
      %663 = vst.msk [vmem:[#allocation2 + $0x18] sm:$0x7] %vm212, %v641
      %664 = vst.msk [vmem:[#allocation2 + $0x20] sm:$0xff] %vm210, %v642
      %665 = vst.msk [vmem:[#allocation2 + $0x28] sm:$0x7] %vm212, %v643
      %666 = vst.msk [vmem:[#allocation2 + $0x30] sm:$0xff] %vm210, %v644
      %667 = vst.msk [vmem:[#allocation2 + $0x38] sm:$0x7] %vm212, %v645
      %668 = vst.msk [vmem:[#allocation2 + $0x40] sm:$0xff] %vm210, %v646
      %669 = vst.msk [vmem:[#allocation2 + $0x48] sm:$0x7] %vm212, %v647
      %670 = vst.msk [vmem:[#allocation2 + $0x50] sm:$0xff] %vm210, %v648
      %671 = vst.msk [vmem:[#allocation2 + $0x58] sm:$0x7] %vm212, %v649
      %672 = vst.msk [vmem:[#allocation2 + $0x60] sm:$0xff] %vm210, %v650
      %673 = vst.msk [vmem:[#allocation2 + $0x68] sm:$0x7] %vm212, %v651
      %674 = vst.msk [vmem:[#allocation2 + $0x70] sm:$0xff] %vm210, %v652
      %675 = vst.msk [vmem:[#allocation2 + $0x78] sm:$0x7] %vm212, %v653
      %676 = vst.msk [vmem:[#allocation2 + $0x80] sm:$0xff] %vm210, %v654
      %677 = vst.msk [vmem:[#allocation2 + $0x88] sm:$0x7] %vm212, %v655
      %678 = vst.msk [vmem:[#allocation2 + $0x90] sm:$0xff] %vm210, %v656
      %679 = vst.msk [vmem:[#allocation2 + $0x98] sm:$0x7] %vm212, %v657
      %680 = vst.msk [vmem:[#allocation2 + $0xa0] sm:$0xff] %vm210, %v658
      %681 = vst.msk [vmem:[#allocation2 + $0xa8] sm:$0x7] %vm212, %v659
      %v682 = vld [vmem:[%s158 + $0x5] sm:$0xff]
      %v683 = vld [vmem:[%s158 + $0xd] sm:$0x7]
      %v684 = vld [vmem:[%s158 + $0x15] sm:$0xff]
      %v685 = vld [vmem:[%s158 + $0x1d] sm:$0x7]
      %v686 = vld [vmem:[%s158 + $0x25] sm:$0xff]
      %v687 = vld [vmem:[%s158 + $0x2d] sm:$0x7]
      %v688 = vld [vmem:[%s158 + $0x35] sm:$0xff]
      %v689 = vld [vmem:[%s158 + $0x3d] sm:$0x7]
      %v690 = vld [vmem:[%s158 + $0x45] sm:$0xff]
      %v691 = vld [vmem:[%s158 + $0x4d] sm:$0x7]
      %v692 = vld [vmem:[%s158 + $0x55] sm:$0xff]
      %v693 = vld [vmem:[%s158 + $0x5d] sm:$0x7]
      %v694 = vld [vmem:[%s158 + $0x65] sm:$0xff]
      %v695 = vld [vmem:[%s158 + $0x6d] sm:$0x7]
      %v696 = vld [vmem:[%s158 + $0x75] sm:$0xff]
      %v697 = vld [vmem:[%s158 + $0x7d] sm:$0x7]
      %v698 = vld [vmem:[%s158 + $0x85] sm:$0xff]
      %v699 = vld [vmem:[%s158 + $0x8d] sm:$0x7]
      %v700 = vld [vmem:[%s158 + $0x95] sm:$0xff]
      %v701 = vld [vmem:[%s158 + $0x9d] sm:$0x7]
      %v702 = vld [vmem:[%s158 + $0xa5] sm:$0xff]
      %v703 = vld [vmem:[%s158 + $0xad] sm:$0x7]
      %v704 = vld [vmem:[%s153 + $0x5] sm:$0x1]
      %v705 = vperm.slane %v704, 0
      %v706 = vmul.f32 %v682, %v705
      %v707 = vmul.f32 %v683, %v705
      %v708 = vmul.f32 %v684, %v705
      %v709 = vmul.f32 %v685, %v705
      %v710 = vmul.f32 %v686, %v705
      %v711 = vmul.f32 %v687, %v705
      %v712 = vmul.f32 %v688, %v705
      %v713 = vmul.f32 %v689, %v705
      %v714 = vmul.f32 %v690, %v705
      %v715 = vmul.f32 %v691, %v705
      %v716 = vmul.f32 %v692, %v705
      %v717 = vmul.f32 %v693, %v705
      %v718 = vmul.f32 %v694, %v705
      %v719 = vmul.f32 %v695, %v705
      %v720 = vmul.f32 %v696, %v705
      %v721 = vmul.f32 %v697, %v705
      %v722 = vmul.f32 %v698, %v705
      %v723 = vmul.f32 %v699, %v705
      %v724 = vmul.f32 %v700, %v705
      %v725 = vmul.f32 %v701, %v705
      %v726 = vmul.f32 %v702, %v705
      %v727 = vmul.f32 %v703, %v705
      %v728 = vld [vmem:[#allocation2] sm:$0xff]
      %v729 = vld [vmem:[#allocation2 + $0x8] sm:$0x7]
      %v730 = vld [vmem:[#allocation2 + $0x10] sm:$0xff]
      %v731 = vld [vmem:[#allocation2 + $0x18] sm:$0x7]
      %v732 = vld [vmem:[#allocation2 + $0x20] sm:$0xff]
      %v733 = vld [vmem:[#allocation2 + $0x28] sm:$0x7]
      %v734 = vld [vmem:[#allocation2 + $0x30] sm:$0xff]
      %v735 = vld [vmem:[#allocation2 + $0x38] sm:$0x7]
      %v736 = vld [vmem:[#allocation2 + $0x40] sm:$0xff]
      %v737 = vld [vmem:[#allocation2 + $0x48] sm:$0x7]
      %v738 = vld [vmem:[#allocation2 + $0x50] sm:$0xff]
      %v739 = vld [vmem:[#allocation2 + $0x58] sm:$0x7]
      %v740 = vld [vmem:[#allocation2 + $0x60] sm:$0xff]
      %v741 = vld [vmem:[#allocation2 + $0x68] sm:$0x7]
      %v742 = vld [vmem:[#allocation2 + $0x70] sm:$0xff]
      %v743 = vld [vmem:[#allocation2 + $0x78] sm:$0x7]
      %v744 = vld [vmem:[#allocation2 + $0x80] sm:$0xff]
      %v745 = vld [vmem:[#allocation2 + $0x88] sm:$0x7]
      %v746 = vld [vmem:[#allocation2 + $0x90] sm:$0xff]
      %v747 = vld [vmem:[#allocation2 + $0x98] sm:$0x7]
      %v748 = vld [vmem:[#allocation2 + $0xa0] sm:$0xff]
      %v749 = vld [vmem:[#allocation2 + $0xa8] sm:$0x7]
      %v750 = vadd.f32 %v728, %v706
      %v751 = vadd.f32 %v729, %v707
      %v752 = vadd.f32 %v730, %v708
      %v753 = vadd.f32 %v731, %v709
      %v754 = vadd.f32 %v732, %v710
      %v755 = vadd.f32 %v733, %v711
      %v756 = vadd.f32 %v734, %v712
      %v757 = vadd.f32 %v735, %v713
      %v758 = vadd.f32 %v736, %v714
      %v759 = vadd.f32 %v737, %v715
      %v760 = vadd.f32 %v738, %v716
      %v761 = vadd.f32 %v739, %v717
      %v762 = vadd.f32 %v740, %v718
      %v763 = vadd.f32 %v741, %v719
      %v764 = vadd.f32 %v742, %v720
      %v765 = vadd.f32 %v743, %v721
      %v766 = vadd.f32 %v744, %v722
      %v767 = vadd.f32 %v745, %v723
      %v768 = vadd.f32 %v746, %v724
      %v769 = vadd.f32 %v747, %v725
      %v770 = vadd.f32 %v748, %v726
      %v771 = vadd.f32 %v749, %v727
      %772 = vst.msk [vmem:[#allocation2] sm:$0xff] %vm210, %v750
      %773 = vst.msk [vmem:[#allocation2 + $0x8] sm:$0x7] %vm212, %v751
      %774 = vst.msk [vmem:[#allocation2 + $0x10] sm:$0xff] %vm210, %v752
      %775 = vst.msk [vmem:[#allocation2 + $0x18] sm:$0x7] %vm212, %v753
      %776 = vst.msk [vmem:[#allocation2 + $0x20] sm:$0xff] %vm210, %v754
      %777 = vst.msk [vmem:[#allocation2 + $0x28] sm:$0x7] %vm212, %v755
      %778 = vst.msk [vmem:[#allocation2 + $0x30] sm:$0xff] %vm210, %v756
      %779 = vst.msk [vmem:[#allocation2 + $0x38] sm:$0x7] %vm212, %v757
      %780 = vst.msk [vmem:[#allocation2 + $0x40] sm:$0xff] %vm210, %v758
      %781 = vst.msk [vmem:[#allocation2 + $0x48] sm:$0x7] %vm212, %v759
      %782 = vst.msk [vmem:[#allocation2 + $0x50] sm:$0xff] %vm210, %v760
      %783 = vst.msk [vmem:[#allocation2 + $0x58] sm:$0x7] %vm212, %v761
      %784 = vst.msk [vmem:[#allocation2 + $0x60] sm:$0xff] %vm210, %v762
      %785 = vst.msk [vmem:[#allocation2 + $0x68] sm:$0x7] %vm212, %v763
      %786 = vst.msk [vmem:[#allocation2 + $0x70] sm:$0xff] %vm210, %v764
      %787 = vst.msk [vmem:[#allocation2 + $0x78] sm:$0x7] %vm212, %v765
      %788 = vst.msk [vmem:[#allocation2 + $0x80] sm:$0xff] %vm210, %v766
      %789 = vst.msk [vmem:[#allocation2 + $0x88] sm:$0x7] %vm212, %v767
      %790 = vst.msk [vmem:[#allocation2 + $0x90] sm:$0xff] %vm210, %v768
      %791 = vst.msk [vmem:[#allocation2 + $0x98] sm:$0x7] %vm212, %v769
      %792 = vst.msk [vmem:[#allocation2 + $0xa0] sm:$0xff] %vm210, %v770
      %793 = vst.msk [vmem:[#allocation2 + $0xa8] sm:$0x7] %vm212, %v771
      %s794 = scalar_lea.vmem %s158, 16
      %v795 = vld [vmem:[%s794] sm:$0xff]
      %v796 = vld [vmem:[%s794 + $0x8] sm:$0x7]
      %v797 = vld [vmem:[%s794 + $0x10] sm:$0xff]
      %v798 = vld [vmem:[%s794 + $0x18] sm:$0x7]
      %v799 = vld [vmem:[%s794 + $0x20] sm:$0xff]
      %v800 = vld [vmem:[%s794 + $0x28] sm:$0x7]
      %v801 = vld [vmem:[%s794 + $0x30] sm:$0xff]
      %v802 = vld [vmem:[%s794 + $0x38] sm:$0x7]
      %v803 = vld [vmem:[%s794 + $0x40] sm:$0xff]
      %v804 = vld [vmem:[%s794 + $0x48] sm:$0x7]
      %v805 = vld [vmem:[%s794 + $0x50] sm:$0xff]
      %v806 = vld [vmem:[%s794 + $0x58] sm:$0x7]
      %v807 = vld [vmem:[%s794 + $0x60] sm:$0xff]
      %v808 = vld [vmem:[%s794 + $0x68] sm:$0x7]
      %v809 = vld [vmem:[%s794 + $0x70] sm:$0xff]
      %v810 = vld [vmem:[%s794 + $0x78] sm:$0x7]
      %v811 = vld [vmem:[%s794 + $0x80] sm:$0xff]
      %v812 = vld [vmem:[%s794 + $0x88] sm:$0x7]
      %v813 = vld [vmem:[%s794 + $0x90] sm:$0xff]
      %v814 = vld [vmem:[%s794 + $0x98] sm:$0x7]
      %v815 = vld [vmem:[%s794 + $0xa0] sm:$0xff]
      %v816 = vld [vmem:[%s794 + $0xa8] sm:$0x7]
      %v817 = vld [vmem:[%s153 + $0x6] sm:$0x1]
      %v818 = vperm.slane %v817, 0
      %v819 = vmul.f32 %v795, %v818
      %v820 = vmul.f32 %v796, %v818
      %v821 = vmul.f32 %v797, %v818
      %v822 = vmul.f32 %v798, %v818
      %v823 = vmul.f32 %v799, %v818
      %v824 = vmul.f32 %v800, %v818
      %v825 = vmul.f32 %v801, %v818
      %v826 = vmul.f32 %v802, %v818
      %v827 = vmul.f32 %v803, %v818
      %v828 = vmul.f32 %v804, %v818
      %v829 = vmul.f32 %v805, %v818
      %v830 = vmul.f32 %v806, %v818
      %v831 = vmul.f32 %v807, %v818
      %v832 = vmul.f32 %v808, %v818
      %v833 = vmul.f32 %v809, %v818
      %v834 = vmul.f32 %v810, %v818
      %v835 = vmul.f32 %v811, %v818
      %v836 = vmul.f32 %v812, %v818
      %v837 = vmul.f32 %v813, %v818
      %v838 = vmul.f32 %v814, %v818
      %v839 = vmul.f32 %v815, %v818
      %v840 = vmul.f32 %v816, %v818
      %v841 = vld [vmem:[#allocation2] sm:$0xff]
      %v842 = vld [vmem:[#allocation2 + $0x8] sm:$0x7]
      %v843 = vld [vmem:[#allocation2 + $0x10] sm:$0xff]
      %v844 = vld [vmem:[#allocation2 + $0x18] sm:$0x7]
      %v845 = vld [vmem:[#allocation2 + $0x20] sm:$0xff]
      %v846 = vld [vmem:[#allocation2 + $0x28] sm:$0x7]
      %v847 = vld [vmem:[#allocation2 + $0x30] sm:$0xff]
      %v848 = vld [vmem:[#allocation2 + $0x38] sm:$0x7]
      %v849 = vld [vmem:[#allocation2 + $0x40] sm:$0xff]
      %v850 = vld [vmem:[#allocation2 + $0x48] sm:$0x7]
      %v851 = vld [vmem:[#allocation2 + $0x50] sm:$0xff]
      %v852 = vld [vmem:[#allocation2 + $0x58] sm:$0x7]
      %v853 = vld [vmem:[#allocation2 + $0x60] sm:$0xff]
      %v854 = vld [vmem:[#allocation2 + $0x68] sm:$0x7]
      %v855 = vld [vmem:[#allocation2 + $0x70] sm:$0xff]
      %v856 = vld [vmem:[#allocation2 + $0x78] sm:$0x7]
      %v857 = vld [vmem:[#allocation2 + $0x80] sm:$0xff]
      %v858 = vld [vmem:[#allocation2 + $0x88] sm:$0x7]
      %v859 = vld [vmem:[#allocation2 + $0x90] sm:$0xff]
      %v860 = vld [vmem:[#allocation2 + $0x98] sm:$0x7]
      %v861 = vld [vmem:[#allocation2 + $0xa0] sm:$0xff]
      %v862 = vld [vmem:[#allocation2 + $0xa8] sm:$0x7]
      %v863 = vadd.f32 %v841, %v819
      %v864 = vadd.f32 %v842, %v820
      %v865 = vadd.f32 %v843, %v821
      %v866 = vadd.f32 %v844, %v822
      %v867 = vadd.f32 %v845, %v823
      %v868 = vadd.f32 %v846, %v824
      %v869 = vadd.f32 %v847, %v825
      %v870 = vadd.f32 %v848, %v826
      %v871 = vadd.f32 %v849, %v827
      %v872 = vadd.f32 %v850, %v828
      %v873 = vadd.f32 %v851, %v829
      %v874 = vadd.f32 %v852, %v830
      %v875 = vadd.f32 %v853, %v831
      %v876 = vadd.f32 %v854, %v832
      %v877 = vadd.f32 %v855, %v833
      %v878 = vadd.f32 %v856, %v834
      %v879 = vadd.f32 %v857, %v835
      %v880 = vadd.f32 %v858, %v836
      %v881 = vadd.f32 %v859, %v837
      %v882 = vadd.f32 %v860, %v838
      %v883 = vadd.f32 %v861, %v839
      %v884 = vadd.f32 %v862, %v840
      %885 = vst.msk [vmem:[#allocation2] sm:$0xff] %vm210, %v863
      %886 = vst.msk [vmem:[#allocation2 + $0x8] sm:$0x7] %vm212, %v864
      %887 = vst.msk [vmem:[#allocation2 + $0x10] sm:$0xff] %vm210, %v865
      %888 = vst.msk [vmem:[#allocation2 + $0x18] sm:$0x7] %vm212, %v866
      %889 = vst.msk [vmem:[#allocation2 + $0x20] sm:$0xff] %vm210, %v867
      %890 = vst.msk [vmem:[#allocation2 + $0x28] sm:$0x7] %vm212, %v868
      %891 = vst.msk [vmem:[#allocation2 + $0x30] sm:$0xff] %vm210, %v869
      %892 = vst.msk [vmem:[#allocation2 + $0x38] sm:$0x7] %vm212, %v870
      %893 = vst.msk [vmem:[#allocation2 + $0x40] sm:$0xff] %vm210, %v871
      %894 = vst.msk [vmem:[#allocation2 + $0x48] sm:$0x7] %vm212, %v872
      %895 = vst.msk [vmem:[#allocation2 + $0x50] sm:$0xff] %vm210, %v873
      %896 = vst.msk [vmem:[#allocation2 + $0x58] sm:$0x7] %vm212, %v874
      %897 = vst.msk [vmem:[#allocation2 + $0x60] sm:$0xff] %vm210, %v875
      %898 = vst.msk [vmem:[#allocation2 + $0x68] sm:$0x7] %vm212, %v876
      %899 = vst.msk [vmem:[#allocation2 + $0x70] sm:$0xff] %vm210, %v877
      %900 = vst.msk [vmem:[#allocation2 + $0x78] sm:$0x7] %vm212, %v878
      %901 = vst.msk [vmem:[#allocation2 + $0x80] sm:$0xff] %vm210, %v879
      %902 = vst.msk [vmem:[#allocation2 + $0x88] sm:$0x7] %vm212, %v880
      %903 = vst.msk [vmem:[#allocation2 + $0x90] sm:$0xff] %vm210, %v881
      %904 = vst.msk [vmem:[#allocation2 + $0x98] sm:$0x7] %vm212, %v882
      %905 = vst.msk [vmem:[#allocation2 + $0xa0] sm:$0xff] %vm210, %v883
      %906 = vst.msk [vmem:[#allocation2 + $0xa8] sm:$0x7] %vm212, %v884
      %v907 = vld [vmem:[%s794 + $0x1] sm:$0xff]
      %v908 = vld [vmem:[%s794 + $0x9] sm:$0x7]
      %v909 = vld [vmem:[%s794 + $0x11] sm:$0xff]
      %v910 = vld [vmem:[%s794 + $0x19] sm:$0x7]
      %v911 = vld [vmem:[%s794 + $0x21] sm:$0xff]
      %v912 = vld [vmem:[%s794 + $0x29] sm:$0x7]
      %v913 = vld [vmem:[%s794 + $0x31] sm:$0xff]
      %v914 = vld [vmem:[%s794 + $0x39] sm:$0x7]
      %v915 = vld [vmem:[%s794 + $0x41] sm:$0xff]
      %v916 = vld [vmem:[%s794 + $0x49] sm:$0x7]
      %v917 = vld [vmem:[%s794 + $0x51] sm:$0xff]
      %v918 = vld [vmem:[%s794 + $0x59] sm:$0x7]
      %v919 = vld [vmem:[%s794 + $0x61] sm:$0xff]
      %v920 = vld [vmem:[%s794 + $0x69] sm:$0x7]
      %v921 = vld [vmem:[%s794 + $0x71] sm:$0xff]
      %v922 = vld [vmem:[%s794 + $0x79] sm:$0x7]
      %v923 = vld [vmem:[%s794 + $0x81] sm:$0xff]
      %v924 = vld [vmem:[%s794 + $0x89] sm:$0x7]
      %v925 = vld [vmem:[%s794 + $0x91] sm:$0xff]
      %v926 = vld [vmem:[%s794 + $0x99] sm:$0x7]
      %v927 = vld [vmem:[%s794 + $0xa1] sm:$0xff]
      %v928 = vld [vmem:[%s794 + $0xa9] sm:$0x7]
      %v929 = vld [vmem:[%s153 + $0x7] sm:$0x1]
      %v930 = vperm.slane %v929, 0
      %v931 = vmul.f32 %v907, %v930
      %v932 = vmul.f32 %v908, %v930
      %v933 = vmul.f32 %v909, %v930
      %v934 = vmul.f32 %v910, %v930
      %v935 = vmul.f32 %v911, %v930
      %v936 = vmul.f32 %v912, %v930
      %v937 = vmul.f32 %v913, %v930
      %v938 = vmul.f32 %v914, %v930
      %v939 = vmul.f32 %v915, %v930
      %v940 = vmul.f32 %v916, %v930
      %v941 = vmul.f32 %v917, %v930
      %v942 = vmul.f32 %v918, %v930
      %v943 = vmul.f32 %v919, %v930
      %v944 = vmul.f32 %v920, %v930
      %v945 = vmul.f32 %v921, %v930
      %v946 = vmul.f32 %v922, %v930
      %v947 = vmul.f32 %v923, %v930
      %v948 = vmul.f32 %v924, %v930
      %v949 = vmul.f32 %v925, %v930
      %v950 = vmul.f32 %v926, %v930
      %v951 = vmul.f32 %v927, %v930
      %v952 = vmul.f32 %v928, %v930
      %v953 = vld [vmem:[#allocation2] sm:$0xff]
      %v954 = vld [vmem:[#allocation2 + $0x8] sm:$0x7]
      %v955 = vld [vmem:[#allocation2 + $0x10] sm:$0xff]
      %v956 = vld [vmem:[#allocation2 + $0x18] sm:$0x7]
      %v957 = vld [vmem:[#allocation2 + $0x20] sm:$0xff]
      %v958 = vld [vmem:[#allocation2 + $0x28] sm:$0x7]
      %v959 = vld [vmem:[#allocation2 + $0x30] sm:$0xff]
      %v960 = vld [vmem:[#allocation2 + $0x38] sm:$0x7]
      %v961 = vld [vmem:[#allocation2 + $0x40] sm:$0xff]
      %v962 = vld [vmem:[#allocation2 + $0x48] sm:$0x7]
      %v963 = vld [vmem:[#allocation2 + $0x50] sm:$0xff]
      %v964 = vld [vmem:[#allocation2 + $0x58] sm:$0x7]
      %v965 = vld [vmem:[#allocation2 + $0x60] sm:$0xff]
      %v966 = vld [vmem:[#allocation2 + $0x68] sm:$0x7]
      %v967 = vld [vmem:[#allocation2 + $0x70] sm:$0xff]
      %v968 = vld [vmem:[#allocation2 + $0x78] sm:$0x7]
      %v969 = vld [vmem:[#allocation2 + $0x80] sm:$0xff]
      %v970 = vld [vmem:[#allocation2 + $0x88] sm:$0x7]
      %v971 = vld [vmem:[#allocation2 + $0x90] sm:$0xff]
      %v972 = vld [vmem:[#allocation2 + $0x98] sm:$0x7]
      %v973 = vld [vmem:[#allocation2 + $0xa0] sm:$0xff]
      %v974 = vld [vmem:[#allocation2 + $0xa8] sm:$0x7]
      %v975 = vadd.f32 %v953, %v931
      %v976 = vadd.f32 %v954, %v932
      %v977 = vadd.f32 %v955, %v933
      %v978 = vadd.f32 %v956, %v934
      %v979 = vadd.f32 %v957, %v935
      %v980 = vadd.f32 %v958, %v936
      %v981 = vadd.f32 %v959, %v937
      %v982 = vadd.f32 %v960, %v938
      %v983 = vadd.f32 %v961, %v939
      %v984 = vadd.f32 %v962, %v940
      %v985 = vadd.f32 %v963, %v941
      %v986 = vadd.f32 %v964, %v942
      %v987 = vadd.f32 %v965, %v943
      %v988 = vadd.f32 %v966, %v944
      %v989 = vadd.f32 %v967, %v945
      %v990 = vadd.f32 %v968, %v946
      %v991 = vadd.f32 %v969, %v947
      %v992 = vadd.f32 %v970, %v948
      %v993 = vadd.f32 %v971, %v949
      %v994 = vadd.f32 %v972, %v950
      %v995 = vadd.f32 %v973, %v951
      %v996 = vadd.f32 %v974, %v952
      %997 = vst.msk [vmem:[#allocation2] sm:$0xff] %vm210, %v975
      %998 = vst.msk [vmem:[#allocation2 + $0x8] sm:$0x7] %vm212, %v976
      %999 = vst.msk [vmem:[#allocation2 + $0x10] sm:$0xff] %vm210, %v977
      %1000 = vst.msk [vmem:[#allocation2 + $0x18] sm:$0x7] %vm212, %v978
      %1001 = vst.msk [vmem:[#allocation2 + $0x20] sm:$0xff] %vm210, %v979
      %1002 = vst.msk [vmem:[#allocation2 + $0x28] sm:$0x7] %vm212, %v980
      %1003 = vst.msk [vmem:[#allocation2 + $0x30] sm:$0xff] %vm210, %v981
      %1004 = vst.msk [vmem:[#allocation2 + $0x38] sm:$0x7] %vm212, %v982
      %1005 = vst.msk [vmem:[#allocation2 + $0x40] sm:$0xff] %vm210, %v983
      %1006 = vst.msk [vmem:[#allocation2 + $0x48] sm:$0x7] %vm212, %v984
      %1007 = vst.msk [vmem:[#allocation2 + $0x50] sm:$0xff] %vm210, %v985
      %1008 = vst.msk [vmem:[#allocation2 + $0x58] sm:$0x7] %vm212, %v986
      %1009 = vst.msk [vmem:[#allocation2 + $0x60] sm:$0xff] %vm210, %v987
      %1010 = vst.msk [vmem:[#allocation2 + $0x68] sm:$0x7] %vm212, %v988
      %1011 = vst.msk [vmem:[#allocation2 + $0x70] sm:$0xff] %vm210, %v989
      %1012 = vst.msk [vmem:[#allocation2 + $0x78] sm:$0x7] %vm212, %v990
      %1013 = vst.msk [vmem:[#allocation2 + $0x80] sm:$0xff] %vm210, %v991
      %1014 = vst.msk [vmem:[#allocation2 + $0x88] sm:$0x7] %vm212, %v992
      %1015 = vst.msk [vmem:[#allocation2 + $0x90] sm:$0xff] %vm210, %v993
      %1016 = vst.msk [vmem:[#allocation2 + $0x98] sm:$0x7] %vm212, %v994
      %1017 = vst.msk [vmem:[#allocation2 + $0xa0] sm:$0xff] %vm210, %v995
      %1018 = vst.msk [vmem:[#allocation2 + $0xa8] sm:$0x7] %vm212, %v996
      %v1019 = vld [vmem:[%s794 + $0x2] sm:$0xff]
      %v1020 = vld [vmem:[%s794 + $0xa] sm:$0x7]
      %v1021 = vld [vmem:[%s794 + $0x12] sm:$0xff]
      %v1022 = vld [vmem:[%s794 + $0x1a] sm:$0x7]
      %v1023 = vld [vmem:[%s794 + $0x22] sm:$0xff]
      %v1024 = vld [vmem:[%s794 + $0x2a] sm:$0x7]
      %v1025 = vld [vmem:[%s794 + $0x32] sm:$0xff]
      %v1026 = vld [vmem:[%s794 + $0x3a] sm:$0x7]
      %v1027 = vld [vmem:[%s794 + $0x42] sm:$0xff]
      %v1028 = vld [vmem:[%s794 + $0x4a] sm:$0x7]
      %v1029 = vld [vmem:[%s794 + $0x52] sm:$0xff]
      %v1030 = vld [vmem:[%s794 + $0x5a] sm:$0x7]
      %v1031 = vld [vmem:[%s794 + $0x62] sm:$0xff]
      %v1032 = vld [vmem:[%s794 + $0x6a] sm:$0x7]
      %v1033 = vld [vmem:[%s794 + $0x72] sm:$0xff]
      %v1034 = vld [vmem:[%s794 + $0x7a] sm:$0x7]
      %v1035 = vld [vmem:[%s794 + $0x82] sm:$0xff]
      %v1036 = vld [vmem:[%s794 + $0x8a] sm:$0x7]
      %v1037 = vld [vmem:[%s794 + $0x92] sm:$0xff]
      %v1038 = vld [vmem:[%s794 + $0x9a] sm:$0x7]
      %v1039 = vld [vmem:[%s794 + $0xa2] sm:$0xff]
      %v1040 = vld [vmem:[%s794 + $0xaa] sm:$0x7]
      %v1041 = vld [vmem:[%s153 + $0x8] sm:$0x1]
      %v1042 = vperm.slane %v1041, 0
      %v1043 = vmul.f32 %v1019, %v1042
      %v1044 = vmul.f32 %v1020, %v1042
      %v1045 = vmul.f32 %v1021, %v1042
      %v1046 = vmul.f32 %v1022, %v1042
      %v1047 = vmul.f32 %v1023, %v1042
      %v1048 = vmul.f32 %v1024, %v1042
      %v1049 = vmul.f32 %v1025, %v1042
      %v1050 = vmul.f32 %v1026, %v1042
      %v1051 = vmul.f32 %v1027, %v1042
      %v1052 = vmul.f32 %v1028, %v1042
      %v1053 = vmul.f32 %v1029, %v1042
      %v1054 = vmul.f32 %v1030, %v1042
      %v1055 = vmul.f32 %v1031, %v1042
      %v1056 = vmul.f32 %v1032, %v1042
      %v1057 = vmul.f32 %v1033, %v1042
      %v1058 = vmul.f32 %v1034, %v1042
      %v1059 = vmul.f32 %v1035, %v1042
      %v1060 = vmul.f32 %v1036, %v1042
      %v1061 = vmul.f32 %v1037, %v1042
      %v1062 = vmul.f32 %v1038, %v1042
      %v1063 = vmul.f32 %v1039, %v1042
      %v1064 = vmul.f32 %v1040, %v1042
      %v1065 = vld [vmem:[#allocation2] sm:$0xff]
      %v1066 = vld [vmem:[#allocation2 + $0x8] sm:$0x7]
      %v1067 = vld [vmem:[#allocation2 + $0x10] sm:$0xff]
      %v1068 = vld [vmem:[#allocation2 + $0x18] sm:$0x7]
      %v1069 = vld [vmem:[#allocation2 + $0x20] sm:$0xff]
      %v1070 = vld [vmem:[#allocation2 + $0x28] sm:$0x7]
      %v1071 = vld [vmem:[#allocation2 + $0x30] sm:$0xff]
      %v1072 = vld [vmem:[#allocation2 + $0x38] sm:$0x7]
      %v1073 = vld [vmem:[#allocation2 + $0x40] sm:$0xff]
      %v1074 = vld [vmem:[#allocation2 + $0x48] sm:$0x7]
      %v1075 = vld [vmem:[#allocation2 + $0x50] sm:$0xff]
      %v1076 = vld [vmem:[#allocation2 + $0x58] sm:$0x7]
      %v1077 = vld [vmem:[#allocation2 + $0x60] sm:$0xff]
      %v1078 = vld [vmem:[#allocation2 + $0x68] sm:$0x7]
      %v1079 = vld [vmem:[#allocation2 + $0x70] sm:$0xff]
      %v1080 = vld [vmem:[#allocation2 + $0x78] sm:$0x7]
      %v1081 = vld [vmem:[#allocation2 + $0x80] sm:$0xff]
      %v1082 = vld [vmem:[#allocation2 + $0x88] sm:$0x7]
      %v1083 = vld [vmem:[#allocation2 + $0x90] sm:$0xff]
      %v1084 = vld [vmem:[#allocation2 + $0x98] sm:$0x7]
      %v1085 = vld [vmem:[#allocation2 + $0xa0] sm:$0xff]
      %v1086 = vld [vmem:[#allocation2 + $0xa8] sm:$0x7]
      %v1087 = vadd.f32 %v1065, %v1043
      %v1088 = vadd.f32 %v1066, %v1044
      %v1089 = vadd.f32 %v1067, %v1045
      %v1090 = vadd.f32 %v1068, %v1046
      %v1091 = vadd.f32 %v1069, %v1047
      %v1092 = vadd.f32 %v1070, %v1048
      %v1093 = vadd.f32 %v1071, %v1049
      %v1094 = vadd.f32 %v1072, %v1050
      %v1095 = vadd.f32 %v1073, %v1051
      %v1096 = vadd.f32 %v1074, %v1052
      %v1097 = vadd.f32 %v1075, %v1053
      %v1098 = vadd.f32 %v1076, %v1054
      %v1099 = vadd.f32 %v1077, %v1055
      %v1100 = vadd.f32 %v1078, %v1056
      %v1101 = vadd.f32 %v1079, %v1057
      %v1102 = vadd.f32 %v1080, %v1058
      %v1103 = vadd.f32 %v1081, %v1059
      %v1104 = vadd.f32 %v1082, %v1060
      %v1105 = vadd.f32 %v1083, %v1061
      %v1106 = vadd.f32 %v1084, %v1062
      %v1107 = vadd.f32 %v1085, %v1063
      %v1108 = vadd.f32 %v1086, %v1064
      %1109 = vst.msk [vmem:[#allocation2] sm:$0xff] %vm210, %v1087
      %1110 = vst.msk [vmem:[#allocation2 + $0x8] sm:$0x7] %vm212, %v1088
      %1111 = vst.msk [vmem:[#allocation2 + $0x10] sm:$0xff] %vm210, %v1089
      %1112 = vst.msk [vmem:[#allocation2 + $0x18] sm:$0x7] %vm212, %v1090
      %1113 = vst.msk [vmem:[#allocation2 + $0x20] sm:$0xff] %vm210, %v1091
      %1114 = vst.msk [vmem:[#allocation2 + $0x28] sm:$0x7] %vm212, %v1092
      %1115 = vst.msk [vmem:[#allocation2 + $0x30] sm:$0xff] %vm210, %v1093
      %1116 = vst.msk [vmem:[#allocation2 + $0x38] sm:$0x7] %vm212, %v1094
      %1117 = vst.msk [vmem:[#allocation2 + $0x40] sm:$0xff] %vm210, %v1095
      %1118 = vst.msk [vmem:[#allocation2 + $0x48] sm:$0x7] %vm212, %v1096
      %1119 = vst.msk [vmem:[#allocation2 + $0x50] sm:$0xff] %vm210, %v1097
      %1120 = vst.msk [vmem:[#allocation2 + $0x58] sm:$0x7] %vm212, %v1098
      %1121 = vst.msk [vmem:[#allocation2 + $0x60] sm:$0xff] %vm210, %v1099
      %1122 = vst.msk [vmem:[#allocation2 + $0x68] sm:$0x7] %vm212, %v1100
      %1123 = vst.msk [vmem:[#allocation2 + $0x70] sm:$0xff] %vm210, %v1101
      %1124 = vst.msk [vmem:[#allocation2 + $0x78] sm:$0x7] %vm212, %v1102
      %1125 = vst.msk [vmem:[#allocation2 + $0x80] sm:$0xff] %vm210, %v1103
      %1126 = vst.msk [vmem:[#allocation2 + $0x88] sm:$0x7] %vm212, %v1104
      %1127 = vst.msk [vmem:[#allocation2 + $0x90] sm:$0xff] %vm210, %v1105
      %1128 = vst.msk [vmem:[#allocation2 + $0x98] sm:$0x7] %vm212, %v1106
      %1129 = vst.msk [vmem:[#allocation2 + $0xa0] sm:$0xff] %vm210, %v1107
      %1130 = vst.msk [vmem:[#allocation2 + $0xa8] sm:$0x7] %vm212, %v1108
      %v1131 = vld [vmem:[%s794 + $0x3] sm:$0xff]
      %v1132 = vld [vmem:[%s794 + $0xb] sm:$0x7]
      %v1133 = vld [vmem:[%s794 + $0x13] sm:$0xff]
      %v1134 = vld [vmem:[%s794 + $0x1b] sm:$0x7]
      %v1135 = vld [vmem:[%s794 + $0x23] sm:$0xff]
      %v1136 = vld [vmem:[%s794 + $0x2b] sm:$0x7]
      %v1137 = vld [vmem:[%s794 + $0x33] sm:$0xff]
      %v1138 = vld [vmem:[%s794 + $0x3b] sm:$0x7]
      %v1139 = vld [vmem:[%s794 + $0x43] sm:$0xff]
      %v1140 = vld [vmem:[%s794 + $0x4b] sm:$0x7]
      %v1141 = vld [vmem:[%s794 + $0x53] sm:$0xff]
      %v1142 = vld [vmem:[%s794 + $0x5b] sm:$0x7]
      %v1143 = vld [vmem:[%s794 + $0x63] sm:$0xff]
      %v1144 = vld [vmem:[%s794 + $0x6b] sm:$0x7]
      %v1145 = vld [vmem:[%s794 + $0x73] sm:$0xff]
      %v1146 = vld [vmem:[%s794 + $0x7b] sm:$0x7]
      %v1147 = vld [vmem:[%s794 + $0x83] sm:$0xff]
      %v1148 = vld [vmem:[%s794 + $0x8b] sm:$0x7]
      %v1149 = vld [vmem:[%s794 + $0x93] sm:$0xff]
      %v1150 = vld [vmem:[%s794 + $0x9b] sm:$0x7]
      %v1151 = vld [vmem:[%s794 + $0xa3] sm:$0xff]
      %v1152 = vld [vmem:[%s794 + $0xab] sm:$0x7]
      %v1153 = vld [vmem:[%s153 + $0x9] sm:$0x1]
      %v1154 = vperm.slane %v1153, 0
      %v1155 = vmul.f32 %v1131, %v1154
      %v1156 = vmul.f32 %v1132, %v1154
      %v1157 = vmul.f32 %v1133, %v1154
      %v1158 = vmul.f32 %v1134, %v1154
      %v1159 = vmul.f32 %v1135, %v1154
      %v1160 = vmul.f32 %v1136, %v1154
      %v1161 = vmul.f32 %v1137, %v1154
      %v1162 = vmul.f32 %v1138, %v1154
      %v1163 = vmul.f32 %v1139, %v1154
      %v1164 = vmul.f32 %v1140, %v1154
      %v1165 = vmul.f32 %v1141, %v1154
      %v1166 = vmul.f32 %v1142, %v1154
      %v1167 = vmul.f32 %v1143, %v1154
      %v1168 = vmul.f32 %v1144, %v1154
      %v1169 = vmul.f32 %v1145, %v1154
      %v1170 = vmul.f32 %v1146, %v1154
      %v1171 = vmul.f32 %v1147, %v1154
      %v1172 = vmul.f32 %v1148, %v1154
      %v1173 = vmul.f32 %v1149, %v1154
      %v1174 = vmul.f32 %v1150, %v1154
      %v1175 = vmul.f32 %v1151, %v1154
      %v1176 = vmul.f32 %v1152, %v1154
      %v1177 = vld [vmem:[#allocation2] sm:$0xff]
      %v1178 = vld [vmem:[#allocation2 + $0x8] sm:$0x7]
      %v1179 = vld [vmem:[#allocation2 + $0x10] sm:$0xff]
      %v1180 = vld [vmem:[#allocation2 + $0x18] sm:$0x7]
      %v1181 = vld [vmem:[#allocation2 + $0x20] sm:$0xff]
      %v1182 = vld [vmem:[#allocation2 + $0x28] sm:$0x7]
      %v1183 = vld [vmem:[#allocation2 + $0x30] sm:$0xff]
      %v1184 = vld [vmem:[#allocation2 + $0x38] sm:$0x7]
      %v1185 = vld [vmem:[#allocation2 + $0x40] sm:$0xff]
      %v1186 = vld [vmem:[#allocation2 + $0x48] sm:$0x7]
      %v1187 = vld [vmem:[#allocation2 + $0x50] sm:$0xff]
      %v1188 = vld [vmem:[#allocation2 + $0x58] sm:$0x7]
      %v1189 = vld [vmem:[#allocation2 + $0x60] sm:$0xff]
      %v1190 = vld [vmem:[#allocation2 + $0x68] sm:$0x7]
      %v1191 = vld [vmem:[#allocation2 + $0x70] sm:$0xff]
      %v1192 = vld [vmem:[#allocation2 + $0x78] sm:$0x7]
      %v1193 = vld [vmem:[#allocation2 + $0x80] sm:$0xff]
      %v1194 = vld [vmem:[#allocation2 + $0x88] sm:$0x7]
      %v1195 = vld [vmem:[#allocation2 + $0x90] sm:$0xff]
      %v1196 = vld [vmem:[#allocation2 + $0x98] sm:$0x7]
      %v1197 = vld [vmem:[#allocation2 + $0xa0] sm:$0xff]
      %v1198 = vld [vmem:[#allocation2 + $0xa8] sm:$0x7]
      %v1199 = vadd.f32 %v1177, %v1155
      %v1200 = vadd.f32 %v1178, %v1156
      %v1201 = vadd.f32 %v1179, %v1157
      %v1202 = vadd.f32 %v1180, %v1158
      %v1203 = vadd.f32 %v1181, %v1159
      %v1204 = vadd.f32 %v1182, %v1160
      %v1205 = vadd.f32 %v1183, %v1161
      %v1206 = vadd.f32 %v1184, %v1162
      %v1207 = vadd.f32 %v1185, %v1163
      %v1208 = vadd.f32 %v1186, %v1164
      %v1209 = vadd.f32 %v1187, %v1165
      %v1210 = vadd.f32 %v1188, %v1166
      %v1211 = vadd.f32 %v1189, %v1167
      %v1212 = vadd.f32 %v1190, %v1168
      %v1213 = vadd.f32 %v1191, %v1169
      %v1214 = vadd.f32 %v1192, %v1170
      %v1215 = vadd.f32 %v1193, %v1171
      %v1216 = vadd.f32 %v1194, %v1172
      %v1217 = vadd.f32 %v1195, %v1173
      %v1218 = vadd.f32 %v1196, %v1174
      %v1219 = vadd.f32 %v1197, %v1175
      %v1220 = vadd.f32 %v1198, %v1176
      %1221 = vst.msk [vmem:[#allocation2] sm:$0xff] %vm210, %v1199
      %1222 = vst.msk [vmem:[#allocation2 + $0x8] sm:$0x7] %vm212, %v1200
      %1223 = vst.msk [vmem:[#allocation2 + $0x10] sm:$0xff] %vm210, %v1201
      %1224 = vst.msk [vmem:[#allocation2 + $0x18] sm:$0x7] %vm212, %v1202
      %1225 = vst.msk [vmem:[#allocation2 + $0x20] sm:$0xff] %vm210, %v1203
      %1226 = vst.msk [vmem:[#allocation2 + $0x28] sm:$0x7] %vm212, %v1204
      %1227 = vst.msk [vmem:[#allocation2 + $0x30] sm:$0xff] %vm210, %v1205
      %1228 = vst.msk [vmem:[#allocation2 + $0x38] sm:$0x7] %vm212, %v1206
      %1229 = vst.msk [vmem:[#allocation2 + $0x40] sm:$0xff] %vm210, %v1207
      %1230 = vst.msk [vmem:[#allocation2 + $0x48] sm:$0x7] %vm212, %v1208
      %1231 = vst.msk [vmem:[#allocation2 + $0x50] sm:$0xff] %vm210, %v1209
      %1232 = vst.msk [vmem:[#allocation2 + $0x58] sm:$0x7] %vm212, %v1210
      %1233 = vst.msk [vmem:[#allocation2 + $0x60] sm:$0xff] %vm210, %v1211
      %1234 = vst.msk [vmem:[#allocation2 + $0x68] sm:$0x7] %vm212, %v1212
      %1235 = vst.msk [vmem:[#allocation2 + $0x70] sm:$0xff] %vm210, %v1213
      %1236 = vst.msk [vmem:[#allocation2 + $0x78] sm:$0x7] %vm212, %v1214
      %1237 = vst.msk [vmem:[#allocation2 + $0x80] sm:$0xff] %vm210, %v1215
      %1238 = vst.msk [vmem:[#allocation2 + $0x88] sm:$0x7] %vm212, %v1216
      %1239 = vst.msk [vmem:[#allocation2 + $0x90] sm:$0xff] %vm210, %v1217
      %1240 = vst.msk [vmem:[#allocation2 + $0x98] sm:$0x7] %vm212, %v1218
      %1241 = vst.msk [vmem:[#allocation2 + $0xa0] sm:$0xff] %vm210, %v1219
      %1242 = vst.msk [vmem:[#allocation2 + $0xa8] sm:$0x7] %vm212, %v1220
      %v1243 = vld [vmem:[%s794 + $0x4] sm:$0xff]
      %v1244 = vld [vmem:[%s794 + $0xc] sm:$0x7]
      %v1245 = vld [vmem:[%s794 + $0x14] sm:$0xff]
      %v1246 = vld [vmem:[%s794 + $0x1c] sm:$0x7]
      %v1247 = vld [vmem:[%s794 + $0x24] sm:$0xff]
      %v1248 = vld [vmem:[%s794 + $0x2c] sm:$0x7]
      %v1249 = vld [vmem:[%s794 + $0x34] sm:$0xff]
      %v1250 = vld [vmem:[%s794 + $0x3c] sm:$0x7]
      %v1251 = vld [vmem:[%s794 + $0x44] sm:$0xff]
      %v1252 = vld [vmem:[%s794 + $0x4c] sm:$0x7]
      %v1253 = vld [vmem:[%s794 + $0x54] sm:$0xff]
      %v1254 = vld [vmem:[%s794 + $0x5c] sm:$0x7]
      %v1255 = vld [vmem:[%s794 + $0x64] sm:$0xff]
      %v1256 = vld [vmem:[%s794 + $0x6c] sm:$0x7]
      %v1257 = vld [vmem:[%s794 + $0x74] sm:$0xff]
      %v1258 = vld [vmem:[%s794 + $0x7c] sm:$0x7]
      %v1259 = vld [vmem:[%s794 + $0x84] sm:$0xff]
      %v1260 = vld [vmem:[%s794 + $0x8c] sm:$0x7]
      %v1261 = vld [vmem:[%s794 + $0x94] sm:$0xff]
      %v1262 = vld [vmem:[%s794 + $0x9c] sm:$0x7]
      %v1263 = vld [vmem:[%s794 + $0xa4] sm:$0xff]
      %v1264 = vld [vmem:[%s794 + $0xac] sm:$0x7]
      %v1265 = vld [vmem:[%s153 + $0xa] sm:$0x1]
      %v1266 = vperm.slane %v1265, 0
      %v1267 = vmul.f32 %v1243, %v1266
      %v1268 = vmul.f32 %v1244, %v1266
      %v1269 = vmul.f32 %v1245, %v1266
      %v1270 = vmul.f32 %v1246, %v1266
      %v1271 = vmul.f32 %v1247, %v1266
      %v1272 = vmul.f32 %v1248, %v1266
      %v1273 = vmul.f32 %v1249, %v1266
      %v1274 = vmul.f32 %v1250, %v1266
      %v1275 = vmul.f32 %v1251, %v1266
      %v1276 = vmul.f32 %v1252, %v1266
      %v1277 = vmul.f32 %v1253, %v1266
      %v1278 = vmul.f32 %v1254, %v1266
      %v1279 = vmul.f32 %v1255, %v1266
      %v1280 = vmul.f32 %v1256, %v1266
      %v1281 = vmul.f32 %v1257, %v1266
      %v1282 = vmul.f32 %v1258, %v1266
      %v1283 = vmul.f32 %v1259, %v1266
      %v1284 = vmul.f32 %v1260, %v1266
      %v1285 = vmul.f32 %v1261, %v1266
      %v1286 = vmul.f32 %v1262, %v1266
      %v1287 = vmul.f32 %v1263, %v1266
      %v1288 = vmul.f32 %v1264, %v1266
      %v1289 = vld [vmem:[#allocation2] sm:$0xff]
      %v1290 = vld [vmem:[#allocation2 + $0x8] sm:$0x7]
      %v1291 = vld [vmem:[#allocation2 + $0x10] sm:$0xff]
      %v1292 = vld [vmem:[#allocation2 + $0x18] sm:$0x7]
      %v1293 = vld [vmem:[#allocation2 + $0x20] sm:$0xff]
      %v1294 = vld [vmem:[#allocation2 + $0x28] sm:$0x7]
      %v1295 = vld [vmem:[#allocation2 + $0x30] sm:$0xff]
      %v1296 = vld [vmem:[#allocation2 + $0x38] sm:$0x7]
      %v1297 = vld [vmem:[#allocation2 + $0x40] sm:$0xff]
      %v1298 = vld [vmem:[#allocation2 + $0x48] sm:$0x7]
      %v1299 = vld [vmem:[#allocation2 + $0x50] sm:$0xff]
      %v1300 = vld [vmem:[#allocation2 + $0x58] sm:$0x7]
      %v1301 = vld [vmem:[#allocation2 + $0x60] sm:$0xff]
      %v1302 = vld [vmem:[#allocation2 + $0x68] sm:$0x7]
      %v1303 = vld [vmem:[#allocation2 + $0x70] sm:$0xff]
      %v1304 = vld [vmem:[#allocation2 + $0x78] sm:$0x7]
      %v1305 = vld [vmem:[#allocation2 + $0x80] sm:$0xff]
      %v1306 = vld [vmem:[#allocation2 + $0x88] sm:$0x7]
      %v1307 = vld [vmem:[#allocation2 + $0x90] sm:$0xff]
      %v1308 = vld [vmem:[#allocation2 + $0x98] sm:$0x7]
      %v1309 = vld [vmem:[#allocation2 + $0xa0] sm:$0xff]
      %v1310 = vld [vmem:[#allocation2 + $0xa8] sm:$0x7]
      %v1311 = vadd.f32 %v1289, %v1267
      %v1312 = vadd.f32 %v1290, %v1268
      %v1313 = vadd.f32 %v1291, %v1269
      %v1314 = vadd.f32 %v1292, %v1270
      %v1315 = vadd.f32 %v1293, %v1271
      %v1316 = vadd.f32 %v1294, %v1272
      %v1317 = vadd.f32 %v1295, %v1273
      %v1318 = vadd.f32 %v1296, %v1274
      %v1319 = vadd.f32 %v1297, %v1275
      %v1320 = vadd.f32 %v1298, %v1276
      %v1321 = vadd.f32 %v1299, %v1277
      %v1322 = vadd.f32 %v1300, %v1278
      %v1323 = vadd.f32 %v1301, %v1279
      %v1324 = vadd.f32 %v1302, %v1280
      %v1325 = vadd.f32 %v1303, %v1281
      %v1326 = vadd.f32 %v1304, %v1282
      %v1327 = vadd.f32 %v1305, %v1283
      %v1328 = vadd.f32 %v1306, %v1284
      %v1329 = vadd.f32 %v1307, %v1285
      %v1330 = vadd.f32 %v1308, %v1286
      %v1331 = vadd.f32 %v1309, %v1287
      %v1332 = vadd.f32 %v1310, %v1288
      %1333 = vst.msk [vmem:[#allocation2] sm:$0xff] %vm210, %v1311
      %1334 = vst.msk [vmem:[#allocation2 + $0x8] sm:$0x7] %vm212, %v1312
      %1335 = vst.msk [vmem:[#allocation2 + $0x10] sm:$0xff] %vm210, %v1313
      %1336 = vst.msk [vmem:[#allocation2 + $0x18] sm:$0x7] %vm212, %v1314
      %1337 = vst.msk [vmem:[#allocation2 + $0x20] sm:$0xff] %vm210, %v1315
      %1338 = vst.msk [vmem:[#allocation2 + $0x28] sm:$0x7] %vm212, %v1316
      %1339 = vst.msk [vmem:[#allocation2 + $0x30] sm:$0xff] %vm210, %v1317
      %1340 = vst.msk [vmem:[#allocation2 + $0x38] sm:$0x7] %vm212, %v1318
      %1341 = vst.msk [vmem:[#allocation2 + $0x40] sm:$0xff] %vm210, %v1319
      %1342 = vst.msk [vmem:[#allocation2 + $0x48] sm:$0x7] %vm212, %v1320
      %1343 = vst.msk [vmem:[#allocation2 + $0x50] sm:$0xff] %vm210, %v1321
      %1344 = vst.msk [vmem:[#allocation2 + $0x58] sm:$0x7] %vm212, %v1322
      %1345 = vst.msk [vmem:[#allocation2 + $0x60] sm:$0xff] %vm210, %v1323
      %1346 = vst.msk [vmem:[#allocation2 + $0x68] sm:$0x7] %vm212, %v1324
      %1347 = vst.msk [vmem:[#allocation2 + $0x70] sm:$0xff] %vm210, %v1325
      %1348 = vst.msk [vmem:[#allocation2 + $0x78] sm:$0x7] %vm212, %v1326
      %1349 = vst.msk [vmem:[#allocation2 + $0x80] sm:$0xff] %vm210, %v1327
      %1350 = vst.msk [vmem:[#allocation2 + $0x88] sm:$0x7] %vm212, %v1328
      %1351 = vst.msk [vmem:[#allocation2 + $0x90] sm:$0xff] %vm210, %v1329
      %1352 = vst.msk [vmem:[#allocation2 + $0x98] sm:$0x7] %vm212, %v1330
      %1353 = vst.msk [vmem:[#allocation2 + $0xa0] sm:$0xff] %vm210, %v1331
      %1354 = vst.msk [vmem:[#allocation2 + $0xa8] sm:$0x7] %vm212, %v1332
      %v1355 = vld [vmem:[%s794 + $0x5] sm:$0xff]
      %v1356 = vld [vmem:[%s794 + $0xd] sm:$0x7]
      %v1357 = vld [vmem:[%s794 + $0x15] sm:$0xff]
      %v1358 = vld [vmem:[%s794 + $0x1d] sm:$0x7]
      %v1359 = vld [vmem:[%s794 + $0x25] sm:$0xff]
      %v1360 = vld [vmem:[%s794 + $0x2d] sm:$0x7]
      %v1361 = vld [vmem:[%s794 + $0x35] sm:$0xff]
      %v1362 = vld [vmem:[%s794 + $0x3d] sm:$0x7]
      %v1363 = vld [vmem:[%s794 + $0x45] sm:$0xff]
      %v1364 = vld [vmem:[%s794 + $0x4d] sm:$0x7]
      %v1365 = vld [vmem:[%s794 + $0x55] sm:$0xff]
      %v1366 = vld [vmem:[%s794 + $0x5d] sm:$0x7]
      %v1367 = vld [vmem:[%s794 + $0x65] sm:$0xff]
      %v1368 = vld [vmem:[%s794 + $0x6d] sm:$0x7]
      %v1369 = vld [vmem:[%s794 + $0x75] sm:$0xff]
      %v1370 = vld [vmem:[%s794 + $0x7d] sm:$0x7]
      %v1371 = vld [vmem:[%s794 + $0x85] sm:$0xff]
      %v1372 = vld [vmem:[%s794 + $0x8d] sm:$0x7]
      %v1373 = vld [vmem:[%s794 + $0x95] sm:$0xff]
      %v1374 = vld [vmem:[%s794 + $0x9d] sm:$0x7]
      %v1375 = vld [vmem:[%s794 + $0xa5] sm:$0xff]
      %v1376 = vld [vmem:[%s794 + $0xad] sm:$0x7]
      %v1377 = vld [vmem:[%s153 + $0xb] sm:$0x1]
      %v1378 = vperm.slane %v1377, 0
      %v1379 = vmul.f32 %v1355, %v1378
      %v1380 = vmul.f32 %v1356, %v1378
      %v1381 = vmul.f32 %v1357, %v1378
      %v1382 = vmul.f32 %v1358, %v1378
      %v1383 = vmul.f32 %v1359, %v1378
      %v1384 = vmul.f32 %v1360, %v1378
      %v1385 = vmul.f32 %v1361, %v1378
      %v1386 = vmul.f32 %v1362, %v1378
      %v1387 = vmul.f32 %v1363, %v1378
      %v1388 = vmul.f32 %v1364, %v1378
      %v1389 = vmul.f32 %v1365, %v1378
      %v1390 = vmul.f32 %v1366, %v1378
      %v1391 = vmul.f32 %v1367, %v1378
      %v1392 = vmul.f32 %v1368, %v1378
      %v1393 = vmul.f32 %v1369, %v1378
      %v1394 = vmul.f32 %v1370, %v1378
      %v1395 = vmul.f32 %v1371, %v1378
      %v1396 = vmul.f32 %v1372, %v1378
      %v1397 = vmul.f32 %v1373, %v1378
      %v1398 = vmul.f32 %v1374, %v1378
      %v1399 = vmul.f32 %v1375, %v1378
      %v1400 = vmul.f32 %v1376, %v1378
      %v1401 = vld [vmem:[#allocation2] sm:$0xff]
      %v1402 = vld [vmem:[#allocation2 + $0x8] sm:$0x7]
      %v1403 = vld [vmem:[#allocation2 + $0x10] sm:$0xff]
      %v1404 = vld [vmem:[#allocation2 + $0x18] sm:$0x7]
      %v1405 = vld [vmem:[#allocation2 + $0x20] sm:$0xff]
      %v1406 = vld [vmem:[#allocation2 + $0x28] sm:$0x7]
      %v1407 = vld [vmem:[#allocation2 + $0x30] sm:$0xff]
      %v1408 = vld [vmem:[#allocation2 + $0x38] sm:$0x7]
      %v1409 = vld [vmem:[#allocation2 + $0x40] sm:$0xff]
      %v1410 = vld [vmem:[#allocation2 + $0x48] sm:$0x7]
      %v1411 = vld [vmem:[#allocation2 + $0x50] sm:$0xff]
      %v1412 = vld [vmem:[#allocation2 + $0x58] sm:$0x7]
      %v1413 = vld [vmem:[#allocation2 + $0x60] sm:$0xff]
      %v1414 = vld [vmem:[#allocation2 + $0x68] sm:$0x7]
      %v1415 = vld [vmem:[#allocation2 + $0x70] sm:$0xff]
      %v1416 = vld [vmem:[#allocation2 + $0x78] sm:$0x7]
      %v1417 = vld [vmem:[#allocation2 + $0x80] sm:$0xff]
      %v1418 = vld [vmem:[#allocation2 + $0x88] sm:$0x7]
      %v1419 = vld [vmem:[#allocation2 + $0x90] sm:$0xff]
      %v1420 = vld [vmem:[#allocation2 + $0x98] sm:$0x7]
      %v1421 = vld [vmem:[#allocation2 + $0xa0] sm:$0xff]
      %v1422 = vld [vmem:[#allocation2 + $0xa8] sm:$0x7]
      %v1423 = vadd.f32 %v1401, %v1379
      %v1424 = vadd.f32 %v1402, %v1380
      %v1425 = vadd.f32 %v1403, %v1381
      %v1426 = vadd.f32 %v1404, %v1382
      %v1427 = vadd.f32 %v1405, %v1383
      %v1428 = vadd.f32 %v1406, %v1384
      %v1429 = vadd.f32 %v1407, %v1385
      %v1430 = vadd.f32 %v1408, %v1386
      %v1431 = vadd.f32 %v1409, %v1387
      %v1432 = vadd.f32 %v1410, %v1388
      %v1433 = vadd.f32 %v1411, %v1389
      %v1434 = vadd.f32 %v1412, %v1390
      %v1435 = vadd.f32 %v1413, %v1391
      %v1436 = vadd.f32 %v1414, %v1392
      %v1437 = vadd.f32 %v1415, %v1393
      %v1438 = vadd.f32 %v1416, %v1394
      %v1439 = vadd.f32 %v1417, %v1395
      %v1440 = vadd.f32 %v1418, %v1396
      %v1441 = vadd.f32 %v1419, %v1397
      %v1442 = vadd.f32 %v1420, %v1398
      %v1443 = vadd.f32 %v1421, %v1399
      %v1444 = vadd.f32 %v1422, %v1400
      %1445 = vst.msk [vmem:[#allocation2] sm:$0xff] %vm210, %v1423
      %1446 = vst.msk [vmem:[#allocation2 + $0x8] sm:$0x7] %vm212, %v1424
      %1447 = vst.msk [vmem:[#allocation2 + $0x10] sm:$0xff] %vm210, %v1425
      %1448 = vst.msk [vmem:[#allocation2 + $0x18] sm:$0x7] %vm212, %v1426
      %1449 = vst.msk [vmem:[#allocation2 + $0x20] sm:$0xff] %vm210, %v1427
      %1450 = vst.msk [vmem:[#allocation2 + $0x28] sm:$0x7] %vm212, %v1428
      %1451 = vst.msk [vmem:[#allocation2 + $0x30] sm:$0xff] %vm210, %v1429
      %1452 = vst.msk [vmem:[#allocation2 + $0x38] sm:$0x7] %vm212, %v1430
      %1453 = vst.msk [vmem:[#allocation2 + $0x40] sm:$0xff] %vm210, %v1431
      %1454 = vst.msk [vmem:[#allocation2 + $0x48] sm:$0x7] %vm212, %v1432
      %1455 = vst.msk [vmem:[#allocation2 + $0x50] sm:$0xff] %vm210, %v1433
      %1456 = vst.msk [vmem:[#allocation2 + $0x58] sm:$0x7] %vm212, %v1434
      %1457 = vst.msk [vmem:[#allocation2 + $0x60] sm:$0xff] %vm210, %v1435
      %1458 = vst.msk [vmem:[#allocation2 + $0x68] sm:$0x7] %vm212, %v1436
      %1459 = vst.msk [vmem:[#allocation2 + $0x70] sm:$0xff] %vm210, %v1437
      %1460 = vst.msk [vmem:[#allocation2 + $0x78] sm:$0x7] %vm212, %v1438
      %1461 = vst.msk [vmem:[#allocation2 + $0x80] sm:$0xff] %vm210, %v1439
      %1462 = vst.msk [vmem:[#allocation2 + $0x88] sm:$0x7] %vm212, %v1440
      %1463 = vst.msk [vmem:[#allocation2 + $0x90] sm:$0xff] %vm210, %v1441
      %1464 = vst.msk [vmem:[#allocation2 + $0x98] sm:$0x7] %vm212, %v1442
      %1465 = vst.msk [vmem:[#allocation2 + $0xa0] sm:$0xff] %vm210, %v1443
      %1466 = vst.msk [vmem:[#allocation2 + $0xa8] sm:$0x7] %vm212, %v1444
      %s1467 = scalar_lea.vmem %s158, 32
      %v1468 = vld [vmem:[%s1467] sm:$0xff]
      %v1469 = vld [vmem:[%s1467 + $0x8] sm:$0x7]
      %v1470 = vld [vmem:[%s1467 + $0x10] sm:$0xff]
      %v1471 = vld [vmem:[%s1467 + $0x18] sm:$0x7]
      %v1472 = vld [vmem:[%s1467 + $0x20] sm:$0xff]
      %v1473 = vld [vmem:[%s1467 + $0x28] sm:$0x7]
      %v1474 = vld [vmem:[%s1467 + $0x30] sm:$0xff]
      %v1475 = vld [vmem:[%s1467 + $0x38] sm:$0x7]
      %v1476 = vld [vmem:[%s1467 + $0x40] sm:$0xff]
      %v1477 = vld [vmem:[%s1467 + $0x48] sm:$0x7]
      %v1478 = vld [vmem:[%s1467 + $0x50] sm:$0xff]
      %v1479 = vld [vmem:[%s1467 + $0x58] sm:$0x7]
      %v1480 = vld [vmem:[%s1467 + $0x60] sm:$0xff]
      %v1481 = vld [vmem:[%s1467 + $0x68] sm:$0x7]
      %v1482 = vld [vmem:[%s1467 + $0x70] sm:$0xff]
      %v1483 = vld [vmem:[%s1467 + $0x78] sm:$0x7]
      %v1484 = vld [vmem:[%s1467 + $0x80] sm:$0xff]
      %v1485 = vld [vmem:[%s1467 + $0x88] sm:$0x7]
      %v1486 = vld [vmem:[%s1467 + $0x90] sm:$0xff]
      %v1487 = vld [vmem:[%s1467 + $0x98] sm:$0x7]
      %v1488 = vld [vmem:[%s1467 + $0xa0] sm:$0xff]
      %v1489 = vld [vmem:[%s1467 + $0xa8] sm:$0x7]
      %v1490 = vld [vmem:[%s153 + $0xc] sm:$0x1]
      %v1491 = vperm.slane %v1490, 0
      %v1492 = vmul.f32 %v1468, %v1491
      %v1493 = vmul.f32 %v1469, %v1491
      %v1494 = vmul.f32 %v1470, %v1491
      %v1495 = vmul.f32 %v1471, %v1491
      %v1496 = vmul.f32 %v1472, %v1491
      %v1497 = vmul.f32 %v1473, %v1491
      %v1498 = vmul.f32 %v1474, %v1491
      %v1499 = vmul.f32 %v1475, %v1491
      %v1500 = vmul.f32 %v1476, %v1491
      %v1501 = vmul.f32 %v1477, %v1491
      %v1502 = vmul.f32 %v1478, %v1491
      %v1503 = vmul.f32 %v1479, %v1491
      %v1504 = vmul.f32 %v1480, %v1491
      %v1505 = vmul.f32 %v1481, %v1491
      %v1506 = vmul.f32 %v1482, %v1491
      %v1507 = vmul.f32 %v1483, %v1491
      %v1508 = vmul.f32 %v1484, %v1491
      %v1509 = vmul.f32 %v1485, %v1491
      %v1510 = vmul.f32 %v1486, %v1491
      %v1511 = vmul.f32 %v1487, %v1491
      %v1512 = vmul.f32 %v1488, %v1491
      %v1513 = vmul.f32 %v1489, %v1491
      %v1514 = vld [vmem:[#allocation2] sm:$0xff]
      %v1515 = vld [vmem:[#allocation2 + $0x8] sm:$0x7]
      %v1516 = vld [vmem:[#allocation2 + $0x10] sm:$0xff]
      %v1517 = vld [vmem:[#allocation2 + $0x18] sm:$0x7]
      %v1518 = vld [vmem:[#allocation2 + $0x20] sm:$0xff]
      %v1519 = vld [vmem:[#allocation2 + $0x28] sm:$0x7]
      %v1520 = vld [vmem:[#allocation2 + $0x30] sm:$0xff]
      %v1521 = vld [vmem:[#allocation2 + $0x38] sm:$0x7]
      %v1522 = vld [vmem:[#allocation2 + $0x40] sm:$0xff]
      %v1523 = vld [vmem:[#allocation2 + $0x48] sm:$0x7]
      %v1524 = vld [vmem:[#allocation2 + $0x50] sm:$0xff]
      %v1525 = vld [vmem:[#allocation2 + $0x58] sm:$0x7]
      %v1526 = vld [vmem:[#allocation2 + $0x60] sm:$0xff]
      %v1527 = vld [vmem:[#allocation2 + $0x68] sm:$0x7]
      %v1528 = vld [vmem:[#allocation2 + $0x70] sm:$0xff]
      %v1529 = vld [vmem:[#allocation2 + $0x78] sm:$0x7]
      %v1530 = vld [vmem:[#allocation2 + $0x80] sm:$0xff]
      %v1531 = vld [vmem:[#allocation2 + $0x88] sm:$0x7]
      %v1532 = vld [vmem:[#allocation2 + $0x90] sm:$0xff]
      %v1533 = vld [vmem:[#allocation2 + $0x98] sm:$0x7]
      %v1534 = vld [vmem:[#allocation2 + $0xa0] sm:$0xff]
      %v1535 = vld [vmem:[#allocation2 + $0xa8] sm:$0x7]
      %v1536 = vadd.f32 %v1514, %v1492
      %v1537 = vadd.f32 %v1515, %v1493
      %v1538 = vadd.f32 %v1516, %v1494
      %v1539 = vadd.f32 %v1517, %v1495
      %v1540 = vadd.f32 %v1518, %v1496
      %v1541 = vadd.f32 %v1519, %v1497
      %v1542 = vadd.f32 %v1520, %v1498
      %v1543 = vadd.f32 %v1521, %v1499
      %v1544 = vadd.f32 %v1522, %v1500
      %v1545 = vadd.f32 %v1523, %v1501
      %v1546 = vadd.f32 %v1524, %v1502
      %v1547 = vadd.f32 %v1525, %v1503
      %v1548 = vadd.f32 %v1526, %v1504
      %v1549 = vadd.f32 %v1527, %v1505
      %v1550 = vadd.f32 %v1528, %v1506
      %v1551 = vadd.f32 %v1529, %v1507
      %v1552 = vadd.f32 %v1530, %v1508
      %v1553 = vadd.f32 %v1531, %v1509
      %v1554 = vadd.f32 %v1532, %v1510
      %v1555 = vadd.f32 %v1533, %v1511
      %v1556 = vadd.f32 %v1534, %v1512
      %v1557 = vadd.f32 %v1535, %v1513
      %1558 = vst.msk [vmem:[#allocation2] sm:$0xff] %vm210, %v1536
      %1559 = vst.msk [vmem:[#allocation2 + $0x8] sm:$0x7] %vm212, %v1537
      %1560 = vst.msk [vmem:[#allocation2 + $0x10] sm:$0xff] %vm210, %v1538
      %1561 = vst.msk [vmem:[#allocation2 + $0x18] sm:$0x7] %vm212, %v1539
      %1562 = vst.msk [vmem:[#allocation2 + $0x20] sm:$0xff] %vm210, %v1540
      %1563 = vst.msk [vmem:[#allocation2 + $0x28] sm:$0x7] %vm212, %v1541
      %1564 = vst.msk [vmem:[#allocation2 + $0x30] sm:$0xff] %vm210, %v1542
      %1565 = vst.msk [vmem:[#allocation2 + $0x38] sm:$0x7] %vm212, %v1543
      %1566 = vst.msk [vmem:[#allocation2 + $0x40] sm:$0xff] %vm210, %v1544
      %1567 = vst.msk [vmem:[#allocation2 + $0x48] sm:$0x7] %vm212, %v1545
      %1568 = vst.msk [vmem:[#allocation2 + $0x50] sm:$0xff] %vm210, %v1546
      %1569 = vst.msk [vmem:[#allocation2 + $0x58] sm:$0x7] %vm212, %v1547
      %1570 = vst.msk [vmem:[#allocation2 + $0x60] sm:$0xff] %vm210, %v1548
      %1571 = vst.msk [vmem:[#allocation2 + $0x68] sm:$0x7] %vm212, %v1549
      %1572 = vst.msk [vmem:[#allocation2 + $0x70] sm:$0xff] %vm210, %v1550
      %1573 = vst.msk [vmem:[#allocation2 + $0x78] sm:$0x7] %vm212, %v1551
      %1574 = vst.msk [vmem:[#allocation2 + $0x80] sm:$0xff] %vm210, %v1552
      %1575 = vst.msk [vmem:[#allocation2 + $0x88] sm:$0x7] %vm212, %v1553
      %1576 = vst.msk [vmem:[#allocation2 + $0x90] sm:$0xff] %vm210, %v1554
      %1577 = vst.msk [vmem:[#allocation2 + $0x98] sm:$0x7] %vm212, %v1555
      %1578 = vst.msk [vmem:[#allocation2 + $0xa0] sm:$0xff] %vm210, %v1556
      %1579 = vst.msk [vmem:[#allocation2 + $0xa8] sm:$0x7] %vm212, %v1557
      %v1580 = vld [vmem:[%s1467 + $0x1] sm:$0xff]
      %v1581 = vld [vmem:[%s1467 + $0x9] sm:$0x7]
      %v1582 = vld [vmem:[%s1467 + $0x11] sm:$0xff]
      %v1583 = vld [vmem:[%s1467 + $0x19] sm:$0x7]
      %v1584 = vld [vmem:[%s1467 + $0x21] sm:$0xff]
      %v1585 = vld [vmem:[%s1467 + $0x29] sm:$0x7]
      %v1586 = vld [vmem:[%s1467 + $0x31] sm:$0xff]
      %v1587 = vld [vmem:[%s1467 + $0x39] sm:$0x7]
      %v1588 = vld [vmem:[%s1467 + $0x41] sm:$0xff]
      %v1589 = vld [vmem:[%s1467 + $0x49] sm:$0x7]
      %v1590 = vld [vmem:[%s1467 + $0x51] sm:$0xff]
      %v1591 = vld [vmem:[%s1467 + $0x59] sm:$0x7]
      %v1592 = vld [vmem:[%s1467 + $0x61] sm:$0xff]
      %v1593 = vld [vmem:[%s1467 + $0x69] sm:$0x7]
      %v1594 = vld [vmem:[%s1467 + $0x71] sm:$0xff]
      %v1595 = vld [vmem:[%s1467 + $0x79] sm:$0x7]
      %v1596 = vld [vmem:[%s1467 + $0x81] sm:$0xff]
      %v1597 = vld [vmem:[%s1467 + $0x89] sm:$0x7]
      %v1598 = vld [vmem:[%s1467 + $0x91] sm:$0xff]
      %v1599 = vld [vmem:[%s1467 + $0x99] sm:$0x7]
      %v1600 = vld [vmem:[%s1467 + $0xa1] sm:$0xff]
      %v1601 = vld [vmem:[%s1467 + $0xa9] sm:$0x7]
      %v1602 = vld [vmem:[%s153 + $0xd] sm:$0x1]
      %v1603 = vperm.slane %v1602, 0
      %v1604 = vmul.f32 %v1580, %v1603
      %v1605 = vmul.f32 %v1581, %v1603
      %v1606 = vmul.f32 %v1582, %v1603
      %v1607 = vmul.f32 %v1583, %v1603
      %v1608 = vmul.f32 %v1584, %v1603
      %v1609 = vmul.f32 %v1585, %v1603
      %v1610 = vmul.f32 %v1586, %v1603
      %v1611 = vmul.f32 %v1587, %v1603
      %v1612 = vmul.f32 %v1588, %v1603
      %v1613 = vmul.f32 %v1589, %v1603
      %v1614 = vmul.f32 %v1590, %v1603
      %v1615 = vmul.f32 %v1591, %v1603
      %v1616 = vmul.f32 %v1592, %v1603
      %v1617 = vmul.f32 %v1593, %v1603
      %v1618 = vmul.f32 %v1594, %v1603
      %v1619 = vmul.f32 %v1595, %v1603
      %v1620 = vmul.f32 %v1596, %v1603
      %v1621 = vmul.f32 %v1597, %v1603
      %v1622 = vmul.f32 %v1598, %v1603
      %v1623 = vmul.f32 %v1599, %v1603
      %v1624 = vmul.f32 %v1600, %v1603
      %v1625 = vmul.f32 %v1601, %v1603
      %v1626 = vld [vmem:[#allocation2] sm:$0xff]
      %v1627 = vld [vmem:[#allocation2 + $0x8] sm:$0x7]
      %v1628 = vld [vmem:[#allocation2 + $0x10] sm:$0xff]
      %v1629 = vld [vmem:[#allocation2 + $0x18] sm:$0x7]
      %v1630 = vld [vmem:[#allocation2 + $0x20] sm:$0xff]
      %v1631 = vld [vmem:[#allocation2 + $0x28] sm:$0x7]
      %v1632 = vld [vmem:[#allocation2 + $0x30] sm:$0xff]
      %v1633 = vld [vmem:[#allocation2 + $0x38] sm:$0x7]
      %v1634 = vld [vmem:[#allocation2 + $0x40] sm:$0xff]
      %v1635 = vld [vmem:[#allocation2 + $0x48] sm:$0x7]
      %v1636 = vld [vmem:[#allocation2 + $0x50] sm:$0xff]
      %v1637 = vld [vmem:[#allocation2 + $0x58] sm:$0x7]
      %v1638 = vld [vmem:[#allocation2 + $0x60] sm:$0xff]
      %v1639 = vld [vmem:[#allocation2 + $0x68] sm:$0x7]
      %v1640 = vld [vmem:[#allocation2 + $0x70] sm:$0xff]
      %v1641 = vld [vmem:[#allocation2 + $0x78] sm:$0x7]
      %v1642 = vld [vmem:[#allocation2 + $0x80] sm:$0xff]
      %v1643 = vld [vmem:[#allocation2 + $0x88] sm:$0x7]
      %v1644 = vld [vmem:[#allocation2 + $0x90] sm:$0xff]
      %v1645 = vld [vmem:[#allocation2 + $0x98] sm:$0x7]
      %v1646 = vld [vmem:[#allocation2 + $0xa0] sm:$0xff]
      %v1647 = vld [vmem:[#allocation2 + $0xa8] sm:$0x7]
      %v1648 = vadd.f32 %v1626, %v1604
      %v1649 = vadd.f32 %v1627, %v1605
      %v1650 = vadd.f32 %v1628, %v1606
      %v1651 = vadd.f32 %v1629, %v1607
      %v1652 = vadd.f32 %v1630, %v1608
      %v1653 = vadd.f32 %v1631, %v1609
      %v1654 = vadd.f32 %v1632, %v1610
      %v1655 = vadd.f32 %v1633, %v1611
      %v1656 = vadd.f32 %v1634, %v1612
      %v1657 = vadd.f32 %v1635, %v1613
      %v1658 = vadd.f32 %v1636, %v1614
      %v1659 = vadd.f32 %v1637, %v1615
      %v1660 = vadd.f32 %v1638, %v1616
      %v1661 = vadd.f32 %v1639, %v1617
      %v1662 = vadd.f32 %v1640, %v1618
      %v1663 = vadd.f32 %v1641, %v1619
      %v1664 = vadd.f32 %v1642, %v1620
      %v1665 = vadd.f32 %v1643, %v1621
      %v1666 = vadd.f32 %v1644, %v1622
      %v1667 = vadd.f32 %v1645, %v1623
      %v1668 = vadd.f32 %v1646, %v1624
      %v1669 = vadd.f32 %v1647, %v1625
      %1670 = vst.msk [vmem:[#allocation2] sm:$0xff] %vm210, %v1648
      %1671 = vst.msk [vmem:[#allocation2 + $0x8] sm:$0x7] %vm212, %v1649
      %1672 = vst.msk [vmem:[#allocation2 + $0x10] sm:$0xff] %vm210, %v1650
      %1673 = vst.msk [vmem:[#allocation2 + $0x18] sm:$0x7] %vm212, %v1651
      %1674 = vst.msk [vmem:[#allocation2 + $0x20] sm:$0xff] %vm210, %v1652
      %1675 = vst.msk [vmem:[#allocation2 + $0x28] sm:$0x7] %vm212, %v1653
      %1676 = vst.msk [vmem:[#allocation2 + $0x30] sm:$0xff] %vm210, %v1654
      %1677 = vst.msk [vmem:[#allocation2 + $0x38] sm:$0x7] %vm212, %v1655
      %1678 = vst.msk [vmem:[#allocation2 + $0x40] sm:$0xff] %vm210, %v1656
      %1679 = vst.msk [vmem:[#allocation2 + $0x48] sm:$0x7] %vm212, %v1657
      %1680 = vst.msk [vmem:[#allocation2 + $0x50] sm:$0xff] %vm210, %v1658
      %1681 = vst.msk [vmem:[#allocation2 + $0x58] sm:$0x7] %vm212, %v1659
      %1682 = vst.msk [vmem:[#allocation2 + $0x60] sm:$0xff] %vm210, %v1660
      %1683 = vst.msk [vmem:[#allocation2 + $0x68] sm:$0x7] %vm212, %v1661
      %1684 = vst.msk [vmem:[#allocation2 + $0x70] sm:$0xff] %vm210, %v1662
      %1685 = vst.msk [vmem:[#allocation2 + $0x78] sm:$0x7] %vm212, %v1663
      %1686 = vst.msk [vmem:[#allocation2 + $0x80] sm:$0xff] %vm210, %v1664
      %1687 = vst.msk [vmem:[#allocation2 + $0x88] sm:$0x7] %vm212, %v1665
      %1688 = vst.msk [vmem:[#allocation2 + $0x90] sm:$0xff] %vm210, %v1666
      %1689 = vst.msk [vmem:[#allocation2 + $0x98] sm:$0x7] %vm212, %v1667
      %1690 = vst.msk [vmem:[#allocation2 + $0xa0] sm:$0xff] %vm210, %v1668
      %1691 = vst.msk [vmem:[#allocation2 + $0xa8] sm:$0x7] %vm212, %v1669
      %v1692 = vld [vmem:[%s1467 + $0x2] sm:$0xff]
      %v1693 = vld [vmem:[%s1467 + $0xa] sm:$0x7]
      %v1694 = vld [vmem:[%s1467 + $0x12] sm:$0xff]
      %v1695 = vld [vmem:[%s1467 + $0x1a] sm:$0x7]
      %v1696 = vld [vmem:[%s1467 + $0x22] sm:$0xff]
      %v1697 = vld [vmem:[%s1467 + $0x2a] sm:$0x7]
      %v1698 = vld [vmem:[%s1467 + $0x32] sm:$0xff]
      %v1699 = vld [vmem:[%s1467 + $0x3a] sm:$0x7]
      %v1700 = vld [vmem:[%s1467 + $0x42] sm:$0xff]
      %v1701 = vld [vmem:[%s1467 + $0x4a] sm:$0x7]
      %v1702 = vld [vmem:[%s1467 + $0x52] sm:$0xff]
      %v1703 = vld [vmem:[%s1467 + $0x5a] sm:$0x7]
      %v1704 = vld [vmem:[%s1467 + $0x62] sm:$0xff]
      %v1705 = vld [vmem:[%s1467 + $0x6a] sm:$0x7]
      %v1706 = vld [vmem:[%s1467 + $0x72] sm:$0xff]
      %v1707 = vld [vmem:[%s1467 + $0x7a] sm:$0x7]
      %v1708 = vld [vmem:[%s1467 + $0x82] sm:$0xff]
      %v1709 = vld [vmem:[%s1467 + $0x8a] sm:$0x7]
      %v1710 = vld [vmem:[%s1467 + $0x92] sm:$0xff]
      %v1711 = vld [vmem:[%s1467 + $0x9a] sm:$0x7]
      %v1712 = vld [vmem:[%s1467 + $0xa2] sm:$0xff]
      %v1713 = vld [vmem:[%s1467 + $0xaa] sm:$0x7]
      %v1714 = vld [vmem:[%s153 + $0xe] sm:$0x1]
      %v1715 = vperm.slane %v1714, 0
      %v1716 = vmul.f32 %v1692, %v1715
      %v1717 = vmul.f32 %v1693, %v1715
      %v1718 = vmul.f32 %v1694, %v1715
      %v1719 = vmul.f32 %v1695, %v1715
      %v1720 = vmul.f32 %v1696, %v1715
      %v1721 = vmul.f32 %v1697, %v1715
      %v1722 = vmul.f32 %v1698, %v1715
      %v1723 = vmul.f32 %v1699, %v1715
      %v1724 = vmul.f32 %v1700, %v1715
      %v1725 = vmul.f32 %v1701, %v1715
      %v1726 = vmul.f32 %v1702, %v1715
      %v1727 = vmul.f32 %v1703, %v1715
      %v1728 = vmul.f32 %v1704, %v1715
      %v1729 = vmul.f32 %v1705, %v1715
      %v1730 = vmul.f32 %v1706, %v1715
      %v1731 = vmul.f32 %v1707, %v1715
      %v1732 = vmul.f32 %v1708, %v1715
      %v1733 = vmul.f32 %v1709, %v1715
      %v1734 = vmul.f32 %v1710, %v1715
      %v1735 = vmul.f32 %v1711, %v1715
      %v1736 = vmul.f32 %v1712, %v1715
      %v1737 = vmul.f32 %v1713, %v1715
      %v1738 = vld [vmem:[#allocation2] sm:$0xff]
      %v1739 = vld [vmem:[#allocation2 + $0x8] sm:$0x7]
      %v1740 = vld [vmem:[#allocation2 + $0x10] sm:$0xff]
      %v1741 = vld [vmem:[#allocation2 + $0x18] sm:$0x7]
      %v1742 = vld [vmem:[#allocation2 + $0x20] sm:$0xff]
      %v1743 = vld [vmem:[#allocation2 + $0x28] sm:$0x7]
      %v1744 = vld [vmem:[#allocation2 + $0x30] sm:$0xff]
      %v1745 = vld [vmem:[#allocation2 + $0x38] sm:$0x7]
      %v1746 = vld [vmem:[#allocation2 + $0x40] sm:$0xff]
      %v1747 = vld [vmem:[#allocation2 + $0x48] sm:$0x7]
      %v1748 = vld [vmem:[#allocation2 + $0x50] sm:$0xff]
      %v1749 = vld [vmem:[#allocation2 + $0x58] sm:$0x7]
      %v1750 = vld [vmem:[#allocation2 + $0x60] sm:$0xff]
      %v1751 = vld [vmem:[#allocation2 + $0x68] sm:$0x7]
      %v1752 = vld [vmem:[#allocation2 + $0x70] sm:$0xff]
      %v1753 = vld [vmem:[#allocation2 + $0x78] sm:$0x7]
      %v1754 = vld [vmem:[#allocation2 + $0x80] sm:$0xff]
      %v1755 = vld [vmem:[#allocation2 + $0x88] sm:$0x7]
      %v1756 = vld [vmem:[#allocation2 + $0x90] sm:$0xff]
      %v1757 = vld [vmem:[#allocation2 + $0x98] sm:$0x7]
      %v1758 = vld [vmem:[#allocation2 + $0xa0] sm:$0xff]
      %v1759 = vld [vmem:[#allocation2 + $0xa8] sm:$0x7]
      %v1760 = vadd.f32 %v1738, %v1716
      %v1761 = vadd.f32 %v1739, %v1717
      %v1762 = vadd.f32 %v1740, %v1718
      %v1763 = vadd.f32 %v1741, %v1719
      %v1764 = vadd.f32 %v1742, %v1720
      %v1765 = vadd.f32 %v1743, %v1721
      %v1766 = vadd.f32 %v1744, %v1722
      %v1767 = vadd.f32 %v1745, %v1723
      %v1768 = vadd.f32 %v1746, %v1724
      %v1769 = vadd.f32 %v1747, %v1725
      %v1770 = vadd.f32 %v1748, %v1726
      %v1771 = vadd.f32 %v1749, %v1727
      %v1772 = vadd.f32 %v1750, %v1728
      %v1773 = vadd.f32 %v1751, %v1729
      %v1774 = vadd.f32 %v1752, %v1730
      %v1775 = vadd.f32 %v1753, %v1731
      %v1776 = vadd.f32 %v1754, %v1732
      %v1777 = vadd.f32 %v1755, %v1733
      %v1778 = vadd.f32 %v1756, %v1734
      %v1779 = vadd.f32 %v1757, %v1735
      %v1780 = vadd.f32 %v1758, %v1736
      %v1781 = vadd.f32 %v1759, %v1737
      %1782 = vst.msk [vmem:[#allocation2] sm:$0xff] %vm210, %v1760
      %1783 = vst.msk [vmem:[#allocation2 + $0x8] sm:$0x7] %vm212, %v1761
      %1784 = vst.msk [vmem:[#allocation2 + $0x10] sm:$0xff] %vm210, %v1762
      %1785 = vst.msk [vmem:[#allocation2 + $0x18] sm:$0x7] %vm212, %v1763
      %1786 = vst.msk [vmem:[#allocation2 + $0x20] sm:$0xff] %vm210, %v1764
      %1787 = vst.msk [vmem:[#allocation2 + $0x28] sm:$0x7] %vm212, %v1765
      %1788 = vst.msk [vmem:[#allocation2 + $0x30] sm:$0xff] %vm210, %v1766
      %1789 = vst.msk [vmem:[#allocation2 + $0x38] sm:$0x7] %vm212, %v1767
      %1790 = vst.msk [vmem:[#allocation2 + $0x40] sm:$0xff] %vm210, %v1768
      %1791 = vst.msk [vmem:[#allocation2 + $0x48] sm:$0x7] %vm212, %v1769
      %1792 = vst.msk [vmem:[#allocation2 + $0x50] sm:$0xff] %vm210, %v1770
      %1793 = vst.msk [vmem:[#allocation2 + $0x58] sm:$0x7] %vm212, %v1771
      %1794 = vst.msk [vmem:[#allocation2 + $0x60] sm:$0xff] %vm210, %v1772
      %1795 = vst.msk [vmem:[#allocation2 + $0x68] sm:$0x7] %vm212, %v1773
      %1796 = vst.msk [vmem:[#allocation2 + $0x70] sm:$0xff] %vm210, %v1774
      %1797 = vst.msk [vmem:[#allocation2 + $0x78] sm:$0x7] %vm212, %v1775
      %1798 = vst.msk [vmem:[#allocation2 + $0x80] sm:$0xff] %vm210, %v1776
      %1799 = vst.msk [vmem:[#allocation2 + $0x88] sm:$0x7] %vm212, %v1777
      %1800 = vst.msk [vmem:[#allocation2 + $0x90] sm:$0xff] %vm210, %v1778
      %1801 = vst.msk [vmem:[#allocation2 + $0x98] sm:$0x7] %vm212, %v1779
      %1802 = vst.msk [vmem:[#allocation2 + $0xa0] sm:$0xff] %vm210, %v1780
      %1803 = vst.msk [vmem:[#allocation2 + $0xa8] sm:$0x7] %vm212, %v1781
      %v1804 = vld [vmem:[%s1467 + $0x3] sm:$0xff]
      %v1805 = vld [vmem:[%s1467 + $0xb] sm:$0x7]
      %v1806 = vld [vmem:[%s1467 + $0x13] sm:$0xff]
      %v1807 = vld [vmem:[%s1467 + $0x1b] sm:$0x7]
      %v1808 = vld [vmem:[%s1467 + $0x23] sm:$0xff]
      %v1809 = vld [vmem:[%s1467 + $0x2b] sm:$0x7]
      %v1810 = vld [vmem:[%s1467 + $0x33] sm:$0xff]
      %v1811 = vld [vmem:[%s1467 + $0x3b] sm:$0x7]
      %v1812 = vld [vmem:[%s1467 + $0x43] sm:$0xff]
      %v1813 = vld [vmem:[%s1467 + $0x4b] sm:$0x7]
      %v1814 = vld [vmem:[%s1467 + $0x53] sm:$0xff]
      %v1815 = vld [vmem:[%s1467 + $0x5b] sm:$0x7]
      %v1816 = vld [vmem:[%s1467 + $0x63] sm:$0xff]
      %v1817 = vld [vmem:[%s1467 + $0x6b] sm:$0x7]
      %v1818 = vld [vmem:[%s1467 + $0x73] sm:$0xff]
      %v1819 = vld [vmem:[%s1467 + $0x7b] sm:$0x7]
      %v1820 = vld [vmem:[%s1467 + $0x83] sm:$0xff]
      %v1821 = vld [vmem:[%s1467 + $0x8b] sm:$0x7]
      %v1822 = vld [vmem:[%s1467 + $0x93] sm:$0xff]
      %v1823 = vld [vmem:[%s1467 + $0x9b] sm:$0x7]
      %v1824 = vld [vmem:[%s1467 + $0xa3] sm:$0xff]
      %v1825 = vld [vmem:[%s1467 + $0xab] sm:$0x7]
      %v1826 = vld [vmem:[%s153 + $0xf] sm:$0x1]
      %v1827 = vperm.slane %v1826, 0
      %v1828 = vmul.f32 %v1804, %v1827
      %v1829 = vmul.f32 %v1805, %v1827
      %v1830 = vmul.f32 %v1806, %v1827
      %v1831 = vmul.f32 %v1807, %v1827
      %v1832 = vmul.f32 %v1808, %v1827
      %v1833 = vmul.f32 %v1809, %v1827
      %v1834 = vmul.f32 %v1810, %v1827
      %v1835 = vmul.f32 %v1811, %v1827
      %v1836 = vmul.f32 %v1812, %v1827
      %v1837 = vmul.f32 %v1813, %v1827
      %v1838 = vmul.f32 %v1814, %v1827
      %v1839 = vmul.f32 %v1815, %v1827
      %v1840 = vmul.f32 %v1816, %v1827
      %v1841 = vmul.f32 %v1817, %v1827
      %v1842 = vmul.f32 %v1818, %v1827
      %v1843 = vmul.f32 %v1819, %v1827
      %v1844 = vmul.f32 %v1820, %v1827
      %v1845 = vmul.f32 %v1821, %v1827
      %v1846 = vmul.f32 %v1822, %v1827
      %v1847 = vmul.f32 %v1823, %v1827
      %v1848 = vmul.f32 %v1824, %v1827
      %v1849 = vmul.f32 %v1825, %v1827
      %v1850 = vld [vmem:[#allocation2] sm:$0xff]
      %v1851 = vld [vmem:[#allocation2 + $0x8] sm:$0x7]
      %v1852 = vld [vmem:[#allocation2 + $0x10] sm:$0xff]
      %v1853 = vld [vmem:[#allocation2 + $0x18] sm:$0x7]
      %v1854 = vld [vmem:[#allocation2 + $0x20] sm:$0xff]
      %v1855 = vld [vmem:[#allocation2 + $0x28] sm:$0x7]
      %v1856 = vld [vmem:[#allocation2 + $0x30] sm:$0xff]
      %v1857 = vld [vmem:[#allocation2 + $0x38] sm:$0x7]
      %v1858 = vld [vmem:[#allocation2 + $0x40] sm:$0xff]
      %v1859 = vld [vmem:[#allocation2 + $0x48] sm:$0x7]
      %v1860 = vld [vmem:[#allocation2 + $0x50] sm:$0xff]
      %v1861 = vld [vmem:[#allocation2 + $0x58] sm:$0x7]
      %v1862 = vld [vmem:[#allocation2 + $0x60] sm:$0xff]
      %v1863 = vld [vmem:[#allocation2 + $0x68] sm:$0x7]
      %v1864 = vld [vmem:[#allocation2 + $0x70] sm:$0xff]
      %v1865 = vld [vmem:[#allocation2 + $0x78] sm:$0x7]
      %v1866 = vld [vmem:[#allocation2 + $0x80] sm:$0xff]
      %v1867 = vld [vmem:[#allocation2 + $0x88] sm:$0x7]
      %v1868 = vld [vmem:[#allocation2 + $0x90] sm:$0xff]
      %v1869 = vld [vmem:[#allocation2 + $0x98] sm:$0x7]
      %v1870 = vld [vmem:[#allocation2 + $0xa0] sm:$0xff]
      %v1871 = vld [vmem:[#allocation2 + $0xa8] sm:$0x7]
      %v1872 = vadd.f32 %v1850, %v1828
      %v1873 = vadd.f32 %v1851, %v1829
      %v1874 = vadd.f32 %v1852, %v1830
      %v1875 = vadd.f32 %v1853, %v1831
      %v1876 = vadd.f32 %v1854, %v1832
      %v1877 = vadd.f32 %v1855, %v1833
      %v1878 = vadd.f32 %v1856, %v1834
      %v1879 = vadd.f32 %v1857, %v1835
      %v1880 = vadd.f32 %v1858, %v1836
      %v1881 = vadd.f32 %v1859, %v1837
      %v1882 = vadd.f32 %v1860, %v1838
      %v1883 = vadd.f32 %v1861, %v1839
      %v1884 = vadd.f32 %v1862, %v1840
      %v1885 = vadd.f32 %v1863, %v1841
      %v1886 = vadd.f32 %v1864, %v1842
      %v1887 = vadd.f32 %v1865, %v1843
      %v1888 = vadd.f32 %v1866, %v1844
      %v1889 = vadd.f32 %v1867, %v1845
      %v1890 = vadd.f32 %v1868, %v1846
      %v1891 = vadd.f32 %v1869, %v1847
      %v1892 = vadd.f32 %v1870, %v1848
      %v1893 = vadd.f32 %v1871, %v1849
      %1894 = vst.msk [vmem:[#allocation2] sm:$0xff] %vm210, %v1872
      %1895 = vst.msk [vmem:[#allocation2 + $0x8] sm:$0x7] %vm212, %v1873
      %1896 = vst.msk [vmem:[#allocation2 + $0x10] sm:$0xff] %vm210, %v1874
      %1897 = vst.msk [vmem:[#allocation2 + $0x18] sm:$0x7] %vm212, %v1875
      %1898 = vst.msk [vmem:[#allocation2 + $0x20] sm:$0xff] %vm210, %v1876
      %1899 = vst.msk [vmem:[#allocation2 + $0x28] sm:$0x7] %vm212, %v1877
      %1900 = vst.msk [vmem:[#allocation2 + $0x30] sm:$0xff] %vm210, %v1878
      %1901 = vst.msk [vmem:[#allocation2 + $0x38] sm:$0x7] %vm212, %v1879
      %1902 = vst.msk [vmem:[#allocation2 + $0x40] sm:$0xff] %vm210, %v1880
      %1903 = vst.msk [vmem:[#allocation2 + $0x48] sm:$0x7] %vm212, %v1881
      %1904 = vst.msk [vmem:[#allocation2 + $0x50] sm:$0xff] %vm210, %v1882
      %1905 = vst.msk [vmem:[#allocation2 + $0x58] sm:$0x7] %vm212, %v1883
      %1906 = vst.msk [vmem:[#allocation2 + $0x60] sm:$0xff] %vm210, %v1884
      %1907 = vst.msk [vmem:[#allocation2 + $0x68] sm:$0x7] %vm212, %v1885
      %1908 = vst.msk [vmem:[#allocation2 + $0x70] sm:$0xff] %vm210, %v1886
      %1909 = vst.msk [vmem:[#allocation2 + $0x78] sm:$0x7] %vm212, %v1887
      %1910 = vst.msk [vmem:[#allocation2 + $0x80] sm:$0xff] %vm210, %v1888
      %1911 = vst.msk [vmem:[#allocation2 + $0x88] sm:$0x7] %vm212, %v1889
      %1912 = vst.msk [vmem:[#allocation2 + $0x90] sm:$0xff] %vm210, %v1890
      %1913 = vst.msk [vmem:[#allocation2 + $0x98] sm:$0x7] %vm212, %v1891
      %1914 = vst.msk [vmem:[#allocation2 + $0xa0] sm:$0xff] %vm210, %v1892
      %1915 = vst.msk [vmem:[#allocation2 + $0xa8] sm:$0x7] %vm212, %v1893
      %v1916 = vld [vmem:[%s1467 + $0x4] sm:$0xff]
      %v1917 = vld [vmem:[%s1467 + $0xc] sm:$0x7]
      %v1918 = vld [vmem:[%s1467 + $0x14] sm:$0xff]
      %v1919 = vld [vmem:[%s1467 + $0x1c] sm:$0x7]
      %v1920 = vld [vmem:[%s1467 + $0x24] sm:$0xff]
      %v1921 = vld [vmem:[%s1467 + $0x2c] sm:$0x7]
      %v1922 = vld [vmem:[%s1467 + $0x34] sm:$0xff]
      %v1923 = vld [vmem:[%s1467 + $0x3c] sm:$0x7]
      %v1924 = vld [vmem:[%s1467 + $0x44] sm:$0xff]
      %v1925 = vld [vmem:[%s1467 + $0x4c] sm:$0x7]
      %v1926 = vld [vmem:[%s1467 + $0x54] sm:$0xff]
      %v1927 = vld [vmem:[%s1467 + $0x5c] sm:$0x7]
      %v1928 = vld [vmem:[%s1467 + $0x64] sm:$0xff]
      %v1929 = vld [vmem:[%s1467 + $0x6c] sm:$0x7]
      %v1930 = vld [vmem:[%s1467 + $0x74] sm:$0xff]
      %v1931 = vld [vmem:[%s1467 + $0x7c] sm:$0x7]
      %v1932 = vld [vmem:[%s1467 + $0x84] sm:$0xff]
      %v1933 = vld [vmem:[%s1467 + $0x8c] sm:$0x7]
      %v1934 = vld [vmem:[%s1467 + $0x94] sm:$0xff]
      %v1935 = vld [vmem:[%s1467 + $0x9c] sm:$0x7]
      %v1936 = vld [vmem:[%s1467 + $0xa4] sm:$0xff]
      %v1937 = vld [vmem:[%s1467 + $0xac] sm:$0x7]
      %v1938 = vld [vmem:[%s153 + $0x10] sm:$0x1]
      %v1939 = vperm.slane %v1938, 0
      %v1940 = vmul.f32 %v1916, %v1939
      %v1941 = vmul.f32 %v1917, %v1939
      %v1942 = vmul.f32 %v1918, %v1939
      %v1943 = vmul.f32 %v1919, %v1939
      %v1944 = vmul.f32 %v1920, %v1939
      %v1945 = vmul.f32 %v1921, %v1939
      %v1946 = vmul.f32 %v1922, %v1939
      %v1947 = vmul.f32 %v1923, %v1939
      %v1948 = vmul.f32 %v1924, %v1939
      %v1949 = vmul.f32 %v1925, %v1939
      %v1950 = vmul.f32 %v1926, %v1939
      %v1951 = vmul.f32 %v1927, %v1939
      %v1952 = vmul.f32 %v1928, %v1939
      %v1953 = vmul.f32 %v1929, %v1939
      %v1954 = vmul.f32 %v1930, %v1939
      %v1955 = vmul.f32 %v1931, %v1939
      %v1956 = vmul.f32 %v1932, %v1939
      %v1957 = vmul.f32 %v1933, %v1939
      %v1958 = vmul.f32 %v1934, %v1939
      %v1959 = vmul.f32 %v1935, %v1939
      %v1960 = vmul.f32 %v1936, %v1939
      %v1961 = vmul.f32 %v1937, %v1939
      %v1962 = vld [vmem:[#allocation2] sm:$0xff]
      %v1963 = vld [vmem:[#allocation2 + $0x8] sm:$0x7]
      %v1964 = vld [vmem:[#allocation2 + $0x10] sm:$0xff]
      %v1965 = vld [vmem:[#allocation2 + $0x18] sm:$0x7]
      %v1966 = vld [vmem:[#allocation2 + $0x20] sm:$0xff]
      %v1967 = vld [vmem:[#allocation2 + $0x28] sm:$0x7]
      %v1968 = vld [vmem:[#allocation2 + $0x30] sm:$0xff]
      %v1969 = vld [vmem:[#allocation2 + $0x38] sm:$0x7]
      %v1970 = vld [vmem:[#allocation2 + $0x40] sm:$0xff]
      %v1971 = vld [vmem:[#allocation2 + $0x48] sm:$0x7]
      %v1972 = vld [vmem:[#allocation2 + $0x50] sm:$0xff]
      %v1973 = vld [vmem:[#allocation2 + $0x58] sm:$0x7]
      %v1974 = vld [vmem:[#allocation2 + $0x60] sm:$0xff]
      %v1975 = vld [vmem:[#allocation2 + $0x68] sm:$0x7]
      %v1976 = vld [vmem:[#allocation2 + $0x70] sm:$0xff]
      %v1977 = vld [vmem:[#allocation2 + $0x78] sm:$0x7]
      %v1978 = vld [vmem:[#allocation2 + $0x80] sm:$0xff]
      %v1979 = vld [vmem:[#allocation2 + $0x88] sm:$0x7]
      %v1980 = vld [vmem:[#allocation2 + $0x90] sm:$0xff]
      %v1981 = vld [vmem:[#allocation2 + $0x98] sm:$0x7]
      %v1982 = vld [vmem:[#allocation2 + $0xa0] sm:$0xff]
      %v1983 = vld [vmem:[#allocation2 + $0xa8] sm:$0x7]
      %v1984 = vadd.f32 %v1962, %v1940
      %v1985 = vadd.f32 %v1963, %v1941
      %v1986 = vadd.f32 %v1964, %v1942
      %v1987 = vadd.f32 %v1965, %v1943
      %v1988 = vadd.f32 %v1966, %v1944
      %v1989 = vadd.f32 %v1967, %v1945
      %v1990 = vadd.f32 %v1968, %v1946
      %v1991 = vadd.f32 %v1969, %v1947
      %v1992 = vadd.f32 %v1970, %v1948
      %v1993 = vadd.f32 %v1971, %v1949
      %v1994 = vadd.f32 %v1972, %v1950
      %v1995 = vadd.f32 %v1973, %v1951
      %v1996 = vadd.f32 %v1974, %v1952
      %v1997 = vadd.f32 %v1975, %v1953
      %v1998 = vadd.f32 %v1976, %v1954
      %v1999 = vadd.f32 %v1977, %v1955
      %v2000 = vadd.f32 %v1978, %v1956
      %v2001 = vadd.f32 %v1979, %v1957
      %v2002 = vadd.f32 %v1980, %v1958
      %v2003 = vadd.f32 %v1981, %v1959
      %v2004 = vadd.f32 %v1982, %v1960
      %v2005 = vadd.f32 %v1983, %v1961
      %2006 = vst.msk [vmem:[#allocation2] sm:$0xff] %vm210, %v1984
      %2007 = vst.msk [vmem:[#allocation2 + $0x8] sm:$0x7] %vm212, %v1985
      %2008 = vst.msk [vmem:[#allocation2 + $0x10] sm:$0xff] %vm210, %v1986
      %2009 = vst.msk [vmem:[#allocation2 + $0x18] sm:$0x7] %vm212, %v1987
      %2010 = vst.msk [vmem:[#allocation2 + $0x20] sm:$0xff] %vm210, %v1988
      %2011 = vst.msk [vmem:[#allocation2 + $0x28] sm:$0x7] %vm212, %v1989
      %2012 = vst.msk [vmem:[#allocation2 + $0x30] sm:$0xff] %vm210, %v1990
      %2013 = vst.msk [vmem:[#allocation2 + $0x38] sm:$0x7] %vm212, %v1991
      %2014 = vst.msk [vmem:[#allocation2 + $0x40] sm:$0xff] %vm210, %v1992
      %2015 = vst.msk [vmem:[#allocation2 + $0x48] sm:$0x7] %vm212, %v1993
      %2016 = vst.msk [vmem:[#allocation2 + $0x50] sm:$0xff] %vm210, %v1994
      %2017 = vst.msk [vmem:[#allocation2 + $0x58] sm:$0x7] %vm212, %v1995
      %2018 = vst.msk [vmem:[#allocation2 + $0x60] sm:$0xff] %vm210, %v1996
      %2019 = vst.msk [vmem:[#allocation2 + $0x68] sm:$0x7] %vm212, %v1997
      %2020 = vst.msk [vmem:[#allocation2 + $0x70] sm:$0xff] %vm210, %v1998
      %2021 = vst.msk [vmem:[#allocation2 + $0x78] sm:$0x7] %vm212, %v1999
      %2022 = vst.msk [vmem:[#allocation2 + $0x80] sm:$0xff] %vm210, %v2000
      %2023 = vst.msk [vmem:[#allocation2 + $0x88] sm:$0x7] %vm212, %v2001
      %2024 = vst.msk [vmem:[#allocation2 + $0x90] sm:$0xff] %vm210, %v2002
      %2025 = vst.msk [vmem:[#allocation2 + $0x98] sm:$0x7] %vm212, %v2003
      %2026 = vst.msk [vmem:[#allocation2 + $0xa0] sm:$0xff] %vm210, %v2004
      %2027 = vst.msk [vmem:[#allocation2 + $0xa8] sm:$0x7] %vm212, %v2005
      %v2028 = vld [vmem:[%s1467 + $0x5] sm:$0xff]
      %v2029 = vld [vmem:[%s1467 + $0xd] sm:$0x7]
      %v2030 = vld [vmem:[%s1467 + $0x15] sm:$0xff]
      %v2031 = vld [vmem:[%s1467 + $0x1d] sm:$0x7]
      %v2032 = vld [vmem:[%s1467 + $0x25] sm:$0xff]
      %v2033 = vld [vmem:[%s1467 + $0x2d] sm:$0x7]
      %v2034 = vld [vmem:[%s1467 + $0x35] sm:$0xff]
      %v2035 = vld [vmem:[%s1467 + $0x3d] sm:$0x7]
      %v2036 = vld [vmem:[%s1467 + $0x45] sm:$0xff]
      %v2037 = vld [vmem:[%s1467 + $0x4d] sm:$0x7]
      %v2038 = vld [vmem:[%s1467 + $0x55] sm:$0xff]
      %v2039 = vld [vmem:[%s1467 + $0x5d] sm:$0x7]
      %v2040 = vld [vmem:[%s1467 + $0x65] sm:$0xff]
      %v2041 = vld [vmem:[%s1467 + $0x6d] sm:$0x7]
      %v2042 = vld [vmem:[%s1467 + $0x75] sm:$0xff]
      %v2043 = vld [vmem:[%s1467 + $0x7d] sm:$0x7]
      %v2044 = vld [vmem:[%s1467 + $0x85] sm:$0xff]
      %v2045 = vld [vmem:[%s1467 + $0x8d] sm:$0x7]
      %v2046 = vld [vmem:[%s1467 + $0x95] sm:$0xff]
      %v2047 = vld [vmem:[%s1467 + $0x9d] sm:$0x7]
      %v2048 = vld [vmem:[%s1467 + $0xa5] sm:$0xff]
      %v2049 = vld [vmem:[%s1467 + $0xad] sm:$0x7]
      %v2050 = vld [vmem:[%s153 + $0x11] sm:$0x1]
      %v2051 = vperm.slane %v2050, 0
      %v2052 = vmul.f32 %v2028, %v2051
      %v2053 = vmul.f32 %v2029, %v2051
      %v2054 = vmul.f32 %v2030, %v2051
      %v2055 = vmul.f32 %v2031, %v2051
      %v2056 = vmul.f32 %v2032, %v2051
      %v2057 = vmul.f32 %v2033, %v2051
      %v2058 = vmul.f32 %v2034, %v2051
      %v2059 = vmul.f32 %v2035, %v2051
      %v2060 = vmul.f32 %v2036, %v2051
      %v2061 = vmul.f32 %v2037, %v2051
      %v2062 = vmul.f32 %v2038, %v2051
      %v2063 = vmul.f32 %v2039, %v2051
      %v2064 = vmul.f32 %v2040, %v2051
      %v2065 = vmul.f32 %v2041, %v2051
      %v2066 = vmul.f32 %v2042, %v2051
      %v2067 = vmul.f32 %v2043, %v2051
      %v2068 = vmul.f32 %v2044, %v2051
      %v2069 = vmul.f32 %v2045, %v2051
      %v2070 = vmul.f32 %v2046, %v2051
      %v2071 = vmul.f32 %v2047, %v2051
      %v2072 = vmul.f32 %v2048, %v2051
      %v2073 = vmul.f32 %v2049, %v2051
      %v2074 = vld [vmem:[#allocation2] sm:$0xff]
      %v2075 = vld [vmem:[#allocation2 + $0x8] sm:$0x7]
      %v2076 = vld [vmem:[#allocation2 + $0x10] sm:$0xff]
      %v2077 = vld [vmem:[#allocation2 + $0x18] sm:$0x7]
      %v2078 = vld [vmem:[#allocation2 + $0x20] sm:$0xff]
      %v2079 = vld [vmem:[#allocation2 + $0x28] sm:$0x7]
      %v2080 = vld [vmem:[#allocation2 + $0x30] sm:$0xff]
      %v2081 = vld [vmem:[#allocation2 + $0x38] sm:$0x7]
      %v2082 = vld [vmem:[#allocation2 + $0x40] sm:$0xff]
      %v2083 = vld [vmem:[#allocation2 + $0x48] sm:$0x7]
      %v2084 = vld [vmem:[#allocation2 + $0x50] sm:$0xff]
      %v2085 = vld [vmem:[#allocation2 + $0x58] sm:$0x7]
      %v2086 = vld [vmem:[#allocation2 + $0x60] sm:$0xff]
      %v2087 = vld [vmem:[#allocation2 + $0x68] sm:$0x7]
      %v2088 = vld [vmem:[#allocation2 + $0x70] sm:$0xff]
      %v2089 = vld [vmem:[#allocation2 + $0x78] sm:$0x7]
      %v2090 = vld [vmem:[#allocation2 + $0x80] sm:$0xff]
      %v2091 = vld [vmem:[#allocation2 + $0x88] sm:$0x7]
      %v2092 = vld [vmem:[#allocation2 + $0x90] sm:$0xff]
      %v2093 = vld [vmem:[#allocation2 + $0x98] sm:$0x7]
      %v2094 = vld [vmem:[#allocation2 + $0xa0] sm:$0xff]
      %v2095 = vld [vmem:[#allocation2 + $0xa8] sm:$0x7]
      %v2096 = vadd.f32 %v2074, %v2052
      %v2097 = vadd.f32 %v2075, %v2053
      %v2098 = vadd.f32 %v2076, %v2054
      %v2099 = vadd.f32 %v2077, %v2055
      %v2100 = vadd.f32 %v2078, %v2056
      %v2101 = vadd.f32 %v2079, %v2057
      %v2102 = vadd.f32 %v2080, %v2058
      %v2103 = vadd.f32 %v2081, %v2059
      %v2104 = vadd.f32 %v2082, %v2060
      %v2105 = vadd.f32 %v2083, %v2061
      %v2106 = vadd.f32 %v2084, %v2062
      %v2107 = vadd.f32 %v2085, %v2063
      %v2108 = vadd.f32 %v2086, %v2064
      %v2109 = vadd.f32 %v2087, %v2065
      %v2110 = vadd.f32 %v2088, %v2066
      %v2111 = vadd.f32 %v2089, %v2067
      %v2112 = vadd.f32 %v2090, %v2068
      %v2113 = vadd.f32 %v2091, %v2069
      %v2114 = vadd.f32 %v2092, %v2070
      %v2115 = vadd.f32 %v2093, %v2071
      %v2116 = vadd.f32 %v2094, %v2072
      %v2117 = vadd.f32 %v2095, %v2073
      %2118 = vst.msk [vmem:[#allocation2] sm:$0xff] %vm210, %v2096
      %2119 = vst.msk [vmem:[#allocation2 + $0x8] sm:$0x7] %vm212, %v2097
      %2120 = vst.msk [vmem:[#allocation2 + $0x10] sm:$0xff] %vm210, %v2098
      %2121 = vst.msk [vmem:[#allocation2 + $0x18] sm:$0x7] %vm212, %v2099
      %2122 = vst.msk [vmem:[#allocation2 + $0x20] sm:$0xff] %vm210, %v2100
      %2123 = vst.msk [vmem:[#allocation2 + $0x28] sm:$0x7] %vm212, %v2101
      %2124 = vst.msk [vmem:[#allocation2 + $0x30] sm:$0xff] %vm210, %v2102
      %2125 = vst.msk [vmem:[#allocation2 + $0x38] sm:$0x7] %vm212, %v2103
      %2126 = vst.msk [vmem:[#allocation2 + $0x40] sm:$0xff] %vm210, %v2104
      %2127 = vst.msk [vmem:[#allocation2 + $0x48] sm:$0x7] %vm212, %v2105
      %2128 = vst.msk [vmem:[#allocation2 + $0x50] sm:$0xff] %vm210, %v2106
      %2129 = vst.msk [vmem:[#allocation2 + $0x58] sm:$0x7] %vm212, %v2107
      %2130 = vst.msk [vmem:[#allocation2 + $0x60] sm:$0xff] %vm210, %v2108
      %2131 = vst.msk [vmem:[#allocation2 + $0x68] sm:$0x7] %vm212, %v2109
      %2132 = vst.msk [vmem:[#allocation2 + $0x70] sm:$0xff] %vm210, %v2110
      %2133 = vst.msk [vmem:[#allocation2 + $0x78] sm:$0x7] %vm212, %v2111
      %2134 = vst.msk [vmem:[#allocation2 + $0x80] sm:$0xff] %vm210, %v2112
      %2135 = vst.msk [vmem:[#allocation2 + $0x88] sm:$0x7] %vm212, %v2113
      %2136 = vst.msk [vmem:[#allocation2 + $0x90] sm:$0xff] %vm210, %v2114
      %2137 = vst.msk [vmem:[#allocation2 + $0x98] sm:$0x7] %vm212, %v2115
      %2138 = vst.msk [vmem:[#allocation2 + $0xa0] sm:$0xff] %vm210, %v2116
      %2139 = vst.msk [vmem:[#allocation2 + $0xa8] sm:$0x7] %vm212, %v2117
      %s2140 = scalar_lea.vmem %s158, 48
      %v2141 = vld [vmem:[%s2140] sm:$0xff]
      %v2142 = vld [vmem:[%s2140 + $0x8] sm:$0x7]
      %v2143 = vld [vmem:[%s2140 + $0x10] sm:$0xff]
      %v2144 = vld [vmem:[%s2140 + $0x18] sm:$0x7]
      %v2145 = vld [vmem:[%s2140 + $0x20] sm:$0xff]
      %v2146 = vld [vmem:[%s2140 + $0x28] sm:$0x7]
      %v2147 = vld [vmem:[%s2140 + $0x30] sm:$0xff]
      %v2148 = vld [vmem:[%s2140 + $0x38] sm:$0x7]
      %v2149 = vld [vmem:[%s2140 + $0x40] sm:$0xff]
      %v2150 = vld [vmem:[%s2140 + $0x48] sm:$0x7]
      %v2151 = vld [vmem:[%s2140 + $0x50] sm:$0xff]
      %v2152 = vld [vmem:[%s2140 + $0x58] sm:$0x7]
      %v2153 = vld [vmem:[%s2140 + $0x60] sm:$0xff]
      %v2154 = vld [vmem:[%s2140 + $0x68] sm:$0x7]
      %v2155 = vld [vmem:[%s2140 + $0x70] sm:$0xff]
      %v2156 = vld [vmem:[%s2140 + $0x78] sm:$0x7]
      %v2157 = vld [vmem:[%s2140 + $0x80] sm:$0xff]
      %v2158 = vld [vmem:[%s2140 + $0x88] sm:$0x7]
      %v2159 = vld [vmem:[%s2140 + $0x90] sm:$0xff]
      %v2160 = vld [vmem:[%s2140 + $0x98] sm:$0x7]
      %v2161 = vld [vmem:[%s2140 + $0xa0] sm:$0xff]
      %v2162 = vld [vmem:[%s2140 + $0xa8] sm:$0x7]
      %v2163 = vld [vmem:[%s153 + $0x12] sm:$0x1]
      %v2164 = vperm.slane %v2163, 0
      %v2165 = vmul.f32 %v2141, %v2164
      %v2166 = vmul.f32 %v2142, %v2164
      %v2167 = vmul.f32 %v2143, %v2164
      %v2168 = vmul.f32 %v2144, %v2164
      %v2169 = vmul.f32 %v2145, %v2164
      %v2170 = vmul.f32 %v2146, %v2164
      %v2171 = vmul.f32 %v2147, %v2164
      %v2172 = vmul.f32 %v2148, %v2164
      %v2173 = vmul.f32 %v2149, %v2164
      %v2174 = vmul.f32 %v2150, %v2164
      %v2175 = vmul.f32 %v2151, %v2164
      %v2176 = vmul.f32 %v2152, %v2164
      %v2177 = vmul.f32 %v2153, %v2164
      %v2178 = vmul.f32 %v2154, %v2164
      %v2179 = vmul.f32 %v2155, %v2164
      %v2180 = vmul.f32 %v2156, %v2164
      %v2181 = vmul.f32 %v2157, %v2164
      %v2182 = vmul.f32 %v2158, %v2164
      %v2183 = vmul.f32 %v2159, %v2164
      %v2184 = vmul.f32 %v2160, %v2164
      %v2185 = vmul.f32 %v2161, %v2164
      %v2186 = vmul.f32 %v2162, %v2164
      %v2187 = vld [vmem:[#allocation2] sm:$0xff]
      %v2188 = vld [vmem:[#allocation2 + $0x8] sm:$0x7]
      %v2189 = vld [vmem:[#allocation2 + $0x10] sm:$0xff]
      %v2190 = vld [vmem:[#allocation2 + $0x18] sm:$0x7]
      %v2191 = vld [vmem:[#allocation2 + $0x20] sm:$0xff]
      %v2192 = vld [vmem:[#allocation2 + $0x28] sm:$0x7]
      %v2193 = vld [vmem:[#allocation2 + $0x30] sm:$0xff]
      %v2194 = vld [vmem:[#allocation2 + $0x38] sm:$0x7]
      %v2195 = vld [vmem:[#allocation2 + $0x40] sm:$0xff]
      %v2196 = vld [vmem:[#allocation2 + $0x48] sm:$0x7]
      %v2197 = vld [vmem:[#allocation2 + $0x50] sm:$0xff]
      %v2198 = vld [vmem:[#allocation2 + $0x58] sm:$0x7]
      %v2199 = vld [vmem:[#allocation2 + $0x60] sm:$0xff]
      %v2200 = vld [vmem:[#allocation2 + $0x68] sm:$0x7]
      %v2201 = vld [vmem:[#allocation2 + $0x70] sm:$0xff]
      %v2202 = vld [vmem:[#allocation2 + $0x78] sm:$0x7]
      %v2203 = vld [vmem:[#allocation2 + $0x80] sm:$0xff]
      %v2204 = vld [vmem:[#allocation2 + $0x88] sm:$0x7]
      %v2205 = vld [vmem:[#allocation2 + $0x90] sm:$0xff]
      %v2206 = vld [vmem:[#allocation2 + $0x98] sm:$0x7]
      %v2207 = vld [vmem:[#allocation2 + $0xa0] sm:$0xff]
      %v2208 = vld [vmem:[#allocation2 + $0xa8] sm:$0x7]
      %v2209 = vadd.f32 %v2187, %v2165
      %v2210 = vadd.f32 %v2188, %v2166
      %v2211 = vadd.f32 %v2189, %v2167
      %v2212 = vadd.f32 %v2190, %v2168
      %v2213 = vadd.f32 %v2191, %v2169
      %v2214 = vadd.f32 %v2192, %v2170
      %v2215 = vadd.f32 %v2193, %v2171
      %v2216 = vadd.f32 %v2194, %v2172
      %v2217 = vadd.f32 %v2195, %v2173
      %v2218 = vadd.f32 %v2196, %v2174
      %v2219 = vadd.f32 %v2197, %v2175
      %v2220 = vadd.f32 %v2198, %v2176
      %v2221 = vadd.f32 %v2199, %v2177
      %v2222 = vadd.f32 %v2200, %v2178
      %v2223 = vadd.f32 %v2201, %v2179
      %v2224 = vadd.f32 %v2202, %v2180
      %v2225 = vadd.f32 %v2203, %v2181
      %v2226 = vadd.f32 %v2204, %v2182
      %v2227 = vadd.f32 %v2205, %v2183
      %v2228 = vadd.f32 %v2206, %v2184
      %v2229 = vadd.f32 %v2207, %v2185
      %v2230 = vadd.f32 %v2208, %v2186
      %2231 = vst.msk [vmem:[#allocation2] sm:$0xff] %vm210, %v2209
      %2232 = vst.msk [vmem:[#allocation2 + $0x8] sm:$0x7] %vm212, %v2210
      %2233 = vst.msk [vmem:[#allocation2 + $0x10] sm:$0xff] %vm210, %v2211
      %2234 = vst.msk [vmem:[#allocation2 + $0x18] sm:$0x7] %vm212, %v2212
      %2235 = vst.msk [vmem:[#allocation2 + $0x20] sm:$0xff] %vm210, %v2213
      %2236 = vst.msk [vmem:[#allocation2 + $0x28] sm:$0x7] %vm212, %v2214
      %2237 = vst.msk [vmem:[#allocation2 + $0x30] sm:$0xff] %vm210, %v2215
      %2238 = vst.msk [vmem:[#allocation2 + $0x38] sm:$0x7] %vm212, %v2216
      %2239 = vst.msk [vmem:[#allocation2 + $0x40] sm:$0xff] %vm210, %v2217
      %2240 = vst.msk [vmem:[#allocation2 + $0x48] sm:$0x7] %vm212, %v2218
      %2241 = vst.msk [vmem:[#allocation2 + $0x50] sm:$0xff] %vm210, %v2219
      %2242 = vst.msk [vmem:[#allocation2 + $0x58] sm:$0x7] %vm212, %v2220
      %2243 = vst.msk [vmem:[#allocation2 + $0x60] sm:$0xff] %vm210, %v2221
      %2244 = vst.msk [vmem:[#allocation2 + $0x68] sm:$0x7] %vm212, %v2222
      %2245 = vst.msk [vmem:[#allocation2 + $0x70] sm:$0xff] %vm210, %v2223
      %2246 = vst.msk [vmem:[#allocation2 + $0x78] sm:$0x7] %vm212, %v2224
      %2247 = vst.msk [vmem:[#allocation2 + $0x80] sm:$0xff] %vm210, %v2225
      %2248 = vst.msk [vmem:[#allocation2 + $0x88] sm:$0x7] %vm212, %v2226
      %2249 = vst.msk [vmem:[#allocation2 + $0x90] sm:$0xff] %vm210, %v2227
      %2250 = vst.msk [vmem:[#allocation2 + $0x98] sm:$0x7] %vm212, %v2228
      %2251 = vst.msk [vmem:[#allocation2 + $0xa0] sm:$0xff] %vm210, %v2229
      %2252 = vst.msk [vmem:[#allocation2 + $0xa8] sm:$0x7] %vm212, %v2230
      %v2253 = vld [vmem:[%s2140 + $0x1] sm:$0xff]
      %v2254 = vld [vmem:[%s2140 + $0x9] sm:$0x7]
      %v2255 = vld [vmem:[%s2140 + $0x11] sm:$0xff]
      %v2256 = vld [vmem:[%s2140 + $0x19] sm:$0x7]
      %v2257 = vld [vmem:[%s2140 + $0x21] sm:$0xff]
      %v2258 = vld [vmem:[%s2140 + $0x29] sm:$0x7]
      %v2259 = vld [vmem:[%s2140 + $0x31] sm:$0xff]
      %v2260 = vld [vmem:[%s2140 + $0x39] sm:$0x7]
      %v2261 = vld [vmem:[%s2140 + $0x41] sm:$0xff]
      %v2262 = vld [vmem:[%s2140 + $0x49] sm:$0x7]
      %v2263 = vld [vmem:[%s2140 + $0x51] sm:$0xff]
      %v2264 = vld [vmem:[%s2140 + $0x59] sm:$0x7]
      %v2265 = vld [vmem:[%s2140 + $0x61] sm:$0xff]
      %v2266 = vld [vmem:[%s2140 + $0x69] sm:$0x7]
      %v2267 = vld [vmem:[%s2140 + $0x71] sm:$0xff]
      %v2268 = vld [vmem:[%s2140 + $0x79] sm:$0x7]
      %v2269 = vld [vmem:[%s2140 + $0x81] sm:$0xff]
      %v2270 = vld [vmem:[%s2140 + $0x89] sm:$0x7]
      %v2271 = vld [vmem:[%s2140 + $0x91] sm:$0xff]
      %v2272 = vld [vmem:[%s2140 + $0x99] sm:$0x7]
      %v2273 = vld [vmem:[%s2140 + $0xa1] sm:$0xff]
      %v2274 = vld [vmem:[%s2140 + $0xa9] sm:$0x7]
      %v2275 = vld [vmem:[%s153 + $0x13] sm:$0x1]
      %v2276 = vperm.slane %v2275, 0
      %v2277 = vmul.f32 %v2253, %v2276
      %v2278 = vmul.f32 %v2254, %v2276
      %v2279 = vmul.f32 %v2255, %v2276
      %v2280 = vmul.f32 %v2256, %v2276
      %v2281 = vmul.f32 %v2257, %v2276
      %v2282 = vmul.f32 %v2258, %v2276
      %v2283 = vmul.f32 %v2259, %v2276
      %v2284 = vmul.f32 %v2260, %v2276
      %v2285 = vmul.f32 %v2261, %v2276
      %v2286 = vmul.f32 %v2262, %v2276
      %v2287 = vmul.f32 %v2263, %v2276
      %v2288 = vmul.f32 %v2264, %v2276
      %v2289 = vmul.f32 %v2265, %v2276
      %v2290 = vmul.f32 %v2266, %v2276
      %v2291 = vmul.f32 %v2267, %v2276
      %v2292 = vmul.f32 %v2268, %v2276
      %v2293 = vmul.f32 %v2269, %v2276
      %v2294 = vmul.f32 %v2270, %v2276
      %v2295 = vmul.f32 %v2271, %v2276
      %v2296 = vmul.f32 %v2272, %v2276
      %v2297 = vmul.f32 %v2273, %v2276
      %v2298 = vmul.f32 %v2274, %v2276
      %v2299 = vld [vmem:[#allocation2] sm:$0xff]
      %v2300 = vld [vmem:[#allocation2 + $0x8] sm:$0x7]
      %v2301 = vld [vmem:[#allocation2 + $0x10] sm:$0xff]
      %v2302 = vld [vmem:[#allocation2 + $0x18] sm:$0x7]
      %v2303 = vld [vmem:[#allocation2 + $0x20] sm:$0xff]
      %v2304 = vld [vmem:[#allocation2 + $0x28] sm:$0x7]
      %v2305 = vld [vmem:[#allocation2 + $0x30] sm:$0xff]
      %v2306 = vld [vmem:[#allocation2 + $0x38] sm:$0x7]
      %v2307 = vld [vmem:[#allocation2 + $0x40] sm:$0xff]
      %v2308 = vld [vmem:[#allocation2 + $0x48] sm:$0x7]
      %v2309 = vld [vmem:[#allocation2 + $0x50] sm:$0xff]
      %v2310 = vld [vmem:[#allocation2 + $0x58] sm:$0x7]
      %v2311 = vld [vmem:[#allocation2 + $0x60] sm:$0xff]
      %v2312 = vld [vmem:[#allocation2 + $0x68] sm:$0x7]
      %v2313 = vld [vmem:[#allocation2 + $0x70] sm:$0xff]
      %v2314 = vld [vmem:[#allocation2 + $0x78] sm:$0x7]
      %v2315 = vld [vmem:[#allocation2 + $0x80] sm:$0xff]
      %v2316 = vld [vmem:[#allocation2 + $0x88] sm:$0x7]
      %v2317 = vld [vmem:[#allocation2 + $0x90] sm:$0xff]
      %v2318 = vld [vmem:[#allocation2 + $0x98] sm:$0x7]
      %v2319 = vld [vmem:[#allocation2 + $0xa0] sm:$0xff]
      %v2320 = vld [vmem:[#allocation2 + $0xa8] sm:$0x7]
      %v2321 = vadd.f32 %v2299, %v2277
      %v2322 = vadd.f32 %v2300, %v2278
      %v2323 = vadd.f32 %v2301, %v2279
      %v2324 = vadd.f32 %v2302, %v2280
      %v2325 = vadd.f32 %v2303, %v2281
      %v2326 = vadd.f32 %v2304, %v2282
      %v2327 = vadd.f32 %v2305, %v2283
      %v2328 = vadd.f32 %v2306, %v2284
      %v2329 = vadd.f32 %v2307, %v2285
      %v2330 = vadd.f32 %v2308, %v2286
      %v2331 = vadd.f32 %v2309, %v2287
      %v2332 = vadd.f32 %v2310, %v2288
      %v2333 = vadd.f32 %v2311, %v2289
      %v2334 = vadd.f32 %v2312, %v2290
      %v2335 = vadd.f32 %v2313, %v2291
      %v2336 = vadd.f32 %v2314, %v2292
      %v2337 = vadd.f32 %v2315, %v2293
      %v2338 = vadd.f32 %v2316, %v2294
      %v2339 = vadd.f32 %v2317, %v2295
      %v2340 = vadd.f32 %v2318, %v2296
      %v2341 = vadd.f32 %v2319, %v2297
      %v2342 = vadd.f32 %v2320, %v2298
      %2343 = vst.msk [vmem:[#allocation2] sm:$0xff] %vm210, %v2321
      %2344 = vst.msk [vmem:[#allocation2 + $0x8] sm:$0x7] %vm212, %v2322
      %2345 = vst.msk [vmem:[#allocation2 + $0x10] sm:$0xff] %vm210, %v2323
      %2346 = vst.msk [vmem:[#allocation2 + $0x18] sm:$0x7] %vm212, %v2324
      %2347 = vst.msk [vmem:[#allocation2 + $0x20] sm:$0xff] %vm210, %v2325
      %2348 = vst.msk [vmem:[#allocation2 + $0x28] sm:$0x7] %vm212, %v2326
      %2349 = vst.msk [vmem:[#allocation2 + $0x30] sm:$0xff] %vm210, %v2327
      %2350 = vst.msk [vmem:[#allocation2 + $0x38] sm:$0x7] %vm212, %v2328
      %2351 = vst.msk [vmem:[#allocation2 + $0x40] sm:$0xff] %vm210, %v2329
      %2352 = vst.msk [vmem:[#allocation2 + $0x48] sm:$0x7] %vm212, %v2330
      %2353 = vst.msk [vmem:[#allocation2 + $0x50] sm:$0xff] %vm210, %v2331
      %2354 = vst.msk [vmem:[#allocation2 + $0x58] sm:$0x7] %vm212, %v2332
      %2355 = vst.msk [vmem:[#allocation2 + $0x60] sm:$0xff] %vm210, %v2333
      %2356 = vst.msk [vmem:[#allocation2 + $0x68] sm:$0x7] %vm212, %v2334
      %2357 = vst.msk [vmem:[#allocation2 + $0x70] sm:$0xff] %vm210, %v2335
      %2358 = vst.msk [vmem:[#allocation2 + $0x78] sm:$0x7] %vm212, %v2336
      %2359 = vst.msk [vmem:[#allocation2 + $0x80] sm:$0xff] %vm210, %v2337
      %2360 = vst.msk [vmem:[#allocation2 + $0x88] sm:$0x7] %vm212, %v2338
      %2361 = vst.msk [vmem:[#allocation2 + $0x90] sm:$0xff] %vm210, %v2339
      %2362 = vst.msk [vmem:[#allocation2 + $0x98] sm:$0x7] %vm212, %v2340
      %2363 = vst.msk [vmem:[#allocation2 + $0xa0] sm:$0xff] %vm210, %v2341
      %2364 = vst.msk [vmem:[#allocation2 + $0xa8] sm:$0x7] %vm212, %v2342
      %v2365 = vld [vmem:[%s2140 + $0x2] sm:$0xff]
      %v2366 = vld [vmem:[%s2140 + $0xa] sm:$0x7]
      %v2367 = vld [vmem:[%s2140 + $0x12] sm:$0xff]
      %v2368 = vld [vmem:[%s2140 + $0x1a] sm:$0x7]
      %v2369 = vld [vmem:[%s2140 + $0x22] sm:$0xff]
      %v2370 = vld [vmem:[%s2140 + $0x2a] sm:$0x7]
      %v2371 = vld [vmem:[%s2140 + $0x32] sm:$0xff]
      %v2372 = vld [vmem:[%s2140 + $0x3a] sm:$0x7]
      %v2373 = vld [vmem:[%s2140 + $0x42] sm:$0xff]
      %v2374 = vld [vmem:[%s2140 + $0x4a] sm:$0x7]
      %v2375 = vld [vmem:[%s2140 + $0x52] sm:$0xff]
      %v2376 = vld [vmem:[%s2140 + $0x5a] sm:$0x7]
      %v2377 = vld [vmem:[%s2140 + $0x62] sm:$0xff]
      %v2378 = vld [vmem:[%s2140 + $0x6a] sm:$0x7]
      %v2379 = vld [vmem:[%s2140 + $0x72] sm:$0xff]
      %v2380 = vld [vmem:[%s2140 + $0x7a] sm:$0x7]
      %v2381 = vld [vmem:[%s2140 + $0x82] sm:$0xff]
      %v2382 = vld [vmem:[%s2140 + $0x8a] sm:$0x7]
      %v2383 = vld [vmem:[%s2140 + $0x92] sm:$0xff]
      %v2384 = vld [vmem:[%s2140 + $0x9a] sm:$0x7]
      %v2385 = vld [vmem:[%s2140 + $0xa2] sm:$0xff]
      %v2386 = vld [vmem:[%s2140 + $0xaa] sm:$0x7]
      %v2387 = vld [vmem:[%s153 + $0x14] sm:$0x1]
      %v2388 = vperm.slane %v2387, 0
      %v2389 = vmul.f32 %v2365, %v2388
      %v2390 = vmul.f32 %v2366, %v2388
      %v2391 = vmul.f32 %v2367, %v2388
      %v2392 = vmul.f32 %v2368, %v2388
      %v2393 = vmul.f32 %v2369, %v2388
      %v2394 = vmul.f32 %v2370, %v2388
      %v2395 = vmul.f32 %v2371, %v2388
      %v2396 = vmul.f32 %v2372, %v2388
      %v2397 = vmul.f32 %v2373, %v2388
      %v2398 = vmul.f32 %v2374, %v2388
      %v2399 = vmul.f32 %v2375, %v2388
      %v2400 = vmul.f32 %v2376, %v2388
      %v2401 = vmul.f32 %v2377, %v2388
      %v2402 = vmul.f32 %v2378, %v2388
      %v2403 = vmul.f32 %v2379, %v2388
      %v2404 = vmul.f32 %v2380, %v2388
      %v2405 = vmul.f32 %v2381, %v2388
      %v2406 = vmul.f32 %v2382, %v2388
      %v2407 = vmul.f32 %v2383, %v2388
      %v2408 = vmul.f32 %v2384, %v2388
      %v2409 = vmul.f32 %v2385, %v2388
      %v2410 = vmul.f32 %v2386, %v2388
      %v2411 = vld [vmem:[#allocation2] sm:$0xff]
      %v2412 = vld [vmem:[#allocation2 + $0x8] sm:$0x7]
      %v2413 = vld [vmem:[#allocation2 + $0x10] sm:$0xff]
      %v2414 = vld [vmem:[#allocation2 + $0x18] sm:$0x7]
      %v2415 = vld [vmem:[#allocation2 + $0x20] sm:$0xff]
      %v2416 = vld [vmem:[#allocation2 + $0x28] sm:$0x7]
      %v2417 = vld [vmem:[#allocation2 + $0x30] sm:$0xff]
      %v2418 = vld [vmem:[#allocation2 + $0x38] sm:$0x7]
      %v2419 = vld [vmem:[#allocation2 + $0x40] sm:$0xff]
      %v2420 = vld [vmem:[#allocation2 + $0x48] sm:$0x7]
      %v2421 = vld [vmem:[#allocation2 + $0x50] sm:$0xff]
      %v2422 = vld [vmem:[#allocation2 + $0x58] sm:$0x7]
      %v2423 = vld [vmem:[#allocation2 + $0x60] sm:$0xff]
      %v2424 = vld [vmem:[#allocation2 + $0x68] sm:$0x7]
      %v2425 = vld [vmem:[#allocation2 + $0x70] sm:$0xff]
      %v2426 = vld [vmem:[#allocation2 + $0x78] sm:$0x7]
      %v2427 = vld [vmem:[#allocation2 + $0x80] sm:$0xff]
      %v2428 = vld [vmem:[#allocation2 + $0x88] sm:$0x7]
      %v2429 = vld [vmem:[#allocation2 + $0x90] sm:$0xff]
      %v2430 = vld [vmem:[#allocation2 + $0x98] sm:$0x7]
      %v2431 = vld [vmem:[#allocation2 + $0xa0] sm:$0xff]
      %v2432 = vld [vmem:[#allocation2 + $0xa8] sm:$0x7]
      %v2433 = vadd.f32 %v2411, %v2389
      %v2434 = vadd.f32 %v2412, %v2390
      %v2435 = vadd.f32 %v2413, %v2391
      %v2436 = vadd.f32 %v2414, %v2392
      %v2437 = vadd.f32 %v2415, %v2393
      %v2438 = vadd.f32 %v2416, %v2394
      %v2439 = vadd.f32 %v2417, %v2395
      %v2440 = vadd.f32 %v2418, %v2396
      %v2441 = vadd.f32 %v2419, %v2397
      %v2442 = vadd.f32 %v2420, %v2398
      %v2443 = vadd.f32 %v2421, %v2399
      %v2444 = vadd.f32 %v2422, %v2400
      %v2445 = vadd.f32 %v2423, %v2401
      %v2446 = vadd.f32 %v2424, %v2402
      %v2447 = vadd.f32 %v2425, %v2403
      %v2448 = vadd.f32 %v2426, %v2404
      %v2449 = vadd.f32 %v2427, %v2405
      %v2450 = vadd.f32 %v2428, %v2406
      %v2451 = vadd.f32 %v2429, %v2407
      %v2452 = vadd.f32 %v2430, %v2408
      %v2453 = vadd.f32 %v2431, %v2409
      %v2454 = vadd.f32 %v2432, %v2410
      %2455 = vst.msk [vmem:[#allocation2] sm:$0xff] %vm210, %v2433
      %2456 = vst.msk [vmem:[#allocation2 + $0x8] sm:$0x7] %vm212, %v2434
      %2457 = vst.msk [vmem:[#allocation2 + $0x10] sm:$0xff] %vm210, %v2435
      %2458 = vst.msk [vmem:[#allocation2 + $0x18] sm:$0x7] %vm212, %v2436
      %2459 = vst.msk [vmem:[#allocation2 + $0x20] sm:$0xff] %vm210, %v2437
      %2460 = vst.msk [vmem:[#allocation2 + $0x28] sm:$0x7] %vm212, %v2438
      %2461 = vst.msk [vmem:[#allocation2 + $0x30] sm:$0xff] %vm210, %v2439
      %2462 = vst.msk [vmem:[#allocation2 + $0x38] sm:$0x7] %vm212, %v2440
      %2463 = vst.msk [vmem:[#allocation2 + $0x40] sm:$0xff] %vm210, %v2441
      %2464 = vst.msk [vmem:[#allocation2 + $0x48] sm:$0x7] %vm212, %v2442
      %2465 = vst.msk [vmem:[#allocation2 + $0x50] sm:$0xff] %vm210, %v2443
      %2466 = vst.msk [vmem:[#allocation2 + $0x58] sm:$0x7] %vm212, %v2444
      %2467 = vst.msk [vmem:[#allocation2 + $0x60] sm:$0xff] %vm210, %v2445
      %2468 = vst.msk [vmem:[#allocation2 + $0x68] sm:$0x7] %vm212, %v2446
      %2469 = vst.msk [vmem:[#allocation2 + $0x70] sm:$0xff] %vm210, %v2447
      %2470 = vst.msk [vmem:[#allocation2 + $0x78] sm:$0x7] %vm212, %v2448
      %2471 = vst.msk [vmem:[#allocation2 + $0x80] sm:$0xff] %vm210, %v2449
      %2472 = vst.msk [vmem:[#allocation2 + $0x88] sm:$0x7] %vm212, %v2450
      %2473 = vst.msk [vmem:[#allocation2 + $0x90] sm:$0xff] %vm210, %v2451
      %2474 = vst.msk [vmem:[#allocation2 + $0x98] sm:$0x7] %vm212, %v2452
      %2475 = vst.msk [vmem:[#allocation2 + $0xa0] sm:$0xff] %vm210, %v2453
      %2476 = vst.msk [vmem:[#allocation2 + $0xa8] sm:$0x7] %vm212, %v2454
      %v2477 = vld [vmem:[%s2140 + $0x3] sm:$0xff]
      %v2478 = vld [vmem:[%s2140 + $0xb] sm:$0x7]
      %v2479 = vld [vmem:[%s2140 + $0x13] sm:$0xff]
      %v2480 = vld [vmem:[%s2140 + $0x1b] sm:$0x7]
      %v2481 = vld [vmem:[%s2140 + $0x23] sm:$0xff]
      %v2482 = vld [vmem:[%s2140 + $0x2b] sm:$0x7]
      %v2483 = vld [vmem:[%s2140 + $0x33] sm:$0xff]
      %v2484 = vld [vmem:[%s2140 + $0x3b] sm:$0x7]
      %v2485 = vld [vmem:[%s2140 + $0x43] sm:$0xff]
      %v2486 = vld [vmem:[%s2140 + $0x4b] sm:$0x7]
      %v2487 = vld [vmem:[%s2140 + $0x53] sm:$0xff]
      %v2488 = vld [vmem:[%s2140 + $0x5b] sm:$0x7]
      %v2489 = vld [vmem:[%s2140 + $0x63] sm:$0xff]
      %v2490 = vld [vmem:[%s2140 + $0x6b] sm:$0x7]
      %v2491 = vld [vmem:[%s2140 + $0x73] sm:$0xff]
      %v2492 = vld [vmem:[%s2140 + $0x7b] sm:$0x7]
      %v2493 = vld [vmem:[%s2140 + $0x83] sm:$0xff]
      %v2494 = vld [vmem:[%s2140 + $0x8b] sm:$0x7]
      %v2495 = vld [vmem:[%s2140 + $0x93] sm:$0xff]
      %v2496 = vld [vmem:[%s2140 + $0x9b] sm:$0x7]
      %v2497 = vld [vmem:[%s2140 + $0xa3] sm:$0xff]
      %v2498 = vld [vmem:[%s2140 + $0xab] sm:$0x7]
      %v2499 = vld [vmem:[%s153 + $0x15] sm:$0x1]
      %v2500 = vperm.slane %v2499, 0
      %v2501 = vmul.f32 %v2477, %v2500
      %v2502 = vmul.f32 %v2478, %v2500
      %v2503 = vmul.f32 %v2479, %v2500
      %v2504 = vmul.f32 %v2480, %v2500
      %v2505 = vmul.f32 %v2481, %v2500
      %v2506 = vmul.f32 %v2482, %v2500
      %v2507 = vmul.f32 %v2483, %v2500
      %v2508 = vmul.f32 %v2484, %v2500
      %v2509 = vmul.f32 %v2485, %v2500
      %v2510 = vmul.f32 %v2486, %v2500
      %v2511 = vmul.f32 %v2487, %v2500
      %v2512 = vmul.f32 %v2488, %v2500
      %v2513 = vmul.f32 %v2489, %v2500
      %v2514 = vmul.f32 %v2490, %v2500
      %v2515 = vmul.f32 %v2491, %v2500
      %v2516 = vmul.f32 %v2492, %v2500
      %v2517 = vmul.f32 %v2493, %v2500
      %v2518 = vmul.f32 %v2494, %v2500
      %v2519 = vmul.f32 %v2495, %v2500
      %v2520 = vmul.f32 %v2496, %v2500
      %v2521 = vmul.f32 %v2497, %v2500
      %v2522 = vmul.f32 %v2498, %v2500
      %v2523 = vld [vmem:[#allocation2] sm:$0xff]
      %v2524 = vld [vmem:[#allocation2 + $0x8] sm:$0x7]
      %v2525 = vld [vmem:[#allocation2 + $0x10] sm:$0xff]
      %v2526 = vld [vmem:[#allocation2 + $0x18] sm:$0x7]
      %v2527 = vld [vmem:[#allocation2 + $0x20] sm:$0xff]
      %v2528 = vld [vmem:[#allocation2 + $0x28] sm:$0x7]
      %v2529 = vld [vmem:[#allocation2 + $0x30] sm:$0xff]
      %v2530 = vld [vmem:[#allocation2 + $0x38] sm:$0x7]
      %v2531 = vld [vmem:[#allocation2 + $0x40] sm:$0xff]
      %v2532 = vld [vmem:[#allocation2 + $0x48] sm:$0x7]
      %v2533 = vld [vmem:[#allocation2 + $0x50] sm:$0xff]
      %v2534 = vld [vmem:[#allocation2 + $0x58] sm:$0x7]
      %v2535 = vld [vmem:[#allocation2 + $0x60] sm:$0xff]
      %v2536 = vld [vmem:[#allocation2 + $0x68] sm:$0x7]
      %v2537 = vld [vmem:[#allocation2 + $0x70] sm:$0xff]
      %v2538 = vld [vmem:[#allocation2 + $0x78] sm:$0x7]
      %v2539 = vld [vmem:[#allocation2 + $0x80] sm:$0xff]
      %v2540 = vld [vmem:[#allocation2 + $0x88] sm:$0x7]
      %v2541 = vld [vmem:[#allocation2 + $0x90] sm:$0xff]
      %v2542 = vld [vmem:[#allocation2 + $0x98] sm:$0x7]
      %v2543 = vld [vmem:[#allocation2 + $0xa0] sm:$0xff]
      %v2544 = vld [vmem:[#allocation2 + $0xa8] sm:$0x7]
      %v2545 = vadd.f32 %v2523, %v2501
      %v2546 = vadd.f32 %v2524, %v2502
      %v2547 = vadd.f32 %v2525, %v2503
      %v2548 = vadd.f32 %v2526, %v2504
      %v2549 = vadd.f32 %v2527, %v2505
      %v2550 = vadd.f32 %v2528, %v2506
      %v2551 = vadd.f32 %v2529, %v2507
      %v2552 = vadd.f32 %v2530, %v2508
      %v2553 = vadd.f32 %v2531, %v2509
      %v2554 = vadd.f32 %v2532, %v2510
      %v2555 = vadd.f32 %v2533, %v2511
      %v2556 = vadd.f32 %v2534, %v2512
      %v2557 = vadd.f32 %v2535, %v2513
      %v2558 = vadd.f32 %v2536, %v2514
      %v2559 = vadd.f32 %v2537, %v2515
      %v2560 = vadd.f32 %v2538, %v2516
      %v2561 = vadd.f32 %v2539, %v2517
      %v2562 = vadd.f32 %v2540, %v2518
      %v2563 = vadd.f32 %v2541, %v2519
      %v2564 = vadd.f32 %v2542, %v2520
      %v2565 = vadd.f32 %v2543, %v2521
      %v2566 = vadd.f32 %v2544, %v2522
      %2567 = vst.msk [vmem:[#allocation2] sm:$0xff] %vm210, %v2545
      %2568 = vst.msk [vmem:[#allocation2 + $0x8] sm:$0x7] %vm212, %v2546
      %2569 = vst.msk [vmem:[#allocation2 + $0x10] sm:$0xff] %vm210, %v2547
      %2570 = vst.msk [vmem:[#allocation2 + $0x18] sm:$0x7] %vm212, %v2548
      %2571 = vst.msk [vmem:[#allocation2 + $0x20] sm:$0xff] %vm210, %v2549
      %2572 = vst.msk [vmem:[#allocation2 + $0x28] sm:$0x7] %vm212, %v2550
      %2573 = vst.msk [vmem:[#allocation2 + $0x30] sm:$0xff] %vm210, %v2551
      %2574 = vst.msk [vmem:[#allocation2 + $0x38] sm:$0x7] %vm212, %v2552
      %2575 = vst.msk [vmem:[#allocation2 + $0x40] sm:$0xff] %vm210, %v2553
      %2576 = vst.msk [vmem:[#allocation2 + $0x48] sm:$0x7] %vm212, %v2554
      %2577 = vst.msk [vmem:[#allocation2 + $0x50] sm:$0xff] %vm210, %v2555
      %2578 = vst.msk [vmem:[#allocation2 + $0x58] sm:$0x7] %vm212, %v2556
      %2579 = vst.msk [vmem:[#allocation2 + $0x60] sm:$0xff] %vm210, %v2557
      %2580 = vst.msk [vmem:[#allocation2 + $0x68] sm:$0x7] %vm212, %v2558
      %2581 = vst.msk [vmem:[#allocation2 + $0x70] sm:$0xff] %vm210, %v2559
      %2582 = vst.msk [vmem:[#allocation2 + $0x78] sm:$0x7] %vm212, %v2560
      %2583 = vst.msk [vmem:[#allocation2 + $0x80] sm:$0xff] %vm210, %v2561
      %2584 = vst.msk [vmem:[#allocation2 + $0x88] sm:$0x7] %vm212, %v2562
      %2585 = vst.msk [vmem:[#allocation2 + $0x90] sm:$0xff] %vm210, %v2563
      %2586 = vst.msk [vmem:[#allocation2 + $0x98] sm:$0x7] %vm212, %v2564
      %2587 = vst.msk [vmem:[#allocation2 + $0xa0] sm:$0xff] %vm210, %v2565
      %2588 = vst.msk [vmem:[#allocation2 + $0xa8] sm:$0x7] %vm212, %v2566
      %v2589 = vld [vmem:[%s2140 + $0x4] sm:$0xff]
      %v2590 = vld [vmem:[%s2140 + $0xc] sm:$0x7]
      %v2591 = vld [vmem:[%s2140 + $0x14] sm:$0xff]
      %v2592 = vld [vmem:[%s2140 + $0x1c] sm:$0x7]
      %v2593 = vld [vmem:[%s2140 + $0x24] sm:$0xff]
      %v2594 = vld [vmem:[%s2140 + $0x2c] sm:$0x7]
      %v2595 = vld [vmem:[%s2140 + $0x34] sm:$0xff]
      %v2596 = vld [vmem:[%s2140 + $0x3c] sm:$0x7]
      %v2597 = vld [vmem:[%s2140 + $0x44] sm:$0xff]
      %v2598 = vld [vmem:[%s2140 + $0x4c] sm:$0x7]
      %v2599 = vld [vmem:[%s2140 + $0x54] sm:$0xff]
      %v2600 = vld [vmem:[%s2140 + $0x5c] sm:$0x7]
      %v2601 = vld [vmem:[%s2140 + $0x64] sm:$0xff]
      %v2602 = vld [vmem:[%s2140 + $0x6c] sm:$0x7]
      %v2603 = vld [vmem:[%s2140 + $0x74] sm:$0xff]
      %v2604 = vld [vmem:[%s2140 + $0x7c] sm:$0x7]
      %v2605 = vld [vmem:[%s2140 + $0x84] sm:$0xff]
      %v2606 = vld [vmem:[%s2140 + $0x8c] sm:$0x7]
      %v2607 = vld [vmem:[%s2140 + $0x94] sm:$0xff]
      %v2608 = vld [vmem:[%s2140 + $0x9c] sm:$0x7]
      %v2609 = vld [vmem:[%s2140 + $0xa4] sm:$0xff]
      %v2610 = vld [vmem:[%s2140 + $0xac] sm:$0x7]
      %v2611 = vld [vmem:[%s153 + $0x16] sm:$0x1]
      %v2612 = vperm.slane %v2611, 0
      %v2613 = vmul.f32 %v2589, %v2612
      %v2614 = vmul.f32 %v2590, %v2612
      %v2615 = vmul.f32 %v2591, %v2612
      %v2616 = vmul.f32 %v2592, %v2612
      %v2617 = vmul.f32 %v2593, %v2612
      %v2618 = vmul.f32 %v2594, %v2612
      %v2619 = vmul.f32 %v2595, %v2612
      %v2620 = vmul.f32 %v2596, %v2612
      %v2621 = vmul.f32 %v2597, %v2612
      %v2622 = vmul.f32 %v2598, %v2612
      %v2623 = vmul.f32 %v2599, %v2612
      %v2624 = vmul.f32 %v2600, %v2612
      %v2625 = vmul.f32 %v2601, %v2612
      %v2626 = vmul.f32 %v2602, %v2612
      %v2627 = vmul.f32 %v2603, %v2612
      %v2628 = vmul.f32 %v2604, %v2612
      %v2629 = vmul.f32 %v2605, %v2612
      %v2630 = vmul.f32 %v2606, %v2612
      %v2631 = vmul.f32 %v2607, %v2612
      %v2632 = vmul.f32 %v2608, %v2612
      %v2633 = vmul.f32 %v2609, %v2612
      %v2634 = vmul.f32 %v2610, %v2612
      %v2635 = vld [vmem:[#allocation2] sm:$0xff]
      %v2636 = vld [vmem:[#allocation2 + $0x8] sm:$0x7]
      %v2637 = vld [vmem:[#allocation2 + $0x10] sm:$0xff]
      %v2638 = vld [vmem:[#allocation2 + $0x18] sm:$0x7]
      %v2639 = vld [vmem:[#allocation2 + $0x20] sm:$0xff]
      %v2640 = vld [vmem:[#allocation2 + $0x28] sm:$0x7]
      %v2641 = vld [vmem:[#allocation2 + $0x30] sm:$0xff]
      %v2642 = vld [vmem:[#allocation2 + $0x38] sm:$0x7]
      %v2643 = vld [vmem:[#allocation2 + $0x40] sm:$0xff]
      %v2644 = vld [vmem:[#allocation2 + $0x48] sm:$0x7]
      %v2645 = vld [vmem:[#allocation2 + $0x50] sm:$0xff]
      %v2646 = vld [vmem:[#allocation2 + $0x58] sm:$0x7]
      %v2647 = vld [vmem:[#allocation2 + $0x60] sm:$0xff]
      %v2648 = vld [vmem:[#allocation2 + $0x68] sm:$0x7]
      %v2649 = vld [vmem:[#allocation2 + $0x70] sm:$0xff]
      %v2650 = vld [vmem:[#allocation2 + $0x78] sm:$0x7]
      %v2651 = vld [vmem:[#allocation2 + $0x80] sm:$0xff]
      %v2652 = vld [vmem:[#allocation2 + $0x88] sm:$0x7]
      %v2653 = vld [vmem:[#allocation2 + $0x90] sm:$0xff]
      %v2654 = vld [vmem:[#allocation2 + $0x98] sm:$0x7]
      %v2655 = vld [vmem:[#allocation2 + $0xa0] sm:$0xff]
      %v2656 = vld [vmem:[#allocation2 + $0xa8] sm:$0x7]
      %v2657 = vadd.f32 %v2635, %v2613
      %v2658 = vadd.f32 %v2636, %v2614
      %v2659 = vadd.f32 %v2637, %v2615
      %v2660 = vadd.f32 %v2638, %v2616
      %v2661 = vadd.f32 %v2639, %v2617
      %v2662 = vadd.f32 %v2640, %v2618
      %v2663 = vadd.f32 %v2641, %v2619
      %v2664 = vadd.f32 %v2642, %v2620
      %v2665 = vadd.f32 %v2643, %v2621
      %v2666 = vadd.f32 %v2644, %v2622
      %v2667 = vadd.f32 %v2645, %v2623
      %v2668 = vadd.f32 %v2646, %v2624
      %v2669 = vadd.f32 %v2647, %v2625
      %v2670 = vadd.f32 %v2648, %v2626
      %v2671 = vadd.f32 %v2649, %v2627
      %v2672 = vadd.f32 %v2650, %v2628
      %v2673 = vadd.f32 %v2651, %v2629
      %v2674 = vadd.f32 %v2652, %v2630
      %v2675 = vadd.f32 %v2653, %v2631
      %v2676 = vadd.f32 %v2654, %v2632
      %v2677 = vadd.f32 %v2655, %v2633
      %v2678 = vadd.f32 %v2656, %v2634
      %2679 = vst.msk [vmem:[#allocation2] sm:$0xff] %vm210, %v2657
      %2680 = vst.msk [vmem:[#allocation2 + $0x8] sm:$0x7] %vm212, %v2658
      %2681 = vst.msk [vmem:[#allocation2 + $0x10] sm:$0xff] %vm210, %v2659
      %2682 = vst.msk [vmem:[#allocation2 + $0x18] sm:$0x7] %vm212, %v2660
      %2683 = vst.msk [vmem:[#allocation2 + $0x20] sm:$0xff] %vm210, %v2661
      %2684 = vst.msk [vmem:[#allocation2 + $0x28] sm:$0x7] %vm212, %v2662
      %2685 = vst.msk [vmem:[#allocation2 + $0x30] sm:$0xff] %vm210, %v2663
      %2686 = vst.msk [vmem:[#allocation2 + $0x38] sm:$0x7] %vm212, %v2664
      %2687 = vst.msk [vmem:[#allocation2 + $0x40] sm:$0xff] %vm210, %v2665
      %2688 = vst.msk [vmem:[#allocation2 + $0x48] sm:$0x7] %vm212, %v2666
      %2689 = vst.msk [vmem:[#allocation2 + $0x50] sm:$0xff] %vm210, %v2667
      %2690 = vst.msk [vmem:[#allocation2 + $0x58] sm:$0x7] %vm212, %v2668
      %2691 = vst.msk [vmem:[#allocation2 + $0x60] sm:$0xff] %vm210, %v2669
      %2692 = vst.msk [vmem:[#allocation2 + $0x68] sm:$0x7] %vm212, %v2670
      %2693 = vst.msk [vmem:[#allocation2 + $0x70] sm:$0xff] %vm210, %v2671
      %2694 = vst.msk [vmem:[#allocation2 + $0x78] sm:$0x7] %vm212, %v2672
      %2695 = vst.msk [vmem:[#allocation2 + $0x80] sm:$0xff] %vm210, %v2673
      %2696 = vst.msk [vmem:[#allocation2 + $0x88] sm:$0x7] %vm212, %v2674
      %2697 = vst.msk [vmem:[#allocation2 + $0x90] sm:$0xff] %vm210, %v2675
      %2698 = vst.msk [vmem:[#allocation2 + $0x98] sm:$0x7] %vm212, %v2676
      %2699 = vst.msk [vmem:[#allocation2 + $0xa0] sm:$0xff] %vm210, %v2677
      %2700 = vst.msk [vmem:[#allocation2 + $0xa8] sm:$0x7] %vm212, %v2678
      %v2701 = vld [vmem:[%s2140 + $0x5] sm:$0xff]
      %v2702 = vld [vmem:[%s2140 + $0xd] sm:$0x7]
      %v2703 = vld [vmem:[%s2140 + $0x15] sm:$0xff]
      %v2704 = vld [vmem:[%s2140 + $0x1d] sm:$0x7]
      %v2705 = vld [vmem:[%s2140 + $0x25] sm:$0xff]
      %v2706 = vld [vmem:[%s2140 + $0x2d] sm:$0x7]
      %v2707 = vld [vmem:[%s2140 + $0x35] sm:$0xff]
      %v2708 = vld [vmem:[%s2140 + $0x3d] sm:$0x7]
      %v2709 = vld [vmem:[%s2140 + $0x45] sm:$0xff]
      %v2710 = vld [vmem:[%s2140 + $0x4d] sm:$0x7]
      %v2711 = vld [vmem:[%s2140 + $0x55] sm:$0xff]
      %v2712 = vld [vmem:[%s2140 + $0x5d] sm:$0x7]
      %v2713 = vld [vmem:[%s2140 + $0x65] sm:$0xff]
      %v2714 = vld [vmem:[%s2140 + $0x6d] sm:$0x7]
      %v2715 = vld [vmem:[%s2140 + $0x75] sm:$0xff]
      %v2716 = vld [vmem:[%s2140 + $0x7d] sm:$0x7]
      %v2717 = vld [vmem:[%s2140 + $0x85] sm:$0xff]
      %v2718 = vld [vmem:[%s2140 + $0x8d] sm:$0x7]
      %v2719 = vld [vmem:[%s2140 + $0x95] sm:$0xff]
      %v2720 = vld [vmem:[%s2140 + $0x9d] sm:$0x7]
      %v2721 = vld [vmem:[%s2140 + $0xa5] sm:$0xff]
      %v2722 = vld [vmem:[%s2140 + $0xad] sm:$0x7]
      %v2723 = vld [vmem:[%s153 + $0x17] sm:$0x1]
      %v2724 = vperm.slane %v2723, 0
      %v2725 = vmul.f32 %v2701, %v2724
      %v2726 = vmul.f32 %v2702, %v2724
      %v2727 = vmul.f32 %v2703, %v2724
      %v2728 = vmul.f32 %v2704, %v2724
      %v2729 = vmul.f32 %v2705, %v2724
      %v2730 = vmul.f32 %v2706, %v2724
      %v2731 = vmul.f32 %v2707, %v2724
      %v2732 = vmul.f32 %v2708, %v2724
      %v2733 = vmul.f32 %v2709, %v2724
      %v2734 = vmul.f32 %v2710, %v2724
      %v2735 = vmul.f32 %v2711, %v2724
      %v2736 = vmul.f32 %v2712, %v2724
      %v2737 = vmul.f32 %v2713, %v2724
      %v2738 = vmul.f32 %v2714, %v2724
      %v2739 = vmul.f32 %v2715, %v2724
      %v2740 = vmul.f32 %v2716, %v2724
      %v2741 = vmul.f32 %v2717, %v2724
      %v2742 = vmul.f32 %v2718, %v2724
      %v2743 = vmul.f32 %v2719, %v2724
      %v2744 = vmul.f32 %v2720, %v2724
      %v2745 = vmul.f32 %v2721, %v2724
      %v2746 = vmul.f32 %v2722, %v2724
      %v2747 = vld [vmem:[#allocation2] sm:$0xff]
      %v2748 = vld [vmem:[#allocation2 + $0x8] sm:$0x7]
      %v2749 = vld [vmem:[#allocation2 + $0x10] sm:$0xff]
      %v2750 = vld [vmem:[#allocation2 + $0x18] sm:$0x7]
      %v2751 = vld [vmem:[#allocation2 + $0x20] sm:$0xff]
      %v2752 = vld [vmem:[#allocation2 + $0x28] sm:$0x7]
      %v2753 = vld [vmem:[#allocation2 + $0x30] sm:$0xff]
      %v2754 = vld [vmem:[#allocation2 + $0x38] sm:$0x7]
      %v2755 = vld [vmem:[#allocation2 + $0x40] sm:$0xff]
      %v2756 = vld [vmem:[#allocation2 + $0x48] sm:$0x7]
      %v2757 = vld [vmem:[#allocation2 + $0x50] sm:$0xff]
      %v2758 = vld [vmem:[#allocation2 + $0x58] sm:$0x7]
      %v2759 = vld [vmem:[#allocation2 + $0x60] sm:$0xff]
      %v2760 = vld [vmem:[#allocation2 + $0x68] sm:$0x7]
      %v2761 = vld [vmem:[#allocation2 + $0x70] sm:$0xff]
      %v2762 = vld [vmem:[#allocation2 + $0x78] sm:$0x7]
      %v2763 = vld [vmem:[#allocation2 + $0x80] sm:$0xff]
      %v2764 = vld [vmem:[#allocation2 + $0x88] sm:$0x7]
      %v2765 = vld [vmem:[#allocation2 + $0x90] sm:$0xff]
      %v2766 = vld [vmem:[#allocation2 + $0x98] sm:$0x7]
      %v2767 = vld [vmem:[#allocation2 + $0xa0] sm:$0xff]
      %v2768 = vld [vmem:[#allocation2 + $0xa8] sm:$0x7]
      %v2769 = vadd.f32 %v2747, %v2725
      %v2770 = vadd.f32 %v2748, %v2726
      %v2771 = vadd.f32 %v2749, %v2727
      %v2772 = vadd.f32 %v2750, %v2728
      %v2773 = vadd.f32 %v2751, %v2729
      %v2774 = vadd.f32 %v2752, %v2730
      %v2775 = vadd.f32 %v2753, %v2731
      %v2776 = vadd.f32 %v2754, %v2732
      %v2777 = vadd.f32 %v2755, %v2733
      %v2778 = vadd.f32 %v2756, %v2734
      %v2779 = vadd.f32 %v2757, %v2735
      %v2780 = vadd.f32 %v2758, %v2736
      %v2781 = vadd.f32 %v2759, %v2737
      %v2782 = vadd.f32 %v2760, %v2738
      %v2783 = vadd.f32 %v2761, %v2739
      %v2784 = vadd.f32 %v2762, %v2740
      %v2785 = vadd.f32 %v2763, %v2741
      %v2786 = vadd.f32 %v2764, %v2742
      %v2787 = vadd.f32 %v2765, %v2743
      %v2788 = vadd.f32 %v2766, %v2744
      %v2789 = vadd.f32 %v2767, %v2745
      %v2790 = vadd.f32 %v2768, %v2746
      %2791 = vst.msk [vmem:[#allocation2] sm:$0xff] %vm210, %v2769
      %2792 = vst.msk [vmem:[#allocation2 + $0x8] sm:$0x7] %vm212, %v2770
      %2793 = vst.msk [vmem:[#allocation2 + $0x10] sm:$0xff] %vm210, %v2771
      %2794 = vst.msk [vmem:[#allocation2 + $0x18] sm:$0x7] %vm212, %v2772
      %2795 = vst.msk [vmem:[#allocation2 + $0x20] sm:$0xff] %vm210, %v2773
      %2796 = vst.msk [vmem:[#allocation2 + $0x28] sm:$0x7] %vm212, %v2774
      %2797 = vst.msk [vmem:[#allocation2 + $0x30] sm:$0xff] %vm210, %v2775
      %2798 = vst.msk [vmem:[#allocation2 + $0x38] sm:$0x7] %vm212, %v2776
      %2799 = vst.msk [vmem:[#allocation2 + $0x40] sm:$0xff] %vm210, %v2777
      %2800 = vst.msk [vmem:[#allocation2 + $0x48] sm:$0x7] %vm212, %v2778
      %2801 = vst.msk [vmem:[#allocation2 + $0x50] sm:$0xff] %vm210, %v2779
      %2802 = vst.msk [vmem:[#allocation2 + $0x58] sm:$0x7] %vm212, %v2780
      %2803 = vst.msk [vmem:[#allocation2 + $0x60] sm:$0xff] %vm210, %v2781
      %2804 = vst.msk [vmem:[#allocation2 + $0x68] sm:$0x7] %vm212, %v2782
      %2805 = vst.msk [vmem:[#allocation2 + $0x70] sm:$0xff] %vm210, %v2783
      %2806 = vst.msk [vmem:[#allocation2 + $0x78] sm:$0x7] %vm212, %v2784
      %2807 = vst.msk [vmem:[#allocation2 + $0x80] sm:$0xff] %vm210, %v2785
      %2808 = vst.msk [vmem:[#allocation2 + $0x88] sm:$0x7] %vm212, %v2786
      %2809 = vst.msk [vmem:[#allocation2 + $0x90] sm:$0xff] %vm210, %v2787
      %2810 = vst.msk [vmem:[#allocation2 + $0x98] sm:$0x7] %vm212, %v2788
      %2811 = vst.msk [vmem:[#allocation2 + $0xa0] sm:$0xff] %vm210, %v2789
      %2812 = vst.msk [vmem:[#allocation2 + $0xa8] sm:$0x7] %vm212, %v2790
      %s2813 = scalar_lea.vmem %s158, 64
      %v2814 = vld [vmem:[%s2813] sm:$0xff]
      %v2815 = vld [vmem:[%s2813 + $0x8] sm:$0x7]
      %v2816 = vld [vmem:[%s2813 + $0x10] sm:$0xff]
      %v2817 = vld [vmem:[%s2813 + $0x18] sm:$0x7]
      %v2818 = vld [vmem:[%s2813 + $0x20] sm:$0xff]
      %v2819 = vld [vmem:[%s2813 + $0x28] sm:$0x7]
      %v2820 = vld [vmem:[%s2813 + $0x30] sm:$0xff]
      %v2821 = vld [vmem:[%s2813 + $0x38] sm:$0x7]
      %v2822 = vld [vmem:[%s2813 + $0x40] sm:$0xff]
      %v2823 = vld [vmem:[%s2813 + $0x48] sm:$0x7]
      %v2824 = vld [vmem:[%s2813 + $0x50] sm:$0xff]
      %v2825 = vld [vmem:[%s2813 + $0x58] sm:$0x7]
      %v2826 = vld [vmem:[%s2813 + $0x60] sm:$0xff]
      %v2827 = vld [vmem:[%s2813 + $0x68] sm:$0x7]
      %v2828 = vld [vmem:[%s2813 + $0x70] sm:$0xff]
      %v2829 = vld [vmem:[%s2813 + $0x78] sm:$0x7]
      %v2830 = vld [vmem:[%s2813 + $0x80] sm:$0xff]
      %v2831 = vld [vmem:[%s2813 + $0x88] sm:$0x7]
      %v2832 = vld [vmem:[%s2813 + $0x90] sm:$0xff]
      %v2833 = vld [vmem:[%s2813 + $0x98] sm:$0x7]
      %v2834 = vld [vmem:[%s2813 + $0xa0] sm:$0xff]
      %v2835 = vld [vmem:[%s2813 + $0xa8] sm:$0x7]
      %v2836 = vld [vmem:[%s153 + $0x18] sm:$0x1]
      %v2837 = vperm.slane %v2836, 0
      %v2838 = vmul.f32 %v2814, %v2837
      %v2839 = vmul.f32 %v2815, %v2837
      %v2840 = vmul.f32 %v2816, %v2837
      %v2841 = vmul.f32 %v2817, %v2837
      %v2842 = vmul.f32 %v2818, %v2837
      %v2843 = vmul.f32 %v2819, %v2837
      %v2844 = vmul.f32 %v2820, %v2837
      %v2845 = vmul.f32 %v2821, %v2837
      %v2846 = vmul.f32 %v2822, %v2837
      %v2847 = vmul.f32 %v2823, %v2837
      %v2848 = vmul.f32 %v2824, %v2837
      %v2849 = vmul.f32 %v2825, %v2837
      %v2850 = vmul.f32 %v2826, %v2837
      %v2851 = vmul.f32 %v2827, %v2837
      %v2852 = vmul.f32 %v2828, %v2837
      %v2853 = vmul.f32 %v2829, %v2837
      %v2854 = vmul.f32 %v2830, %v2837
      %v2855 = vmul.f32 %v2831, %v2837
      %v2856 = vmul.f32 %v2832, %v2837
      %v2857 = vmul.f32 %v2833, %v2837
      %v2858 = vmul.f32 %v2834, %v2837
      %v2859 = vmul.f32 %v2835, %v2837
      %v2860 = vld [vmem:[#allocation2] sm:$0xff]
      %v2861 = vld [vmem:[#allocation2 + $0x8] sm:$0x7]
      %v2862 = vld [vmem:[#allocation2 + $0x10] sm:$0xff]
      %v2863 = vld [vmem:[#allocation2 + $0x18] sm:$0x7]
      %v2864 = vld [vmem:[#allocation2 + $0x20] sm:$0xff]
      %v2865 = vld [vmem:[#allocation2 + $0x28] sm:$0x7]
      %v2866 = vld [vmem:[#allocation2 + $0x30] sm:$0xff]
      %v2867 = vld [vmem:[#allocation2 + $0x38] sm:$0x7]
      %v2868 = vld [vmem:[#allocation2 + $0x40] sm:$0xff]
      %v2869 = vld [vmem:[#allocation2 + $0x48] sm:$0x7]
      %v2870 = vld [vmem:[#allocation2 + $0x50] sm:$0xff]
      %v2871 = vld [vmem:[#allocation2 + $0x58] sm:$0x7]
      %v2872 = vld [vmem:[#allocation2 + $0x60] sm:$0xff]
      %v2873 = vld [vmem:[#allocation2 + $0x68] sm:$0x7]
      %v2874 = vld [vmem:[#allocation2 + $0x70] sm:$0xff]
      %v2875 = vld [vmem:[#allocation2 + $0x78] sm:$0x7]
      %v2876 = vld [vmem:[#allocation2 + $0x80] sm:$0xff]
      %v2877 = vld [vmem:[#allocation2 + $0x88] sm:$0x7]
      %v2878 = vld [vmem:[#allocation2 + $0x90] sm:$0xff]
      %v2879 = vld [vmem:[#allocation2 + $0x98] sm:$0x7]
      %v2880 = vld [vmem:[#allocation2 + $0xa0] sm:$0xff]
      %v2881 = vld [vmem:[#allocation2 + $0xa8] sm:$0x7]
      %v2882 = vadd.f32 %v2860, %v2838
      %v2883 = vadd.f32 %v2861, %v2839
      %v2884 = vadd.f32 %v2862, %v2840
      %v2885 = vadd.f32 %v2863, %v2841
      %v2886 = vadd.f32 %v2864, %v2842
      %v2887 = vadd.f32 %v2865, %v2843
      %v2888 = vadd.f32 %v2866, %v2844
      %v2889 = vadd.f32 %v2867, %v2845
      %v2890 = vadd.f32 %v2868, %v2846
      %v2891 = vadd.f32 %v2869, %v2847
      %v2892 = vadd.f32 %v2870, %v2848
      %v2893 = vadd.f32 %v2871, %v2849
      %v2894 = vadd.f32 %v2872, %v2850
      %v2895 = vadd.f32 %v2873, %v2851
      %v2896 = vadd.f32 %v2874, %v2852
      %v2897 = vadd.f32 %v2875, %v2853
      %v2898 = vadd.f32 %v2876, %v2854
      %v2899 = vadd.f32 %v2877, %v2855
      %v2900 = vadd.f32 %v2878, %v2856
      %v2901 = vadd.f32 %v2879, %v2857
      %v2902 = vadd.f32 %v2880, %v2858
      %v2903 = vadd.f32 %v2881, %v2859
      %2904 = vst.msk [vmem:[#allocation2] sm:$0xff] %vm210, %v2882
      %2905 = vst.msk [vmem:[#allocation2 + $0x8] sm:$0x7] %vm212, %v2883
      %2906 = vst.msk [vmem:[#allocation2 + $0x10] sm:$0xff] %vm210, %v2884
      %2907 = vst.msk [vmem:[#allocation2 + $0x18] sm:$0x7] %vm212, %v2885
      %2908 = vst.msk [vmem:[#allocation2 + $0x20] sm:$0xff] %vm210, %v2886
      %2909 = vst.msk [vmem:[#allocation2 + $0x28] sm:$0x7] %vm212, %v2887
      %2910 = vst.msk [vmem:[#allocation2 + $0x30] sm:$0xff] %vm210, %v2888
      %2911 = vst.msk [vmem:[#allocation2 + $0x38] sm:$0x7] %vm212, %v2889
      %2912 = vst.msk [vmem:[#allocation2 + $0x40] sm:$0xff] %vm210, %v2890
      %2913 = vst.msk [vmem:[#allocation2 + $0x48] sm:$0x7] %vm212, %v2891
      %2914 = vst.msk [vmem:[#allocation2 + $0x50] sm:$0xff] %vm210, %v2892
      %2915 = vst.msk [vmem:[#allocation2 + $0x58] sm:$0x7] %vm212, %v2893
      %2916 = vst.msk [vmem:[#allocation2 + $0x60] sm:$0xff] %vm210, %v2894
      %2917 = vst.msk [vmem:[#allocation2 + $0x68] sm:$0x7] %vm212, %v2895
      %2918 = vst.msk [vmem:[#allocation2 + $0x70] sm:$0xff] %vm210, %v2896
      %2919 = vst.msk [vmem:[#allocation2 + $0x78] sm:$0x7] %vm212, %v2897
      %2920 = vst.msk [vmem:[#allocation2 + $0x80] sm:$0xff] %vm210, %v2898
      %2921 = vst.msk [vmem:[#allocation2 + $0x88] sm:$0x7] %vm212, %v2899
      %2922 = vst.msk [vmem:[#allocation2 + $0x90] sm:$0xff] %vm210, %v2900
      %2923 = vst.msk [vmem:[#allocation2 + $0x98] sm:$0x7] %vm212, %v2901
      %2924 = vst.msk [vmem:[#allocation2 + $0xa0] sm:$0xff] %vm210, %v2902
      %2925 = vst.msk [vmem:[#allocation2 + $0xa8] sm:$0x7] %vm212, %v2903
      %v2926 = vld [vmem:[%s2813 + $0x1] sm:$0xff]
      %v2927 = vld [vmem:[%s2813 + $0x9] sm:$0x7]
      %v2928 = vld [vmem:[%s2813 + $0x11] sm:$0xff]
      %v2929 = vld [vmem:[%s2813 + $0x19] sm:$0x7]
      %v2930 = vld [vmem:[%s2813 + $0x21] sm:$0xff]
      %v2931 = vld [vmem:[%s2813 + $0x29] sm:$0x7]
      %v2932 = vld [vmem:[%s2813 + $0x31] sm:$0xff]
      %v2933 = vld [vmem:[%s2813 + $0x39] sm:$0x7]
      %v2934 = vld [vmem:[%s2813 + $0x41] sm:$0xff]
      %v2935 = vld [vmem:[%s2813 + $0x49] sm:$0x7]
      %v2936 = vld [vmem:[%s2813 + $0x51] sm:$0xff]
      %v2937 = vld [vmem:[%s2813 + $0x59] sm:$0x7]
      %v2938 = vld [vmem:[%s2813 + $0x61] sm:$0xff]
      %v2939 = vld [vmem:[%s2813 + $0x69] sm:$0x7]
      %v2940 = vld [vmem:[%s2813 + $0x71] sm:$0xff]
      %v2941 = vld [vmem:[%s2813 + $0x79] sm:$0x7]
      %v2942 = vld [vmem:[%s2813 + $0x81] sm:$0xff]
      %v2943 = vld [vmem:[%s2813 + $0x89] sm:$0x7]
      %v2944 = vld [vmem:[%s2813 + $0x91] sm:$0xff]
      %v2945 = vld [vmem:[%s2813 + $0x99] sm:$0x7]
      %v2946 = vld [vmem:[%s2813 + $0xa1] sm:$0xff]
      %v2947 = vld [vmem:[%s2813 + $0xa9] sm:$0x7]
      %v2948 = vld [vmem:[%s153 + $0x19] sm:$0x1]
      %v2949 = vperm.slane %v2948, 0
      %v2950 = vmul.f32 %v2926, %v2949
      %v2951 = vmul.f32 %v2927, %v2949
      %v2952 = vmul.f32 %v2928, %v2949
      %v2953 = vmul.f32 %v2929, %v2949
      %v2954 = vmul.f32 %v2930, %v2949
      %v2955 = vmul.f32 %v2931, %v2949
      %v2956 = vmul.f32 %v2932, %v2949
      %v2957 = vmul.f32 %v2933, %v2949
      %v2958 = vmul.f32 %v2934, %v2949
      %v2959 = vmul.f32 %v2935, %v2949
      %v2960 = vmul.f32 %v2936, %v2949
      %v2961 = vmul.f32 %v2937, %v2949
      %v2962 = vmul.f32 %v2938, %v2949
      %v2963 = vmul.f32 %v2939, %v2949
      %v2964 = vmul.f32 %v2940, %v2949
      %v2965 = vmul.f32 %v2941, %v2949
      %v2966 = vmul.f32 %v2942, %v2949
      %v2967 = vmul.f32 %v2943, %v2949
      %v2968 = vmul.f32 %v2944, %v2949
      %v2969 = vmul.f32 %v2945, %v2949
      %v2970 = vmul.f32 %v2946, %v2949
      %v2971 = vmul.f32 %v2947, %v2949
      %v2972 = vld [vmem:[#allocation2] sm:$0xff]
      %v2973 = vld [vmem:[#allocation2 + $0x8] sm:$0x7]
      %v2974 = vld [vmem:[#allocation2 + $0x10] sm:$0xff]
      %v2975 = vld [vmem:[#allocation2 + $0x18] sm:$0x7]
      %v2976 = vld [vmem:[#allocation2 + $0x20] sm:$0xff]
      %v2977 = vld [vmem:[#allocation2 + $0x28] sm:$0x7]
      %v2978 = vld [vmem:[#allocation2 + $0x30] sm:$0xff]
      %v2979 = vld [vmem:[#allocation2 + $0x38] sm:$0x7]
      %v2980 = vld [vmem:[#allocation2 + $0x40] sm:$0xff]
      %v2981 = vld [vmem:[#allocation2 + $0x48] sm:$0x7]
      %v2982 = vld [vmem:[#allocation2 + $0x50] sm:$0xff]
      %v2983 = vld [vmem:[#allocation2 + $0x58] sm:$0x7]
      %v2984 = vld [vmem:[#allocation2 + $0x60] sm:$0xff]
      %v2985 = vld [vmem:[#allocation2 + $0x68] sm:$0x7]
      %v2986 = vld [vmem:[#allocation2 + $0x70] sm:$0xff]
      %v2987 = vld [vmem:[#allocation2 + $0x78] sm:$0x7]
      %v2988 = vld [vmem:[#allocation2 + $0x80] sm:$0xff]
      %v2989 = vld [vmem:[#allocation2 + $0x88] sm:$0x7]
      %v2990 = vld [vmem:[#allocation2 + $0x90] sm:$0xff]
      %v2991 = vld [vmem:[#allocation2 + $0x98] sm:$0x7]
      %v2992 = vld [vmem:[#allocation2 + $0xa0] sm:$0xff]
      %v2993 = vld [vmem:[#allocation2 + $0xa8] sm:$0x7]
      %v2994 = vadd.f32 %v2972, %v2950
      %v2995 = vadd.f32 %v2973, %v2951
      %v2996 = vadd.f32 %v2974, %v2952
      %v2997 = vadd.f32 %v2975, %v2953
      %v2998 = vadd.f32 %v2976, %v2954
      %v2999 = vadd.f32 %v2977, %v2955
      %v3000 = vadd.f32 %v2978, %v2956
      %v3001 = vadd.f32 %v2979, %v2957
      %v3002 = vadd.f32 %v2980, %v2958
      %v3003 = vadd.f32 %v2981, %v2959
      %v3004 = vadd.f32 %v2982, %v2960
      %v3005 = vadd.f32 %v2983, %v2961
      %v3006 = vadd.f32 %v2984, %v2962
      %v3007 = vadd.f32 %v2985, %v2963
      %v3008 = vadd.f32 %v2986, %v2964
      %v3009 = vadd.f32 %v2987, %v2965
      %v3010 = vadd.f32 %v2988, %v2966
      %v3011 = vadd.f32 %v2989, %v2967
      %v3012 = vadd.f32 %v2990, %v2968
      %v3013 = vadd.f32 %v2991, %v2969
      %v3014 = vadd.f32 %v2992, %v2970
      %v3015 = vadd.f32 %v2993, %v2971
      %3016 = vst.msk [vmem:[#allocation2] sm:$0xff] %vm210, %v2994
      %3017 = vst.msk [vmem:[#allocation2 + $0x8] sm:$0x7] %vm212, %v2995
      %3018 = vst.msk [vmem:[#allocation2 + $0x10] sm:$0xff] %vm210, %v2996
      %3019 = vst.msk [vmem:[#allocation2 + $0x18] sm:$0x7] %vm212, %v2997
      %3020 = vst.msk [vmem:[#allocation2 + $0x20] sm:$0xff] %vm210, %v2998
      %3021 = vst.msk [vmem:[#allocation2 + $0x28] sm:$0x7] %vm212, %v2999
      %3022 = vst.msk [vmem:[#allocation2 + $0x30] sm:$0xff] %vm210, %v3000
      %3023 = vst.msk [vmem:[#allocation2 + $0x38] sm:$0x7] %vm212, %v3001
      %3024 = vst.msk [vmem:[#allocation2 + $0x40] sm:$0xff] %vm210, %v3002
      %3025 = vst.msk [vmem:[#allocation2 + $0x48] sm:$0x7] %vm212, %v3003
      %3026 = vst.msk [vmem:[#allocation2 + $0x50] sm:$0xff] %vm210, %v3004
      %3027 = vst.msk [vmem:[#allocation2 + $0x58] sm:$0x7] %vm212, %v3005
      %3028 = vst.msk [vmem:[#allocation2 + $0x60] sm:$0xff] %vm210, %v3006
      %3029 = vst.msk [vmem:[#allocation2 + $0x68] sm:$0x7] %vm212, %v3007
      %3030 = vst.msk [vmem:[#allocation2 + $0x70] sm:$0xff] %vm210, %v3008
      %3031 = vst.msk [vmem:[#allocation2 + $0x78] sm:$0x7] %vm212, %v3009
      %3032 = vst.msk [vmem:[#allocation2 + $0x80] sm:$0xff] %vm210, %v3010
      %3033 = vst.msk [vmem:[#allocation2 + $0x88] sm:$0x7] %vm212, %v3011
      %3034 = vst.msk [vmem:[#allocation2 + $0x90] sm:$0xff] %vm210, %v3012
      %3035 = vst.msk [vmem:[#allocation2 + $0x98] sm:$0x7] %vm212, %v3013
      %3036 = vst.msk [vmem:[#allocation2 + $0xa0] sm:$0xff] %vm210, %v3014
      %3037 = vst.msk [vmem:[#allocation2 + $0xa8] sm:$0x7] %vm212, %v3015
      %v3038 = vld [vmem:[%s2813 + $0x2] sm:$0xff]
      %v3039 = vld [vmem:[%s2813 + $0xa] sm:$0x7]
      %v3040 = vld [vmem:[%s2813 + $0x12] sm:$0xff]
      %v3041 = vld [vmem:[%s2813 + $0x1a] sm:$0x7]
      %v3042 = vld [vmem:[%s2813 + $0x22] sm:$0xff]
      %v3043 = vld [vmem:[%s2813 + $0x2a] sm:$0x7]
      %v3044 = vld [vmem:[%s2813 + $0x32] sm:$0xff]
      %v3045 = vld [vmem:[%s2813 + $0x3a] sm:$0x7]
      %v3046 = vld [vmem:[%s2813 + $0x42] sm:$0xff]
      %v3047 = vld [vmem:[%s2813 + $0x4a] sm:$0x7]
      %v3048 = vld [vmem:[%s2813 + $0x52] sm:$0xff]
      %v3049 = vld [vmem:[%s2813 + $0x5a] sm:$0x7]
      %v3050 = vld [vmem:[%s2813 + $0x62] sm:$0xff]
      %v3051 = vld [vmem:[%s2813 + $0x6a] sm:$0x7]
      %v3052 = vld [vmem:[%s2813 + $0x72] sm:$0xff]
      %v3053 = vld [vmem:[%s2813 + $0x7a] sm:$0x7]
      %v3054 = vld [vmem:[%s2813 + $0x82] sm:$0xff]
      %v3055 = vld [vmem:[%s2813 + $0x8a] sm:$0x7]
      %v3056 = vld [vmem:[%s2813 + $0x92] sm:$0xff]
      %v3057 = vld [vmem:[%s2813 + $0x9a] sm:$0x7]
      %v3058 = vld [vmem:[%s2813 + $0xa2] sm:$0xff]
      %v3059 = vld [vmem:[%s2813 + $0xaa] sm:$0x7]
      %v3060 = vld [vmem:[%s153 + $0x1a] sm:$0x1]
      %v3061 = vperm.slane %v3060, 0
      %v3062 = vmul.f32 %v3038, %v3061
      %v3063 = vmul.f32 %v3039, %v3061
      %v3064 = vmul.f32 %v3040, %v3061
      %v3065 = vmul.f32 %v3041, %v3061
      %v3066 = vmul.f32 %v3042, %v3061
      %v3067 = vmul.f32 %v3043, %v3061
      %v3068 = vmul.f32 %v3044, %v3061
      %v3069 = vmul.f32 %v3045, %v3061
      %v3070 = vmul.f32 %v3046, %v3061
      %v3071 = vmul.f32 %v3047, %v3061
      %v3072 = vmul.f32 %v3048, %v3061
      %v3073 = vmul.f32 %v3049, %v3061
      %v3074 = vmul.f32 %v3050, %v3061
      %v3075 = vmul.f32 %v3051, %v3061
      %v3076 = vmul.f32 %v3052, %v3061
      %v3077 = vmul.f32 %v3053, %v3061
      %v3078 = vmul.f32 %v3054, %v3061
      %v3079 = vmul.f32 %v3055, %v3061
      %v3080 = vmul.f32 %v3056, %v3061
      %v3081 = vmul.f32 %v3057, %v3061
      %v3082 = vmul.f32 %v3058, %v3061
      %v3083 = vmul.f32 %v3059, %v3061
      %v3084 = vld [vmem:[#allocation2] sm:$0xff]
      %v3085 = vld [vmem:[#allocation2 + $0x8] sm:$0x7]
      %v3086 = vld [vmem:[#allocation2 + $0x10] sm:$0xff]
      %v3087 = vld [vmem:[#allocation2 + $0x18] sm:$0x7]
      %v3088 = vld [vmem:[#allocation2 + $0x20] sm:$0xff]
      %v3089 = vld [vmem:[#allocation2 + $0x28] sm:$0x7]
      %v3090 = vld [vmem:[#allocation2 + $0x30] sm:$0xff]
      %v3091 = vld [vmem:[#allocation2 + $0x38] sm:$0x7]
      %v3092 = vld [vmem:[#allocation2 + $0x40] sm:$0xff]
      %v3093 = vld [vmem:[#allocation2 + $0x48] sm:$0x7]
      %v3094 = vld [vmem:[#allocation2 + $0x50] sm:$0xff]
      %v3095 = vld [vmem:[#allocation2 + $0x58] sm:$0x7]
      %v3096 = vld [vmem:[#allocation2 + $0x60] sm:$0xff]
      %v3097 = vld [vmem:[#allocation2 + $0x68] sm:$0x7]
      %v3098 = vld [vmem:[#allocation2 + $0x70] sm:$0xff]
      %v3099 = vld [vmem:[#allocation2 + $0x78] sm:$0x7]
      %v3100 = vld [vmem:[#allocation2 + $0x80] sm:$0xff]
      %v3101 = vld [vmem:[#allocation2 + $0x88] sm:$0x7]
      %v3102 = vld [vmem:[#allocation2 + $0x90] sm:$0xff]
      %v3103 = vld [vmem:[#allocation2 + $0x98] sm:$0x7]
      %v3104 = vld [vmem:[#allocation2 + $0xa0] sm:$0xff]
      %v3105 = vld [vmem:[#allocation2 + $0xa8] sm:$0x7]
      %v3106 = vadd.f32 %v3084, %v3062
      %v3107 = vadd.f32 %v3085, %v3063
      %v3108 = vadd.f32 %v3086, %v3064
      %v3109 = vadd.f32 %v3087, %v3065
      %v3110 = vadd.f32 %v3088, %v3066
      %v3111 = vadd.f32 %v3089, %v3067
      %v3112 = vadd.f32 %v3090, %v3068
      %v3113 = vadd.f32 %v3091, %v3069
      %v3114 = vadd.f32 %v3092, %v3070
      %v3115 = vadd.f32 %v3093, %v3071
      %v3116 = vadd.f32 %v3094, %v3072
      %v3117 = vadd.f32 %v3095, %v3073
      %v3118 = vadd.f32 %v3096, %v3074
      %v3119 = vadd.f32 %v3097, %v3075
      %v3120 = vadd.f32 %v3098, %v3076
      %v3121 = vadd.f32 %v3099, %v3077
      %v3122 = vadd.f32 %v3100, %v3078
      %v3123 = vadd.f32 %v3101, %v3079
      %v3124 = vadd.f32 %v3102, %v3080
      %v3125 = vadd.f32 %v3103, %v3081
      %v3126 = vadd.f32 %v3104, %v3082
      %v3127 = vadd.f32 %v3105, %v3083
      %3128 = vst.msk [vmem:[#allocation2] sm:$0xff] %vm210, %v3106
      %3129 = vst.msk [vmem:[#allocation2 + $0x8] sm:$0x7] %vm212, %v3107
      %3130 = vst.msk [vmem:[#allocation2 + $0x10] sm:$0xff] %vm210, %v3108
      %3131 = vst.msk [vmem:[#allocation2 + $0x18] sm:$0x7] %vm212, %v3109
      %3132 = vst.msk [vmem:[#allocation2 + $0x20] sm:$0xff] %vm210, %v3110
      %3133 = vst.msk [vmem:[#allocation2 + $0x28] sm:$0x7] %vm212, %v3111
      %3134 = vst.msk [vmem:[#allocation2 + $0x30] sm:$0xff] %vm210, %v3112
      %3135 = vst.msk [vmem:[#allocation2 + $0x38] sm:$0x7] %vm212, %v3113
      %3136 = vst.msk [vmem:[#allocation2 + $0x40] sm:$0xff] %vm210, %v3114
      %3137 = vst.msk [vmem:[#allocation2 + $0x48] sm:$0x7] %vm212, %v3115
      %3138 = vst.msk [vmem:[#allocation2 + $0x50] sm:$0xff] %vm210, %v3116
      %3139 = vst.msk [vmem:[#allocation2 + $0x58] sm:$0x7] %vm212, %v3117
      %3140 = vst.msk [vmem:[#allocation2 + $0x60] sm:$0xff] %vm210, %v3118
      %3141 = vst.msk [vmem:[#allocation2 + $0x68] sm:$0x7] %vm212, %v3119
      %3142 = vst.msk [vmem:[#allocation2 + $0x70] sm:$0xff] %vm210, %v3120
      %3143 = vst.msk [vmem:[#allocation2 + $0x78] sm:$0x7] %vm212, %v3121
      %3144 = vst.msk [vmem:[#allocation2 + $0x80] sm:$0xff] %vm210, %v3122
      %3145 = vst.msk [vmem:[#allocation2 + $0x88] sm:$0x7] %vm212, %v3123
      %3146 = vst.msk [vmem:[#allocation2 + $0x90] sm:$0xff] %vm210, %v3124
      %3147 = vst.msk [vmem:[#allocation2 + $0x98] sm:$0x7] %vm212, %v3125
      %3148 = vst.msk [vmem:[#allocation2 + $0xa0] sm:$0xff] %vm210, %v3126
      %3149 = vst.msk [vmem:[#allocation2 + $0xa8] sm:$0x7] %vm212, %v3127
      %v3150 = vld [vmem:[%s2813 + $0x3] sm:$0xff]
      %v3151 = vld [vmem:[%s2813 + $0xb] sm:$0x7]
      %v3152 = vld [vmem:[%s2813 + $0x13] sm:$0xff]
      %v3153 = vld [vmem:[%s2813 + $0x1b] sm:$0x7]
      %v3154 = vld [vmem:[%s2813 + $0x23] sm:$0xff]
      %v3155 = vld [vmem:[%s2813 + $0x2b] sm:$0x7]
      %v3156 = vld [vmem:[%s2813 + $0x33] sm:$0xff]
      %v3157 = vld [vmem:[%s2813 + $0x3b] sm:$0x7]
      %v3158 = vld [vmem:[%s2813 + $0x43] sm:$0xff]
      %v3159 = vld [vmem:[%s2813 + $0x4b] sm:$0x7]
      %v3160 = vld [vmem:[%s2813 + $0x53] sm:$0xff]
      %v3161 = vld [vmem:[%s2813 + $0x5b] sm:$0x7]
      %v3162 = vld [vmem:[%s2813 + $0x63] sm:$0xff]
      %v3163 = vld [vmem:[%s2813 + $0x6b] sm:$0x7]
      %v3164 = vld [vmem:[%s2813 + $0x73] sm:$0xff]
      %v3165 = vld [vmem:[%s2813 + $0x7b] sm:$0x7]
      %v3166 = vld [vmem:[%s2813 + $0x83] sm:$0xff]
      %v3167 = vld [vmem:[%s2813 + $0x8b] sm:$0x7]
      %v3168 = vld [vmem:[%s2813 + $0x93] sm:$0xff]
      %v3169 = vld [vmem:[%s2813 + $0x9b] sm:$0x7]
      %v3170 = vld [vmem:[%s2813 + $0xa3] sm:$0xff]
      %v3171 = vld [vmem:[%s2813 + $0xab] sm:$0x7]
      %v3172 = vld [vmem:[%s153 + $0x1b] sm:$0x1]
      %v3173 = vperm.slane %v3172, 0
      %v3174 = vmul.f32 %v3150, %v3173
      %v3175 = vmul.f32 %v3151, %v3173
      %v3176 = vmul.f32 %v3152, %v3173
      %v3177 = vmul.f32 %v3153, %v3173
      %v3178 = vmul.f32 %v3154, %v3173
      %v3179 = vmul.f32 %v3155, %v3173
      %v3180 = vmul.f32 %v3156, %v3173
      %v3181 = vmul.f32 %v3157, %v3173
      %v3182 = vmul.f32 %v3158, %v3173
      %v3183 = vmul.f32 %v3159, %v3173
      %v3184 = vmul.f32 %v3160, %v3173
      %v3185 = vmul.f32 %v3161, %v3173
      %v3186 = vmul.f32 %v3162, %v3173
      %v3187 = vmul.f32 %v3163, %v3173
      %v3188 = vmul.f32 %v3164, %v3173
      %v3189 = vmul.f32 %v3165, %v3173
      %v3190 = vmul.f32 %v3166, %v3173
      %v3191 = vmul.f32 %v3167, %v3173
      %v3192 = vmul.f32 %v3168, %v3173
      %v3193 = vmul.f32 %v3169, %v3173
      %v3194 = vmul.f32 %v3170, %v3173
      %v3195 = vmul.f32 %v3171, %v3173
      %v3196 = vld [vmem:[#allocation2] sm:$0xff]
      %v3197 = vld [vmem:[#allocation2 + $0x8] sm:$0x7]
      %v3198 = vld [vmem:[#allocation2 + $0x10] sm:$0xff]
      %v3199 = vld [vmem:[#allocation2 + $0x18] sm:$0x7]
      %v3200 = vld [vmem:[#allocation2 + $0x20] sm:$0xff]
      %v3201 = vld [vmem:[#allocation2 + $0x28] sm:$0x7]
      %v3202 = vld [vmem:[#allocation2 + $0x30] sm:$0xff]
      %v3203 = vld [vmem:[#allocation2 + $0x38] sm:$0x7]
      %v3204 = vld [vmem:[#allocation2 + $0x40] sm:$0xff]
      %v3205 = vld [vmem:[#allocation2 + $0x48] sm:$0x7]
      %v3206 = vld [vmem:[#allocation2 + $0x50] sm:$0xff]
      %v3207 = vld [vmem:[#allocation2 + $0x58] sm:$0x7]
      %v3208 = vld [vmem:[#allocation2 + $0x60] sm:$0xff]
      %v3209 = vld [vmem:[#allocation2 + $0x68] sm:$0x7]
      %v3210 = vld [vmem:[#allocation2 + $0x70] sm:$0xff]
      %v3211 = vld [vmem:[#allocation2 + $0x78] sm:$0x7]
      %v3212 = vld [vmem:[#allocation2 + $0x80] sm:$0xff]
      %v3213 = vld [vmem:[#allocation2 + $0x88] sm:$0x7]
      %v3214 = vld [vmem:[#allocation2 + $0x90] sm:$0xff]
      %v3215 = vld [vmem:[#allocation2 + $0x98] sm:$0x7]
      %v3216 = vld [vmem:[#allocation2 + $0xa0] sm:$0xff]
      %v3217 = vld [vmem:[#allocation2 + $0xa8] sm:$0x7]
      %v3218 = vadd.f32 %v3196, %v3174
      %v3219 = vadd.f32 %v3197, %v3175
      %v3220 = vadd.f32 %v3198, %v3176
      %v3221 = vadd.f32 %v3199, %v3177
      %v3222 = vadd.f32 %v3200, %v3178
      %v3223 = vadd.f32 %v3201, %v3179
      %v3224 = vadd.f32 %v3202, %v3180
      %v3225 = vadd.f32 %v3203, %v3181
      %v3226 = vadd.f32 %v3204, %v3182
      %v3227 = vadd.f32 %v3205, %v3183
      %v3228 = vadd.f32 %v3206, %v3184
      %v3229 = vadd.f32 %v3207, %v3185
      %v3230 = vadd.f32 %v3208, %v3186
      %v3231 = vadd.f32 %v3209, %v3187
      %v3232 = vadd.f32 %v3210, %v3188
      %v3233 = vadd.f32 %v3211, %v3189
      %v3234 = vadd.f32 %v3212, %v3190
      %v3235 = vadd.f32 %v3213, %v3191
      %v3236 = vadd.f32 %v3214, %v3192
      %v3237 = vadd.f32 %v3215, %v3193
      %v3238 = vadd.f32 %v3216, %v3194
      %v3239 = vadd.f32 %v3217, %v3195
      %3240 = vst.msk [vmem:[#allocation2] sm:$0xff] %vm210, %v3218
      %3241 = vst.msk [vmem:[#allocation2 + $0x8] sm:$0x7] %vm212, %v3219
      %3242 = vst.msk [vmem:[#allocation2 + $0x10] sm:$0xff] %vm210, %v3220
      %3243 = vst.msk [vmem:[#allocation2 + $0x18] sm:$0x7] %vm212, %v3221
      %3244 = vst.msk [vmem:[#allocation2 + $0x20] sm:$0xff] %vm210, %v3222
      %3245 = vst.msk [vmem:[#allocation2 + $0x28] sm:$0x7] %vm212, %v3223
      %3246 = vst.msk [vmem:[#allocation2 + $0x30] sm:$0xff] %vm210, %v3224
      %3247 = vst.msk [vmem:[#allocation2 + $0x38] sm:$0x7] %vm212, %v3225
      %3248 = vst.msk [vmem:[#allocation2 + $0x40] sm:$0xff] %vm210, %v3226
      %3249 = vst.msk [vmem:[#allocation2 + $0x48] sm:$0x7] %vm212, %v3227
      %3250 = vst.msk [vmem:[#allocation2 + $0x50] sm:$0xff] %vm210, %v3228
      %3251 = vst.msk [vmem:[#allocation2 + $0x58] sm:$0x7] %vm212, %v3229
      %3252 = vst.msk [vmem:[#allocation2 + $0x60] sm:$0xff] %vm210, %v3230
      %3253 = vst.msk [vmem:[#allocation2 + $0x68] sm:$0x7] %vm212, %v3231
      %3254 = vst.msk [vmem:[#allocation2 + $0x70] sm:$0xff] %vm210, %v3232
      %3255 = vst.msk [vmem:[#allocation2 + $0x78] sm:$0x7] %vm212, %v3233
      %3256 = vst.msk [vmem:[#allocation2 + $0x80] sm:$0xff] %vm210, %v3234
      %3257 = vst.msk [vmem:[#allocation2 + $0x88] sm:$0x7] %vm212, %v3235
      %3258 = vst.msk [vmem:[#allocation2 + $0x90] sm:$0xff] %vm210, %v3236
      %3259 = vst.msk [vmem:[#allocation2 + $0x98] sm:$0x7] %vm212, %v3237
      %3260 = vst.msk [vmem:[#allocation2 + $0xa0] sm:$0xff] %vm210, %v3238
      %3261 = vst.msk [vmem:[#allocation2 + $0xa8] sm:$0x7] %vm212, %v3239
      %v3262 = vld [vmem:[%s2813 + $0x4] sm:$0xff]
      %v3263 = vld [vmem:[%s2813 + $0xc] sm:$0x7]
      %v3264 = vld [vmem:[%s2813 + $0x14] sm:$0xff]
      %v3265 = vld [vmem:[%s2813 + $0x1c] sm:$0x7]
      %v3266 = vld [vmem:[%s2813 + $0x24] sm:$0xff]
      %v3267 = vld [vmem:[%s2813 + $0x2c] sm:$0x7]
      %v3268 = vld [vmem:[%s2813 + $0x34] sm:$0xff]
      %v3269 = vld [vmem:[%s2813 + $0x3c] sm:$0x7]
      %v3270 = vld [vmem:[%s2813 + $0x44] sm:$0xff]
      %v3271 = vld [vmem:[%s2813 + $0x4c] sm:$0x7]
      %v3272 = vld [vmem:[%s2813 + $0x54] sm:$0xff]
      %v3273 = vld [vmem:[%s2813 + $0x5c] sm:$0x7]
      %v3274 = vld [vmem:[%s2813 + $0x64] sm:$0xff]
      %v3275 = vld [vmem:[%s2813 + $0x6c] sm:$0x7]
      %v3276 = vld [vmem:[%s2813 + $0x74] sm:$0xff]
      %v3277 = vld [vmem:[%s2813 + $0x7c] sm:$0x7]
      %v3278 = vld [vmem:[%s2813 + $0x84] sm:$0xff]
      %v3279 = vld [vmem:[%s2813 + $0x8c] sm:$0x7]
      %v3280 = vld [vmem:[%s2813 + $0x94] sm:$0xff]
      %v3281 = vld [vmem:[%s2813 + $0x9c] sm:$0x7]
      %v3282 = vld [vmem:[%s2813 + $0xa4] sm:$0xff]
      %v3283 = vld [vmem:[%s2813 + $0xac] sm:$0x7]
      %v3284 = vld [vmem:[%s153 + $0x1c] sm:$0x1]
      %v3285 = vperm.slane %v3284, 0
      %v3286 = vmul.f32 %v3262, %v3285
      %v3287 = vmul.f32 %v3263, %v3285
      %v3288 = vmul.f32 %v3264, %v3285
      %v3289 = vmul.f32 %v3265, %v3285
      %v3290 = vmul.f32 %v3266, %v3285
      %v3291 = vmul.f32 %v3267, %v3285
      %v3292 = vmul.f32 %v3268, %v3285
      %v3293 = vmul.f32 %v3269, %v3285
      %v3294 = vmul.f32 %v3270, %v3285
      %v3295 = vmul.f32 %v3271, %v3285
      %v3296 = vmul.f32 %v3272, %v3285
      %v3297 = vmul.f32 %v3273, %v3285
      %v3298 = vmul.f32 %v3274, %v3285
      %v3299 = vmul.f32 %v3275, %v3285
      %v3300 = vmul.f32 %v3276, %v3285
      %v3301 = vmul.f32 %v3277, %v3285
      %v3302 = vmul.f32 %v3278, %v3285
      %v3303 = vmul.f32 %v3279, %v3285
      %v3304 = vmul.f32 %v3280, %v3285
      %v3305 = vmul.f32 %v3281, %v3285
      %v3306 = vmul.f32 %v3282, %v3285
      %v3307 = vmul.f32 %v3283, %v3285
      %v3308 = vld [vmem:[#allocation2] sm:$0xff]
      %v3309 = vld [vmem:[#allocation2 + $0x8] sm:$0x7]
      %v3310 = vld [vmem:[#allocation2 + $0x10] sm:$0xff]
      %v3311 = vld [vmem:[#allocation2 + $0x18] sm:$0x7]
      %v3312 = vld [vmem:[#allocation2 + $0x20] sm:$0xff]
      %v3313 = vld [vmem:[#allocation2 + $0x28] sm:$0x7]
      %v3314 = vld [vmem:[#allocation2 + $0x30] sm:$0xff]
      %v3315 = vld [vmem:[#allocation2 + $0x38] sm:$0x7]
      %v3316 = vld [vmem:[#allocation2 + $0x40] sm:$0xff]
      %v3317 = vld [vmem:[#allocation2 + $0x48] sm:$0x7]
      %v3318 = vld [vmem:[#allocation2 + $0x50] sm:$0xff]
      %v3319 = vld [vmem:[#allocation2 + $0x58] sm:$0x7]
      %v3320 = vld [vmem:[#allocation2 + $0x60] sm:$0xff]
      %v3321 = vld [vmem:[#allocation2 + $0x68] sm:$0x7]
      %v3322 = vld [vmem:[#allocation2 + $0x70] sm:$0xff]
      %v3323 = vld [vmem:[#allocation2 + $0x78] sm:$0x7]
      %v3324 = vld [vmem:[#allocation2 + $0x80] sm:$0xff]
      %v3325 = vld [vmem:[#allocation2 + $0x88] sm:$0x7]
      %v3326 = vld [vmem:[#allocation2 + $0x90] sm:$0xff]
      %v3327 = vld [vmem:[#allocation2 + $0x98] sm:$0x7]
      %v3328 = vld [vmem:[#allocation2 + $0xa0] sm:$0xff]
      %v3329 = vld [vmem:[#allocation2 + $0xa8] sm:$0x7]
      %v3330 = vadd.f32 %v3308, %v3286
      %v3331 = vadd.f32 %v3309, %v3287
      %v3332 = vadd.f32 %v3310, %v3288
      %v3333 = vadd.f32 %v3311, %v3289
      %v3334 = vadd.f32 %v3312, %v3290
      %v3335 = vadd.f32 %v3313, %v3291
      %v3336 = vadd.f32 %v3314, %v3292
      %v3337 = vadd.f32 %v3315, %v3293
      %v3338 = vadd.f32 %v3316, %v3294
      %v3339 = vadd.f32 %v3317, %v3295
      %v3340 = vadd.f32 %v3318, %v3296
      %v3341 = vadd.f32 %v3319, %v3297
      %v3342 = vadd.f32 %v3320, %v3298
      %v3343 = vadd.f32 %v3321, %v3299
      %v3344 = vadd.f32 %v3322, %v3300
      %v3345 = vadd.f32 %v3323, %v3301
      %v3346 = vadd.f32 %v3324, %v3302
      %v3347 = vadd.f32 %v3325, %v3303
      %v3348 = vadd.f32 %v3326, %v3304
      %v3349 = vadd.f32 %v3327, %v3305
      %v3350 = vadd.f32 %v3328, %v3306
      %v3351 = vadd.f32 %v3329, %v3307
      %3352 = vst.msk [vmem:[#allocation2] sm:$0xff] %vm210, %v3330
      %3353 = vst.msk [vmem:[#allocation2 + $0x8] sm:$0x7] %vm212, %v3331
      %3354 = vst.msk [vmem:[#allocation2 + $0x10] sm:$0xff] %vm210, %v3332
      %3355 = vst.msk [vmem:[#allocation2 + $0x18] sm:$0x7] %vm212, %v3333
      %3356 = vst.msk [vmem:[#allocation2 + $0x20] sm:$0xff] %vm210, %v3334
      %3357 = vst.msk [vmem:[#allocation2 + $0x28] sm:$0x7] %vm212, %v3335
      %3358 = vst.msk [vmem:[#allocation2 + $0x30] sm:$0xff] %vm210, %v3336
      %3359 = vst.msk [vmem:[#allocation2 + $0x38] sm:$0x7] %vm212, %v3337
      %3360 = vst.msk [vmem:[#allocation2 + $0x40] sm:$0xff] %vm210, %v3338
      %3361 = vst.msk [vmem:[#allocation2 + $0x48] sm:$0x7] %vm212, %v3339
      %3362 = vst.msk [vmem:[#allocation2 + $0x50] sm:$0xff] %vm210, %v3340
      %3363 = vst.msk [vmem:[#allocation2 + $0x58] sm:$0x7] %vm212, %v3341
      %3364 = vst.msk [vmem:[#allocation2 + $0x60] sm:$0xff] %vm210, %v3342
      %3365 = vst.msk [vmem:[#allocation2 + $0x68] sm:$0x7] %vm212, %v3343
      %3366 = vst.msk [vmem:[#allocation2 + $0x70] sm:$0xff] %vm210, %v3344
      %3367 = vst.msk [vmem:[#allocation2 + $0x78] sm:$0x7] %vm212, %v3345
      %3368 = vst.msk [vmem:[#allocation2 + $0x80] sm:$0xff] %vm210, %v3346
      %3369 = vst.msk [vmem:[#allocation2 + $0x88] sm:$0x7] %vm212, %v3347
      %3370 = vst.msk [vmem:[#allocation2 + $0x90] sm:$0xff] %vm210, %v3348
      %3371 = vst.msk [vmem:[#allocation2 + $0x98] sm:$0x7] %vm212, %v3349
      %3372 = vst.msk [vmem:[#allocation2 + $0xa0] sm:$0xff] %vm210, %v3350
      %3373 = vst.msk [vmem:[#allocation2 + $0xa8] sm:$0x7] %vm212, %v3351
      %v3374 = vld [vmem:[%s2813 + $0x5] sm:$0xff]
      %v3375 = vld [vmem:[%s2813 + $0xd] sm:$0x7]
      %v3376 = vld [vmem:[%s2813 + $0x15] sm:$0xff]
      %v3377 = vld [vmem:[%s2813 + $0x1d] sm:$0x7]
      %v3378 = vld [vmem:[%s2813 + $0x25] sm:$0xff]
      %v3379 = vld [vmem:[%s2813 + $0x2d] sm:$0x7]
      %v3380 = vld [vmem:[%s2813 + $0x35] sm:$0xff]
      %v3381 = vld [vmem:[%s2813 + $0x3d] sm:$0x7]
      %v3382 = vld [vmem:[%s2813 + $0x45] sm:$0xff]
      %v3383 = vld [vmem:[%s2813 + $0x4d] sm:$0x7]
      %v3384 = vld [vmem:[%s2813 + $0x55] sm:$0xff]
      %v3385 = vld [vmem:[%s2813 + $0x5d] sm:$0x7]
      %v3386 = vld [vmem:[%s2813 + $0x65] sm:$0xff]
      %v3387 = vld [vmem:[%s2813 + $0x6d] sm:$0x7]
      %v3388 = vld [vmem:[%s2813 + $0x75] sm:$0xff]
      %v3389 = vld [vmem:[%s2813 + $0x7d] sm:$0x7]
      %v3390 = vld [vmem:[%s2813 + $0x85] sm:$0xff]
      %v3391 = vld [vmem:[%s2813 + $0x8d] sm:$0x7]
      %v3392 = vld [vmem:[%s2813 + $0x95] sm:$0xff]
      %v3393 = vld [vmem:[%s2813 + $0x9d] sm:$0x7]
      %v3394 = vld [vmem:[%s2813 + $0xa5] sm:$0xff]
      %v3395 = vld [vmem:[%s2813 + $0xad] sm:$0x7]
      %v3396 = vld [vmem:[%s153 + $0x1d] sm:$0x1]
      %v3397 = vperm.slane %v3396, 0
      %v3398 = vmul.f32 %v3374, %v3397
      %v3399 = vmul.f32 %v3375, %v3397
      %v3400 = vmul.f32 %v3376, %v3397
      %v3401 = vmul.f32 %v3377, %v3397
      %v3402 = vmul.f32 %v3378, %v3397
      %v3403 = vmul.f32 %v3379, %v3397
      %v3404 = vmul.f32 %v3380, %v3397
      %v3405 = vmul.f32 %v3381, %v3397
      %v3406 = vmul.f32 %v3382, %v3397
      %v3407 = vmul.f32 %v3383, %v3397
      %v3408 = vmul.f32 %v3384, %v3397
      %v3409 = vmul.f32 %v3385, %v3397
      %v3410 = vmul.f32 %v3386, %v3397
      %v3411 = vmul.f32 %v3387, %v3397
      %v3412 = vmul.f32 %v3388, %v3397
      %v3413 = vmul.f32 %v3389, %v3397
      %v3414 = vmul.f32 %v3390, %v3397
      %v3415 = vmul.f32 %v3391, %v3397
      %v3416 = vmul.f32 %v3392, %v3397
      %v3417 = vmul.f32 %v3393, %v3397
      %v3418 = vmul.f32 %v3394, %v3397
      %v3419 = vmul.f32 %v3395, %v3397
      %v3420 = vld [vmem:[#allocation2] sm:$0xff]
      %v3421 = vld [vmem:[#allocation2 + $0x8] sm:$0x7]
      %v3422 = vld [vmem:[#allocation2 + $0x10] sm:$0xff]
      %v3423 = vld [vmem:[#allocation2 + $0x18] sm:$0x7]
      %v3424 = vld [vmem:[#allocation2 + $0x20] sm:$0xff]
      %v3425 = vld [vmem:[#allocation2 + $0x28] sm:$0x7]
      %v3426 = vld [vmem:[#allocation2 + $0x30] sm:$0xff]
      %v3427 = vld [vmem:[#allocation2 + $0x38] sm:$0x7]
      %v3428 = vld [vmem:[#allocation2 + $0x40] sm:$0xff]
      %v3429 = vld [vmem:[#allocation2 + $0x48] sm:$0x7]
      %v3430 = vld [vmem:[#allocation2 + $0x50] sm:$0xff]
      %v3431 = vld [vmem:[#allocation2 + $0x58] sm:$0x7]
      %v3432 = vld [vmem:[#allocation2 + $0x60] sm:$0xff]
      %v3433 = vld [vmem:[#allocation2 + $0x68] sm:$0x7]
      %v3434 = vld [vmem:[#allocation2 + $0x70] sm:$0xff]
      %v3435 = vld [vmem:[#allocation2 + $0x78] sm:$0x7]
      %v3436 = vld [vmem:[#allocation2 + $0x80] sm:$0xff]
      %v3437 = vld [vmem:[#allocation2 + $0x88] sm:$0x7]
      %v3438 = vld [vmem:[#allocation2 + $0x90] sm:$0xff]
      %v3439 = vld [vmem:[#allocation2 + $0x98] sm:$0x7]
      %v3440 = vld [vmem:[#allocation2 + $0xa0] sm:$0xff]
      %v3441 = vld [vmem:[#allocation2 + $0xa8] sm:$0x7]
      %v3442 = vadd.f32 %v3420, %v3398
      %v3443 = vadd.f32 %v3421, %v3399
      %v3444 = vadd.f32 %v3422, %v3400
      %v3445 = vadd.f32 %v3423, %v3401
      %v3446 = vadd.f32 %v3424, %v3402
      %v3447 = vadd.f32 %v3425, %v3403
      %v3448 = vadd.f32 %v3426, %v3404
      %v3449 = vadd.f32 %v3427, %v3405
      %v3450 = vadd.f32 %v3428, %v3406
      %v3451 = vadd.f32 %v3429, %v3407
      %v3452 = vadd.f32 %v3430, %v3408
      %v3453 = vadd.f32 %v3431, %v3409
      %v3454 = vadd.f32 %v3432, %v3410
      %v3455 = vadd.f32 %v3433, %v3411
      %v3456 = vadd.f32 %v3434, %v3412
      %v3457 = vadd.f32 %v3435, %v3413
      %v3458 = vadd.f32 %v3436, %v3414
      %v3459 = vadd.f32 %v3437, %v3415
      %v3460 = vadd.f32 %v3438, %v3416
      %v3461 = vadd.f32 %v3439, %v3417
      %v3462 = vadd.f32 %v3440, %v3418
      %v3463 = vadd.f32 %v3441, %v3419
      %3464 = vst.msk [vmem:[#allocation2] sm:$0xff] %vm210, %v3442
      %3465 = vst.msk [vmem:[#allocation2 + $0x8] sm:$0x7] %vm212, %v3443
      %3466 = vst.msk [vmem:[#allocation2 + $0x10] sm:$0xff] %vm210, %v3444
      %3467 = vst.msk [vmem:[#allocation2 + $0x18] sm:$0x7] %vm212, %v3445
      %3468 = vst.msk [vmem:[#allocation2 + $0x20] sm:$0xff] %vm210, %v3446
      %3469 = vst.msk [vmem:[#allocation2 + $0x28] sm:$0x7] %vm212, %v3447
      %3470 = vst.msk [vmem:[#allocation2 + $0x30] sm:$0xff] %vm210, %v3448
      %3471 = vst.msk [vmem:[#allocation2 + $0x38] sm:$0x7] %vm212, %v3449
      %3472 = vst.msk [vmem:[#allocation2 + $0x40] sm:$0xff] %vm210, %v3450
      %3473 = vst.msk [vmem:[#allocation2 + $0x48] sm:$0x7] %vm212, %v3451
      %3474 = vst.msk [vmem:[#allocation2 + $0x50] sm:$0xff] %vm210, %v3452
      %3475 = vst.msk [vmem:[#allocation2 + $0x58] sm:$0x7] %vm212, %v3453
      %3476 = vst.msk [vmem:[#allocation2 + $0x60] sm:$0xff] %vm210, %v3454
      %3477 = vst.msk [vmem:[#allocation2 + $0x68] sm:$0x7] %vm212, %v3455
      %3478 = vst.msk [vmem:[#allocation2 + $0x70] sm:$0xff] %vm210, %v3456
      %3479 = vst.msk [vmem:[#allocation2 + $0x78] sm:$0x7] %vm212, %v3457
      %3480 = vst.msk [vmem:[#allocation2 + $0x80] sm:$0xff] %vm210, %v3458
      %3481 = vst.msk [vmem:[#allocation2 + $0x88] sm:$0x7] %vm212, %v3459
      %3482 = vst.msk [vmem:[#allocation2 + $0x90] sm:$0xff] %vm210, %v3460
      %3483 = vst.msk [vmem:[#allocation2 + $0x98] sm:$0x7] %vm212, %v3461
      %3484 = vst.msk [vmem:[#allocation2 + $0xa0] sm:$0xff] %vm210, %v3462
      %3485 = vst.msk [vmem:[#allocation2 + $0xa8] sm:$0x7] %vm212, %v3463
      %s3486 = scalar_lea.vmem %s158, 80
      %v3487 = vld [vmem:[%s3486] sm:$0xff]
      %v3488 = vld [vmem:[%s3486 + $0x8] sm:$0x7]
      %v3489 = vld [vmem:[%s3486 + $0x10] sm:$0xff]
      %v3490 = vld [vmem:[%s3486 + $0x18] sm:$0x7]
      %v3491 = vld [vmem:[%s3486 + $0x20] sm:$0xff]
      %v3492 = vld [vmem:[%s3486 + $0x28] sm:$0x7]
      %v3493 = vld [vmem:[%s3486 + $0x30] sm:$0xff]
      %v3494 = vld [vmem:[%s3486 + $0x38] sm:$0x7]
      %v3495 = vld [vmem:[%s3486 + $0x40] sm:$0xff]
      %v3496 = vld [vmem:[%s3486 + $0x48] sm:$0x7]
      %v3497 = vld [vmem:[%s3486 + $0x50] sm:$0xff]
      %v3498 = vld [vmem:[%s3486 + $0x58] sm:$0x7]
      %v3499 = vld [vmem:[%s3486 + $0x60] sm:$0xff]
      %v3500 = vld [vmem:[%s3486 + $0x68] sm:$0x7]
      %v3501 = vld [vmem:[%s3486 + $0x70] sm:$0xff]
      %v3502 = vld [vmem:[%s3486 + $0x78] sm:$0x7]
      %v3503 = vld [vmem:[%s3486 + $0x80] sm:$0xff]
      %v3504 = vld [vmem:[%s3486 + $0x88] sm:$0x7]
      %v3505 = vld [vmem:[%s3486 + $0x90] sm:$0xff]
      %v3506 = vld [vmem:[%s3486 + $0x98] sm:$0x7]
      %v3507 = vld [vmem:[%s3486 + $0xa0] sm:$0xff]
      %v3508 = vld [vmem:[%s3486 + $0xa8] sm:$0x7]
      %v3509 = vld [vmem:[%s153 + $0x1e] sm:$0x1]
      %v3510 = vperm.slane %v3509, 0
      %v3511 = vmul.f32 %v3487, %v3510
      %v3512 = vmul.f32 %v3488, %v3510
      %v3513 = vmul.f32 %v3489, %v3510
      %v3514 = vmul.f32 %v3490, %v3510
      %v3515 = vmul.f32 %v3491, %v3510
      %v3516 = vmul.f32 %v3492, %v3510
      %v3517 = vmul.f32 %v3493, %v3510
      %v3518 = vmul.f32 %v3494, %v3510
      %v3519 = vmul.f32 %v3495, %v3510
      %v3520 = vmul.f32 %v3496, %v3510
      %v3521 = vmul.f32 %v3497, %v3510
      %v3522 = vmul.f32 %v3498, %v3510
      %v3523 = vmul.f32 %v3499, %v3510
      %v3524 = vmul.f32 %v3500, %v3510
      %v3525 = vmul.f32 %v3501, %v3510
      %v3526 = vmul.f32 %v3502, %v3510
      %v3527 = vmul.f32 %v3503, %v3510
      %v3528 = vmul.f32 %v3504, %v3510
      %v3529 = vmul.f32 %v3505, %v3510
      %v3530 = vmul.f32 %v3506, %v3510
      %v3531 = vmul.f32 %v3507, %v3510
      %v3532 = vmul.f32 %v3508, %v3510
      %v3533 = vld [vmem:[#allocation2] sm:$0xff]
      %v3534 = vld [vmem:[#allocation2 + $0x8] sm:$0x7]
      %v3535 = vld [vmem:[#allocation2 + $0x10] sm:$0xff]
      %v3536 = vld [vmem:[#allocation2 + $0x18] sm:$0x7]
      %v3537 = vld [vmem:[#allocation2 + $0x20] sm:$0xff]
      %v3538 = vld [vmem:[#allocation2 + $0x28] sm:$0x7]
      %v3539 = vld [vmem:[#allocation2 + $0x30] sm:$0xff]
      %v3540 = vld [vmem:[#allocation2 + $0x38] sm:$0x7]
      %v3541 = vld [vmem:[#allocation2 + $0x40] sm:$0xff]
      %v3542 = vld [vmem:[#allocation2 + $0x48] sm:$0x7]
      %v3543 = vld [vmem:[#allocation2 + $0x50] sm:$0xff]
      %v3544 = vld [vmem:[#allocation2 + $0x58] sm:$0x7]
      %v3545 = vld [vmem:[#allocation2 + $0x60] sm:$0xff]
      %v3546 = vld [vmem:[#allocation2 + $0x68] sm:$0x7]
      %v3547 = vld [vmem:[#allocation2 + $0x70] sm:$0xff]
      %v3548 = vld [vmem:[#allocation2 + $0x78] sm:$0x7]
      %v3549 = vld [vmem:[#allocation2 + $0x80] sm:$0xff]
      %v3550 = vld [vmem:[#allocation2 + $0x88] sm:$0x7]
      %v3551 = vld [vmem:[#allocation2 + $0x90] sm:$0xff]
      %v3552 = vld [vmem:[#allocation2 + $0x98] sm:$0x7]
      %v3553 = vld [vmem:[#allocation2 + $0xa0] sm:$0xff]
      %v3554 = vld [vmem:[#allocation2 + $0xa8] sm:$0x7]
      %v3555 = vadd.f32 %v3533, %v3511
      %v3556 = vadd.f32 %v3534, %v3512
      %v3557 = vadd.f32 %v3535, %v3513
      %v3558 = vadd.f32 %v3536, %v3514
      %v3559 = vadd.f32 %v3537, %v3515
      %v3560 = vadd.f32 %v3538, %v3516
      %v3561 = vadd.f32 %v3539, %v3517
      %v3562 = vadd.f32 %v3540, %v3518
      %v3563 = vadd.f32 %v3541, %v3519
      %v3564 = vadd.f32 %v3542, %v3520
      %v3565 = vadd.f32 %v3543, %v3521
      %v3566 = vadd.f32 %v3544, %v3522
      %v3567 = vadd.f32 %v3545, %v3523
      %v3568 = vadd.f32 %v3546, %v3524
      %v3569 = vadd.f32 %v3547, %v3525
      %v3570 = vadd.f32 %v3548, %v3526
      %v3571 = vadd.f32 %v3549, %v3527
      %v3572 = vadd.f32 %v3550, %v3528
      %v3573 = vadd.f32 %v3551, %v3529
      %v3574 = vadd.f32 %v3552, %v3530
      %v3575 = vadd.f32 %v3553, %v3531
      %v3576 = vadd.f32 %v3554, %v3532
      %3577 = vst.msk [vmem:[#allocation2] sm:$0xff] %vm210, %v3555
      %3578 = vst.msk [vmem:[#allocation2 + $0x8] sm:$0x7] %vm212, %v3556
      %3579 = vst.msk [vmem:[#allocation2 + $0x10] sm:$0xff] %vm210, %v3557
      %3580 = vst.msk [vmem:[#allocation2 + $0x18] sm:$0x7] %vm212, %v3558
      %3581 = vst.msk [vmem:[#allocation2 + $0x20] sm:$0xff] %vm210, %v3559
      %3582 = vst.msk [vmem:[#allocation2 + $0x28] sm:$0x7] %vm212, %v3560
      %3583 = vst.msk [vmem:[#allocation2 + $0x30] sm:$0xff] %vm210, %v3561
      %3584 = vst.msk [vmem:[#allocation2 + $0x38] sm:$0x7] %vm212, %v3562
      %3585 = vst.msk [vmem:[#allocation2 + $0x40] sm:$0xff] %vm210, %v3563
      %3586 = vst.msk [vmem:[#allocation2 + $0x48] sm:$0x7] %vm212, %v3564
      %3587 = vst.msk [vmem:[#allocation2 + $0x50] sm:$0xff] %vm210, %v3565
      %3588 = vst.msk [vmem:[#allocation2 + $0x58] sm:$0x7] %vm212, %v3566
      %3589 = vst.msk [vmem:[#allocation2 + $0x60] sm:$0xff] %vm210, %v3567
      %3590 = vst.msk [vmem:[#allocation2 + $0x68] sm:$0x7] %vm212, %v3568
      %3591 = vst.msk [vmem:[#allocation2 + $0x70] sm:$0xff] %vm210, %v3569
      %3592 = vst.msk [vmem:[#allocation2 + $0x78] sm:$0x7] %vm212, %v3570
      %3593 = vst.msk [vmem:[#allocation2 + $0x80] sm:$0xff] %vm210, %v3571
      %3594 = vst.msk [vmem:[#allocation2 + $0x88] sm:$0x7] %vm212, %v3572
      %3595 = vst.msk [vmem:[#allocation2 + $0x90] sm:$0xff] %vm210, %v3573
      %3596 = vst.msk [vmem:[#allocation2 + $0x98] sm:$0x7] %vm212, %v3574
      %3597 = vst.msk [vmem:[#allocation2 + $0xa0] sm:$0xff] %vm210, %v3575
      %3598 = vst.msk [vmem:[#allocation2 + $0xa8] sm:$0x7] %vm212, %v3576
      %v3599 = vld [vmem:[%s3486 + $0x1] sm:$0xff]
      %v3600 = vld [vmem:[%s3486 + $0x9] sm:$0x7]
      %v3601 = vld [vmem:[%s3486 + $0x11] sm:$0xff]
      %v3602 = vld [vmem:[%s3486 + $0x19] sm:$0x7]
      %v3603 = vld [vmem:[%s3486 + $0x21] sm:$0xff]
      %v3604 = vld [vmem:[%s3486 + $0x29] sm:$0x7]
      %v3605 = vld [vmem:[%s3486 + $0x31] sm:$0xff]
      %v3606 = vld [vmem:[%s3486 + $0x39] sm:$0x7]
      %v3607 = vld [vmem:[%s3486 + $0x41] sm:$0xff]
      %v3608 = vld [vmem:[%s3486 + $0x49] sm:$0x7]
      %v3609 = vld [vmem:[%s3486 + $0x51] sm:$0xff]
      %v3610 = vld [vmem:[%s3486 + $0x59] sm:$0x7]
      %v3611 = vld [vmem:[%s3486 + $0x61] sm:$0xff]
      %v3612 = vld [vmem:[%s3486 + $0x69] sm:$0x7]
      %v3613 = vld [vmem:[%s3486 + $0x71] sm:$0xff]
      %v3614 = vld [vmem:[%s3486 + $0x79] sm:$0x7]
      %v3615 = vld [vmem:[%s3486 + $0x81] sm:$0xff]
      %v3616 = vld [vmem:[%s3486 + $0x89] sm:$0x7]
      %v3617 = vld [vmem:[%s3486 + $0x91] sm:$0xff]
      %v3618 = vld [vmem:[%s3486 + $0x99] sm:$0x7]
      %v3619 = vld [vmem:[%s3486 + $0xa1] sm:$0xff]
      %v3620 = vld [vmem:[%s3486 + $0xa9] sm:$0x7]
      %v3621 = vld [vmem:[%s153 + $0x1f] sm:$0x1]
      %v3622 = vperm.slane %v3621, 0
      %v3623 = vmul.f32 %v3599, %v3622
      %v3624 = vmul.f32 %v3600, %v3622
      %v3625 = vmul.f32 %v3601, %v3622
      %v3626 = vmul.f32 %v3602, %v3622
      %v3627 = vmul.f32 %v3603, %v3622
      %v3628 = vmul.f32 %v3604, %v3622
      %v3629 = vmul.f32 %v3605, %v3622
      %v3630 = vmul.f32 %v3606, %v3622
      %v3631 = vmul.f32 %v3607, %v3622
      %v3632 = vmul.f32 %v3608, %v3622
      %v3633 = vmul.f32 %v3609, %v3622
      %v3634 = vmul.f32 %v3610, %v3622
      %v3635 = vmul.f32 %v3611, %v3622
      %v3636 = vmul.f32 %v3612, %v3622
      %v3637 = vmul.f32 %v3613, %v3622
      %v3638 = vmul.f32 %v3614, %v3622
      %v3639 = vmul.f32 %v3615, %v3622
      %v3640 = vmul.f32 %v3616, %v3622
      %v3641 = vmul.f32 %v3617, %v3622
      %v3642 = vmul.f32 %v3618, %v3622
      %v3643 = vmul.f32 %v3619, %v3622
      %v3644 = vmul.f32 %v3620, %v3622
      %v3645 = vld [vmem:[#allocation2] sm:$0xff]
      %v3646 = vld [vmem:[#allocation2 + $0x8] sm:$0x7]
      %v3647 = vld [vmem:[#allocation2 + $0x10] sm:$0xff]
      %v3648 = vld [vmem:[#allocation2 + $0x18] sm:$0x7]
      %v3649 = vld [vmem:[#allocation2 + $0x20] sm:$0xff]
      %v3650 = vld [vmem:[#allocation2 + $0x28] sm:$0x7]
      %v3651 = vld [vmem:[#allocation2 + $0x30] sm:$0xff]
      %v3652 = vld [vmem:[#allocation2 + $0x38] sm:$0x7]
      %v3653 = vld [vmem:[#allocation2 + $0x40] sm:$0xff]
      %v3654 = vld [vmem:[#allocation2 + $0x48] sm:$0x7]
      %v3655 = vld [vmem:[#allocation2 + $0x50] sm:$0xff]
      %v3656 = vld [vmem:[#allocation2 + $0x58] sm:$0x7]
      %v3657 = vld [vmem:[#allocation2 + $0x60] sm:$0xff]
      %v3658 = vld [vmem:[#allocation2 + $0x68] sm:$0x7]
      %v3659 = vld [vmem:[#allocation2 + $0x70] sm:$0xff]
      %v3660 = vld [vmem:[#allocation2 + $0x78] sm:$0x7]
      %v3661 = vld [vmem:[#allocation2 + $0x80] sm:$0xff]
      %v3662 = vld [vmem:[#allocation2 + $0x88] sm:$0x7]
      %v3663 = vld [vmem:[#allocation2 + $0x90] sm:$0xff]
      %v3664 = vld [vmem:[#allocation2 + $0x98] sm:$0x7]
      %v3665 = vld [vmem:[#allocation2 + $0xa0] sm:$0xff]
      %v3666 = vld [vmem:[#allocation2 + $0xa8] sm:$0x7]
      %v3667 = vadd.f32 %v3645, %v3623
      %v3668 = vadd.f32 %v3646, %v3624
      %v3669 = vadd.f32 %v3647, %v3625
      %v3670 = vadd.f32 %v3648, %v3626
      %v3671 = vadd.f32 %v3649, %v3627
      %v3672 = vadd.f32 %v3650, %v3628
      %v3673 = vadd.f32 %v3651, %v3629
      %v3674 = vadd.f32 %v3652, %v3630
      %v3675 = vadd.f32 %v3653, %v3631
      %v3676 = vadd.f32 %v3654, %v3632
      %v3677 = vadd.f32 %v3655, %v3633
      %v3678 = vadd.f32 %v3656, %v3634
      %v3679 = vadd.f32 %v3657, %v3635
      %v3680 = vadd.f32 %v3658, %v3636
      %v3681 = vadd.f32 %v3659, %v3637
      %v3682 = vadd.f32 %v3660, %v3638
      %v3683 = vadd.f32 %v3661, %v3639
      %v3684 = vadd.f32 %v3662, %v3640
      %v3685 = vadd.f32 %v3663, %v3641
      %v3686 = vadd.f32 %v3664, %v3642
      %v3687 = vadd.f32 %v3665, %v3643
      %v3688 = vadd.f32 %v3666, %v3644
      %3689 = vst.msk [vmem:[#allocation2] sm:$0xff] %vm210, %v3667
      %3690 = vst.msk [vmem:[#allocation2 + $0x8] sm:$0x7] %vm212, %v3668
      %3691 = vst.msk [vmem:[#allocation2 + $0x10] sm:$0xff] %vm210, %v3669
      %3692 = vst.msk [vmem:[#allocation2 + $0x18] sm:$0x7] %vm212, %v3670
      %3693 = vst.msk [vmem:[#allocation2 + $0x20] sm:$0xff] %vm210, %v3671
      %3694 = vst.msk [vmem:[#allocation2 + $0x28] sm:$0x7] %vm212, %v3672
      %3695 = vst.msk [vmem:[#allocation2 + $0x30] sm:$0xff] %vm210, %v3673
      %3696 = vst.msk [vmem:[#allocation2 + $0x38] sm:$0x7] %vm212, %v3674
      %3697 = vst.msk [vmem:[#allocation2 + $0x40] sm:$0xff] %vm210, %v3675
      %3698 = vst.msk [vmem:[#allocation2 + $0x48] sm:$0x7] %vm212, %v3676
      %3699 = vst.msk [vmem:[#allocation2 + $0x50] sm:$0xff] %vm210, %v3677
      %3700 = vst.msk [vmem:[#allocation2 + $0x58] sm:$0x7] %vm212, %v3678
      %3701 = vst.msk [vmem:[#allocation2 + $0x60] sm:$0xff] %vm210, %v3679
      %3702 = vst.msk [vmem:[#allocation2 + $0x68] sm:$0x7] %vm212, %v3680
      %3703 = vst.msk [vmem:[#allocation2 + $0x70] sm:$0xff] %vm210, %v3681
      %3704 = vst.msk [vmem:[#allocation2 + $0x78] sm:$0x7] %vm212, %v3682
      %3705 = vst.msk [vmem:[#allocation2 + $0x80] sm:$0xff] %vm210, %v3683
      %3706 = vst.msk [vmem:[#allocation2 + $0x88] sm:$0x7] %vm212, %v3684
      %3707 = vst.msk [vmem:[#allocation2 + $0x90] sm:$0xff] %vm210, %v3685
      %3708 = vst.msk [vmem:[#allocation2 + $0x98] sm:$0x7] %vm212, %v3686
      %3709 = vst.msk [vmem:[#allocation2 + $0xa0] sm:$0xff] %vm210, %v3687
      %3710 = vst.msk [vmem:[#allocation2 + $0xa8] sm:$0x7] %vm212, %v3688
      %v3711 = vld [vmem:[%s3486 + $0x2] sm:$0xff]
      %v3712 = vld [vmem:[%s3486 + $0xa] sm:$0x7]
      %v3713 = vld [vmem:[%s3486 + $0x12] sm:$0xff]
      %v3714 = vld [vmem:[%s3486 + $0x1a] sm:$0x7]
      %v3715 = vld [vmem:[%s3486 + $0x22] sm:$0xff]
      %v3716 = vld [vmem:[%s3486 + $0x2a] sm:$0x7]
      %v3717 = vld [vmem:[%s3486 + $0x32] sm:$0xff]
      %v3718 = vld [vmem:[%s3486 + $0x3a] sm:$0x7]
      %v3719 = vld [vmem:[%s3486 + $0x42] sm:$0xff]
      %v3720 = vld [vmem:[%s3486 + $0x4a] sm:$0x7]
      %v3721 = vld [vmem:[%s3486 + $0x52] sm:$0xff]
      %v3722 = vld [vmem:[%s3486 + $0x5a] sm:$0x7]
      %v3723 = vld [vmem:[%s3486 + $0x62] sm:$0xff]
      %v3724 = vld [vmem:[%s3486 + $0x6a] sm:$0x7]
      %v3725 = vld [vmem:[%s3486 + $0x72] sm:$0xff]
      %v3726 = vld [vmem:[%s3486 + $0x7a] sm:$0x7]
      %v3727 = vld [vmem:[%s3486 + $0x82] sm:$0xff]
      %v3728 = vld [vmem:[%s3486 + $0x8a] sm:$0x7]
      %v3729 = vld [vmem:[%s3486 + $0x92] sm:$0xff]
      %v3730 = vld [vmem:[%s3486 + $0x9a] sm:$0x7]
      %v3731 = vld [vmem:[%s3486 + $0xa2] sm:$0xff]
      %v3732 = vld [vmem:[%s3486 + $0xaa] sm:$0x7]
      %v3733 = vld [vmem:[%s153 + $0x20] sm:$0x1]
      %v3734 = vperm.slane %v3733, 0
      %v3735 = vmul.f32 %v3711, %v3734
      %v3736 = vmul.f32 %v3712, %v3734
      %v3737 = vmul.f32 %v3713, %v3734
      %v3738 = vmul.f32 %v3714, %v3734
      %v3739 = vmul.f32 %v3715, %v3734
      %v3740 = vmul.f32 %v3716, %v3734
      %v3741 = vmul.f32 %v3717, %v3734
      %v3742 = vmul.f32 %v3718, %v3734
      %v3743 = vmul.f32 %v3719, %v3734
      %v3744 = vmul.f32 %v3720, %v3734
      %v3745 = vmul.f32 %v3721, %v3734
      %v3746 = vmul.f32 %v3722, %v3734
      %v3747 = vmul.f32 %v3723, %v3734
      %v3748 = vmul.f32 %v3724, %v3734
      %v3749 = vmul.f32 %v3725, %v3734
      %v3750 = vmul.f32 %v3726, %v3734
      %v3751 = vmul.f32 %v3727, %v3734
      %v3752 = vmul.f32 %v3728, %v3734
      %v3753 = vmul.f32 %v3729, %v3734
      %v3754 = vmul.f32 %v3730, %v3734
      %v3755 = vmul.f32 %v3731, %v3734
      %v3756 = vmul.f32 %v3732, %v3734
      %v3757 = vld [vmem:[#allocation2] sm:$0xff]
      %v3758 = vld [vmem:[#allocation2 + $0x8] sm:$0x7]
      %v3759 = vld [vmem:[#allocation2 + $0x10] sm:$0xff]
      %v3760 = vld [vmem:[#allocation2 + $0x18] sm:$0x7]
      %v3761 = vld [vmem:[#allocation2 + $0x20] sm:$0xff]
      %v3762 = vld [vmem:[#allocation2 + $0x28] sm:$0x7]
      %v3763 = vld [vmem:[#allocation2 + $0x30] sm:$0xff]
      %v3764 = vld [vmem:[#allocation2 + $0x38] sm:$0x7]
      %v3765 = vld [vmem:[#allocation2 + $0x40] sm:$0xff]
      %v3766 = vld [vmem:[#allocation2 + $0x48] sm:$0x7]
      %v3767 = vld [vmem:[#allocation2 + $0x50] sm:$0xff]
      %v3768 = vld [vmem:[#allocation2 + $0x58] sm:$0x7]
      %v3769 = vld [vmem:[#allocation2 + $0x60] sm:$0xff]
      %v3770 = vld [vmem:[#allocation2 + $0x68] sm:$0x7]
      %v3771 = vld [vmem:[#allocation2 + $0x70] sm:$0xff]
      %v3772 = vld [vmem:[#allocation2 + $0x78] sm:$0x7]
      %v3773 = vld [vmem:[#allocation2 + $0x80] sm:$0xff]
      %v3774 = vld [vmem:[#allocation2 + $0x88] sm:$0x7]
      %v3775 = vld [vmem:[#allocation2 + $0x90] sm:$0xff]
      %v3776 = vld [vmem:[#allocation2 + $0x98] sm:$0x7]
      %v3777 = vld [vmem:[#allocation2 + $0xa0] sm:$0xff]
      %v3778 = vld [vmem:[#allocation2 + $0xa8] sm:$0x7]
      %v3779 = vadd.f32 %v3757, %v3735
      %v3780 = vadd.f32 %v3758, %v3736
      %v3781 = vadd.f32 %v3759, %v3737
      %v3782 = vadd.f32 %v3760, %v3738
      %v3783 = vadd.f32 %v3761, %v3739
      %v3784 = vadd.f32 %v3762, %v3740
      %v3785 = vadd.f32 %v3763, %v3741
      %v3786 = vadd.f32 %v3764, %v3742
      %v3787 = vadd.f32 %v3765, %v3743
      %v3788 = vadd.f32 %v3766, %v3744
      %v3789 = vadd.f32 %v3767, %v3745
      %v3790 = vadd.f32 %v3768, %v3746
      %v3791 = vadd.f32 %v3769, %v3747
      %v3792 = vadd.f32 %v3770, %v3748
      %v3793 = vadd.f32 %v3771, %v3749
      %v3794 = vadd.f32 %v3772, %v3750
      %v3795 = vadd.f32 %v3773, %v3751
      %v3796 = vadd.f32 %v3774, %v3752
      %v3797 = vadd.f32 %v3775, %v3753
      %v3798 = vadd.f32 %v3776, %v3754
      %v3799 = vadd.f32 %v3777, %v3755
      %v3800 = vadd.f32 %v3778, %v3756
      %3801 = vst.msk [vmem:[#allocation2] sm:$0xff] %vm210, %v3779
      %3802 = vst.msk [vmem:[#allocation2 + $0x8] sm:$0x7] %vm212, %v3780
      %3803 = vst.msk [vmem:[#allocation2 + $0x10] sm:$0xff] %vm210, %v3781
      %3804 = vst.msk [vmem:[#allocation2 + $0x18] sm:$0x7] %vm212, %v3782
      %3805 = vst.msk [vmem:[#allocation2 + $0x20] sm:$0xff] %vm210, %v3783
      %3806 = vst.msk [vmem:[#allocation2 + $0x28] sm:$0x7] %vm212, %v3784
      %3807 = vst.msk [vmem:[#allocation2 + $0x30] sm:$0xff] %vm210, %v3785
      %3808 = vst.msk [vmem:[#allocation2 + $0x38] sm:$0x7] %vm212, %v3786
      %3809 = vst.msk [vmem:[#allocation2 + $0x40] sm:$0xff] %vm210, %v3787
      %3810 = vst.msk [vmem:[#allocation2 + $0x48] sm:$0x7] %vm212, %v3788
      %3811 = vst.msk [vmem:[#allocation2 + $0x50] sm:$0xff] %vm210, %v3789
      %3812 = vst.msk [vmem:[#allocation2 + $0x58] sm:$0x7] %vm212, %v3790
      %3813 = vst.msk [vmem:[#allocation2 + $0x60] sm:$0xff] %vm210, %v3791
      %3814 = vst.msk [vmem:[#allocation2 + $0x68] sm:$0x7] %vm212, %v3792
      %3815 = vst.msk [vmem:[#allocation2 + $0x70] sm:$0xff] %vm210, %v3793
      %3816 = vst.msk [vmem:[#allocation2 + $0x78] sm:$0x7] %vm212, %v3794
      %3817 = vst.msk [vmem:[#allocation2 + $0x80] sm:$0xff] %vm210, %v3795
      %3818 = vst.msk [vmem:[#allocation2 + $0x88] sm:$0x7] %vm212, %v3796
      %3819 = vst.msk [vmem:[#allocation2 + $0x90] sm:$0xff] %vm210, %v3797
      %3820 = vst.msk [vmem:[#allocation2 + $0x98] sm:$0x7] %vm212, %v3798
      %3821 = vst.msk [vmem:[#allocation2 + $0xa0] sm:$0xff] %vm210, %v3799
      %3822 = vst.msk [vmem:[#allocation2 + $0xa8] sm:$0x7] %vm212, %v3800
      %v3823 = vld [vmem:[%s3486 + $0x3] sm:$0xff]
      %v3824 = vld [vmem:[%s3486 + $0xb] sm:$0x7]
      %v3825 = vld [vmem:[%s3486 + $0x13] sm:$0xff]
      %v3826 = vld [vmem:[%s3486 + $0x1b] sm:$0x7]
      %v3827 = vld [vmem:[%s3486 + $0x23] sm:$0xff]
      %v3828 = vld [vmem:[%s3486 + $0x2b] sm:$0x7]
      %v3829 = vld [vmem:[%s3486 + $0x33] sm:$0xff]
      %v3830 = vld [vmem:[%s3486 + $0x3b] sm:$0x7]
      %v3831 = vld [vmem:[%s3486 + $0x43] sm:$0xff]
      %v3832 = vld [vmem:[%s3486 + $0x4b] sm:$0x7]
      %v3833 = vld [vmem:[%s3486 + $0x53] sm:$0xff]
      %v3834 = vld [vmem:[%s3486 + $0x5b] sm:$0x7]
      %v3835 = vld [vmem:[%s3486 + $0x63] sm:$0xff]
      %v3836 = vld [vmem:[%s3486 + $0x6b] sm:$0x7]
      %v3837 = vld [vmem:[%s3486 + $0x73] sm:$0xff]
      %v3838 = vld [vmem:[%s3486 + $0x7b] sm:$0x7]
      %v3839 = vld [vmem:[%s3486 + $0x83] sm:$0xff]
      %v3840 = vld [vmem:[%s3486 + $0x8b] sm:$0x7]
      %v3841 = vld [vmem:[%s3486 + $0x93] sm:$0xff]
      %v3842 = vld [vmem:[%s3486 + $0x9b] sm:$0x7]
      %v3843 = vld [vmem:[%s3486 + $0xa3] sm:$0xff]
      %v3844 = vld [vmem:[%s3486 + $0xab] sm:$0x7]
      %v3845 = vld [vmem:[%s153 + $0x21] sm:$0x1]
      %v3846 = vperm.slane %v3845, 0
      %v3847 = vmul.f32 %v3823, %v3846
      %v3848 = vmul.f32 %v3824, %v3846
      %v3849 = vmul.f32 %v3825, %v3846
      %v3850 = vmul.f32 %v3826, %v3846
      %v3851 = vmul.f32 %v3827, %v3846
      %v3852 = vmul.f32 %v3828, %v3846
      %v3853 = vmul.f32 %v3829, %v3846
      %v3854 = vmul.f32 %v3830, %v3846
      %v3855 = vmul.f32 %v3831, %v3846
      %v3856 = vmul.f32 %v3832, %v3846
      %v3857 = vmul.f32 %v3833, %v3846
      %v3858 = vmul.f32 %v3834, %v3846
      %v3859 = vmul.f32 %v3835, %v3846
      %v3860 = vmul.f32 %v3836, %v3846
      %v3861 = vmul.f32 %v3837, %v3846
      %v3862 = vmul.f32 %v3838, %v3846
      %v3863 = vmul.f32 %v3839, %v3846
      %v3864 = vmul.f32 %v3840, %v3846
      %v3865 = vmul.f32 %v3841, %v3846
      %v3866 = vmul.f32 %v3842, %v3846
      %v3867 = vmul.f32 %v3843, %v3846
      %v3868 = vmul.f32 %v3844, %v3846
      %v3869 = vld [vmem:[#allocation2] sm:$0xff]
      %v3870 = vld [vmem:[#allocation2 + $0x8] sm:$0x7]
      %v3871 = vld [vmem:[#allocation2 + $0x10] sm:$0xff]
      %v3872 = vld [vmem:[#allocation2 + $0x18] sm:$0x7]
      %v3873 = vld [vmem:[#allocation2 + $0x20] sm:$0xff]
      %v3874 = vld [vmem:[#allocation2 + $0x28] sm:$0x7]
      %v3875 = vld [vmem:[#allocation2 + $0x30] sm:$0xff]
      %v3876 = vld [vmem:[#allocation2 + $0x38] sm:$0x7]
      %v3877 = vld [vmem:[#allocation2 + $0x40] sm:$0xff]
      %v3878 = vld [vmem:[#allocation2 + $0x48] sm:$0x7]
      %v3879 = vld [vmem:[#allocation2 + $0x50] sm:$0xff]
      %v3880 = vld [vmem:[#allocation2 + $0x58] sm:$0x7]
      %v3881 = vld [vmem:[#allocation2 + $0x60] sm:$0xff]
      %v3882 = vld [vmem:[#allocation2 + $0x68] sm:$0x7]
      %v3883 = vld [vmem:[#allocation2 + $0x70] sm:$0xff]
      %v3884 = vld [vmem:[#allocation2 + $0x78] sm:$0x7]
      %v3885 = vld [vmem:[#allocation2 + $0x80] sm:$0xff]
      %v3886 = vld [vmem:[#allocation2 + $0x88] sm:$0x7]
      %v3887 = vld [vmem:[#allocation2 + $0x90] sm:$0xff]
      %v3888 = vld [vmem:[#allocation2 + $0x98] sm:$0x7]
      %v3889 = vld [vmem:[#allocation2 + $0xa0] sm:$0xff]
      %v3890 = vld [vmem:[#allocation2 + $0xa8] sm:$0x7]
      %v3891 = vadd.f32 %v3869, %v3847
      %v3892 = vadd.f32 %v3870, %v3848
      %v3893 = vadd.f32 %v3871, %v3849
      %v3894 = vadd.f32 %v3872, %v3850
      %v3895 = vadd.f32 %v3873, %v3851
      %v3896 = vadd.f32 %v3874, %v3852
      %v3897 = vadd.f32 %v3875, %v3853
      %v3898 = vadd.f32 %v3876, %v3854
      %v3899 = vadd.f32 %v3877, %v3855
      %v3900 = vadd.f32 %v3878, %v3856
      %v3901 = vadd.f32 %v3879, %v3857
      %v3902 = vadd.f32 %v3880, %v3858
      %v3903 = vadd.f32 %v3881, %v3859
      %v3904 = vadd.f32 %v3882, %v3860
      %v3905 = vadd.f32 %v3883, %v3861
      %v3906 = vadd.f32 %v3884, %v3862
      %v3907 = vadd.f32 %v3885, %v3863
      %v3908 = vadd.f32 %v3886, %v3864
      %v3909 = vadd.f32 %v3887, %v3865
      %v3910 = vadd.f32 %v3888, %v3866
      %v3911 = vadd.f32 %v3889, %v3867
      %v3912 = vadd.f32 %v3890, %v3868
      %3913 = vst.msk [vmem:[#allocation2] sm:$0xff] %vm210, %v3891
      %3914 = vst.msk [vmem:[#allocation2 + $0x8] sm:$0x7] %vm212, %v3892
      %3915 = vst.msk [vmem:[#allocation2 + $0x10] sm:$0xff] %vm210, %v3893
      %3916 = vst.msk [vmem:[#allocation2 + $0x18] sm:$0x7] %vm212, %v3894
      %3917 = vst.msk [vmem:[#allocation2 + $0x20] sm:$0xff] %vm210, %v3895
      %3918 = vst.msk [vmem:[#allocation2 + $0x28] sm:$0x7] %vm212, %v3896
      %3919 = vst.msk [vmem:[#allocation2 + $0x30] sm:$0xff] %vm210, %v3897
      %3920 = vst.msk [vmem:[#allocation2 + $0x38] sm:$0x7] %vm212, %v3898
      %3921 = vst.msk [vmem:[#allocation2 + $0x40] sm:$0xff] %vm210, %v3899
      %3922 = vst.msk [vmem:[#allocation2 + $0x48] sm:$0x7] %vm212, %v3900
      %3923 = vst.msk [vmem:[#allocation2 + $0x50] sm:$0xff] %vm210, %v3901
      %3924 = vst.msk [vmem:[#allocation2 + $0x58] sm:$0x7] %vm212, %v3902
      %3925 = vst.msk [vmem:[#allocation2 + $0x60] sm:$0xff] %vm210, %v3903
      %3926 = vst.msk [vmem:[#allocation2 + $0x68] sm:$0x7] %vm212, %v3904
      %3927 = vst.msk [vmem:[#allocation2 + $0x70] sm:$0xff] %vm210, %v3905
      %3928 = vst.msk [vmem:[#allocation2 + $0x78] sm:$0x7] %vm212, %v3906
      %3929 = vst.msk [vmem:[#allocation2 + $0x80] sm:$0xff] %vm210, %v3907
      %3930 = vst.msk [vmem:[#allocation2 + $0x88] sm:$0x7] %vm212, %v3908
      %3931 = vst.msk [vmem:[#allocation2 + $0x90] sm:$0xff] %vm210, %v3909
      %3932 = vst.msk [vmem:[#allocation2 + $0x98] sm:$0x7] %vm212, %v3910
      %3933 = vst.msk [vmem:[#allocation2 + $0xa0] sm:$0xff] %vm210, %v3911
      %3934 = vst.msk [vmem:[#allocation2 + $0xa8] sm:$0x7] %vm212, %v3912
      %v3935 = vld [vmem:[%s3486 + $0x4] sm:$0xff]
      %v3936 = vld [vmem:[%s3486 + $0xc] sm:$0x7]
      %v3937 = vld [vmem:[%s3486 + $0x14] sm:$0xff]
      %v3938 = vld [vmem:[%s3486 + $0x1c] sm:$0x7]
      %v3939 = vld [vmem:[%s3486 + $0x24] sm:$0xff]
      %v3940 = vld [vmem:[%s3486 + $0x2c] sm:$0x7]
      %v3941 = vld [vmem:[%s3486 + $0x34] sm:$0xff]
      %v3942 = vld [vmem:[%s3486 + $0x3c] sm:$0x7]
      %v3943 = vld [vmem:[%s3486 + $0x44] sm:$0xff]
      %v3944 = vld [vmem:[%s3486 + $0x4c] sm:$0x7]
      %v3945 = vld [vmem:[%s3486 + $0x54] sm:$0xff]
      %v3946 = vld [vmem:[%s3486 + $0x5c] sm:$0x7]
      %v3947 = vld [vmem:[%s3486 + $0x64] sm:$0xff]
      %v3948 = vld [vmem:[%s3486 + $0x6c] sm:$0x7]
      %v3949 = vld [vmem:[%s3486 + $0x74] sm:$0xff]
      %v3950 = vld [vmem:[%s3486 + $0x7c] sm:$0x7]
      %v3951 = vld [vmem:[%s3486 + $0x84] sm:$0xff]
      %v3952 = vld [vmem:[%s3486 + $0x8c] sm:$0x7]
      %v3953 = vld [vmem:[%s3486 + $0x94] sm:$0xff]
      %v3954 = vld [vmem:[%s3486 + $0x9c] sm:$0x7]
      %v3955 = vld [vmem:[%s3486 + $0xa4] sm:$0xff]
      %v3956 = vld [vmem:[%s3486 + $0xac] sm:$0x7]
      %v3957 = vld [vmem:[%s153 + $0x22] sm:$0x1]
      %v3958 = vperm.slane %v3957, 0
      %v3959 = vmul.f32 %v3935, %v3958
      %v3960 = vmul.f32 %v3936, %v3958
      %v3961 = vmul.f32 %v3937, %v3958
      %v3962 = vmul.f32 %v3938, %v3958
      %v3963 = vmul.f32 %v3939, %v3958
      %v3964 = vmul.f32 %v3940, %v3958
      %v3965 = vmul.f32 %v3941, %v3958
      %v3966 = vmul.f32 %v3942, %v3958
      %v3967 = vmul.f32 %v3943, %v3958
      %v3968 = vmul.f32 %v3944, %v3958
      %v3969 = vmul.f32 %v3945, %v3958
      %v3970 = vmul.f32 %v3946, %v3958
      %v3971 = vmul.f32 %v3947, %v3958
      %v3972 = vmul.f32 %v3948, %v3958
      %v3973 = vmul.f32 %v3949, %v3958
      %v3974 = vmul.f32 %v3950, %v3958
      %v3975 = vmul.f32 %v3951, %v3958
      %v3976 = vmul.f32 %v3952, %v3958
      %v3977 = vmul.f32 %v3953, %v3958
      %v3978 = vmul.f32 %v3954, %v3958
      %v3979 = vmul.f32 %v3955, %v3958
      %v3980 = vmul.f32 %v3956, %v3958
      %v3981 = vld [vmem:[#allocation2] sm:$0xff]
      %v3982 = vld [vmem:[#allocation2 + $0x8] sm:$0x7]
      %v3983 = vld [vmem:[#allocation2 + $0x10] sm:$0xff]
      %v3984 = vld [vmem:[#allocation2 + $0x18] sm:$0x7]
      %v3985 = vld [vmem:[#allocation2 + $0x20] sm:$0xff]
      %v3986 = vld [vmem:[#allocation2 + $0x28] sm:$0x7]
      %v3987 = vld [vmem:[#allocation2 + $0x30] sm:$0xff]
      %v3988 = vld [vmem:[#allocation2 + $0x38] sm:$0x7]
      %v3989 = vld [vmem:[#allocation2 + $0x40] sm:$0xff]
      %v3990 = vld [vmem:[#allocation2 + $0x48] sm:$0x7]
      %v3991 = vld [vmem:[#allocation2 + $0x50] sm:$0xff]
      %v3992 = vld [vmem:[#allocation2 + $0x58] sm:$0x7]
      %v3993 = vld [vmem:[#allocation2 + $0x60] sm:$0xff]
      %v3994 = vld [vmem:[#allocation2 + $0x68] sm:$0x7]
      %v3995 = vld [vmem:[#allocation2 + $0x70] sm:$0xff]
      %v3996 = vld [vmem:[#allocation2 + $0x78] sm:$0x7]
      %v3997 = vld [vmem:[#allocation2 + $0x80] sm:$0xff]
      %v3998 = vld [vmem:[#allocation2 + $0x88] sm:$0x7]
      %v3999 = vld [vmem:[#allocation2 + $0x90] sm:$0xff]
      %v4000 = vld [vmem:[#allocation2 + $0x98] sm:$0x7]
      %v4001 = vld [vmem:[#allocation2 + $0xa0] sm:$0xff]
      %v4002 = vld [vmem:[#allocation2 + $0xa8] sm:$0x7]
      %v4003 = vadd.f32 %v3981, %v3959
      %v4004 = vadd.f32 %v3982, %v3960
      %v4005 = vadd.f32 %v3983, %v3961
      %v4006 = vadd.f32 %v3984, %v3962
      %v4007 = vadd.f32 %v3985, %v3963
      %v4008 = vadd.f32 %v3986, %v3964
      %v4009 = vadd.f32 %v3987, %v3965
      %v4010 = vadd.f32 %v3988, %v3966
      %v4011 = vadd.f32 %v3989, %v3967
      %v4012 = vadd.f32 %v3990, %v3968
      %v4013 = vadd.f32 %v3991, %v3969
      %v4014 = vadd.f32 %v3992, %v3970
      %v4015 = vadd.f32 %v3993, %v3971
      %v4016 = vadd.f32 %v3994, %v3972
      %v4017 = vadd.f32 %v3995, %v3973
      %v4018 = vadd.f32 %v3996, %v3974
      %v4019 = vadd.f32 %v3997, %v3975
      %v4020 = vadd.f32 %v3998, %v3976
      %v4021 = vadd.f32 %v3999, %v3977
      %v4022 = vadd.f32 %v4000, %v3978
      %v4023 = vadd.f32 %v4001, %v3979
      %v4024 = vadd.f32 %v4002, %v3980
      %4025 = vst.msk [vmem:[#allocation2] sm:$0xff] %vm210, %v4003
      %4026 = vst.msk [vmem:[#allocation2 + $0x8] sm:$0x7] %vm212, %v4004
      %4027 = vst.msk [vmem:[#allocation2 + $0x10] sm:$0xff] %vm210, %v4005
      %4028 = vst.msk [vmem:[#allocation2 + $0x18] sm:$0x7] %vm212, %v4006
      %4029 = vst.msk [vmem:[#allocation2 + $0x20] sm:$0xff] %vm210, %v4007
      %4030 = vst.msk [vmem:[#allocation2 + $0x28] sm:$0x7] %vm212, %v4008
      %4031 = vst.msk [vmem:[#allocation2 + $0x30] sm:$0xff] %vm210, %v4009
      %4032 = vst.msk [vmem:[#allocation2 + $0x38] sm:$0x7] %vm212, %v4010
      %4033 = vst.msk [vmem:[#allocation2 + $0x40] sm:$0xff] %vm210, %v4011
      %4034 = vst.msk [vmem:[#allocation2 + $0x48] sm:$0x7] %vm212, %v4012
      %4035 = vst.msk [vmem:[#allocation2 + $0x50] sm:$0xff] %vm210, %v4013
      %4036 = vst.msk [vmem:[#allocation2 + $0x58] sm:$0x7] %vm212, %v4014
      %4037 = vst.msk [vmem:[#allocation2 + $0x60] sm:$0xff] %vm210, %v4015
      %4038 = vst.msk [vmem:[#allocation2 + $0x68] sm:$0x7] %vm212, %v4016
      %4039 = vst.msk [vmem:[#allocation2 + $0x70] sm:$0xff] %vm210, %v4017
      %4040 = vst.msk [vmem:[#allocation2 + $0x78] sm:$0x7] %vm212, %v4018
      %4041 = vst.msk [vmem:[#allocation2 + $0x80] sm:$0xff] %vm210, %v4019
      %4042 = vst.msk [vmem:[#allocation2 + $0x88] sm:$0x7] %vm212, %v4020
      %4043 = vst.msk [vmem:[#allocation2 + $0x90] sm:$0xff] %vm210, %v4021
      %4044 = vst.msk [vmem:[#allocation2 + $0x98] sm:$0x7] %vm212, %v4022
      %4045 = vst.msk [vmem:[#allocation2 + $0xa0] sm:$0xff] %vm210, %v4023
      %4046 = vst.msk [vmem:[#allocation2 + $0xa8] sm:$0x7] %vm212, %v4024
      %v4047 = vld [vmem:[%s3486 + $0x5] sm:$0xff]
      %v4048 = vld [vmem:[%s3486 + $0xd] sm:$0x7]
      %v4049 = vld [vmem:[%s3486 + $0x15] sm:$0xff]
      %v4050 = vld [vmem:[%s3486 + $0x1d] sm:$0x7]
      %v4051 = vld [vmem:[%s3486 + $0x25] sm:$0xff]
      %v4052 = vld [vmem:[%s3486 + $0x2d] sm:$0x7]
      %v4053 = vld [vmem:[%s3486 + $0x35] sm:$0xff]
      %v4054 = vld [vmem:[%s3486 + $0x3d] sm:$0x7]
      %v4055 = vld [vmem:[%s3486 + $0x45] sm:$0xff]
      %v4056 = vld [vmem:[%s3486 + $0x4d] sm:$0x7]
      %v4057 = vld [vmem:[%s3486 + $0x55] sm:$0xff]
      %v4058 = vld [vmem:[%s3486 + $0x5d] sm:$0x7]
      %v4059 = vld [vmem:[%s3486 + $0x65] sm:$0xff]
      %v4060 = vld [vmem:[%s3486 + $0x6d] sm:$0x7]
      %v4061 = vld [vmem:[%s3486 + $0x75] sm:$0xff]
      %v4062 = vld [vmem:[%s3486 + $0x7d] sm:$0x7]
      %v4063 = vld [vmem:[%s3486 + $0x85] sm:$0xff]
      %v4064 = vld [vmem:[%s3486 + $0x8d] sm:$0x7]
      %v4065 = vld [vmem:[%s3486 + $0x95] sm:$0xff]
      %v4066 = vld [vmem:[%s3486 + $0x9d] sm:$0x7]
      %v4067 = vld [vmem:[%s3486 + $0xa5] sm:$0xff]
      %v4068 = vld [vmem:[%s3486 + $0xad] sm:$0x7]
      %v4069 = vld [vmem:[%s153 + $0x23] sm:$0x1]
      %v4070 = vperm.slane %v4069, 0
      %v4071 = vmul.f32 %v4047, %v4070
      %v4072 = vmul.f32 %v4048, %v4070
      %v4073 = vmul.f32 %v4049, %v4070
      %v4074 = vmul.f32 %v4050, %v4070
      %v4075 = vmul.f32 %v4051, %v4070
      %v4076 = vmul.f32 %v4052, %v4070
      %v4077 = vmul.f32 %v4053, %v4070
      %v4078 = vmul.f32 %v4054, %v4070
      %v4079 = vmul.f32 %v4055, %v4070
      %v4080 = vmul.f32 %v4056, %v4070
      %v4081 = vmul.f32 %v4057, %v4070
      %v4082 = vmul.f32 %v4058, %v4070
      %v4083 = vmul.f32 %v4059, %v4070
      %v4084 = vmul.f32 %v4060, %v4070
      %v4085 = vmul.f32 %v4061, %v4070
      %v4086 = vmul.f32 %v4062, %v4070
      %v4087 = vmul.f32 %v4063, %v4070
      %v4088 = vmul.f32 %v4064, %v4070
      %v4089 = vmul.f32 %v4065, %v4070
      %v4090 = vmul.f32 %v4066, %v4070
      %v4091 = vmul.f32 %v4067, %v4070
      %v4092 = vmul.f32 %v4068, %v4070
      %v4093 = vld [vmem:[#allocation2] sm:$0xff]
      %v4094 = vld [vmem:[#allocation2 + $0x8] sm:$0x7]
      %v4095 = vld [vmem:[#allocation2 + $0x10] sm:$0xff]
      %v4096 = vld [vmem:[#allocation2 + $0x18] sm:$0x7]
      %v4097 = vld [vmem:[#allocation2 + $0x20] sm:$0xff]
      %v4098 = vld [vmem:[#allocation2 + $0x28] sm:$0x7]
      %v4099 = vld [vmem:[#allocation2 + $0x30] sm:$0xff]
      %v4100 = vld [vmem:[#allocation2 + $0x38] sm:$0x7]
      %v4101 = vld [vmem:[#allocation2 + $0x40] sm:$0xff]
      %v4102 = vld [vmem:[#allocation2 + $0x48] sm:$0x7]
      %v4103 = vld [vmem:[#allocation2 + $0x50] sm:$0xff]
      %v4104 = vld [vmem:[#allocation2 + $0x58] sm:$0x7]
      %v4105 = vld [vmem:[#allocation2 + $0x60] sm:$0xff]
      %v4106 = vld [vmem:[#allocation2 + $0x68] sm:$0x7]
      %v4107 = vld [vmem:[#allocation2 + $0x70] sm:$0xff]
      %v4108 = vld [vmem:[#allocation2 + $0x78] sm:$0x7]
      %v4109 = vld [vmem:[#allocation2 + $0x80] sm:$0xff]
      %v4110 = vld [vmem:[#allocation2 + $0x88] sm:$0x7]
      %v4111 = vld [vmem:[#allocation2 + $0x90] sm:$0xff]
      %v4112 = vld [vmem:[#allocation2 + $0x98] sm:$0x7]
      %v4113 = vld [vmem:[#allocation2 + $0xa0] sm:$0xff]
      %v4114 = vld [vmem:[#allocation2 + $0xa8] sm:$0x7]
      %v4115 = vadd.f32 %v4093, %v4071
      %v4116 = vadd.f32 %v4094, %v4072
      %v4117 = vadd.f32 %v4095, %v4073
      %v4118 = vadd.f32 %v4096, %v4074
      %v4119 = vadd.f32 %v4097, %v4075
      %v4120 = vadd.f32 %v4098, %v4076
      %v4121 = vadd.f32 %v4099, %v4077
      %v4122 = vadd.f32 %v4100, %v4078
      %v4123 = vadd.f32 %v4101, %v4079
      %v4124 = vadd.f32 %v4102, %v4080
      %v4125 = vadd.f32 %v4103, %v4081
      %v4126 = vadd.f32 %v4104, %v4082
      %v4127 = vadd.f32 %v4105, %v4083
      %v4128 = vadd.f32 %v4106, %v4084
      %v4129 = vadd.f32 %v4107, %v4085
      %v4130 = vadd.f32 %v4108, %v4086
      %v4131 = vadd.f32 %v4109, %v4087
      %v4132 = vadd.f32 %v4110, %v4088
      %v4133 = vadd.f32 %v4111, %v4089
      %v4134 = vadd.f32 %v4112, %v4090
      %v4135 = vadd.f32 %v4113, %v4091
      %v4136 = vadd.f32 %v4114, %v4092
      %4137 = vst.msk [vmem:[#allocation2] sm:$0xff] %vm210, %v4115
      %4138 = vst.msk [vmem:[#allocation2 + $0x8] sm:$0x7] %vm212, %v4116
      %4139 = vst.msk [vmem:[#allocation2 + $0x10] sm:$0xff] %vm210, %v4117
      %4140 = vst.msk [vmem:[#allocation2 + $0x18] sm:$0x7] %vm212, %v4118
      %4141 = vst.msk [vmem:[#allocation2 + $0x20] sm:$0xff] %vm210, %v4119
      %4142 = vst.msk [vmem:[#allocation2 + $0x28] sm:$0x7] %vm212, %v4120
      %4143 = vst.msk [vmem:[#allocation2 + $0x30] sm:$0xff] %vm210, %v4121
      %4144 = vst.msk [vmem:[#allocation2 + $0x38] sm:$0x7] %vm212, %v4122
      %4145 = vst.msk [vmem:[#allocation2 + $0x40] sm:$0xff] %vm210, %v4123
      %4146 = vst.msk [vmem:[#allocation2 + $0x48] sm:$0x7] %vm212, %v4124
      %4147 = vst.msk [vmem:[#allocation2 + $0x50] sm:$0xff] %vm210, %v4125
      %4148 = vst.msk [vmem:[#allocation2 + $0x58] sm:$0x7] %vm212, %v4126
      %4149 = vst.msk [vmem:[#allocation2 + $0x60] sm:$0xff] %vm210, %v4127
      %4150 = vst.msk [vmem:[#allocation2 + $0x68] sm:$0x7] %vm212, %v4128
      %4151 = vst.msk [vmem:[#allocation2 + $0x70] sm:$0xff] %vm210, %v4129
      %4152 = vst.msk [vmem:[#allocation2 + $0x78] sm:$0x7] %vm212, %v4130
      %4153 = vst.msk [vmem:[#allocation2 + $0x80] sm:$0xff] %vm210, %v4131
      %4154 = vst.msk [vmem:[#allocation2 + $0x88] sm:$0x7] %vm212, %v4132
      %4155 = vst.msk [vmem:[#allocation2 + $0x90] sm:$0xff] %vm210, %v4133
      %4156 = vst.msk [vmem:[#allocation2 + $0x98] sm:$0x7] %vm212, %v4134
      %4157 = vst.msk [vmem:[#allocation2 + $0xa0] sm:$0xff] %vm210, %v4135
      %4158 = vst.msk [vmem:[#allocation2 + $0xa8] sm:$0x7] %vm212, %v4136
      %v4159 = vld [vmem:[#allocation2] sm:$0xff]
      %v4160 = vld [vmem:[#allocation2 + $0x8] sm:$0x7]
      %v4161 = vld [vmem:[#allocation2 + $0x10] sm:$0xff]
      %v4162 = vld [vmem:[#allocation2 + $0x18] sm:$0x7]
      %v4163 = vld [vmem:[#allocation2 + $0x20] sm:$0xff]
      %v4164 = vld [vmem:[#allocation2 + $0x28] sm:$0x7]
      %v4165 = vld [vmem:[#allocation2 + $0x30] sm:$0xff]
      %v4166 = vld [vmem:[#allocation2 + $0x38] sm:$0x7]
      %v4167 = vld [vmem:[#allocation2 + $0x40] sm:$0xff]
      %v4168 = vld [vmem:[#allocation2 + $0x48] sm:$0x7]
      %v4169 = vld [vmem:[#allocation2 + $0x50] sm:$0xff]
      %v4170 = vld [vmem:[#allocation2 + $0x58] sm:$0x7]
      %v4171 = vld [vmem:[#allocation2 + $0x60] sm:$0xff]
      %v4172 = vld [vmem:[#allocation2 + $0x68] sm:$0x7]
      %v4173 = vld [vmem:[#allocation2 + $0x70] sm:$0xff]
      %v4174 = vld [vmem:[#allocation2 + $0x78] sm:$0x7]
      %v4175 = vld [vmem:[#allocation2 + $0x80] sm:$0xff]
      %v4176 = vld [vmem:[#allocation2 + $0x88] sm:$0x7]
      %v4177 = vld [vmem:[#allocation2 + $0x90] sm:$0xff]
      %v4178 = vld [vmem:[#allocation2 + $0x98] sm:$0x7]
      %v4179 = vld [vmem:[#allocation2 + $0xa0] sm:$0xff]
      %v4180 = vld [vmem:[#allocation2 + $0xa8] sm:$0x7]
      %v4181 = vsel %vm210, %v4159, 0.0
      %4182 = vadd.xlane.f32.xlu0 %v4181
      %v4183 = vpop.xlane.xlu0 %4182
      %v4184 = vsel %vm212, %v4160, 0.0
      %4185 = vadd.xlane.f32.xlu0 %v4184
      %v4186 = vpop.xlane.xlu0 %4185
      %v4187 = vsel %vm210, %v4161, 0.0
      %4188 = vadd.xlane.f32.xlu0 %v4187
      %v4189 = vpop.xlane.xlu0 %4188
      %v4190 = vsel %vm212, %v4162, 0.0
      %4191 = vadd.xlane.f32.xlu0 %v4190
      %v4192 = vpop.xlane.xlu0 %4191
      %v4193 = vsel %vm210, %v4163, 0.0
      %4194 = vadd.xlane.f32.xlu0 %v4193
      %v4195 = vpop.xlane.xlu0 %4194
      %v4196 = vsel %vm212, %v4164, 0.0
      %4197 = vadd.xlane.f32.xlu0 %v4196
      %v4198 = vpop.xlane.xlu0 %4197
      %v4199 = vsel %vm210, %v4165, 0.0
      %4200 = vadd.xlane.f32.xlu0 %v4199
      %v4201 = vpop.xlane.xlu0 %4200
      %v4202 = vsel %vm212, %v4166, 0.0
      %4203 = vadd.xlane.f32.xlu0 %v4202
      %v4204 = vpop.xlane.xlu0 %4203
      %v4205 = vsel %vm210, %v4167, 0.0
      %4206 = vadd.xlane.f32.xlu0 %v4205
      %v4207 = vpop.xlane.xlu0 %4206
      %v4208 = vsel %vm212, %v4168, 0.0
      %4209 = vadd.xlane.f32.xlu0 %v4208
      %v4210 = vpop.xlane.xlu0 %4209
      %v4211 = vsel %vm210, %v4169, 0.0
      %4212 = vadd.xlane.f32.xlu0 %v4211
      %v4213 = vpop.xlane.xlu0 %4212
      %v4214 = vsel %vm212, %v4170, 0.0
      %4215 = vadd.xlane.f32.xlu0 %v4214
      %v4216 = vpop.xlane.xlu0 %4215
      %v4217 = vsel %vm210, %v4171, 0.0
      %4218 = vadd.xlane.f32.xlu0 %v4217
      %v4219 = vpop.xlane.xlu0 %4218
      %v4220 = vsel %vm212, %v4172, 0.0
      %4221 = vadd.xlane.f32.xlu0 %v4220
      %v4222 = vpop.xlane.xlu0 %4221
      %v4223 = vsel %vm210, %v4173, 0.0
      %4224 = vadd.xlane.f32.xlu0 %v4223
      %v4225 = vpop.xlane.xlu0 %4224
      %v4226 = vsel %vm212, %v4174, 0.0
      %4227 = vadd.xlane.f32.xlu0 %v4226
      %v4228 = vpop.xlane.xlu0 %4227
      %v4229 = vsel %vm210, %v4175, 0.0
      %4230 = vadd.xlane.f32.xlu0 %v4229
      %v4231 = vpop.xlane.xlu0 %4230
      %v4232 = vsel %vm212, %v4176, 0.0
      %4233 = vadd.xlane.f32.xlu0 %v4232
      %v4234 = vpop.xlane.xlu0 %4233
      %v4235 = vsel %vm210, %v4177, 0.0
      %4236 = vadd.xlane.f32.xlu0 %v4235
      %v4237 = vpop.xlane.xlu0 %4236
      %v4238 = vsel %vm212, %v4178, 0.0
      %4239 = vadd.xlane.f32.xlu0 %v4238
      %v4240 = vpop.xlane.xlu0 %4239
      %v4241 = vsel %vm210, %v4179, 0.0
      %4242 = vadd.xlane.f32.xlu0 %v4241
      %v4243 = vpop.xlane.xlu0 %4242
      %v4244 = vsel %vm212, %v4180, 0.0
      %4245 = vadd.xlane.f32.xlu0 %v4244
      %v4246 = vpop.xlane.xlu0 %4245
      %v4247 = vmul.f32 %v4183, 0.001
      %v4248 = vmul.f32 %v4186, 0.001
      %v4249 = vmul.f32 %v4189, 0.001
      %v4250 = vmul.f32 %v4192, 0.001
      %v4251 = vmul.f32 %v4195, 0.001
      %v4252 = vmul.f32 %v4198, 0.001
      %v4253 = vmul.f32 %v4201, 0.001
      %v4254 = vmul.f32 %v4204, 0.001
      %v4255 = vmul.f32 %v4207, 0.001
      %v4256 = vmul.f32 %v4210, 0.001
      %v4257 = vmul.f32 %v4213, 0.001
      %v4258 = vmul.f32 %v4216, 0.001
      %v4259 = vmul.f32 %v4219, 0.001
      %v4260 = vmul.f32 %v4222, 0.001
      %v4261 = vmul.f32 %v4225, 0.001
      %v4262 = vmul.f32 %v4228, 0.001
      %v4263 = vmul.f32 %v4231, 0.001
      %v4264 = vmul.f32 %v4234, 0.001
      %v4265 = vmul.f32 %v4237, 0.001
      %v4266 = vmul.f32 %v4240, 0.001
      %v4267 = vmul.f32 %v4243, 0.001
      %v4268 = vmul.f32 %v4246, 0.001
      %v4291 = vlaneseq
      %v4292 = vand.u32 %v4291, 127
      %v4293 = vperm.slane %v4247, %v4292
      %v4294 = vadd.s32 %v4292, 4294967288
      %v4295 = vperm.slane %v4248, %v4294
      %vm4296 = vcmask 130112
      %v4297 = vsel %vm4296, %v4295, %v4293
      %v4298 = vperm.slane %v4249, %v4292
      %v4299 = vperm.slane %v4250, %v4294
      %v4300 = vsel %vm4296, %v4299, %v4298
      %v4301 = vperm.slane %v4251, %v4292
      %v4302 = vperm.slane %v4252, %v4294
      %v4303 = vsel %vm4296, %v4302, %v4301
      %v4304 = vperm.slane %v4253, %v4292
      %v4305 = vperm.slane %v4254, %v4294
      %v4306 = vsel %vm4296, %v4305, %v4304
      %v4307 = vperm.slane %v4255, %v4292
      %v4308 = vperm.slane %v4256, %v4294
      %v4309 = vsel %vm4296, %v4308, %v4307
      %v4310 = vperm.slane %v4257, %v4292
      %v4311 = vperm.slane %v4258, %v4294
      %v4312 = vsel %vm4296, %v4311, %v4310
      %v4313 = vperm.slane %v4259, %v4292
      %v4314 = vperm.slane %v4260, %v4294
      %v4315 = vsel %vm4296, %v4314, %v4313
      %v4316 = vperm.slane %v4261, %v4292
      %v4317 = vperm.slane %v4262, %v4294
      %v4318 = vsel %vm4296, %v4317, %v4316
      %v4319 = vperm.slane %v4263, %v4292
      %v4320 = vperm.slane %v4264, %v4294
      %v4321 = vsel %vm4296, %v4320, %v4319
      %v4322 = vperm.slane %v4265, %v4292
      %v4323 = vperm.slane %v4266, %v4294
      %v4324 = vsel %vm4296, %v4323, %v4322
      %v4325 = vperm.slane %v4267, %v4292
      %v4326 = vperm.slane %v4268, %v4294
      %v4327 = vsel %vm4296, %v4326, %v4325
      %vm4328 = vcmask 1041409
      %v4329 = vsel %vm4328, %v4300, %v4297
      %vm4330 = vcmask 1042434
      %v4331 = vsel %vm4330, %v4303, %v4329
      %vm4332 = vcmask 1043459
      %v4333 = vsel %vm4332, %v4306, %v4331
      %vm4334 = vcmask 1044484
      %v4335 = vsel %vm4334, %v4309, %v4333
      %vm4336 = vcmask 1045509
      %v4337 = vsel %vm4336, %v4312, %v4335
      %vm4338 = vcmask 1046534
      %v4339 = vsel %vm4338, %v4315, %v4337
      %vm4340 = vcmask 1047559
      %v4341 = vsel %vm4340, %v4318, %v4339
      %v4342 = vsel %vm4328, %v4324, %v4321
      %v4343 = vsel %vm4330, %v4327, %v4342
      %vm4346 = vcmask 89088
      %4347 = vst.msk [vmem:[%s163] sm:$0xff] %vm4346, %v4341
      %vm4348 = vcmask 83968
      %4349 = vst.msk [vmem:[%s163 + $0x8] sm:$0x7] %vm4348, %v4343
      %p4350 = scmp.lt.s32.totalorder %s13, 1
      %s4351 = scalar_select %p4350, %s13, 1
      %s4352 = smul.addr %s4351, 2
      %s4353 = smul.addr %s4352, 8
      %s4354 = scalar_lea.vmem %s2, %s4353
      // Predicated region
      $region29: #{tpu_custom_call.1} parent=27 // pred_check
        %p4355 = pneg %p83
      $region30: #{tpu_custom_call.1} parent=27 // pred_check_branch
        %4357 = sbr.rel (%p4355) target = $region32
      $region31: #{tpu_custom_call.1} parent=27 // pred_region
        _
      $region32: #{tpu_custom_call.1} parent=27 // pred_fallthru
        _
    $region28: #{tpu_custom_call.1} parent=5 // pred_fallthru
      _
    %p4358 = scmp.le.s32.totalorder 2, %s8
    // Predicated region
    $region33: #{tpu_custom_call.1} parent=5 // pred_check
      %p4359 = pneg %p4358
    $region34: #{tpu_custom_call.1} parent=5 // pred_check_branch
      %4361 = sbr.rel (%p4359) target = $region36
    $region35: #{tpu_custom_call.1} parent=5 // pred_region
      %s4362 = ssub.s32 %s8, 2
      // Predicated region
      $region37: #{tpu_custom_call.1} parent=35 // pred_check
        %p4363 = pneg %p89
      $region38: #{tpu_custom_call.1} parent=35 // pred_check_branch
        %4365 = sbr.rel (%p4363) target = $region40
      $region39: #{tpu_custom_call.1} parent=35 // pred_region
        %p4366 = scmp.lt.s32.totalorder %s14, 1
        %s4367 = scalar_select %p4366, %s14, 1
        %s4368 = smul.addr %s4367, 2
        %s4369 = smul.addr %s4368, 8
        %s4370 = scalar_lea.vmem %s2, %s4369
      $region40: #{tpu_custom_call.1} parent=35 // pred_fallthru
        _
    $region36: #{tpu_custom_call.1} parent=5 // pred_fallthru
      _
  $region6: #{tpu_custom_call.1} parent=0 // loop_footer
    %s12 = sadd.s32 1, %s8
  $region7: #{tpu_custom_call.1} parent=0 // loop_footer_branch
    %7 = sbr.rel target = $region3
  $region8: #{tpu_custom_call.1} parent=0 // loop_exit
    _

</llo_original>
